<compile_context>
chip_gen: v7x
topology: tpu7x:2x2x1
jax: 0.10.0
libtpu: 0.0.40
codegen_flags: <defaults>
</compile_context>

<pallas_src>
import math
from functools import partial

import numpy as np
import jax
import jax.numpy as jnp
from jax.experimental import pallas as pl
from jax.experimental.pallas import tpu as pltpu

_EPS = 1e-5
_LANES = 128


def _round_up(x, m):
    return (x + m - 1) // m * m


def _mish(v, *, approx_recip=False):
    """mish(v) = v*tanh(softplus(v)) = v*n/(n+2), n = t*(t+2), t = exp(v)."""
    t = jnp.exp(jnp.minimum(v, 20.0))      # for v>=20 mish(v)==v to f32 precision
    n = t * (t + 2.0)
    if approx_recip:
        return v * n * pl.reciprocal(n + 2.0, approx=True)   # relative error only
    return v * n / (n + 2.0)


def _conv3x3_packed(xv, w, oh, ow):
    """3x3 'valid' conv of xv (B, ih, iw, Cp) -> (B, oh, ow, Cp) f32 accumulator.

    w is (3*Cp, 3*Cp) bf16 with rows = (dy, ci) and cols = (dx, co): the dy taps are
    packed into the contraction axis, so the whole conv is ONE bf16 MXU matmul with
    K = 3*Cp (>= 384) — the 256-deep v6e/v7x reduce dim is fully used.  dx taps are
    realigned afterwards with 128-aligned lane slices + two sublane-offset slices.
    """
    b, ih, iw, cp = xv.shape
    # dy-shifted row slabs concatenated along lanes (all slices are 128-lane aligned;
    # the row shifts are on a non-minor dim and are free).
    lhs = jnp.concatenate([xv[:, dy:dy + oh] for dy in range(3)], axis=-1)  # (b,oh,iw,3Cp)
    big = jnp.dot(lhs.reshape(b * oh * iw, 3 * cp).astype(jnp.bfloat16), w,
                  preferred_element_type=jnp.float32).reshape(b, oh, iw, 3 * cp)
    return (big[:, :, 0:ow, 0:cp]
            + big[:, :, 1:1 + ow, cp:2 * cp]
            + big[:, :, 2:2 + ow, 2 * cp:3 * cp])


def _stats(acc_f32, inv_cnt):
    """Per-grid-step (sum, centered M2) over all but the channel axis (f32)."""
    s = jnp.sum(acc_f32, axis=(0, 1, 2), keepdims=True)          # (1,1,1,Cp)
    d = acc_f32 - s * inv_cnt
    m2 = jnp.sum(d * d, axis=(0, 1, 2), keepdims=True)
    return s[0], m2[0]                                           # (1,1,Cp) each


def _conv1_kernel(x_ref, w_ref, y_ref, s_ref, m2_ref, *, H, W):
    # x_ref: (B, H+4, Wi, Cp) bf16, zero-padded by 2; y_ref: (B, GH, GW, Cp) bf16 conv1
    # evaluated on the padded grid (interior [1:H+1, 1:W+1] are the real outputs).
    # Conv bias omitted: training-mode BN cancels it exactly.
    bb, gh, gw, cp = y_ref.shape
    acc = _conv3x3_packed(x_ref[...], w_ref[...], gh, gw)        # f32 accumulator
    y_ref[...] = acc.astype(y_ref.dtype)                         # bf16 intermediate
    inter = acc[:, 1:H + 1, 1:W + 1, :]
    s, m2 = _stats(inter, 1.0 / float(bb * H * W))
    s_ref[...] = s
    m2_ref[...] = m2


def _conv2_kernel(y1_ref, sc_ref, sh_ref, w_ref, y2_ref, s_ref, m2_ref, *, H, W):
    # BN1 (pre-folded scale/shift) + Mish; the 1-element ring (the 'same' padding of
    # conv2) is zeroed with an in-kernel iota mask — no lane-sparse HBM mask input.
    bb, gh, gw, cp = y1_ref.shape
    v = y1_ref[...].astype(jnp.float32) * sc_ref[...] + sh_ref[...]
    h = _mish(v)
    row = jax.lax.broadcasted_iota(jnp.int32, (bb, gh, gw, cp), 1)
    col = jax.lax.broadcasted_iota(jnp.int32, (bb, gh, gw, cp), 2)
    keep = (row >= 1) & (row <= H) & (col >= 1) & (col <= W)
    h = jnp.where(keep, h, 0.0)
    acc = _conv3x3_packed(h, w_ref[...], H, W)
    y2_ref[...] = acc.astype(y2_ref.dtype)                       # bf16 intermediate
    s, m2 = _stats(acc, 1.0 / float(bb * H * W))
    s_ref[...] = s
    m2_ref[...] = m2


def _finalize_kernel(y2_ref, x_ref, sc_ref, sh_ref, o_ref, *, H, W):
    # BN2 (folded scale/shift) + residual + Mish.  The residual is the interior of the
    # same padded input slab that pass 1 consumed (no duplicate residual copy in HBM).
    res = x_ref[...][:, 2:2 + H, 2:2 + W, :].astype(jnp.float32)
    v = y2_ref[...].astype(jnp.float32) * sc_ref[...] + sh_ref[...] + res
    o_ref[...] = _mish(v, approx_recip=True)


def _images_per_step(n, per_image_bytes, budget=8 << 20):
    """Largest divisor of n whose per-step bytes fit `budget`, keeping >=2 grid steps
    (when n >= 2) so v7x megacore can split the batch across both TensorCores."""
    best = 1
    for b in range(1, n + 1):
        if n % b:
            continue
        if b * per_image_bytes > budget:
            break
        if n >= 2 and n // b < 2:
            continue
        best = b
    return best


def resblock_pallas(x_nchw, params):
    """ResBlock forward with training-mode BatchNorm semantics (NCHW in/out)."""
    x = jnp.transpose(x_nchw, (0, 2, 3, 1)).astype(jnp.float32)          # NCHW -> NHWC
    N, H, W, C = x.shape
    Cp = _round_up(C, _LANES)                 # lane-dense channel axis
    GH = H + 2                                # conv grid = 'same'-padded spatial extent
    GW = _round_up(W + 2, 8)                  # ... width rounded for (8,128) tiling
    Wi = _round_up(GW + 2, 8)                 # conv1 input width (1-tap halo each side)
    HI = H + 4

    # -------- wrapper-side layout glue (single padded slab, packed weights) --------
    # One bf16 padded copy of x: conv1 input AND pass-3 residual (interior slice).
    xpad = jnp.pad(x, ((0, 0), (2, HI - H - 2), (2, Wi - W - 2), (0, Cp - C))
                   ).astype(jnp.bfloat16)

    def prep_w(w):  # (3,3,C,C) -> (3*Cp, 3*Cp) bf16, rows=(dy,ci), cols=(dx,co)
        w = jnp.pad(w.astype(jnp.float32), ((0, 0), (0, 0), (0, Cp - C), (0, Cp - C)))
        return jnp.transpose(w, (0, 2, 1, 3)).reshape(3 * Cp, 3 * Cp).astype(jnp.bfloat16)

    def prep_v(v):  # (1, C) -> (1, 1, Cp) f32
        return jnp.pad(v.astype(jnp.float32).reshape(1, -1),
                       ((0, 0), (0, Cp - C))).reshape(1, 1, Cp)

    w1p, w2p = prep_w(params["w1"]), prep_w(params["w2"])
    g1, be1 = prep_v(params["g1"]), prep_v(params["be1"])
    g2, be2 = prep_v(params["g2"]), prep_v(params["be2"])
    # conv biases b1/b2 intentionally unused: batch-stat BN cancels them exactly.

    # Batch-block size: pack several small images per grid step (pipeline depth / per-step
    # bytes), bounded by a conservative VMEM budget; keep >=2 steps for v7x megacore.
    per_img = ((HI * Wi + GH * GW + H * W) * Cp * 2        # bf16 in/out blocks
               + GH * Wi * 3 * Cp * 6)                     # bf16 lhs + f32 matmul result
    B = _images_per_step(N, per_img)
    steps = N // B

    cparams = pltpu.CompilerParams(dimension_semantics=("parallel",))

    def img_spec(shape):          # one batch-block per grid step
        return pl.BlockSpec((B,) + shape, lambda n: (n,) + (0,) * len(shape))

    def const_spec(shape):        # small constant operand, same block every step
        return pl.BlockSpec(shape, lambda n: (0,) * len(shape))

    stat_sds = jax.ShapeDtypeStruct((steps, 1, Cp), jnp.float32)
    stat_spec = pl.BlockSpec((1, 1, Cp), lambda n: (n, 0, 0))

    # ---- pass 1: conv1 on the padded grid (bf16 out) + per-step BN1 stats ----
    y1, s1, m21 = pl.pallas_call(
        partial(_conv1_kernel, H=H, W=W),
        grid=(steps,),
        in_specs=[img_spec((HI, Wi, Cp)), const_spec((3 * Cp, 3 * Cp))],
        out_specs=(img_spec((GH, GW, Cp)), stat_spec, stat_spec),
        out_shape=(jax.ShapeDtypeStruct((N, GH, GW, Cp), jnp.bfloat16), stat_sds, stat_sds),
        compiler_params=cparams,
    )(xpad, w1p)

    cnt_step = float(B * H * W)
    total = float(steps) * cnt_step

    def bn_fold(s, m2, gamma, beta):   # O(C) glue: Chan-combine group stats -> scale/shift
        mu = jnp.sum(s, axis=0, keepdims=True) / total                      # (1,1,Cp)
        mean_g = s / cnt_step                                               # (steps,1,Cp)
        between = jnp.sum((mean_g - mu) ** 2, axis=0, keepdims=True) * cnt_step
        var = jnp.maximum((jnp.sum(m2, axis=0, keepdims=True) + between) / total, 0.0)
        scale = gamma * jax.lax.rsqrt(var + _EPS)
        return scale, beta - mu * scale

    sc1, sh1 = bn_fold(s1, m21, g1, be1)

    # ---- pass 2: BN1 + Mish (iota ring mask) -> conv2 (bf16 out) + BN2 stats ----
    y2, s2, m22 = pl.pallas_call(
        partial(_conv2_kernel, H=H, W=W),
        grid=(steps,),
        in_specs=[img_spec((GH, GW, Cp)), const_spec((1, 1, Cp)), const_spec((1, 1, Cp)),
                  const_spec((3 * Cp, 3 * Cp))],
        out_specs=(img_spec((H, W, Cp)), stat_spec, stat_spec),
        out_shape=(jax.ShapeDtypeStruct((N, H, W, Cp), jnp.bfloat16), stat_sds, stat_sds),
        compiler_params=cparams,
    )(y1, sc1, sh1, w2p)

    sc2, sh2 = bn_fold(s2, m22, g2, be2)

    # ---- pass 3: BN2 + residual (interior of xpad) + Mish ----
    out = pl.pallas_call(
        partial(_finalize_kernel, H=H, W=W),
        grid=(steps,),
        in_specs=[img_spec((H, W, Cp)), img_spec((HI, Wi, Cp)),
                  const_spec((1, 1, Cp)), const_spec((1, 1, Cp))],
        out_specs=img_spec((H, W, Cp)),
        out_shape=jax.ShapeDtypeStruct((N, H, W, Cp), jnp.float32),
        compiler_params=cparams,
    )(y2, xpad, sc2, sh2)

    return jnp.transpose(out[..., :C], (0, 3, 1, 2))                       # NHWC -> NCHW


# ----------------------------- pure-JAX reference -----------------------------
def resblock_reference(x_nchw, params):
    x = jnp.transpose(x_nchw, (0, 2, 3, 1)).astype(jnp.float32)

    def conv(h, w, b):
        y = jax.lax.conv_general_dilated(
            h, w, window_strides=(1, 1), padding="SAME",
            dimension_numbers=("NHWC", "HWIO", "NHWC"))
        return y + b.reshape(1, 1, 1, -1)

    def bn(y, g, be):
        mu = jnp.mean(y, axis=(0, 1, 2), keepdims=True)
        var = jnp.mean((y - mu) ** 2, axis=(0, 1, 2), keepdims=True)
        return (y - mu) / jnp.sqrt(var + _EPS) * g.reshape(1, 1, 1, -1) + be.reshape(1, 1, 1, -1)

    def mish(v):
        return v * jnp.tanh(jax.nn.softplus(v))

    h = mish(bn(conv(x, params["w1"], params["b1"]), params["g1"], params["be1"]))
    h = bn(conv(h, params["w2"], params["b2"]), params["g2"], params["be2"])
    out = mish(h + x)
    return jnp.transpose(out, (0, 3, 1, 2))


def init_params(key, c):
    ks = jax.random.split(key, 8)
    bound = 1.0 / math.sqrt(c * 9)                                   # Conv2d default init scale
    return {
        "w1": jax.random.uniform(ks[0], (3, 3, c, c), jnp.float32, -bound, bound),
        "b1": jax.random.uniform(ks[1], (1, c), jnp.float32, -bound, bound),
        "g1": jax.random.uniform(ks[2], (1, c), jnp.float32, 0.5, 1.5),
        "be1": jax.random.uniform(ks[3], (1, c), jnp.float32, -0.1, 0.1),
        "w2": jax.random.uniform(ks[4], (3, 3, c, c), jnp.float32, -bound, bound),
        "b2": jax.random.uniform(ks[5], (1, c), jnp.float32, -bound, bound),
        "g2": jax.random.uniform(ks[6], (1, c), jnp.float32, 0.5, 1.5),
        "be2": jax.random.uniform(ks[7], (1, c), jnp.float32, -0.1, 0.1),
    }


if __name__ == "__main__":
    key = jax.random.PRNGKey(0)
    kx, kp = jax.random.split(key)
    N, C, H, W = 2, 8, 16, 16                                        # PyTorch-style NCHW input
    x = jax.random.normal(kx, (N, C, H, W), jnp.float32)
    params = init_params(kp, C)

    out = jax.block_until_ready(jax.jit(resblock_pallas)(x, params))
    ref = jax.block_until_ready(resblock_reference(x, params))
    # bf16 intermediates / MXU operands: tolerance loosened from 1e-2 to 2e-2.
    np.testing.assert_allclose(np.asarray(out), np.asarray(ref), atol=2e-2, rtol=2e-2)
    print("KERNEL_OK")
</pallas_src>

<mosaic_0001>
module attributes {stable_mosaic.version = 11 : i64} {
  func.func @_conv2_kernel(%arg0: i32, %arg1: memref<1x18x24x128xbf16, #tpu.memory_space<vmem>>, %arg2: memref<1x1x128xf32, #tpu.memory_space<vmem>>, %arg3: memref<1x1x128xf32, #tpu.memory_space<vmem>>, %arg4: memref<384x384xbf16, #tpu.memory_space<vmem>>, %arg5: memref<1x16x16x128xbf16, #tpu.memory_space<vmem>>, %arg6: memref<1x1x128xf32, #tpu.memory_space<vmem>>, %arg7: memref<1x1x128xf32, #tpu.memory_space<vmem>>) attributes {dimension_semantics = [#tpu.dimension_semantics<parallel>], iteration_bounds = array<i64: 2>, scalar_prefetch = 0 : i64, scratch_operands = 0 : i64, tpu.core_type = #tpu.core_type<tc>, window_params = [{transform_indices = @transform_0, window_bounds = array<i64: 1, 18, 24, 128>}, {pipeline_mode = #tpu.pipeline_mode<synchronous>, transform_indices = @transform_1, window_bounds = array<i64: 1, 1, 128>}, {pipeline_mode = #tpu.pipeline_mode<synchronous>, transform_indices = @transform_2, window_bounds = array<i64: 1, 1, 128>}, {pipeline_mode = #tpu.pipeline_mode<synchronous>, transform_indices = @transform_3, window_bounds = array<i64: 384, 384>}, {transform_indices = @transform_4, window_bounds = array<i64: 1, 16, 16, 128>}, {transform_indices = @transform_5, window_bounds = array<i64: 1, 1, 128>}, {transform_indices = @transform_6, window_bounds = array<i64: 1, 1, 128>}]} {
    %c0 = arith.constant 0 : index
    %c0_0 = arith.constant 0 : index
    %c0_1 = arith.constant 0 : index
    %c0_2 = arith.constant 0 : index
    %0 = vector.load %arg1[%c0, %c0_0, %c0_1, %c0_2] : memref<1x18x24x128xbf16, #tpu.memory_space<vmem>>, vector<1x18x24x128xbf16>
    %1 = arith.extf %0 : vector<1x18x24x128xbf16> to vector<1x18x24x128xf32>
    %c0_3 = arith.constant 0 : index
    %c0_4 = arith.constant 0 : index
    %c0_5 = arith.constant 0 : index
    %2 = vector.load %arg2[%c0_3, %c0_4, %c0_5] : memref<1x1x128xf32, #tpu.memory_space<vmem>>, vector<1x1x128xf32>
    %3 = vector.shape_cast %2 : vector<1x1x128xf32> to vector<1x1x1x128xf32>
    %4 = vector.broadcast %3 : vector<1x1x1x128xf32> to vector<1x18x24x128xf32>
    %5 = arith.mulf %1, %4 : vector<1x18x24x128xf32>
    %c0_6 = arith.constant 0 : index
    %c0_7 = arith.constant 0 : index
    %c0_8 = arith.constant 0 : index
    %6 = vector.load %arg3[%c0_6, %c0_7, %c0_8] : memref<1x1x128xf32, #tpu.memory_space<vmem>>, vector<1x1x128xf32>
    %7 = vector.shape_cast %6 : vector<1x1x128xf32> to vector<1x1x1x128xf32>
    %8 = vector.broadcast %7 : vector<1x1x1x128xf32> to vector<1x18x24x128xf32>
    %9 = arith.addf %5, %8 : vector<1x18x24x128xf32>
    %cst = arith.constant 2.000000e+01 : f32
    %10 = vector.broadcast %cst : f32 to vector<1x18x24x128xf32>
    %11 = arith.minimumf %9, %10 : vector<1x18x24x128xf32>
    %12 = math.exp %11 : vector<1x18x24x128xf32>
    %cst_9 = arith.constant 2.000000e+00 : f32
    %13 = vector.broadcast %cst_9 : f32 to vector<1x18x24x128xf32>
    %14 = arith.addf %12, %13 : vector<1x18x24x128xf32>
    %15 = arith.mulf %12, %14 : vector<1x18x24x128xf32>
    %16 = arith.mulf %9, %15 : vector<1x18x24x128xf32>
    %cst_10 = arith.constant 2.000000e+00 : f32
    %17 = vector.broadcast %cst_10 : f32 to vector<1x18x24x128xf32>
    %18 = arith.addf %15, %17 : vector<1x18x24x128xf32>
    %19 = arith.divf %16, %18 : vector<1x18x24x128xf32>
    %20 = tpu.iota {dimensions = array<i32: 1>} : vector<1x18x24x128xi32>
    %21 = tpu.iota {dimensions = array<i32: 2>} : vector<1x18x24x128xi32>
    %c1_i32 = arith.constant 1 : i32
    %22 = vector.broadcast %c1_i32 : i32 to vector<1x18x24x128xi32>
    %23 = arith.cmpi sge, %20, %22 : vector<1x18x24x128xi32>
    %c16_i32 = arith.constant 16 : i32
    %24 = vector.broadcast %c16_i32 : i32 to vector<1x18x24x128xi32>
    %25 = arith.cmpi sle, %20, %24 : vector<1x18x24x128xi32>
    %26 = arith.andi %23, %25 : vector<1x18x24x128xi1>
    %c1_i32_11 = arith.constant 1 : i32
    %27 = vector.broadcast %c1_i32_11 : i32 to vector<1x18x24x128xi32>
    %28 = arith.cmpi sge, %21, %27 : vector<1x18x24x128xi32>
    %29 = arith.andi %26, %28 : vector<1x18x24x128xi1>
    %c16_i32_12 = arith.constant 16 : i32
    %30 = vector.broadcast %c16_i32_12 : i32 to vector<1x18x24x128xi32>
    %31 = arith.cmpi sle, %21, %30 : vector<1x18x24x128xi32>
    %32 = arith.andi %29, %31 : vector<1x18x24x128xi1>
    %cst_13 = arith.constant 0.000000e+00 : f32
    %33 = vector.broadcast %cst_13 : f32 to vector<1x18x24x128xf32>
    %34 = arith.select %32, %19, %33 : vector<1x18x24x128xi1>, vector<1x18x24x128xf32>
    %c0_14 = arith.constant 0 : index
    %c0_15 = arith.constant 0 : index
    %35 = vector.load %arg4[%c0_14, %c0_15] : memref<384x384xbf16, #tpu.memory_space<vmem>>, vector<384x384xbf16>
    %36 = vector.extract_strided_slice %34 {offsets = [0, 0, 0, 0], sizes = [1, 16, 24, 128], strides = [1, 1, 1, 1]} : vector<1x18x24x128xf32> to vector<1x16x24x128xf32>
    %37 = vector.extract_strided_slice %34 {offsets = [0, 1, 0, 0], sizes = [1, 16, 24, 128], strides = [1, 1, 1, 1]} : vector<1x18x24x128xf32> to vector<1x16x24x128xf32>
    %38 = vector.extract_strided_slice %34 {offsets = [0, 2, 0, 0], sizes = [1, 16, 24, 128], strides = [1, 1, 1, 1]} : vector<1x18x24x128xf32> to vector<1x16x24x128xf32>
    %39 = tpu.concatenate %36, %37, %38 in 3 : vector<1x16x24x128xf32>, vector<1x16x24x128xf32>, vector<1x16x24x128xf32> -> vector<1x16x24x384xf32>
    %40 = vector.shape_cast %39 : vector<1x16x24x384xf32> to vector<384x384xf32>
    %41 = arith.truncf %40 : vector<384x384xf32> to vector<384x384xbf16>
    %cst_16 = arith.constant dense<0.000000e+00> : vector<384x384xf32>
    %42 = tpu.matmul %41, %35, %cst_16 {dimension_numbers = #tpu.dot_dimension_numbers<[1], [0], [0], [1], [0, 0, 1, 1], [], []>} : vector<384x384xbf16>, vector<384x384xbf16>, vector<384x384xf32> -> vector<384x384xf32>
    %43 = vector.shape_cast %42 : vector<384x384xf32> to vector<1x16x24x384xf32>
    %44 = vector.extract_strided_slice %43 {offsets = [0, 0, 0, 0], sizes = [1, 16, 16, 128], strides = [1, 1, 1, 1]} : vector<1x16x24x384xf32> to vector<1x16x16x128xf32>
    %45 = vector.extract_strided_slice %43 {offsets = [0, 0, 1, 128], sizes = [1, 16, 16, 128], strides = [1, 1, 1, 1]} : vector<1x16x24x384xf32> to vector<1x16x16x128xf32>
    %46 = arith.addf %44, %45 : vector<1x16x16x128xf32>
    %47 = vector.extract_strided_slice %43 {offsets = [0, 0, 2, 256], sizes = [1, 16, 16, 128], strides = [1, 1, 1, 1]} : vector<1x16x24x384xf32> to vector<1x16x16x128xf32>
    %48 = arith.addf %46, %47 : vector<1x16x16x128xf32>
    %49 = arith.truncf %48 : vector<1x16x16x128xf32> to vector<1x16x16x128xbf16>
    %c0_17 = arith.constant 0 : index
    %c0_18 = arith.constant 0 : index
    %c0_19 = arith.constant 0 : index
    %c0_20 = arith.constant 0 : index
    %50 = vector.load %arg5[%c0_17, %c0_18, %c0_19, %c0_20] : memref<1x16x16x128xbf16, #tpu.memory_space<vmem>>, vector<1x16x16x128xbf16>
    tpu.vector_store %arg5[%c0_17, %c0_18, %c0_19, %c0_20], %49 {strides = array<i32>} : memref<1x16x16x128xbf16, #tpu.memory_space<vmem>>, vector<1x16x16x128xbf16>,
    %cst_21 = arith.constant dense<0.000000e+00> : vector<128xf32>
    %51 = vector.multi_reduction <add>, %48, %cst_21 [0, 1, 2] : vector<1x16x16x128xf32> to vector<128xf32>
    %52 = vector.shape_cast %51 : vector<128xf32> to vector<1x1x1x128xf32>
    %cst_22 = arith.constant 3.906250e-03 : f32
    %53 = vector.broadcast %cst_22 : f32 to vector<1x1x1x128xf32>
    %54 = arith.mulf %52, %53 : vector<1x1x1x128xf32>
    %55 = vector.broadcast %54 : vector<1x1x1x128xf32> to vector<1x16x16x128xf32>
    %56 = arith.subf %48, %55 : vector<1x16x16x128xf32>
    %57 = arith.mulf %56, %56 : vector<1x16x16x128xf32>
    %cst_23 = arith.constant dense<0.000000e+00> : vector<128xf32>
    %58 = vector.multi_reduction <add>, %57, %cst_23 [0, 1, 2] : vector<1x16x16x128xf32> to vector<128xf32>
    %59 = vector.shape_cast %58 : vector<128xf32> to vector<1x1x1x128xf32>
    %60 = vector.shape_cast %52 : vector<1x1x1x128xf32> to vector<1x1x128xf32>
    %61 = vector.shape_cast %59 : vector<1x1x1x128xf32> to vector<1x1x128xf32>
    %c0_24 = arith.constant 0 : index
    %c0_25 = arith.constant 0 : index
    %c0_26 = arith.constant 0 : index
    %62 = vector.load %arg6[%c0_24, %c0_25, %c0_26] : memref<1x1x128xf32, #tpu.memory_space<vmem>>, vector<1x1x128xf32>
    tpu.vector_store %arg6[%c0_24, %c0_25, %c0_26], %60 {strides = array<i32>} : memref<1x1x128xf32, #tpu.memory_space<vmem>>, vector<1x1x128xf32>,
    %c0_27 = arith.constant 0 : index
    %c0_28 = arith.constant 0 : index
    %c0_29 = arith.constant 0 : index
    %63 = vector.load %arg7[%c0_27, %c0_28, %c0_29] : memref<1x1x128xf32, #tpu.memory_space<vmem>>, vector<1x1x128xf32>
    tpu.vector_store %arg7[%c0_27, %c0_28, %c0_29], %61 {strides = array<i32>} : memref<1x1x128xf32, #tpu.memory_space<vmem>>, vector<1x1x128xf32>,
    return
  }
  func.func @transform_0(%arg0: i32) -> (i32, i32, i32, i32) {
    %c0_i32 = arith.constant 0 : i32
    %c0_i32_0 = arith.constant 0 : i32
    %c0_i32_1 = arith.constant 0 : i32
    %c0_i32_2 = arith.constant 0 : i32
    return %arg0, %c0_i32, %c0_i32_0, %c0_i32_1 : i32, i32, i32, i32
  }
  func.func @transform_1(%arg0: i32) -> (i32, i32, i32) {
    %c0_i32 = arith.constant 0 : i32
    %c0_i32_0 = arith.constant 0 : i32
    %c0_i32_1 = arith.constant 0 : i32
    %c0_i32_2 = arith.constant 0 : i32
    return %c0_i32, %c0_i32_0, %c0_i32_1 : i32, i32, i32
  }
  func.func @transform_2(%arg0: i32) -> (i32, i32, i32) {
    %c0_i32 = arith.constant 0 : i32
    %c0_i32_0 = arith.constant 0 : i32
    %c0_i32_1 = arith.constant 0 : i32
    %c0_i32_2 = arith.constant 0 : i32
    return %c0_i32, %c0_i32_0, %c0_i32_1 : i32, i32, i32
  }
  func.func @transform_3(%arg0: i32) -> (i32, i32) {
    %c0_i32 = arith.constant 0 : i32
    %c0_i32_0 = arith.constant 0 : i32
    %c0_i32_1 = arith.constant 0 : i32
    return %c0_i32, %c0_i32_0 : i32, i32
  }
  func.func @transform_4(%arg0: i32) -> (i32, i32, i32, i32) {
    %c0_i32 = arith.constant 0 : i32
    %c0_i32_0 = arith.constant 0 : i32
    %c0_i32_1 = arith.constant 0 : i32
    %c0_i32_2 = arith.constant 0 : i32
    return %arg0, %c0_i32, %c0_i32_0, %c0_i32_1 : i32, i32, i32, i32
  }
  func.func @transform_5(%arg0: i32) -> (i32, i32, i32) {
    %c0_i32 = arith.constant 0 : i32
    %c0_i32_0 = arith.constant 0 : i32
    %c0_i32_1 = arith.constant 0 : i32
    return %arg0, %c0_i32, %c0_i32_0 : i32, i32, i32
  }
  func.func @transform_6(%arg0: i32) -> (i32, i32, i32) {
    %c0_i32 = arith.constant 0 : i32
    %c0_i32_0 = arith.constant 0 : i32
    %c0_i32_1 = arith.constant 0 : i32
    return %arg0, %c0_i32, %c0_i32_0 : i32, i32, i32
  }
}

module attributes {stable_mosaic.version = 11 : i64} {
  func.func @_conv1_kernel(%arg0: i32, %arg1: memref<1x20x32x128xbf16, #tpu.memory_space<vmem>>, %arg2: memref<384x384xbf16, #tpu.memory_space<vmem>>, %arg3: memref<1x18x24x128xbf16, #tpu.memory_space<vmem>>, %arg4: memref<1x1x128xf32, #tpu.memory_space<vmem>>, %arg5: memref<1x1x128xf32, #tpu.memory_space<vmem>>) attributes {dimension_semantics = [#tpu.dimension_semantics<parallel>], iteration_bounds = array<i64: 2>, scalar_prefetch = 0 : i64, scratch_operands = 0 : i64, tpu.core_type = #tpu.core_type<tc>, window_params = [{transform_indices = @transform_0, window_bounds = array<i64: 1, 20, 32, 128>}, {pipeline_mode = #tpu.pipeline_mode<synchronous>, transform_indices = @transform_1, window_bounds = array<i64: 384, 384>}, {transform_indices = @transform_2, window_bounds = array<i64: 1, 18, 24, 128>}, {transform_indices = @transform_3, window_bounds = array<i64: 1, 1, 128>}, {transform_indices = @transform_4, window_bounds = array<i64: 1, 1, 128>}]} {
    %c0 = arith.constant 0 : index
    %c0_0 = arith.constant 0 : index
    %c0_1 = arith.constant 0 : index
    %c0_2 = arith.constant 0 : index
    %0 = vector.load %arg1[%c0, %c0_0, %c0_1, %c0_2] : memref<1x20x32x128xbf16, #tpu.memory_space<vmem>>, vector<1x20x32x128xbf16>
    %c0_3 = arith.constant 0 : index
    %c0_4 = arith.constant 0 : index
    %1 = vector.load %arg2[%c0_3, %c0_4] : memref<384x384xbf16, #tpu.memory_space<vmem>>, vector<384x384xbf16>
    %2 = vector.extract_strided_slice %0 {offsets = [0, 0, 0, 0], sizes = [1, 18, 32, 128], strides = [1, 1, 1, 1]} : vector<1x20x32x128xbf16> to vector<1x18x32x128xbf16>
    %3 = vector.extract_strided_slice %0 {offsets = [0, 1, 0, 0], sizes = [1, 18, 32, 128], strides = [1, 1, 1, 1]} : vector<1x20x32x128xbf16> to vector<1x18x32x128xbf16>
    %4 = vector.extract_strided_slice %0 {offsets = [0, 2, 0, 0], sizes = [1, 18, 32, 128], strides = [1, 1, 1, 1]} : vector<1x20x32x128xbf16> to vector<1x18x32x128xbf16>
    %5 = tpu.concatenate %2, %3, %4 in 3 : vector<1x18x32x128xbf16>, vector<1x18x32x128xbf16>, vector<1x18x32x128xbf16> -> vector<1x18x32x384xbf16>
    %6 = vector.shape_cast %5 : vector<1x18x32x384xbf16> to vector<576x384xbf16>
    %cst = arith.constant dense<0.000000e+00> : vector<576x384xf32>
    %7 = tpu.matmul %6, %1, %cst {dimension_numbers = #tpu.dot_dimension_numbers<[1], [0], [0], [1], [0, 0, 1, 1], [], []>} : vector<576x384xbf16>, vector<384x384xbf16>, vector<576x384xf32> -> vector<576x384xf32>
    %8 = vector.shape_cast %7 : vector<576x384xf32> to vector<1x18x32x384xf32>
    %9 = vector.extract_strided_slice %8 {offsets = [0, 0, 0, 0], sizes = [1, 18, 24, 128], strides = [1, 1, 1, 1]} : vector<1x18x32x384xf32> to vector<1x18x24x128xf32>
    %10 = vector.extract_strided_slice %8 {offsets = [0, 0, 1, 128], sizes = [1, 18, 24, 128], strides = [1, 1, 1, 1]} : vector<1x18x32x384xf32> to vector<1x18x24x128xf32>
    %11 = arith.addf %9, %10 : vector<1x18x24x128xf32>
    %12 = vector.extract_strided_slice %8 {offsets = [0, 0, 2, 256], sizes = [1, 18, 24, 128], strides = [1, 1, 1, 1]} : vector<1x18x32x384xf32> to vector<1x18x24x128xf32>
    %13 = arith.addf %11, %12 : vector<1x18x24x128xf32>
    %14 = arith.truncf %13 : vector<1x18x24x128xf32> to vector<1x18x24x128xbf16>
    %c0_5 = arith.constant 0 : index
    %c0_6 = arith.constant 0 : index
    %c0_7 = arith.constant 0 : index
    %c0_8 = arith.constant 0 : index
    %15 = vector.load %arg3[%c0_5, %c0_6, %c0_7, %c0_8] : memref<1x18x24x128xbf16, #tpu.memory_space<vmem>>, vector<1x18x24x128xbf16>
    tpu.vector_store %arg3[%c0_5, %c0_6, %c0_7, %c0_8], %14 {strides = array<i32>} : memref<1x18x24x128xbf16, #tpu.memory_space<vmem>>, vector<1x18x24x128xbf16>,
    %16 = vector.extract_strided_slice %13 {offsets = [0, 1, 1, 0], sizes = [1, 16, 16, 128], strides = [1, 1, 1, 1]} : vector<1x18x24x128xf32> to vector<1x16x16x128xf32>
    %cst_9 = arith.constant dense<0.000000e+00> : vector<128xf32>
    %17 = vector.multi_reduction <add>, %16, %cst_9 [0, 1, 2] : vector<1x16x16x128xf32> to vector<128xf32>
    %18 = vector.shape_cast %17 : vector<128xf32> to vector<1x1x1x128xf32>
    %cst_10 = arith.constant 3.906250e-03 : f32
    %19 = vector.broadcast %cst_10 : f32 to vector<1x1x1x128xf32>
    %20 = arith.mulf %18, %19 : vector<1x1x1x128xf32>
    %21 = vector.broadcast %20 : vector<1x1x1x128xf32> to vector<1x16x16x128xf32>
    %22 = arith.subf %16, %21 : vector<1x16x16x128xf32>
    %23 = arith.mulf %22, %22 : vector<1x16x16x128xf32>
    %cst_11 = arith.constant dense<0.000000e+00> : vector<128xf32>
    %24 = vector.multi_reduction <add>, %23, %cst_11 [0, 1, 2] : vector<1x16x16x128xf32> to vector<128xf32>
    %25 = vector.shape_cast %24 : vector<128xf32> to vector<1x1x1x128xf32>
    %26 = vector.shape_cast %18 : vector<1x1x1x128xf32> to vector<1x1x128xf32>
    %27 = vector.shape_cast %25 : vector<1x1x1x128xf32> to vector<1x1x128xf32>
    %c0_12 = arith.constant 0 : index
    %c0_13 = arith.constant 0 : index
    %c0_14 = arith.constant 0 : index
    %28 = vector.load %arg4[%c0_12, %c0_13, %c0_14] : memref<1x1x128xf32, #tpu.memory_space<vmem>>, vector<1x1x128xf32>
    tpu.vector_store %arg4[%c0_12, %c0_13, %c0_14], %26 {strides = array<i32>} : memref<1x1x128xf32, #tpu.memory_space<vmem>>, vector<1x1x128xf32>,
    %c0_15 = arith.constant 0 : index
    %c0_16 = arith.constant 0 : index
    %c0_17 = arith.constant 0 : index
    %29 = vector.load %arg5[%c0_15, %c0_16, %c0_17] : memref<1x1x128xf32, #tpu.memory_space<vmem>>, vector<1x1x128xf32>
    tpu.vector_store %arg5[%c0_15, %c0_16, %c0_17], %27 {strides = array<i32>} : memref<1x1x128xf32, #tpu.memory_space<vmem>>, vector<1x1x128xf32>,
    return
  }
  func.func @transform_0(%arg0: i32) -> (i32, i32, i32, i32) {
    %c0_i32 = arith.constant 0 : i32
    %c0_i32_0 = arith.constant 0 : i32
    %c0_i32_1 = arith.constant 0 : i32
    %c0_i32_2 = arith.constant 0 : i32
    return %arg0, %c0_i32, %c0_i32_0, %c0_i32_1 : i32, i32, i32, i32
  }
  func.func @transform_1(%arg0: i32) -> (i32, i32) {
    %c0_i32 = arith.constant 0 : i32
    %c0_i32_0 = arith.constant 0 : i32
    %c0_i32_1 = arith.constant 0 : i32
    return %c0_i32, %c0_i32_0 : i32, i32
  }
  func.func @transform_2(%arg0: i32) -> (i32, i32, i32, i32) {
    %c0_i32 = arith.constant 0 : i32
    %c0_i32_0 = arith.constant 0 : i32
    %c0_i32_1 = arith.constant 0 : i32
    %c0_i32_2 = arith.constant 0 : i32
    return %arg0, %c0_i32, %c0_i32_0, %c0_i32_1 : i32, i32, i32, i32
  }
  func.func @transform_3(%arg0: i32) -> (i32, i32, i32) {
    %c0_i32 = arith.constant 0 : i32
    %c0_i32_0 = arith.constant 0 : i32
    %c0_i32_1 = arith.constant 0 : i32
    return %arg0, %c0_i32, %c0_i32_0 : i32, i32, i32
  }
  func.func @transform_4(%arg0: i32) -> (i32, i32, i32) {
    %c0_i32 = arith.constant 0 : i32
    %c0_i32_0 = arith.constant 0 : i32
    %c0_i32_1 = arith.constant 0 : i32
    return %arg0, %c0_i32, %c0_i32_0 : i32, i32, i32
  }
}

module attributes {stable_mosaic.version = 11 : i64} {
  func.func @_finalize_kernel(%arg0: i32, %arg1: memref<1x16x16x128xbf16, #tpu.memory_space<vmem>>, %arg2: memref<1x20x32x128xbf16, #tpu.memory_space<vmem>>, %arg3: memref<1x1x128xf32, #tpu.memory_space<vmem>>, %arg4: memref<1x1x128xf32, #tpu.memory_space<vmem>>, %arg5: memref<1x16x16x128xf32, #tpu.memory_space<vmem>>) attributes {dimension_semantics = [#tpu.dimension_semantics<parallel>], iteration_bounds = array<i64: 2>, scalar_prefetch = 0 : i64, scratch_operands = 0 : i64, tpu.core_type = #tpu.core_type<tc>, window_params = [{transform_indices = @transform_0, window_bounds = array<i64: 1, 16, 16, 128>}, {transform_indices = @transform_1, window_bounds = array<i64: 1, 20, 32, 128>}, {pipeline_mode = #tpu.pipeline_mode<synchronous>, transform_indices = @transform_2, window_bounds = array<i64: 1, 1, 128>}, {pipeline_mode = #tpu.pipeline_mode<synchronous>, transform_indices = @transform_3, window_bounds = array<i64: 1, 1, 128>}, {transform_indices = @transform_4, window_bounds = array<i64: 1, 16, 16, 128>}]} {
    %c0 = arith.constant 0 : index
    %c0_0 = arith.constant 0 : index
    %c0_1 = arith.constant 0 : index
    %c0_2 = arith.constant 0 : index
    %0 = vector.load %arg2[%c0, %c0_0, %c0_1, %c0_2] : memref<1x20x32x128xbf16, #tpu.memory_space<vmem>>, vector<1x20x32x128xbf16>
    %1 = vector.extract_strided_slice %0 {offsets = [0, 2, 2, 0], sizes = [1, 16, 16, 128], strides = [1, 1, 1, 1]} : vector<1x20x32x128xbf16> to vector<1x16x16x128xbf16>
    %2 = arith.extf %1 : vector<1x16x16x128xbf16> to vector<1x16x16x128xf32>
    %c0_3 = arith.constant 0 : index
    %c0_4 = arith.constant 0 : index
    %c0_5 = arith.constant 0 : index
    %c0_6 = arith.constant 0 : index
    %3 = vector.load %arg1[%c0_3, %c0_4, %c0_5, %c0_6] : memref<1x16x16x128xbf16, #tpu.memory_space<vmem>>, vector<1x16x16x128xbf16>
    %4 = arith.extf %3 : vector<1x16x16x128xbf16> to vector<1x16x16x128xf32>
    %c0_7 = arith.constant 0 : index
    %c0_8 = arith.constant 0 : index
    %c0_9 = arith.constant 0 : index
    %5 = vector.load %arg3[%c0_7, %c0_8, %c0_9] : memref<1x1x128xf32, #tpu.memory_space<vmem>>, vector<1x1x128xf32>
    %6 = vector.shape_cast %5 : vector<1x1x128xf32> to vector<1x1x1x128xf32>
    %7 = vector.broadcast %6 : vector<1x1x1x128xf32> to vector<1x16x16x128xf32>
    %8 = arith.mulf %4, %7 : vector<1x16x16x128xf32>
    %c0_10 = arith.constant 0 : index
    %c0_11 = arith.constant 0 : index
    %c0_12 = arith.constant 0 : index
    %9 = vector.load %arg4[%c0_10, %c0_11, %c0_12] : memref<1x1x128xf32, #tpu.memory_space<vmem>>, vector<1x1x128xf32>
    %10 = vector.shape_cast %9 : vector<1x1x128xf32> to vector<1x1x1x128xf32>
    %11 = vector.broadcast %10 : vector<1x1x1x128xf32> to vector<1x16x16x128xf32>
    %12 = arith.addf %8, %11 : vector<1x16x16x128xf32>
    %13 = arith.addf %12, %2 : vector<1x16x16x128xf32>
    %cst = arith.constant 2.000000e+01 : f32
    %14 = vector.broadcast %cst : f32 to vector<1x16x16x128xf32>
    %15 = arith.minimumf %13, %14 : vector<1x16x16x128xf32>
    %16 = math.exp %15 : vector<1x16x16x128xf32>
    %cst_13 = arith.constant 2.000000e+00 : f32
    %17 = vector.broadcast %cst_13 : f32 to vector<1x16x16x128xf32>
    %18 = arith.addf %16, %17 : vector<1x16x16x128xf32>
    %19 = arith.mulf %16, %18 : vector<1x16x16x128xf32>
    %20 = arith.mulf %13, %19 : vector<1x16x16x128xf32>
    %cst_14 = arith.constant 2.000000e+00 : f32
    %21 = vector.broadcast %cst_14 : f32 to vector<1x16x16x128xf32>
    %22 = arith.addf %19, %21 : vector<1x16x16x128xf32>
    %23 = tpu.reciprocal %22 {approx = true} : vector<1x16x16x128xf32> -> vector<1x16x16x128xf32>
    %24 = arith.mulf %20, %23 : vector<1x16x16x128xf32>
    %c0_15 = arith.constant 0 : index
    %c0_16 = arith.constant 0 : index
    %c0_17 = arith.constant 0 : index
    %c0_18 = arith.constant 0 : index
    %25 = vector.load %arg5[%c0_15, %c0_16, %c0_17, %c0_18] : memref<1x16x16x128xf32, #tpu.memory_space<vmem>>, vector<1x16x16x128xf32>
    tpu.vector_store %arg5[%c0_15, %c0_16, %c0_17, %c0_18], %24 {strides = array<i32>} : memref<1x16x16x128xf32, #tpu.memory_space<vmem>>, vector<1x16x16x128xf32>,
    return
  }
  func.func @transform_0(%arg0: i32) -> (i32, i32, i32, i32) {
    %c0_i32 = arith.constant 0 : i32
    %c0_i32_0 = arith.constant 0 : i32
    %c0_i32_1 = arith.constant 0 : i32
    %c0_i32_2 = arith.constant 0 : i32
    return %arg0, %c0_i32, %c0_i32_0, %c0_i32_1 : i32, i32, i32, i32
  }
  func.func @transform_1(%arg0: i32) -> (i32, i32, i32, i32) {
    %c0_i32 = arith.constant 0 : i32
    %c0_i32_0 = arith.constant 0 : i32
    %c0_i32_1 = arith.constant 0 : i32
    %c0_i32_2 = arith.constant 0 : i32
    return %arg0, %c0_i32, %c0_i32_0, %c0_i32_1 : i32, i32, i32, i32
  }
  func.func @transform_2(%arg0: i32) -> (i32, i32, i32) {
    %c0_i32 = arith.constant 0 : i32
    %c0_i32_0 = arith.constant 0 : i32
    %c0_i32_1 = arith.constant 0 : i32
    %c0_i32_2 = arith.constant 0 : i32
    return %c0_i32, %c0_i32_0, %c0_i32_1 : i32, i32, i32
  }
  func.func @transform_3(%arg0: i32) -> (i32, i32, i32) {
    %c0_i32 = arith.constant 0 : i32
    %c0_i32_0 = arith.constant 0 : i32
    %c0_i32_1 = arith.constant 0 : i32
    %c0_i32_2 = arith.constant 0 : i32
    return %c0_i32, %c0_i32_0, %c0_i32_1 : i32, i32, i32
  }
  func.func @transform_4(%arg0: i32) -> (i32, i32, i32, i32) {
    %c0_i32 = arith.constant 0 : i32
    %c0_i32_0 = arith.constant 0 : i32
    %c0_i32_1 = arith.constant 0 : i32
    %c0_i32_2 = arith.constant 0 : i32
    return %arg0, %c0_i32, %c0_i32_0, %c0_i32_1 : i32, i32, i32, i32
  }
}

</mosaic_0001>

<llo_original>
// kernel: resblock_pallas.5
$region0: #{resblock_pallas.5}
  #allocation0 [shape = 'u32[]', space=smem, size = 0x4, offset = 0x4, fixed_abs, tag = 'smem constant byte address 0x4 - core index']
  #allocation1 [shape = 'u32[144,128]{1,0:T(1,128)}', space=vmem, size = 0x12000, scoped, tag = 'internal scratch']
  %s0 = inlined_call_operand.vmem [shape: bf16[2,16,16,128], index: 0, kind: input, shape index: {}]
  %s1 = inlined_call_operand.vmem [shape: bf16[2,20,32,128], index: 1, kind: input, shape index: {}]
  %s2 = inlined_call_operand.vmem [shape: f32[1,1,128], index: 2, kind: input, shape index: {}]
  %s3 = inlined_call_operand.vmem [shape: f32[1,1,128], index: 3, kind: input, shape index: {}]
  %s4 = inlined_call_operand.vmem [shape: f32[2,16,16,128], index: 4, kind: output, shape index: {}]
  %s5 = sld [smem:[#allocation0]]
  $region49: #{resblock_pallas.5} parent=0
    _
  %s7 = ssub.s32 1, %s5
  %s8 = scalar_select 0, %s7, %s5
  loop: start=0, step=1, limit=4
  $region2: #{resblock_pallas.5} parent=0 // loop_pre_header
    _
  $region3: #{resblock_pallas.5} parent=0 // loop_header
    %s10 = sphi 0, %s14
    %p11 = scmp.ge.s32.totalorder %s10, 4
    %s20 = sphi 0, %s22
    %s23 = sphi 0, %s20
    %s24 = sphi 0, %s23
    %s40 = sphi 0, %s24
    %s46 = sphi 0, %s48
    %s49 = sphi 0, %s46
    %s50 = sphi 0, %s49
    %s66 = sphi 0, %s50
    %s70 = sphi 0, %s70
    %s72 = sphi 0, %s70
    %s73 = sphi 0, %s72
    %s87 = sphi 0, %s73
    %s91 = sphi 0, %s91
    %s93 = sphi 0, %s91
    %s94 = sphi 0, %s93
    %s108 = sphi 0, %s94
    %s114 = sphi 0, %s116
    %s117 = sphi 0, %s114
    %s118 = sphi 0, %s117
    %s134 = sphi 0, %s118
  $region4: #{resblock_pallas.5} parent=0 // loop_header_branch
    %13 = sbr.rel (%p11) target = $region8
  $region5: #{resblock_pallas.5} parent=0 // loop_body
    %s15 = ssub.s32 %s10, 1
    %s16 = ssub.s32 %s10, 2
    %s17 = sadd.s32 %s10, 1
    %s18 = ssub.s32 %s10, %s17
    %p19 = scmp.eq.s32.totalorder %s18, 0
    %s21 = sadd.s32 %s20, 1
    %s22 = scalar_select %p19, %s20, %s21
    %p25 = pneg %p19
    %p26 = scmp.eq.s32.totalorder %s10, 1
    %p27 = por %p25, %p26
    %p28 = scmp.ne.s32.totalorder %s20, %s23
    %p29 = scmp.eq.s32.totalorder %s10, 0
    %p30 = por %p28, %p29
    %p31 = scmp.ne.s32.totalorder %s20, %s23
    %p32 = scmp.eq.s32.totalorder %s15, 1
    %p33 = por %p31, %p32
    %p34 = scmp.ne.s32.totalorder %s23, %s24
    %p35 = scmp.eq.s32.totalorder %s15, 0
    %p36 = por %p34, %p35
    %p37 = scmp.ne.s32.totalorder %s23, %s24
    %p38 = scmp.eq.s32.totalorder %s16, 1
    %p39 = por %p37, %p38
    %p41 = scmp.ne.s32.totalorder %s24, %s40
    %p42 = scmp.eq.s32.totalorder %s16, 0
    %p43 = por %p41, %p42
    %s44 = ssub.s32 %s10, %s17
    %p45 = scmp.eq.s32.totalorder %s44, 0
    %s47 = sadd.s32 %s46, 1
    %s48 = scalar_select %p45, %s46, %s47
    %p51 = pneg %p45
    %p52 = scmp.eq.s32.totalorder %s10, 1
    %p53 = por %p51, %p52
    %p54 = scmp.ne.s32.totalorder %s46, %s49
    %p55 = scmp.eq.s32.totalorder %s10, 0
    %p56 = por %p54, %p55
    %p57 = scmp.ne.s32.totalorder %s46, %s49
    %p58 = scmp.eq.s32.totalorder %s15, 1
    %p59 = por %p57, %p58
    %p60 = scmp.ne.s32.totalorder %s49, %s50
    %p61 = scmp.eq.s32.totalorder %s15, 0
    %p62 = por %p60, %p61
    %p63 = scmp.ne.s32.totalorder %s49, %s50
    %p64 = scmp.eq.s32.totalorder %s16, 1
    %p65 = por %p63, %p64
    %p67 = scmp.ne.s32.totalorder %s50, %s66
    %p68 = scmp.eq.s32.totalorder %s16, 0
    %p69 = por %p67, %p68
    %s71 = sadd.s32 %s70, 1
    %p74 = scmp.eq.s32.totalorder %s10, 1
    %p75 = scmp.ne.s32.totalorder %s70, %s72
    %p76 = scmp.eq.s32.totalorder %s10, 0
    %p77 = por %p75, %p76
    %p78 = scmp.ne.s32.totalorder %s70, %s72
    %p79 = scmp.eq.s32.totalorder %s15, 1
    %p80 = por %p78, %p79
    %p81 = scmp.ne.s32.totalorder %s72, %s73
    %p82 = scmp.eq.s32.totalorder %s15, 0
    %p83 = por %p81, %p82
    %p84 = scmp.ne.s32.totalorder %s72, %s73
    %p85 = scmp.eq.s32.totalorder %s16, 1
    %p86 = por %p84, %p85
    %p88 = scmp.ne.s32.totalorder %s73, %s87
    %p89 = scmp.eq.s32.totalorder %s16, 0
    %p90 = por %p88, %p89
    %s92 = sadd.s32 %s91, 1
    %p95 = scmp.eq.s32.totalorder %s10, 1
    %p96 = scmp.ne.s32.totalorder %s91, %s93
    %p97 = scmp.eq.s32.totalorder %s10, 0
    %p98 = por %p96, %p97
    %p99 = scmp.ne.s32.totalorder %s91, %s93
    %p100 = scmp.eq.s32.totalorder %s15, 1
    %p101 = por %p99, %p100
    %p102 = scmp.ne.s32.totalorder %s93, %s94
    %p103 = scmp.eq.s32.totalorder %s15, 0
    %p104 = por %p102, %p103
    %p105 = scmp.ne.s32.totalorder %s93, %s94
    %p106 = scmp.eq.s32.totalorder %s16, 1
    %p107 = por %p105, %p106
    %p109 = scmp.ne.s32.totalorder %s94, %s108
    %p110 = scmp.eq.s32.totalorder %s16, 0
    %p111 = por %p109, %p110
    %s112 = ssub.s32 %s10, %s17
    %p113 = scmp.eq.s32.totalorder %s112, 0
    %s115 = sadd.s32 %s114, 1
    %s116 = scalar_select %p113, %s114, %s115
    %p119 = pneg %p113
    %p120 = scmp.eq.s32.totalorder %s10, 1
    %p121 = por %p119, %p120
    %p122 = scmp.ne.s32.totalorder %s114, %s117
    %p123 = scmp.eq.s32.totalorder %s10, 0
    %p124 = por %p122, %p123
    %p125 = scmp.ne.s32.totalorder %s114, %s117
    %p126 = scmp.eq.s32.totalorder %s15, 1
    %p127 = por %p125, %p126
    %p128 = scmp.ne.s32.totalorder %s117, %s118
    %p129 = scmp.eq.s32.totalorder %s15, 0
    %p130 = por %p128, %p129
    %p131 = scmp.ne.s32.totalorder %s117, %s118
    %p132 = scmp.eq.s32.totalorder %s16, 1
    %p133 = por %p131, %p132
    %p135 = scmp.ne.s32.totalorder %s118, %s134
    %p136 = scmp.eq.s32.totalorder %s16, 0
    %p137 = por %p135, %p136
    %p138 = scmp.le.s32.totalorder 1, %s10
    %p139 = scmp.lt.s32.totalorder %s10, 3
    %p140 = pnand %p138, %p139
    %p141 = pneg %p140
    // Predicated region
    $region9: #{resblock_pallas.5} parent=5 // pred_check
      _
    $region10: #{resblock_pallas.5} parent=5 // pred_check_branch
      %143 = sbr.rel (%p140) target = $region12
    $region11: #{resblock_pallas.5} parent=5 // pred_region
      %s144 = ssub.s32 %s10, 1
      // Predicated region
      $region13: #{resblock_pallas.5} parent=11 // pred_check
        %p145 = pneg %p83
      $region14: #{resblock_pallas.5} parent=11 // pred_check_branch
        %147 = sbr.rel (%p145) target = $region16
      $region15: #{resblock_pallas.5} parent=11 // pred_region
        _
      $region16: #{resblock_pallas.5} parent=11 // pred_fallthru
        _
      // Predicated region
      $region17: #{resblock_pallas.5} parent=11 // pred_check
        %p148 = pneg %p104
      $region18: #{resblock_pallas.5} parent=11 // pred_check_branch
        %150 = sbr.rel (%p148) target = $region20
      $region19: #{resblock_pallas.5} parent=11 // pred_region
        _
      $region20: #{resblock_pallas.5} parent=11 // pred_fallthru
        _
    $region12: #{resblock_pallas.5} parent=5 // pred_fallthru
      _
    %p151 = scmp.lt.s32.totalorder %s10, 2
    // Predicated region
    $region21: #{resblock_pallas.5} parent=5 // pred_check
      %p152 = pneg %p151
    $region22: #{resblock_pallas.5} parent=5 // pred_check_branch
      %154 = sbr.rel (%p152) target = $region24
    $region23: #{resblock_pallas.5} parent=5 // pred_region
      // Predicated region
      $region25: #{resblock_pallas.5} parent=23 // pred_check
        %p155 = pneg %p30
      $region26: #{resblock_pallas.5} parent=23 // pred_check_branch
        %157 = sbr.rel (%p155) target = $region28
      $region27: #{resblock_pallas.5} parent=23 // pred_region
        %p158 = scmp.lt.s32.totalorder %s10, 1
        %s159 = scalar_select %p158, %s10, 1
        %s160 = smul.addr %s159, 32
        %s161 = smul.addr %s160, 4
        %s162 = scalar_lea.vmem %s0, %s161
      $region28: #{resblock_pallas.5} parent=23 // pred_fallthru
        _
      // Predicated region
      $region29: #{resblock_pallas.5} parent=23 // pred_check
        %p163 = pneg %p56
      $region30: #{resblock_pallas.5} parent=23 // pred_check_branch
        %165 = sbr.rel (%p163) target = $region32
      $region31: #{resblock_pallas.5} parent=23 // pred_region
        %p166 = scmp.lt.s32.totalorder %s10, 1
        %s167 = scalar_select %p166, %s10, 1
        %s168 = smul.addr %s167, 80
        %s169 = smul.addr %s168, 4
        %s170 = scalar_lea.vmem %s1, %s169
      $region32: #{resblock_pallas.5} parent=23 // pred_fallthru
        _
    $region24: #{resblock_pallas.5} parent=5 // pred_fallthru
      _
    %p171 = scmp.le.s32.totalorder 1, %s10
    %p172 = scmp.lt.s32.totalorder %s10, 3
    %p173 = pnand %p171, %p172
    %p174 = pneg %p173
    // Predicated region
    $region33: #{resblock_pallas.5} parent=5 // pred_check
      _
    $region34: #{resblock_pallas.5} parent=5 // pred_check_branch
      %176 = sbr.rel (%p173) target = $region36
    $region35: #{resblock_pallas.5} parent=5 // pred_region
      %s177 = ssub.s32 %s10, 1
      %p178 = scmp.lt.s32.totalorder %s15, 1
      %s179 = scalar_select %p178, %s15, 1
      %s180 = smul.addr %s179, 32
      %s181 = smul.addr %s180, 4
      %s182 = scalar_lea.vmem %s0, %s181
      %p183 = pneg %p36
      %p184 = pneg %p33
      %p185 = scmp.lt.s32.totalorder %s15, 1
      %s186 = scalar_select %p185, %s15, 1
      %s187 = smul.addr %s186, 80
      %s188 = smul.addr %s187, 4
      %s189 = scalar_lea.vmem %s1, %s188
      %p190 = pneg %p62
      %p191 = pneg %p59
      %p192 = pneg %p83
      %p193 = pneg %p80
      %p194 = pneg %p104
      %p195 = pneg %p101
      %p196 = pneg %p130
      %p197 = pneg %p127
      %p198 = scmp.lt.s32.totalorder %s15, 1
      %s199 = scalar_select %p198, %s15, 1
      %s200 = smul.addr %s199, 32
      %s201 = smul.addr %s200, 8
      %s202 = scalar_lea.vmem %s4, %s201
      %p203 = scmp.lt.s32.totalorder %s15, 1
      %s204 = scalar_select %p203, %s15, 1
      %s205 = smul.addr %s204, 32
      %s206 = smul.addr %s205, 4
      %s207 = scalar_lea.vmem %s0, %s206
      %p208 = scmp.lt.s32.totalorder %s15, 1
      %s209 = scalar_select %p208, %s15, 1
      %s210 = smul.addr %s209, 80
      %s211 = smul.addr %s210, 4
      %s212 = scalar_lea.vmem %s1, %s211
      %p213 = scmp.lt.s32.totalorder %s15, 1
      %s214 = scalar_select %p213, %s15, 1
      %s215 = smul.addr %s214, 32
      %s216 = smul.addr %s215, 8
      %s217 = scalar_lea.vmem %s4, %s216
      %v218 = vld [vmem:[%s212 + $0x20] sm:$0xf]
      %v219 = vld [vmem:[%s212 + $0x24] sm:$0xf]
      %v220 = vld [vmem:[%s212 + $0x28] sm:$0xf]
      %v221 = vld [vmem:[%s212 + $0x30] sm:$0xf]
      %v222 = vld [vmem:[%s212 + $0x34] sm:$0xf]
      %v223 = vld [vmem:[%s212 + $0x38] sm:$0xf]
      %v224 = vld [vmem:[%s212 + $0x40] sm:$0xf]
      %v225 = vld [vmem:[%s212 + $0x44] sm:$0xf]
      %v226 = vld [vmem:[%s212 + $0x48] sm:$0xf]
      %v227 = vld [vmem:[%s212 + $0x50] sm:$0xf]
      %v228 = vld [vmem:[%s212 + $0x54] sm:$0xf]
      %v229 = vld [vmem:[%s212 + $0x58] sm:$0xf]
      %v230 = vld [vmem:[%s212 + $0x60] sm:$0xf]
      %v231 = vld [vmem:[%s212 + $0x64] sm:$0xf]
      %v232 = vld [vmem:[%s212 + $0x68] sm:$0xf]
      %v233 = vld [vmem:[%s212 + $0x70] sm:$0xf]
      %v234 = vld [vmem:[%s212 + $0x74] sm:$0xf]
      %v235 = vld [vmem:[%s212 + $0x78] sm:$0xf]
      %v236 = vld [vmem:[%s212 + $0x80] sm:$0xf]
      %v237 = vld [vmem:[%s212 + $0x84] sm:$0xf]
      %v238 = vld [vmem:[%s212 + $0x88] sm:$0xf]
      %v239 = vld [vmem:[%s212 + $0x90] sm:$0xf]
      %v240 = vld [vmem:[%s212 + $0x94] sm:$0xf]
      %v241 = vld [vmem:[%s212 + $0x98] sm:$0xf]
      %v242 = vld [vmem:[%s212 + $0xa0] sm:$0xf]
      %v243 = vld [vmem:[%s212 + $0xa4] sm:$0xf]
      %v244 = vld [vmem:[%s212 + $0xa8] sm:$0xf]
      %v245 = vld [vmem:[%s212 + $0xb0] sm:$0xf]
      %v246 = vld [vmem:[%s212 + $0xb4] sm:$0xf]
      %v247 = vld [vmem:[%s212 + $0xb8] sm:$0xf]
      %v248 = vld [vmem:[%s212 + $0xc0] sm:$0xf]
      %v249 = vld [vmem:[%s212 + $0xc4] sm:$0xf]
      %v250 = vld [vmem:[%s212 + $0xc8] sm:$0xf]
      %v251 = vld [vmem:[%s212 + $0xd0] sm:$0xf]
      %v252 = vld [vmem:[%s212 + $0xd4] sm:$0xf]
      %v253 = vld [vmem:[%s212 + $0xd8] sm:$0xf]
      %v254 = vld [vmem:[%s212 + $0xe0] sm:$0xf]
      %v255 = vld [vmem:[%s212 + $0xe4] sm:$0xf]
      %v256 = vld [vmem:[%s212 + $0xe8] sm:$0xf]
      %v257 = vld [vmem:[%s212 + $0xf0] sm:$0xf]
      %v258 = vld [vmem:[%s212 + $0xf4] sm:$0xf]
      %v259 = vld [vmem:[%s212 + $0xf8] sm:$0xf]
      %v260 = vld [vmem:[%s212 + $0x100] sm:$0xf]
      %v261 = vld [vmem:[%s212 + $0x104] sm:$0xf]
      %v262 = vld [vmem:[%s212 + $0x108] sm:$0xf]
      %v263 = vld [vmem:[%s212 + $0x110] sm:$0xf]
      %v264 = vld [vmem:[%s212 + $0x114] sm:$0xf]
      %v265 = vld [vmem:[%s212 + $0x118] sm:$0xf]
      %v266 = vunpack.c.l.bf16 %v218
      %v267 = vunpack.c.l.bf16 %v219
      %v268 = vunpack.c.l.bf16 %v220
      %v269 = vunpack.c.l.bf16 %v221
      %v270 = vunpack.c.l.bf16 %v222
      %v271 = vunpack.c.l.bf16 %v223
      %v272 = vunpack.c.l.bf16 %v224
      %v273 = vunpack.c.l.bf16 %v225
      %v274 = vunpack.c.l.bf16 %v226
      %v275 = vunpack.c.l.bf16 %v227
      %v276 = vunpack.c.l.bf16 %v228
      %v277 = vunpack.c.l.bf16 %v229
      %v278 = vunpack.c.l.bf16 %v230
      %v279 = vunpack.c.l.bf16 %v231
      %v280 = vunpack.c.l.bf16 %v232
      %v281 = vunpack.c.l.bf16 %v233
      %v282 = vunpack.c.l.bf16 %v234
      %v283 = vunpack.c.l.bf16 %v235
      %v284 = vunpack.c.l.bf16 %v236
      %v285 = vunpack.c.l.bf16 %v237
      %v286 = vunpack.c.l.bf16 %v238
      %v287 = vunpack.c.l.bf16 %v239
      %v288 = vunpack.c.l.bf16 %v240
      %v289 = vunpack.c.l.bf16 %v241
      %v290 = vunpack.c.l.bf16 %v242
      %v291 = vunpack.c.l.bf16 %v243
      %v292 = vunpack.c.l.bf16 %v244
      %v293 = vunpack.c.l.bf16 %v245
      %v294 = vunpack.c.l.bf16 %v246
      %v295 = vunpack.c.l.bf16 %v247
      %v296 = vunpack.c.l.bf16 %v248
      %v297 = vunpack.c.l.bf16 %v249
      %v298 = vunpack.c.l.bf16 %v250
      %v299 = vunpack.c.l.bf16 %v251
      %v300 = vunpack.c.l.bf16 %v252
      %v301 = vunpack.c.l.bf16 %v253
      %v302 = vunpack.c.l.bf16 %v254
      %v303 = vunpack.c.l.bf16 %v255
      %v304 = vunpack.c.l.bf16 %v256
      %v305 = vunpack.c.l.bf16 %v257
      %v306 = vunpack.c.l.bf16 %v258
      %v307 = vunpack.c.l.bf16 %v259
      %v308 = vunpack.c.l.bf16 %v260
      %v309 = vunpack.c.l.bf16 %v261
      %v310 = vunpack.c.l.bf16 %v262
      %v311 = vunpack.c.l.bf16 %v263
      %v312 = vunpack.c.l.bf16 %v264
      %v313 = vunpack.c.l.bf16 %v265
      %v314 = vld [vmem:[%s207] sm:$0xf]
      %v315 = vld [vmem:[%s207 + $0x4] sm:$0xf]
      %v316 = vld [vmem:[%s207 + $0x8] sm:$0xf]
      %v317 = vld [vmem:[%s207 + $0xc] sm:$0xf]
      %v318 = vld [vmem:[%s207 + $0x10] sm:$0xf]
      %v319 = vld [vmem:[%s207 + $0x14] sm:$0xf]
      %v320 = vld [vmem:[%s207 + $0x18] sm:$0xf]
      %v321 = vld [vmem:[%s207 + $0x1c] sm:$0xf]
      %v322 = vld [vmem:[%s207 + $0x20] sm:$0xf]
      %v323 = vld [vmem:[%s207 + $0x24] sm:$0xf]
      %v324 = vld [vmem:[%s207 + $0x28] sm:$0xf]
      %v325 = vld [vmem:[%s207 + $0x2c] sm:$0xf]
      %v326 = vld [vmem:[%s207 + $0x30] sm:$0xf]
      %v327 = vld [vmem:[%s207 + $0x34] sm:$0xf]
      %v328 = vld [vmem:[%s207 + $0x38] sm:$0xf]
      %v329 = vld [vmem:[%s207 + $0x3c] sm:$0xf]
      %v330 = vld [vmem:[%s207 + $0x40] sm:$0xf]
      %v331 = vld [vmem:[%s207 + $0x44] sm:$0xf]
      %v332 = vld [vmem:[%s207 + $0x48] sm:$0xf]
      %v333 = vld [vmem:[%s207 + $0x4c] sm:$0xf]
      %v334 = vld [vmem:[%s207 + $0x50] sm:$0xf]
      %v335 = vld [vmem:[%s207 + $0x54] sm:$0xf]
      %v336 = vld [vmem:[%s207 + $0x58] sm:$0xf]
      %v337 = vld [vmem:[%s207 + $0x5c] sm:$0xf]
      %v338 = vld [vmem:[%s207 + $0x60] sm:$0xf]
      %v339 = vld [vmem:[%s207 + $0x64] sm:$0xf]
      %v340 = vld [vmem:[%s207 + $0x68] sm:$0xf]
      %v341 = vld [vmem:[%s207 + $0x6c] sm:$0xf]
      %v342 = vld [vmem:[%s207 + $0x70] sm:$0xf]
      %v343 = vld [vmem:[%s207 + $0x74] sm:$0xf]
      %v344 = vld [vmem:[%s207 + $0x78] sm:$0xf]
      %v345 = vld [vmem:[%s207 + $0x7c] sm:$0xf]
      %v346 = vunpack.c.l.bf16 %v314
      %v347 = vunpack.c.l.bf16 %v315
      %v348 = vunpack.c.l.bf16 %v316
      %v349 = vunpack.c.l.bf16 %v317
      %v350 = vunpack.c.l.bf16 %v318
      %v351 = vunpack.c.l.bf16 %v319
      %v352 = vunpack.c.l.bf16 %v320
      %v353 = vunpack.c.l.bf16 %v321
      %v354 = vunpack.c.l.bf16 %v322
      %v355 = vunpack.c.l.bf16 %v323
      %v356 = vunpack.c.l.bf16 %v324
      %v357 = vunpack.c.l.bf16 %v325
      %v358 = vunpack.c.l.bf16 %v326
      %v359 = vunpack.c.l.bf16 %v327
      %v360 = vunpack.c.l.bf16 %v328
      %v361 = vunpack.c.l.bf16 %v329
      %v362 = vunpack.c.l.bf16 %v330
      %v363 = vunpack.c.l.bf16 %v331
      %v364 = vunpack.c.l.bf16 %v332
      %v365 = vunpack.c.l.bf16 %v333
      %v366 = vunpack.c.l.bf16 %v334
      %v367 = vunpack.c.l.bf16 %v335
      %v368 = vunpack.c.l.bf16 %v336
      %v369 = vunpack.c.l.bf16 %v337
      %v370 = vunpack.c.l.bf16 %v338
      %v371 = vunpack.c.l.bf16 %v339
      %v372 = vunpack.c.l.bf16 %v340
      %v373 = vunpack.c.l.bf16 %v341
      %v374 = vunpack.c.l.bf16 %v342
      %v375 = vunpack.c.l.bf16 %v343
      %v376 = vunpack.c.l.bf16 %v344
      %v377 = vunpack.c.l.bf16 %v345
      %v378 = vld [vmem:[%s2] sm:$0x1]
      %v380 = vlaneseq
      %v381 = vshrl.u32 %v380, 7
      %v382 = vsub.s32 0, %v381
      %v383 = vrot.slane %v378, %v382
      %v385 = vmul.f32 %v346, %v383
      %v386 = vmul.f32 %v347, %v383
      %v387 = vmul.f32 %v348, %v383
      %v388 = vmul.f32 %v349, %v383
      %v389 = vmul.f32 %v350, %v383
      %v390 = vmul.f32 %v351, %v383
      %v391 = vmul.f32 %v352, %v383
      %v392 = vmul.f32 %v353, %v383
      %v393 = vmul.f32 %v354, %v383
      %v394 = vmul.f32 %v355, %v383
      %v395 = vmul.f32 %v356, %v383
      %v396 = vmul.f32 %v357, %v383
      %v397 = vmul.f32 %v358, %v383
      %v398 = vmul.f32 %v359, %v383
      %v399 = vmul.f32 %v360, %v383
      %v400 = vmul.f32 %v361, %v383
      %v401 = vmul.f32 %v362, %v383
      %v402 = vmul.f32 %v363, %v383
      %v403 = vmul.f32 %v364, %v383
      %v404 = vmul.f32 %v365, %v383
      %v405 = vmul.f32 %v366, %v383
      %v406 = vmul.f32 %v367, %v383
      %v407 = vmul.f32 %v368, %v383
      %v408 = vmul.f32 %v369, %v383
      %v409 = vmul.f32 %v370, %v383
      %v410 = vmul.f32 %v371, %v383
      %v411 = vmul.f32 %v372, %v383
      %v412 = vmul.f32 %v373, %v383
      %v413 = vmul.f32 %v374, %v383
      %v414 = vmul.f32 %v375, %v383
      %v415 = vmul.f32 %v376, %v383
      %v416 = vmul.f32 %v377, %v383
      %v417 = vld [vmem:[%s3] sm:$0x1]
      %v419 = vlaneseq
      %v420 = vshrl.u32 %v419, 7
      %v421 = vsub.s32 0, %v420
      %v422 = vrot.slane %v417, %v421
      %v424 = vadd.f32 %v385, %v422
      %v425 = vadd.f32 %v386, %v422
      %v426 = vadd.f32 %v387, %v422
      %v427 = vadd.f32 %v388, %v422
      %v428 = vadd.f32 %v389, %v422
      %v429 = vadd.f32 %v390, %v422
      %v430 = vadd.f32 %v391, %v422
      %v431 = vadd.f32 %v392, %v422
      %v432 = vadd.f32 %v393, %v422
      %v433 = vadd.f32 %v394, %v422
      %v434 = vadd.f32 %v395, %v422
      %v435 = vadd.f32 %v396, %v422
      %v436 = vadd.f32 %v397, %v422
      %v437 = vadd.f32 %v398, %v422
      %v438 = vadd.f32 %v399, %v422
      %v439 = vadd.f32 %v400, %v422
      %v440 = vadd.f32 %v401, %v422
      %v441 = vadd.f32 %v402, %v422
      %v442 = vadd.f32 %v403, %v422
      %v443 = vadd.f32 %v404, %v422
      %v444 = vadd.f32 %v405, %v422
      %v445 = vadd.f32 %v406, %v422
      %v446 = vadd.f32 %v407, %v422
      %v447 = vadd.f32 %v408, %v422
      %v448 = vadd.f32 %v409, %v422
      %v449 = vadd.f32 %v410, %v422
      %v450 = vadd.f32 %v411, %v422
      %v451 = vadd.f32 %v412, %v422
      %v452 = vadd.f32 %v413, %v422
      %v453 = vadd.f32 %v414, %v422
      %v454 = vadd.f32 %v415, %v422
      %v455 = vadd.f32 %v416, %v422
      %vm504 = vcmask 1045504
      %v505 = vrot.slane %v266, 2
      %v506 = vrot.slane %v267, 2
      %v507 = vsel %vm504, %v505, %v506
      %v508 = vrot.slane %v268, 2
      %v509 = vsel %vm504, %v506, %v508
      %v510 = vrot.slane %v269, 2
      %v511 = vrot.slane %v270, 2
      %v512 = vsel %vm504, %v510, %v511
      %v513 = vrot.slane %v271, 2
      %v514 = vsel %vm504, %v511, %v513
      %v515 = vrot.slane %v272, 2
      %v516 = vrot.slane %v273, 2
      %v517 = vsel %vm504, %v515, %v516
      %v518 = vrot.slane %v274, 2
      %v519 = vsel %vm504, %v516, %v518
      %v520 = vrot.slane %v275, 2
      %v521 = vrot.slane %v276, 2
      %v522 = vsel %vm504, %v520, %v521
      %v523 = vrot.slane %v277, 2
      %v524 = vsel %vm504, %v521, %v523
      %v525 = vrot.slane %v278, 2
      %v526 = vrot.slane %v279, 2
      %v527 = vsel %vm504, %v525, %v526
      %v528 = vrot.slane %v280, 2
      %v529 = vsel %vm504, %v526, %v528
      %v530 = vrot.slane %v281, 2
      %v531 = vrot.slane %v282, 2
      %v532 = vsel %vm504, %v530, %v531
      %v533 = vrot.slane %v283, 2
      %v534 = vsel %vm504, %v531, %v533
      %v535 = vrot.slane %v284, 2
      %v536 = vrot.slane %v285, 2
      %v537 = vsel %vm504, %v535, %v536
      %v538 = vrot.slane %v286, 2
      %v539 = vsel %vm504, %v536, %v538
      %v540 = vrot.slane %v287, 2
      %v541 = vrot.slane %v288, 2
      %v542 = vsel %vm504, %v540, %v541
      %v543 = vrot.slane %v289, 2
      %v544 = vsel %vm504, %v541, %v543
      %v545 = vrot.slane %v290, 2
      %v546 = vrot.slane %v291, 2
      %v547 = vsel %vm504, %v545, %v546
      %v548 = vrot.slane %v292, 2
      %v549 = vsel %vm504, %v546, %v548
      %v550 = vrot.slane %v293, 2
      %v551 = vrot.slane %v294, 2
      %v552 = vsel %vm504, %v550, %v551
      %v553 = vrot.slane %v295, 2
      %v554 = vsel %vm504, %v551, %v553
      %v555 = vrot.slane %v296, 2
      %v556 = vrot.slane %v297, 2
      %v557 = vsel %vm504, %v555, %v556
      %v558 = vrot.slane %v298, 2
      %v559 = vsel %vm504, %v556, %v558
      %v560 = vrot.slane %v299, 2
      %v561 = vrot.slane %v300, 2
      %v562 = vsel %vm504, %v560, %v561
      %v563 = vrot.slane %v301, 2
      %v564 = vsel %vm504, %v561, %v563
      %v565 = vrot.slane %v302, 2
      %v566 = vrot.slane %v303, 2
      %v567 = vsel %vm504, %v565, %v566
      %v568 = vrot.slane %v304, 2
      %v569 = vsel %vm504, %v566, %v568
      %v570 = vrot.slane %v305, 2
      %v571 = vrot.slane %v306, 2
      %v572 = vsel %vm504, %v570, %v571
      %v573 = vrot.slane %v307, 2
      %v574 = vsel %vm504, %v571, %v573
      %v575 = vrot.slane %v308, 2
      %v576 = vrot.slane %v309, 2
      %v577 = vsel %vm504, %v575, %v576
      %v578 = vrot.slane %v310, 2
      %v579 = vsel %vm504, %v576, %v578
      %v580 = vrot.slane %v311, 2
      %v581 = vrot.slane %v312, 2
      %v582 = vsel %vm504, %v580, %v581
      %v583 = vrot.slane %v313, 2
      %v584 = vsel %vm504, %v581, %v583
      %v617 = vadd.f32 %v424, %v507
      %v618 = vadd.f32 %v425, %v509
      %v619 = vadd.f32 %v426, %v512
      %v620 = vadd.f32 %v427, %v514
      %v621 = vadd.f32 %v428, %v517
      %v622 = vadd.f32 %v429, %v519
      %v623 = vadd.f32 %v430, %v522
      %v624 = vadd.f32 %v431, %v524
      %v625 = vadd.f32 %v432, %v527
      %v626 = vadd.f32 %v433, %v529
      %v627 = vadd.f32 %v434, %v532
      %v628 = vadd.f32 %v435, %v534
      %v629 = vadd.f32 %v436, %v537
      %v630 = vadd.f32 %v437, %v539
      %v631 = vadd.f32 %v438, %v542
      %v632 = vadd.f32 %v439, %v544
      %v633 = vadd.f32 %v440, %v547
      %v634 = vadd.f32 %v441, %v549
      %v635 = vadd.f32 %v442, %v552
      %v636 = vadd.f32 %v443, %v554
      %v637 = vadd.f32 %v444, %v557
      %v638 = vadd.f32 %v445, %v559
      %v639 = vadd.f32 %v446, %v562
      %v640 = vadd.f32 %v447, %v564
      %v641 = vadd.f32 %v448, %v567
      %v642 = vadd.f32 %v449, %v569
      %v643 = vadd.f32 %v450, %v572
      %v644 = vadd.f32 %v451, %v574
      %v645 = vadd.f32 %v452, %v577
      %v646 = vadd.f32 %v453, %v579
      %v647 = vadd.f32 %v454, %v582
      %v648 = vadd.f32 %v455, %v584
      %v649 = vmin.f32 %v617, 20.0
      %v650 = vmin.f32 %v618, 20.0
      %v651 = vmin.f32 %v619, 20.0
      %v652 = vmin.f32 %v620, 20.0
      %v653 = vmin.f32 %v621, 20.0
      %v654 = vmin.f32 %v622, 20.0
      %v655 = vmin.f32 %v623, 20.0
      %v656 = vmin.f32 %v624, 20.0
      %v657 = vmin.f32 %v625, 20.0
      %v658 = vmin.f32 %v626, 20.0
      %v659 = vmin.f32 %v627, 20.0
      %v660 = vmin.f32 %v628, 20.0
      %v661 = vmin.f32 %v629, 20.0
      %v662 = vmin.f32 %v630, 20.0
      %v663 = vmin.f32 %v631, 20.0
      %v664 = vmin.f32 %v632, 20.0
      %v665 = vmin.f32 %v633, 20.0
      %v666 = vmin.f32 %v634, 20.0
      %v667 = vmin.f32 %v635, 20.0
      %v668 = vmin.f32 %v636, 20.0
      %v669 = vmin.f32 %v637, 20.0
      %v670 = vmin.f32 %v638, 20.0
      %v671 = vmin.f32 %v639, 20.0
      %v672 = vmin.f32 %v640, 20.0
      %v673 = vmin.f32 %v641, 20.0
      %v674 = vmin.f32 %v642, 20.0
      %v675 = vmin.f32 %v643, 20.0
      %v676 = vmin.f32 %v644, 20.0
      %v677 = vmin.f32 %v645, 20.0
      %v678 = vmin.f32 %v646, 20.0
      %v679 = vmin.f32 %v647, 20.0
      %v680 = vmin.f32 %v648, 20.0
      %v681 = vmul.f32 %v649, 1.442695
      %v682 = vpow.pop %v681
      %v683 = vmul.f32 %v650, 1.442695
      %v684 = vpow.pop %v683
      %v685 = vmul.f32 %v651, 1.442695
      %v686 = vpow.pop %v685
      %v687 = vmul.f32 %v652, 1.442695
      %v688 = vpow.pop %v687
      %v689 = vmul.f32 %v653, 1.442695
      %v690 = vpow.pop %v689
      %v691 = vmul.f32 %v654, 1.442695
      %v692 = vpow.pop %v691
      %v693 = vmul.f32 %v655, 1.442695
      %v694 = vpow.pop %v693
      %v695 = vmul.f32 %v656, 1.442695
      %v696 = vpow.pop %v695
      %v697 = vmul.f32 %v657, 1.442695
      %v698 = vpow.pop %v697
      %v699 = vmul.f32 %v658, 1.442695
      %v700 = vpow.pop %v699
      %v701 = vmul.f32 %v659, 1.442695
      %v702 = vpow.pop %v701
      %v703 = vmul.f32 %v660, 1.442695
      %v704 = vpow.pop %v703
      %v705 = vmul.f32 %v661, 1.442695
      %v706 = vpow.pop %v705
      %v707 = vmul.f32 %v662, 1.442695
      %v708 = vpow.pop %v707
      %v709 = vmul.f32 %v663, 1.442695
      %v710 = vpow.pop %v709
      %v711 = vmul.f32 %v664, 1.442695
      %v712 = vpow.pop %v711
      %v713 = vmul.f32 %v665, 1.442695
      %v714 = vpow.pop %v713
      %v715 = vmul.f32 %v666, 1.442695
      %v716 = vpow.pop %v715
      %v717 = vmul.f32 %v667, 1.442695
      %v718 = vpow.pop %v717
      %v719 = vmul.f32 %v668, 1.442695
      %v720 = vpow.pop %v719
      %v721 = vmul.f32 %v669, 1.442695
      %v722 = vpow.pop %v721
      %v723 = vmul.f32 %v670, 1.442695
      %v724 = vpow.pop %v723
      %v725 = vmul.f32 %v671, 1.442695
      %v726 = vpow.pop %v725
      %v727 = vmul.f32 %v672, 1.442695
      %v728 = vpow.pop %v727
      %v729 = vmul.f32 %v673, 1.442695
      %v730 = vpow.pop %v729
      %v731 = vmul.f32 %v674, 1.442695
      %v732 = vpow.pop %v731
      %v733 = vmul.f32 %v675, 1.442695
      %v734 = vpow.pop %v733
      %v735 = vmul.f32 %v676, 1.442695
      %v736 = vpow.pop %v735
      %v737 = vmul.f32 %v677, 1.442695
      %v738 = vpow.pop %v737
      %v739 = vmul.f32 %v678, 1.442695
      %v740 = vpow.pop %v739
      %v741 = vmul.f32 %v679, 1.442695
      %v742 = vpow.pop %v741
      %v743 = vmul.f32 %v680, 1.442695
      %v744 = vpow.pop %v743
      %v745 = vadd.f32 %v682, 2.0
      %v746 = vadd.f32 %v684, 2.0
      %v747 = vadd.f32 %v686, 2.0
      %v748 = vadd.f32 %v688, 2.0
      %v749 = vadd.f32 %v690, 2.0
      %v750 = vadd.f32 %v692, 2.0
      %v751 = vadd.f32 %v694, 2.0
      %v752 = vadd.f32 %v696, 2.0
      %v753 = vadd.f32 %v698, 2.0
      %v754 = vadd.f32 %v700, 2.0
      %v755 = vadd.f32 %v702, 2.0
      %v756 = vadd.f32 %v704, 2.0
      %v757 = vadd.f32 %v706, 2.0
      %v758 = vadd.f32 %v708, 2.0
      %v759 = vadd.f32 %v710, 2.0
      %v760 = vadd.f32 %v712, 2.0
      %v761 = vadd.f32 %v714, 2.0
      %v762 = vadd.f32 %v716, 2.0
      %v763 = vadd.f32 %v718, 2.0
      %v764 = vadd.f32 %v720, 2.0
      %v765 = vadd.f32 %v722, 2.0
      %v766 = vadd.f32 %v724, 2.0
      %v767 = vadd.f32 %v726, 2.0
      %v768 = vadd.f32 %v728, 2.0
      %v769 = vadd.f32 %v730, 2.0
      %v770 = vadd.f32 %v732, 2.0
      %v771 = vadd.f32 %v734, 2.0
      %v772 = vadd.f32 %v736, 2.0
      %v773 = vadd.f32 %v738, 2.0
      %v774 = vadd.f32 %v740, 2.0
      %v775 = vadd.f32 %v742, 2.0
      %v776 = vadd.f32 %v744, 2.0
      %v777 = vmul.f32 %v682, %v745
      %v778 = vmul.f32 %v684, %v746
      %v779 = vmul.f32 %v686, %v747
      %v780 = vmul.f32 %v688, %v748
      %v781 = vmul.f32 %v690, %v749
      %v782 = vmul.f32 %v692, %v750
      %v783 = vmul.f32 %v694, %v751
      %v784 = vmul.f32 %v696, %v752
      %v785 = vmul.f32 %v698, %v753
      %v786 = vmul.f32 %v700, %v754
      %v787 = vmul.f32 %v702, %v755
      %v788 = vmul.f32 %v704, %v756
      %v789 = vmul.f32 %v706, %v757
      %v790 = vmul.f32 %v708, %v758
      %v791 = vmul.f32 %v710, %v759
      %v792 = vmul.f32 %v712, %v760
      %v793 = vmul.f32 %v714, %v761
      %v794 = vmul.f32 %v716, %v762
      %v795 = vmul.f32 %v718, %v763
      %v796 = vmul.f32 %v720, %v764
      %v797 = vmul.f32 %v722, %v765
      %v798 = vmul.f32 %v724, %v766
      %v799 = vmul.f32 %v726, %v767
      %v800 = vmul.f32 %v728, %v768
      %v801 = vmul.f32 %v730, %v769
      %v802 = vmul.f32 %v732, %v770
      %v803 = vmul.f32 %v734, %v771
      %v804 = vmul.f32 %v736, %v772
      %v805 = vmul.f32 %v738, %v773
      %v806 = vmul.f32 %v740, %v774
      %v807 = vmul.f32 %v742, %v775
      %v808 = vmul.f32 %v744, %v776
      %v809 = vmul.f32 %v617, %v777
      %v810 = vmul.f32 %v618, %v778
      %v811 = vmul.f32 %v619, %v779
      %v812 = vmul.f32 %v620, %v780
      %v813 = vmul.f32 %v621, %v781
      %v814 = vmul.f32 %v622, %v782
      %v815 = vmul.f32 %v623, %v783
      %v816 = vmul.f32 %v624, %v784
      %v817 = vmul.f32 %v625, %v785
      %v818 = vmul.f32 %v626, %v786
      %v819 = vmul.f32 %v627, %v787
      %v820 = vmul.f32 %v628, %v788
      %v821 = vmul.f32 %v629, %v789
      %v822 = vmul.f32 %v630, %v790
      %v823 = vmul.f32 %v631, %v791
      %v824 = vmul.f32 %v632, %v792
      %v825 = vmul.f32 %v633, %v793
      %v826 = vmul.f32 %v634, %v794
      %v827 = vmul.f32 %v635, %v795
      %v828 = vmul.f32 %v636, %v796
      %v829 = vmul.f32 %v637, %v797
      %v830 = vmul.f32 %v638, %v798
      %v831 = vmul.f32 %v639, %v799
      %v832 = vmul.f32 %v640, %v800
      %v833 = vmul.f32 %v641, %v801
      %v834 = vmul.f32 %v642, %v802
      %v835 = vmul.f32 %v643, %v803
      %v836 = vmul.f32 %v644, %v804
      %v837 = vmul.f32 %v645, %v805
      %v838 = vmul.f32 %v646, %v806
      %v839 = vmul.f32 %v647, %v807
      %v840 = vmul.f32 %v648, %v808
      %v841 = vadd.f32 %v777, 2.0
      %v842 = vadd.f32 %v778, 2.0
      %v843 = vadd.f32 %v779, 2.0
      %v844 = vadd.f32 %v780, 2.0
      %v845 = vadd.f32 %v781, 2.0
      %v846 = vadd.f32 %v782, 2.0
      %v847 = vadd.f32 %v783, 2.0
      %v848 = vadd.f32 %v784, 2.0
      %v849 = vadd.f32 %v785, 2.0
      %v850 = vadd.f32 %v786, 2.0
      %v851 = vadd.f32 %v787, 2.0
      %v852 = vadd.f32 %v788, 2.0
      %v853 = vadd.f32 %v789, 2.0
      %v854 = vadd.f32 %v790, 2.0
      %v855 = vadd.f32 %v791, 2.0
      %v856 = vadd.f32 %v792, 2.0
      %v857 = vadd.f32 %v793, 2.0
      %v858 = vadd.f32 %v794, 2.0
      %v859 = vadd.f32 %v795, 2.0
      %v860 = vadd.f32 %v796, 2.0
      %v861 = vadd.f32 %v797, 2.0
      %v862 = vadd.f32 %v798, 2.0
      %v863 = vadd.f32 %v799, 2.0
      %v864 = vadd.f32 %v800, 2.0
      %v865 = vadd.f32 %v801, 2.0
      %v866 = vadd.f32 %v802, 2.0
      %v867 = vadd.f32 %v803, 2.0
      %v868 = vadd.f32 %v804, 2.0
      %v869 = vadd.f32 %v805, 2.0
      %v870 = vadd.f32 %v806, 2.0
      %v871 = vadd.f32 %v807, 2.0
      %v872 = vadd.f32 %v808, 2.0
      %v873 = vrcp.pop %v841
      %v874 = vrcp.pop %v842
      %v875 = vrcp.pop %v843
      %v876 = vrcp.pop %v844
      %v877 = vrcp.pop %v845
      %v878 = vrcp.pop %v846
      %v879 = vrcp.pop %v847
      %v880 = vrcp.pop %v848
      %v881 = vrcp.pop %v849
      %v882 = vrcp.pop %v850
      %v883 = vrcp.pop %v851
      %v884 = vrcp.pop %v852
      %v885 = vrcp.pop %v853
      %v886 = vrcp.pop %v854
      %v887 = vrcp.pop %v855
      %v888 = vrcp.pop %v856
      %v889 = vrcp.pop %v857
      %v890 = vrcp.pop %v858
      %v891 = vrcp.pop %v859
      %v892 = vrcp.pop %v860
      %v893 = vrcp.pop %v861
      %v894 = vrcp.pop %v862
      %v895 = vrcp.pop %v863
      %v896 = vrcp.pop %v864
      %v897 = vrcp.pop %v865
      %v898 = vrcp.pop %v866
      %v899 = vrcp.pop %v867
      %v900 = vrcp.pop %v868
      %v901 = vrcp.pop %v869
      %v902 = vrcp.pop %v870
      %v903 = vrcp.pop %v871
      %v904 = vrcp.pop %v872
      %v905 = vmul.f32 %v809, %v873
      %v906 = vmul.f32 %v810, %v874
      %v907 = vmul.f32 %v811, %v875
      %v908 = vmul.f32 %v812, %v876
      %v909 = vmul.f32 %v813, %v877
      %v910 = vmul.f32 %v814, %v878
      %v911 = vmul.f32 %v815, %v879
      %v912 = vmul.f32 %v816, %v880
      %v913 = vmul.f32 %v817, %v881
      %v914 = vmul.f32 %v818, %v882
      %v915 = vmul.f32 %v819, %v883
      %v916 = vmul.f32 %v820, %v884
      %v917 = vmul.f32 %v821, %v885
      %v918 = vmul.f32 %v822, %v886
      %v919 = vmul.f32 %v823, %v887
      %v920 = vmul.f32 %v824, %v888
      %v921 = vmul.f32 %v825, %v889
      %v922 = vmul.f32 %v826, %v890
      %v923 = vmul.f32 %v827, %v891
      %v924 = vmul.f32 %v828, %v892
      %v925 = vmul.f32 %v829, %v893
      %v926 = vmul.f32 %v830, %v894
      %v927 = vmul.f32 %v831, %v895
      %v928 = vmul.f32 %v832, %v896
      %v929 = vmul.f32 %v833, %v897
      %v930 = vmul.f32 %v834, %v898
      %v931 = vmul.f32 %v835, %v899
      %v932 = vmul.f32 %v836, %v900
      %v933 = vmul.f32 %v837, %v901
      %v934 = vmul.f32 %v838, %v902
      %v935 = vmul.f32 %v839, %v903
      %v936 = vmul.f32 %v840, %v904
      %937 = vst [vmem:[%s217] sm:$0xff] %v905
      %938 = vst [vmem:[%s217 + $0x8] sm:$0xff] %v906
      %939 = vst [vmem:[%s217 + $0x10] sm:$0xff] %v907
      %940 = vst [vmem:[%s217 + $0x18] sm:$0xff] %v908
      %941 = vst [vmem:[%s217 + $0x20] sm:$0xff] %v909
      %942 = vst [vmem:[%s217 + $0x28] sm:$0xff] %v910
      %943 = vst [vmem:[%s217 + $0x30] sm:$0xff] %v911
      %944 = vst [vmem:[%s217 + $0x38] sm:$0xff] %v912
      %945 = vst [vmem:[%s217 + $0x40] sm:$0xff] %v913
      %946 = vst [vmem:[%s217 + $0x48] sm:$0xff] %v914
      %947 = vst [vmem:[%s217 + $0x50] sm:$0xff] %v915
      %948 = vst [vmem:[%s217 + $0x58] sm:$0xff] %v916
      %949 = vst [vmem:[%s217 + $0x60] sm:$0xff] %v917
      %950 = vst [vmem:[%s217 + $0x68] sm:$0xff] %v918
      %951 = vst [vmem:[%s217 + $0x70] sm:$0xff] %v919
      %952 = vst [vmem:[%s217 + $0x78] sm:$0xff] %v920
      %953 = vst [vmem:[%s217 + $0x80] sm:$0xff] %v921
      %954 = vst [vmem:[%s217 + $0x88] sm:$0xff] %v922
      %955 = vst [vmem:[%s217 + $0x90] sm:$0xff] %v923
      %956 = vst [vmem:[%s217 + $0x98] sm:$0xff] %v924
      %957 = vst [vmem:[%s217 + $0xa0] sm:$0xff] %v925
      %958 = vst [vmem:[%s217 + $0xa8] sm:$0xff] %v926
      %959 = vst [vmem:[%s217 + $0xb0] sm:$0xff] %v927
      %960 = vst [vmem:[%s217 + $0xb8] sm:$0xff] %v928
      %961 = vst [vmem:[%s217 + $0xc0] sm:$0xff] %v929
      %962 = vst [vmem:[%s217 + $0xc8] sm:$0xff] %v930
      %963 = vst [vmem:[%s217 + $0xd0] sm:$0xff] %v931
      %964 = vst [vmem:[%s217 + $0xd8] sm:$0xff] %v932
      %965 = vst [vmem:[%s217 + $0xe0] sm:$0xff] %v933
      %966 = vst [vmem:[%s217 + $0xe8] sm:$0xff] %v934
      %967 = vst [vmem:[%s217 + $0xf0] sm:$0xff] %v935
      %968 = vst [vmem:[%s217 + $0xf8] sm:$0xff] %v936
      %p969 = scmp.lt.s32.totalorder %s15, 1
      %s970 = scalar_select %p969, %s15, 1
      %s971 = smul.addr %s970, 32
      %s972 = smul.addr %s971, 8
      %s973 = scalar_lea.vmem %s4, %s972
      // Predicated region
      $region37: #{resblock_pallas.5} parent=35 // pred_check
        %p974 = pneg %p127
      $region38: #{resblock_pallas.5} parent=35 // pred_check_branch
        %976 = sbr.rel (%p974) target = $region40
      $region39: #{resblock_pallas.5} parent=35 // pred_region
        _
      $region40: #{resblock_pallas.5} parent=35 // pred_fallthru
        _
    $region36: #{resblock_pallas.5} parent=5 // pred_fallthru
      _
    %p977 = scmp.le.s32.totalorder 2, %s10
    // Predicated region
    $region41: #{resblock_pallas.5} parent=5 // pred_check
      %p978 = pneg %p977
    $region42: #{resblock_pallas.5} parent=5 // pred_check_branch
      %980 = sbr.rel (%p978) target = $region44
    $region43: #{resblock_pallas.5} parent=5 // pred_region
      %s981 = ssub.s32 %s10, 2
      // Predicated region
      $region45: #{resblock_pallas.5} parent=43 // pred_check
        %p982 = pneg %p133
      $region46: #{resblock_pallas.5} parent=43 // pred_check_branch
        %984 = sbr.rel (%p982) target = $region48
      $region47: #{resblock_pallas.5} parent=43 // pred_region
        %p985 = scmp.lt.s32.totalorder %s16, 1
        %s986 = scalar_select %p985, %s16, 1
        %s987 = smul.addr %s986, 32
        %s988 = smul.addr %s987, 8
        %s989 = scalar_lea.vmem %s4, %s988
      $region48: #{resblock_pallas.5} parent=43 // pred_fallthru
        _
    $region44: #{resblock_pallas.5} parent=5 // pred_fallthru
      _
  $region6: #{resblock_pallas.5} parent=0 // loop_footer
    %s14 = sadd.s32 1, %s10
  $region7: #{resblock_pallas.5} parent=0 // loop_footer_branch
    %9 = sbr.rel target = $region3
  $region8: #{resblock_pallas.5} parent=0 // loop_exit
    _

// kernel: resblock_pallas.4
$region0: #{resblock_pallas.4}
  #allocation0 [shape = 'u32[]', space=smem, size = 0x4, offset = 0x4, fixed_abs, tag = 'smem constant byte address 0x4 - core index']
  #allocation1 [shape = 'u32[144,128]{1,0:T(1,128)}', space=vmem, size = 0x12000, scoped, tag = 'internal scratch']
  %s0 = inlined_call_operand.vmem [shape: bf16[2,18,24,128], index: 0, kind: input, shape index: {}]
  %s1 = inlined_call_operand.vmem [shape: f32[1,1,128], index: 1, kind: input, shape index: {}]
  %s2 = inlined_call_operand.vmem [shape: f32[1,1,128], index: 2, kind: input, shape index: {}]
  %s3 = inlined_call_operand.vmem [shape: bf16[384,384], index: 3, kind: input, shape index: {}]
  %s4 = inlined_call_operand.vmem [shape: bf16[2,16,16,128], index: 4, kind: output, shape index: {0}]
  %s5 = inlined_call_operand.vmem [shape: f32[2,1,128], index: 5, kind: output, shape index: {1}]
  %s6 = inlined_call_operand.vmem [shape: f32[2,1,128], index: 6, kind: output, shape index: {2}]
  %7 = xla_tuple %s4, %s5, %s6
  %s8 = sld [smem:[#allocation0]]
  $region65: #{resblock_pallas.4} parent=0
    _
  %s10 = ssub.s32 1, %s8
  %s11 = scalar_select 0, %s10, %s8
  loop: start=0, step=1, limit=4
  $region2: #{resblock_pallas.4} parent=0 // loop_pre_header
    _
  $region3: #{resblock_pallas.4} parent=0 // loop_header
    %s13 = sphi 0, %s17
    %p14 = scmp.ge.s32.totalorder %s13, 4
    %s23 = sphi 0, %s25
    %s26 = sphi 0, %s23
    %s27 = sphi 0, %s26
    %s43 = sphi 0, %s27
    %s47 = sphi 0, %s47
    %s49 = sphi 0, %s47
    %s50 = sphi 0, %s49
    %s64 = sphi 0, %s50
    %s68 = sphi 0, %s68
    %s70 = sphi 0, %s68
    %s71 = sphi 0, %s70
    %s85 = sphi 0, %s71
    %s89 = sphi 0, %s89
    %s91 = sphi 0, %s89
    %s92 = sphi 0, %s91
    %s106 = sphi 0, %s92
    %s112 = sphi 0, %s114
    %s115 = sphi 0, %s112
    %s116 = sphi 0, %s115
    %s132 = sphi 0, %s116
    %s138 = sphi 0, %s140
    %s141 = sphi 0, %s138
    %s142 = sphi 0, %s141
    %s158 = sphi 0, %s142
    %s164 = sphi 0, %s166
    %s167 = sphi 0, %s164
    %s168 = sphi 0, %s167
    %s184 = sphi 0, %s168
  $region4: #{resblock_pallas.4} parent=0 // loop_header_branch
    %16 = sbr.rel (%p14) target = $region8
  $region5: #{resblock_pallas.4} parent=0 // loop_body
    %s18 = ssub.s32 %s13, 1
    %s19 = ssub.s32 %s13, 2
    %s20 = sadd.s32 %s13, 1
    %s21 = ssub.s32 %s13, %s20
    %p22 = scmp.eq.s32.totalorder %s21, 0
    %s24 = sadd.s32 %s23, 1
    %s25 = scalar_select %p22, %s23, %s24
    %p28 = pneg %p22
    %p29 = scmp.eq.s32.totalorder %s13, 1
    %p30 = por %p28, %p29
    %p31 = scmp.ne.s32.totalorder %s23, %s26
    %p32 = scmp.eq.s32.totalorder %s13, 0
    %p33 = por %p31, %p32
    %p34 = scmp.ne.s32.totalorder %s23, %s26
    %p35 = scmp.eq.s32.totalorder %s18, 1
    %p36 = por %p34, %p35
    %p37 = scmp.ne.s32.totalorder %s26, %s27
    %p38 = scmp.eq.s32.totalorder %s18, 0
    %p39 = por %p37, %p38
    %p40 = scmp.ne.s32.totalorder %s26, %s27
    %p41 = scmp.eq.s32.totalorder %s19, 1
    %p42 = por %p40, %p41
    %p44 = scmp.ne.s32.totalorder %s27, %s43
    %p45 = scmp.eq.s32.totalorder %s19, 0
    %p46 = por %p44, %p45
    %s48 = sadd.s32 %s47, 1
    %p51 = scmp.eq.s32.totalorder %s13, 1
    %p52 = scmp.ne.s32.totalorder %s47, %s49
    %p53 = scmp.eq.s32.totalorder %s13, 0
    %p54 = por %p52, %p53
    %p55 = scmp.ne.s32.totalorder %s47, %s49
    %p56 = scmp.eq.s32.totalorder %s18, 1
    %p57 = por %p55, %p56
    %p58 = scmp.ne.s32.totalorder %s49, %s50
    %p59 = scmp.eq.s32.totalorder %s18, 0
    %p60 = por %p58, %p59
    %p61 = scmp.ne.s32.totalorder %s49, %s50
    %p62 = scmp.eq.s32.totalorder %s19, 1
    %p63 = por %p61, %p62
    %p65 = scmp.ne.s32.totalorder %s50, %s64
    %p66 = scmp.eq.s32.totalorder %s19, 0
    %p67 = por %p65, %p66
    %s69 = sadd.s32 %s68, 1
    %p72 = scmp.eq.s32.totalorder %s13, 1
    %p73 = scmp.ne.s32.totalorder %s68, %s70
    %p74 = scmp.eq.s32.totalorder %s13, 0
    %p75 = por %p73, %p74
    %p76 = scmp.ne.s32.totalorder %s68, %s70
    %p77 = scmp.eq.s32.totalorder %s18, 1
    %p78 = por %p76, %p77
    %p79 = scmp.ne.s32.totalorder %s70, %s71
    %p80 = scmp.eq.s32.totalorder %s18, 0
    %p81 = por %p79, %p80
    %p82 = scmp.ne.s32.totalorder %s70, %s71
    %p83 = scmp.eq.s32.totalorder %s19, 1
    %p84 = por %p82, %p83
    %p86 = scmp.ne.s32.totalorder %s71, %s85
    %p87 = scmp.eq.s32.totalorder %s19, 0
    %p88 = por %p86, %p87
    %s90 = sadd.s32 %s89, 1
    %p93 = scmp.eq.s32.totalorder %s13, 1
    %p94 = scmp.ne.s32.totalorder %s89, %s91
    %p95 = scmp.eq.s32.totalorder %s13, 0
    %p96 = por %p94, %p95
    %p97 = scmp.ne.s32.totalorder %s89, %s91
    %p98 = scmp.eq.s32.totalorder %s18, 1
    %p99 = por %p97, %p98
    %p100 = scmp.ne.s32.totalorder %s91, %s92
    %p101 = scmp.eq.s32.totalorder %s18, 0
    %p102 = por %p100, %p101
    %p103 = scmp.ne.s32.totalorder %s91, %s92
    %p104 = scmp.eq.s32.totalorder %s19, 1
    %p105 = por %p103, %p104
    %p107 = scmp.ne.s32.totalorder %s92, %s106
    %p108 = scmp.eq.s32.totalorder %s19, 0
    %p109 = por %p107, %p108
    %s110 = ssub.s32 %s13, %s20
    %p111 = scmp.eq.s32.totalorder %s110, 0
    %s113 = sadd.s32 %s112, 1
    %s114 = scalar_select %p111, %s112, %s113
    %p117 = pneg %p111
    %p118 = scmp.eq.s32.totalorder %s13, 1
    %p119 = por %p117, %p118
    %p120 = scmp.ne.s32.totalorder %s112, %s115
    %p121 = scmp.eq.s32.totalorder %s13, 0
    %p122 = por %p120, %p121
    %p123 = scmp.ne.s32.totalorder %s112, %s115
    %p124 = scmp.eq.s32.totalorder %s18, 1
    %p125 = por %p123, %p124
    %p126 = scmp.ne.s32.totalorder %s115, %s116
    %p127 = scmp.eq.s32.totalorder %s18, 0
    %p128 = por %p126, %p127
    %p129 = scmp.ne.s32.totalorder %s115, %s116
    %p130 = scmp.eq.s32.totalorder %s19, 1
    %p131 = por %p129, %p130
    %p133 = scmp.ne.s32.totalorder %s116, %s132
    %p134 = scmp.eq.s32.totalorder %s19, 0
    %p135 = por %p133, %p134
    %s136 = ssub.s32 %s13, %s20
    %p137 = scmp.eq.s32.totalorder %s136, 0
    %s139 = sadd.s32 %s138, 1
    %s140 = scalar_select %p137, %s138, %s139
    %p143 = pneg %p137
    %p144 = scmp.eq.s32.totalorder %s13, 1
    %p145 = por %p143, %p144
    %p146 = scmp.ne.s32.totalorder %s138, %s141
    %p147 = scmp.eq.s32.totalorder %s13, 0
    %p148 = por %p146, %p147
    %p149 = scmp.ne.s32.totalorder %s138, %s141
    %p150 = scmp.eq.s32.totalorder %s18, 1
    %p151 = por %p149, %p150
    %p152 = scmp.ne.s32.totalorder %s141, %s142
    %p153 = scmp.eq.s32.totalorder %s18, 0
    %p154 = por %p152, %p153
    %p155 = scmp.ne.s32.totalorder %s141, %s142
    %p156 = scmp.eq.s32.totalorder %s19, 1
    %p157 = por %p155, %p156
    %p159 = scmp.ne.s32.totalorder %s142, %s158
    %p160 = scmp.eq.s32.totalorder %s19, 0
    %p161 = por %p159, %p160
    %s162 = ssub.s32 %s13, %s20
    %p163 = scmp.eq.s32.totalorder %s162, 0
    %s165 = sadd.s32 %s164, 1
    %s166 = scalar_select %p163, %s164, %s165
    %p169 = pneg %p163
    %p170 = scmp.eq.s32.totalorder %s13, 1
    %p171 = por %p169, %p170
    %p172 = scmp.ne.s32.totalorder %s164, %s167
    %p173 = scmp.eq.s32.totalorder %s13, 0
    %p174 = por %p172, %p173
    %p175 = scmp.ne.s32.totalorder %s164, %s167
    %p176 = scmp.eq.s32.totalorder %s18, 1
    %p177 = por %p175, %p176
    %p178 = scmp.ne.s32.totalorder %s167, %s168
    %p179 = scmp.eq.s32.totalorder %s18, 0
    %p180 = por %p178, %p179
    %p181 = scmp.ne.s32.totalorder %s167, %s168
    %p182 = scmp.eq.s32.totalorder %s19, 1
    %p183 = por %p181, %p182
    %p185 = scmp.ne.s32.totalorder %s168, %s184
    %p186 = scmp.eq.s32.totalorder %s19, 0
    %p187 = por %p185, %p186
    %p188 = scmp.le.s32.totalorder 1, %s13
    %p189 = scmp.lt.s32.totalorder %s13, 3
    %p190 = pnand %p188, %p189
    %p191 = pneg %p190
    // Predicated region
    $region9: #{resblock_pallas.4} parent=5 // pred_check
      _
    $region10: #{resblock_pallas.4} parent=5 // pred_check_branch
      %193 = sbr.rel (%p190) target = $region12
    $region11: #{resblock_pallas.4} parent=5 // pred_region
      %s194 = ssub.s32 %s13, 1
      // Predicated region
      $region13: #{resblock_pallas.4} parent=11 // pred_check
        %p195 = pneg %p60
      $region14: #{resblock_pallas.4} parent=11 // pred_check_branch
        %197 = sbr.rel (%p195) target = $region16
      $region15: #{resblock_pallas.4} parent=11 // pred_region
        _
      $region16: #{resblock_pallas.4} parent=11 // pred_fallthru
        _
      // Predicated region
      $region17: #{resblock_pallas.4} parent=11 // pred_check
        %p198 = pneg %p81
      $region18: #{resblock_pallas.4} parent=11 // pred_check_branch
        %200 = sbr.rel (%p198) target = $region20
      $region19: #{resblock_pallas.4} parent=11 // pred_region
        _
      $region20: #{resblock_pallas.4} parent=11 // pred_fallthru
        _
      // Predicated region
      $region21: #{resblock_pallas.4} parent=11 // pred_check
        %p201 = pneg %p102
      $region22: #{resblock_pallas.4} parent=11 // pred_check_branch
        %203 = sbr.rel (%p201) target = $region24
      $region23: #{resblock_pallas.4} parent=11 // pred_region
        _
      $region24: #{resblock_pallas.4} parent=11 // pred_fallthru
        _
    $region12: #{resblock_pallas.4} parent=5 // pred_fallthru
      _
    %p204 = scmp.lt.s32.totalorder %s13, 2
    // Predicated region
    $region25: #{resblock_pallas.4} parent=5 // pred_check
      %p205 = pneg %p204
    $region26: #{resblock_pallas.4} parent=5 // pred_check_branch
      %207 = sbr.rel (%p205) target = $region28
    $region27: #{resblock_pallas.4} parent=5 // pred_region
      // Predicated region
      $region29: #{resblock_pallas.4} parent=27 // pred_check
        %p208 = pneg %p33
      $region30: #{resblock_pallas.4} parent=27 // pred_check_branch
        %210 = sbr.rel (%p208) target = $region32
      $region31: #{resblock_pallas.4} parent=27 // pred_region
        %p211 = scmp.lt.s32.totalorder %s13, 1
        %s212 = scalar_select %p211, %s13, 1
        %s213 = smul.addr %s212, 54
        %s214 = smul.addr %s213, 4
        %s215 = scalar_lea.vmem %s0, %s214
      $region32: #{resblock_pallas.4} parent=27 // pred_fallthru
        _
    $region28: #{resblock_pallas.4} parent=5 // pred_fallthru
      _
    %p216 = scmp.le.s32.totalorder 1, %s13
    %p217 = scmp.lt.s32.totalorder %s13, 3
    %p218 = pnand %p216, %p217
    %p219 = pneg %p218
    // Predicated region
    $region33: #{resblock_pallas.4} parent=5 // pred_check
      _
    $region34: #{resblock_pallas.4} parent=5 // pred_check_branch
      %221 = sbr.rel (%p218) target = $region36
    $region35: #{resblock_pallas.4} parent=5 // pred_region
      %s222 = ssub.s32 %s13, 1
      %p223 = scmp.lt.s32.totalorder %s18, 1
      %s224 = scalar_select %p223, %s18, 1
      %s225 = smul.addr %s224, 54
      %s226 = smul.addr %s225, 4
      %s227 = scalar_lea.vmem %s0, %s226
      %p228 = pneg %p39
      %p229 = pneg %p36
      %p230 = pneg %p60
      %p231 = pneg %p57
      %p232 = pneg %p81
      %p233 = pneg %p78
      %p234 = pneg %p102
      %p235 = pneg %p99
      %p236 = pneg %p128
      %p237 = pneg %p125
      %p238 = scmp.lt.s32.totalorder %s18, 1
      %s239 = scalar_select %p238, %s18, 1
      %s240 = smul.addr %s239, 32
      %s241 = smul.addr %s240, 4
      %s242 = scalar_lea.vmem %s4, %s241
      %p243 = pneg %p154
      %p244 = pneg %p151
      %p245 = scmp.lt.s32.totalorder %s18, 1
      %s246 = scalar_select %p245, %s18, 1
      %s247 = scalar_lea.vmem %s5, %s246
      %p248 = pneg %p180
      %p249 = pneg %p177
      %p250 = scmp.lt.s32.totalorder %s18, 1
      %s251 = scalar_select %p250, %s18, 1
      %s252 = scalar_lea.vmem %s6, %s251
      %p253 = scmp.lt.s32.totalorder %s18, 1
      %s254 = scalar_select %p253, %s18, 1
      %s255 = smul.addr %s254, 54
      %s256 = smul.addr %s255, 4
      %s257 = scalar_lea.vmem %s0, %s256
      %p258 = scmp.lt.s32.totalorder %s18, 1
      %s259 = scalar_select %p258, %s18, 1
      %s260 = smul.addr %s259, 32
      %s261 = smul.addr %s260, 4
      %s262 = scalar_lea.vmem %s4, %s261
      %p263 = scmp.lt.s32.totalorder %s18, 1
      %s264 = scalar_select %p263, %s18, 1
      %s265 = scalar_lea.vmem %s5, %s264
      %p266 = scmp.lt.s32.totalorder %s18, 1
      %s267 = scalar_select %p266, %s18, 1
      %s268 = scalar_lea.vmem %s6, %s267
      %v270 = vld [vmem:[%s257] sm:$0xf]
      %v271 = vld [vmem:[%s257 + $0x4] sm:$0xf]
      %v272 = vld [vmem:[%s257 + $0x8] sm:$0xf]
      %v273 = vld [vmem:[%s257 + $0xc] sm:$0xf]
      %v274 = vld [vmem:[%s257 + $0x10] sm:$0xf]
      %v275 = vld [vmem:[%s257 + $0x14] sm:$0xf]
      %v276 = vld [vmem:[%s257 + $0x18] sm:$0xf]
      %v277 = vld [vmem:[%s257 + $0x1c] sm:$0xf]
      %v278 = vld [vmem:[%s257 + $0x20] sm:$0xf]
      %v279 = vld [vmem:[%s257 + $0x24] sm:$0xf]
      %v280 = vld [vmem:[%s257 + $0x28] sm:$0xf]
      %v281 = vld [vmem:[%s257 + $0x2c] sm:$0xf]
      %v282 = vld [vmem:[%s257 + $0x30] sm:$0xf]
      %v283 = vld [vmem:[%s257 + $0x34] sm:$0xf]
      %v284 = vld [vmem:[%s257 + $0x38] sm:$0xf]
      %v285 = vld [vmem:[%s257 + $0x3c] sm:$0xf]
      %v286 = vld [vmem:[%s257 + $0x40] sm:$0xf]
      %v287 = vld [vmem:[%s257 + $0x44] sm:$0xf]
      %v288 = vld [vmem:[%s257 + $0x48] sm:$0xf]
      %v289 = vld [vmem:[%s257 + $0x4c] sm:$0xf]
      %v290 = vld [vmem:[%s257 + $0x50] sm:$0xf]
      %v291 = vld [vmem:[%s257 + $0x54] sm:$0xf]
      %v292 = vld [vmem:[%s257 + $0x58] sm:$0xf]
      %v293 = vld [vmem:[%s257 + $0x5c] sm:$0xf]
      %v294 = vld [vmem:[%s257 + $0x60] sm:$0xf]
      %v295 = vld [vmem:[%s257 + $0x64] sm:$0xf]
      %v296 = vld [vmem:[%s257 + $0x68] sm:$0xf]
      %v297 = vld [vmem:[%s257 + $0x6c] sm:$0xf]
      %v298 = vld [vmem:[%s257 + $0x70] sm:$0xf]
      %v299 = vld [vmem:[%s257 + $0x74] sm:$0xf]
      %v300 = vld [vmem:[%s257 + $0x78] sm:$0xf]
      %v301 = vld [vmem:[%s257 + $0x7c] sm:$0xf]
      %v302 = vld [vmem:[%s257 + $0x80] sm:$0xf]
      %v303 = vld [vmem:[%s257 + $0x84] sm:$0xf]
      %v304 = vld [vmem:[%s257 + $0x88] sm:$0xf]
      %v305 = vld [vmem:[%s257 + $0x8c] sm:$0xf]
      %v306 = vld [vmem:[%s257 + $0x90] sm:$0xf]
      %v307 = vld [vmem:[%s257 + $0x94] sm:$0xf]
      %v308 = vld [vmem:[%s257 + $0x98] sm:$0xf]
      %v309 = vld [vmem:[%s257 + $0x9c] sm:$0xf]
      %v310 = vld [vmem:[%s257 + $0xa0] sm:$0xf]
      %v311 = vld [vmem:[%s257 + $0xa4] sm:$0xf]
      %v312 = vld [vmem:[%s257 + $0xa8] sm:$0xf]
      %v313 = vld [vmem:[%s257 + $0xac] sm:$0xf]
      %v314 = vld [vmem:[%s257 + $0xb0] sm:$0xf]
      %v315 = vld [vmem:[%s257 + $0xb4] sm:$0xf]
      %v316 = vld [vmem:[%s257 + $0xb8] sm:$0xf]
      %v317 = vld [vmem:[%s257 + $0xbc] sm:$0xf]
      %v318 = vld [vmem:[%s257 + $0xc0] sm:$0xf]
      %v319 = vld [vmem:[%s257 + $0xc4] sm:$0xf]
      %v320 = vld [vmem:[%s257 + $0xc8] sm:$0xf]
      %v321 = vld [vmem:[%s257 + $0xcc] sm:$0xf]
      %v322 = vld [vmem:[%s257 + $0xd0] sm:$0xf]
      %v323 = vld [vmem:[%s257 + $0xd4] sm:$0xf]
      %v324 = vunpack.c.l.bf16 %v270
      %v325 = vunpack.c.l.bf16 %v271
      %v326 = vunpack.c.l.bf16 %v272
      %v327 = vunpack.c.l.bf16 %v273
      %v328 = vunpack.c.l.bf16 %v274
      %v329 = vunpack.c.l.bf16 %v275
      %v330 = vunpack.c.l.bf16 %v276
      %v331 = vunpack.c.l.bf16 %v277
      %v332 = vunpack.c.l.bf16 %v278
      %v333 = vunpack.c.l.bf16 %v279
      %v334 = vunpack.c.l.bf16 %v280
      %v335 = vunpack.c.l.bf16 %v281
      %v336 = vunpack.c.l.bf16 %v282
      %v337 = vunpack.c.l.bf16 %v283
      %v338 = vunpack.c.l.bf16 %v284
      %v339 = vunpack.c.l.bf16 %v285
      %v340 = vunpack.c.l.bf16 %v286
      %v341 = vunpack.c.l.bf16 %v287
      %v342 = vunpack.c.l.bf16 %v288
      %v343 = vunpack.c.l.bf16 %v289
      %v344 = vunpack.c.l.bf16 %v290
      %v345 = vunpack.c.l.bf16 %v291
      %v346 = vunpack.c.l.bf16 %v292
      %v347 = vunpack.c.l.bf16 %v293
      %v348 = vunpack.c.l.bf16 %v294
      %v349 = vunpack.c.l.bf16 %v295
      %v350 = vunpack.c.l.bf16 %v296
      %v351 = vunpack.c.l.bf16 %v297
      %v352 = vunpack.c.l.bf16 %v298
      %v353 = vunpack.c.l.bf16 %v299
      %v354 = vunpack.c.l.bf16 %v300
      %v355 = vunpack.c.l.bf16 %v301
      %v356 = vunpack.c.l.bf16 %v302
      %v357 = vunpack.c.l.bf16 %v303
      %v358 = vunpack.c.l.bf16 %v304
      %v359 = vunpack.c.l.bf16 %v305
      %v360 = vunpack.c.l.bf16 %v306
      %v361 = vunpack.c.l.bf16 %v307
      %v362 = vunpack.c.l.bf16 %v308
      %v363 = vunpack.c.l.bf16 %v309
      %v364 = vunpack.c.l.bf16 %v310
      %v365 = vunpack.c.l.bf16 %v311
      %v366 = vunpack.c.l.bf16 %v312
      %v367 = vunpack.c.l.bf16 %v313
      %v368 = vunpack.c.l.bf16 %v314
      %v369 = vunpack.c.l.bf16 %v315
      %v370 = vunpack.c.l.bf16 %v316
      %v371 = vunpack.c.l.bf16 %v317
      %v372 = vunpack.c.l.bf16 %v318
      %v373 = vunpack.c.l.bf16 %v319
      %v374 = vunpack.c.l.bf16 %v320
      %v375 = vunpack.c.l.bf16 %v321
      %v376 = vunpack.c.l.bf16 %v322
      %v377 = vunpack.c.l.bf16 %v323
      %v378 = vld [vmem:[%s1] sm:$0x1]
      %v380 = vlaneseq
      %v381 = vshrl.u32 %v380, 7
      %v382 = vsub.s32 0, %v381
      %v383 = vrot.slane %v378, %v382
      %v385 = vmul.f32 %v324, %v383
      %v386 = vmul.f32 %v325, %v383
      %v387 = vmul.f32 %v326, %v383
      %v388 = vmul.f32 %v327, %v383
      %v389 = vmul.f32 %v328, %v383
      %v390 = vmul.f32 %v329, %v383
      %v391 = vmul.f32 %v330, %v383
      %v392 = vmul.f32 %v331, %v383
      %v393 = vmul.f32 %v332, %v383
      %v394 = vmul.f32 %v333, %v383
      %v395 = vmul.f32 %v334, %v383
      %v396 = vmul.f32 %v335, %v383
      %v397 = vmul.f32 %v336, %v383
      %v398 = vmul.f32 %v337, %v383
      %v399 = vmul.f32 %v338, %v383
      %v400 = vmul.f32 %v339, %v383
      %v401 = vmul.f32 %v340, %v383
      %v402 = vmul.f32 %v341, %v383
      %v403 = vmul.f32 %v342, %v383
      %v404 = vmul.f32 %v343, %v383
      %v405 = vmul.f32 %v344, %v383
      %v406 = vmul.f32 %v345, %v383
      %v407 = vmul.f32 %v346, %v383
      %v408 = vmul.f32 %v347, %v383
      %v409 = vmul.f32 %v348, %v383
      %v410 = vmul.f32 %v349, %v383
      %v411 = vmul.f32 %v350, %v383
      %v412 = vmul.f32 %v351, %v383
      %v413 = vmul.f32 %v352, %v383
      %v414 = vmul.f32 %v353, %v383
      %v415 = vmul.f32 %v354, %v383
      %v416 = vmul.f32 %v355, %v383
      %v417 = vmul.f32 %v356, %v383
      %v418 = vmul.f32 %v357, %v383
      %v419 = vmul.f32 %v358, %v383
      %v420 = vmul.f32 %v359, %v383
      %v421 = vmul.f32 %v360, %v383
      %v422 = vmul.f32 %v361, %v383
      %v423 = vmul.f32 %v362, %v383
      %v424 = vmul.f32 %v363, %v383
      %v425 = vmul.f32 %v364, %v383
      %v426 = vmul.f32 %v365, %v383
      %v427 = vmul.f32 %v366, %v383
      %v428 = vmul.f32 %v367, %v383
      %v429 = vmul.f32 %v368, %v383
      %v430 = vmul.f32 %v369, %v383
      %v431 = vmul.f32 %v370, %v383
      %v432 = vmul.f32 %v371, %v383
      %v433 = vmul.f32 %v372, %v383
      %v434 = vmul.f32 %v373, %v383
      %v435 = vmul.f32 %v374, %v383
      %v436 = vmul.f32 %v375, %v383
      %v437 = vmul.f32 %v376, %v383
      %v438 = vmul.f32 %v377, %v383
      %v439 = vld [vmem:[%s2] sm:$0x1]
      %v441 = vlaneseq
      %v442 = vshrl.u32 %v441, 7
      %v443 = vsub.s32 0, %v442
      %v444 = vrot.slane %v439, %v443
      %v446 = vadd.f32 %v385, %v444
      %v447 = vadd.f32 %v386, %v444
      %v448 = vadd.f32 %v387, %v444
      %v449 = vadd.f32 %v388, %v444
      %v450 = vadd.f32 %v389, %v444
      %v451 = vadd.f32 %v390, %v444
      %v452 = vadd.f32 %v391, %v444
      %v453 = vadd.f32 %v392, %v444
      %v454 = vadd.f32 %v393, %v444
      %v455 = vadd.f32 %v394, %v444
      %v456 = vadd.f32 %v395, %v444
      %v457 = vadd.f32 %v396, %v444
      %v458 = vadd.f32 %v397, %v444
      %v459 = vadd.f32 %v398, %v444
      %v460 = vadd.f32 %v399, %v444
      %v461 = vadd.f32 %v400, %v444
      %v462 = vadd.f32 %v401, %v444
      %v463 = vadd.f32 %v402, %v444
      %v464 = vadd.f32 %v403, %v444
      %v465 = vadd.f32 %v404, %v444
      %v466 = vadd.f32 %v405, %v444
      %v467 = vadd.f32 %v406, %v444
      %v468 = vadd.f32 %v407, %v444
      %v469 = vadd.f32 %v408, %v444
      %v470 = vadd.f32 %v409, %v444
      %v471 = vadd.f32 %v410, %v444
      %v472 = vadd.f32 %v411, %v444
      %v473 = vadd.f32 %v412, %v444
      %v474 = vadd.f32 %v413, %v444
      %v475 = vadd.f32 %v414, %v444
      %v476 = vadd.f32 %v415, %v444
      %v477 = vadd.f32 %v416, %v444
      %v478 = vadd.f32 %v417, %v444
      %v479 = vadd.f32 %v418, %v444
      %v480 = vadd.f32 %v419, %v444
      %v481 = vadd.f32 %v420, %v444
      %v482 = vadd.f32 %v421, %v444
      %v483 = vadd.f32 %v422, %v444
      %v484 = vadd.f32 %v423, %v444
      %v485 = vadd.f32 %v424, %v444
      %v486 = vadd.f32 %v425, %v444
      %v487 = vadd.f32 %v426, %v444
      %v488 = vadd.f32 %v427, %v444
      %v489 = vadd.f32 %v428, %v444
      %v490 = vadd.f32 %v429, %v444
      %v491 = vadd.f32 %v430, %v444
      %v492 = vadd.f32 %v431, %v444
      %v493 = vadd.f32 %v432, %v444
      %v494 = vadd.f32 %v433, %v444
      %v495 = vadd.f32 %v434, %v444
      %v496 = vadd.f32 %v435, %v444
      %v497 = vadd.f32 %v436, %v444
      %v498 = vadd.f32 %v437, %v444
      %v499 = vadd.f32 %v438, %v444
      %v500 = vmin.f32 %v446, 20.0
      %v501 = vmin.f32 %v447, 20.0
      %v502 = vmin.f32 %v448, 20.0
      %v503 = vmin.f32 %v449, 20.0
      %v504 = vmin.f32 %v450, 20.0
      %v505 = vmin.f32 %v451, 20.0
      %v506 = vmin.f32 %v452, 20.0
      %v507 = vmin.f32 %v453, 20.0
      %v508 = vmin.f32 %v454, 20.0
      %v509 = vmin.f32 %v455, 20.0
      %v510 = vmin.f32 %v456, 20.0
      %v511 = vmin.f32 %v457, 20.0
      %v512 = vmin.f32 %v458, 20.0
      %v513 = vmin.f32 %v459, 20.0
      %v514 = vmin.f32 %v460, 20.0
      %v515 = vmin.f32 %v461, 20.0
      %v516 = vmin.f32 %v462, 20.0
      %v517 = vmin.f32 %v463, 20.0
      %v518 = vmin.f32 %v464, 20.0
      %v519 = vmin.f32 %v465, 20.0
      %v520 = vmin.f32 %v466, 20.0
      %v521 = vmin.f32 %v467, 20.0
      %v522 = vmin.f32 %v468, 20.0
      %v523 = vmin.f32 %v469, 20.0
      %v524 = vmin.f32 %v470, 20.0
      %v525 = vmin.f32 %v471, 20.0
      %v526 = vmin.f32 %v472, 20.0
      %v527 = vmin.f32 %v473, 20.0
      %v528 = vmin.f32 %v474, 20.0
      %v529 = vmin.f32 %v475, 20.0
      %v530 = vmin.f32 %v476, 20.0
      %v531 = vmin.f32 %v477, 20.0
      %v532 = vmin.f32 %v478, 20.0
      %v533 = vmin.f32 %v479, 20.0
      %v534 = vmin.f32 %v480, 20.0
      %v535 = vmin.f32 %v481, 20.0
      %v536 = vmin.f32 %v482, 20.0
      %v537 = vmin.f32 %v483, 20.0
      %v538 = vmin.f32 %v484, 20.0
      %v539 = vmin.f32 %v485, 20.0
      %v540 = vmin.f32 %v486, 20.0
      %v541 = vmin.f32 %v487, 20.0
      %v542 = vmin.f32 %v488, 20.0
      %v543 = vmin.f32 %v489, 20.0
      %v544 = vmin.f32 %v490, 20.0
      %v545 = vmin.f32 %v491, 20.0
      %v546 = vmin.f32 %v492, 20.0
      %v547 = vmin.f32 %v493, 20.0
      %v548 = vmin.f32 %v494, 20.0
      %v549 = vmin.f32 %v495, 20.0
      %v550 = vmin.f32 %v496, 20.0
      %v551 = vmin.f32 %v497, 20.0
      %v552 = vmin.f32 %v498, 20.0
      %v553 = vmin.f32 %v499, 20.0
      %v554 = vmul.f32 %v500, 1.442695
      %v555 = vpow.pop %v554
      %v556 = vmul.f32 %v501, 1.442695
      %v557 = vpow.pop %v556
      %v558 = vmul.f32 %v502, 1.442695
      %v559 = vpow.pop %v558
      %v560 = vmul.f32 %v503, 1.442695
      %v561 = vpow.pop %v560
      %v562 = vmul.f32 %v504, 1.442695
      %v563 = vpow.pop %v562
      %v564 = vmul.f32 %v505, 1.442695
      %v565 = vpow.pop %v564
      %v566 = vmul.f32 %v506, 1.442695
      %v567 = vpow.pop %v566
      %v568 = vmul.f32 %v507, 1.442695
      %v569 = vpow.pop %v568
      %v570 = vmul.f32 %v508, 1.442695
      %v571 = vpow.pop %v570
      %v572 = vmul.f32 %v509, 1.442695
      %v573 = vpow.pop %v572
      %v574 = vmul.f32 %v510, 1.442695
      %v575 = vpow.pop %v574
      %v576 = vmul.f32 %v511, 1.442695
      %v577 = vpow.pop %v576
      %v578 = vmul.f32 %v512, 1.442695
      %v579 = vpow.pop %v578
      %v580 = vmul.f32 %v513, 1.442695
      %v581 = vpow.pop %v580
      %v582 = vmul.f32 %v514, 1.442695
      %v583 = vpow.pop %v582
      %v584 = vmul.f32 %v515, 1.442695
      %v585 = vpow.pop %v584
      %v586 = vmul.f32 %v516, 1.442695
      %v587 = vpow.pop %v586
      %v588 = vmul.f32 %v517, 1.442695
      %v589 = vpow.pop %v588
      %v590 = vmul.f32 %v518, 1.442695
      %v591 = vpow.pop %v590
      %v592 = vmul.f32 %v519, 1.442695
      %v593 = vpow.pop %v592
      %v594 = vmul.f32 %v520, 1.442695
      %v595 = vpow.pop %v594
      %v596 = vmul.f32 %v521, 1.442695
      %v597 = vpow.pop %v596
      %v598 = vmul.f32 %v522, 1.442695
      %v599 = vpow.pop %v598
      %v600 = vmul.f32 %v523, 1.442695
      %v601 = vpow.pop %v600
      %v602 = vmul.f32 %v524, 1.442695
      %v603 = vpow.pop %v602
      %v604 = vmul.f32 %v525, 1.442695
      %v605 = vpow.pop %v604
      %v606 = vmul.f32 %v526, 1.442695
      %v607 = vpow.pop %v606
      %v608 = vmul.f32 %v527, 1.442695
      %v609 = vpow.pop %v608
      %v610 = vmul.f32 %v528, 1.442695
      %v611 = vpow.pop %v610
      %v612 = vmul.f32 %v529, 1.442695
      %v613 = vpow.pop %v612
      %v614 = vmul.f32 %v530, 1.442695
      %v615 = vpow.pop %v614
      %v616 = vmul.f32 %v531, 1.442695
      %v617 = vpow.pop %v616
      %v618 = vmul.f32 %v532, 1.442695
      %v619 = vpow.pop %v618
      %v620 = vmul.f32 %v533, 1.442695
      %v621 = vpow.pop %v620
      %v622 = vmul.f32 %v534, 1.442695
      %v623 = vpow.pop %v622
      %v624 = vmul.f32 %v535, 1.442695
      %v625 = vpow.pop %v624
      %v626 = vmul.f32 %v536, 1.442695
      %v627 = vpow.pop %v626
      %v628 = vmul.f32 %v537, 1.442695
      %v629 = vpow.pop %v628
      %v630 = vmul.f32 %v538, 1.442695
      %v631 = vpow.pop %v630
      %v632 = vmul.f32 %v539, 1.442695
      %v633 = vpow.pop %v632
      %v634 = vmul.f32 %v540, 1.442695
      %v635 = vpow.pop %v634
      %v636 = vmul.f32 %v541, 1.442695
      %v637 = vpow.pop %v636
      %v638 = vmul.f32 %v542, 1.442695
      %v639 = vpow.pop %v638
      %v640 = vmul.f32 %v543, 1.442695
      %v641 = vpow.pop %v640
      %v642 = vmul.f32 %v544, 1.442695
      %v643 = vpow.pop %v642
      %v644 = vmul.f32 %v545, 1.442695
      %v645 = vpow.pop %v644
      %v646 = vmul.f32 %v546, 1.442695
      %v647 = vpow.pop %v646
      %v648 = vmul.f32 %v547, 1.442695
      %v649 = vpow.pop %v648
      %v650 = vmul.f32 %v548, 1.442695
      %v651 = vpow.pop %v650
      %v652 = vmul.f32 %v549, 1.442695
      %v653 = vpow.pop %v652
      %v654 = vmul.f32 %v550, 1.442695
      %v655 = vpow.pop %v654
      %v656 = vmul.f32 %v551, 1.442695
      %v657 = vpow.pop %v656
      %v658 = vmul.f32 %v552, 1.442695
      %v659 = vpow.pop %v658
      %v660 = vmul.f32 %v553, 1.442695
      %v661 = vpow.pop %v660
      %v662 = vadd.f32 %v555, 2.0
      %v663 = vadd.f32 %v557, 2.0
      %v664 = vadd.f32 %v559, 2.0
      %v665 = vadd.f32 %v561, 2.0
      %v666 = vadd.f32 %v563, 2.0
      %v667 = vadd.f32 %v565, 2.0
      %v668 = vadd.f32 %v567, 2.0
      %v669 = vadd.f32 %v569, 2.0
      %v670 = vadd.f32 %v571, 2.0
      %v671 = vadd.f32 %v573, 2.0
      %v672 = vadd.f32 %v575, 2.0
      %v673 = vadd.f32 %v577, 2.0
      %v674 = vadd.f32 %v579, 2.0
      %v675 = vadd.f32 %v581, 2.0
      %v676 = vadd.f32 %v583, 2.0
      %v677 = vadd.f32 %v585, 2.0
      %v678 = vadd.f32 %v587, 2.0
      %v679 = vadd.f32 %v589, 2.0
      %v680 = vadd.f32 %v591, 2.0
      %v681 = vadd.f32 %v593, 2.0
      %v682 = vadd.f32 %v595, 2.0
      %v683 = vadd.f32 %v597, 2.0
      %v684 = vadd.f32 %v599, 2.0
      %v685 = vadd.f32 %v601, 2.0
      %v686 = vadd.f32 %v603, 2.0
      %v687 = vadd.f32 %v605, 2.0
      %v688 = vadd.f32 %v607, 2.0
      %v689 = vadd.f32 %v609, 2.0
      %v690 = vadd.f32 %v611, 2.0
      %v691 = vadd.f32 %v613, 2.0
      %v692 = vadd.f32 %v615, 2.0
      %v693 = vadd.f32 %v617, 2.0
      %v694 = vadd.f32 %v619, 2.0
      %v695 = vadd.f32 %v621, 2.0
      %v696 = vadd.f32 %v623, 2.0
      %v697 = vadd.f32 %v625, 2.0
      %v698 = vadd.f32 %v627, 2.0
      %v699 = vadd.f32 %v629, 2.0
      %v700 = vadd.f32 %v631, 2.0
      %v701 = vadd.f32 %v633, 2.0
      %v702 = vadd.f32 %v635, 2.0
      %v703 = vadd.f32 %v637, 2.0
      %v704 = vadd.f32 %v639, 2.0
      %v705 = vadd.f32 %v641, 2.0
      %v706 = vadd.f32 %v643, 2.0
      %v707 = vadd.f32 %v645, 2.0
      %v708 = vadd.f32 %v647, 2.0
      %v709 = vadd.f32 %v649, 2.0
      %v710 = vadd.f32 %v651, 2.0
      %v711 = vadd.f32 %v653, 2.0
      %v712 = vadd.f32 %v655, 2.0
      %v713 = vadd.f32 %v657, 2.0
      %v714 = vadd.f32 %v659, 2.0
      %v715 = vadd.f32 %v661, 2.0
      %v716 = vmul.f32 %v555, %v662
      %v717 = vmul.f32 %v557, %v663
      %v718 = vmul.f32 %v559, %v664
      %v719 = vmul.f32 %v561, %v665
      %v720 = vmul.f32 %v563, %v666
      %v721 = vmul.f32 %v565, %v667
      %v722 = vmul.f32 %v567, %v668
      %v723 = vmul.f32 %v569, %v669
      %v724 = vmul.f32 %v571, %v670
      %v725 = vmul.f32 %v573, %v671
      %v726 = vmul.f32 %v575, %v672
      %v727 = vmul.f32 %v577, %v673
      %v728 = vmul.f32 %v579, %v674
      %v729 = vmul.f32 %v581, %v675
      %v730 = vmul.f32 %v583, %v676
      %v731 = vmul.f32 %v585, %v677
      %v732 = vmul.f32 %v587, %v678
      %v733 = vmul.f32 %v589, %v679
      %v734 = vmul.f32 %v591, %v680
      %v735 = vmul.f32 %v593, %v681
      %v736 = vmul.f32 %v595, %v682
      %v737 = vmul.f32 %v597, %v683
      %v738 = vmul.f32 %v599, %v684
      %v739 = vmul.f32 %v601, %v685
      %v740 = vmul.f32 %v603, %v686
      %v741 = vmul.f32 %v605, %v687
      %v742 = vmul.f32 %v607, %v688
      %v743 = vmul.f32 %v609, %v689
      %v744 = vmul.f32 %v611, %v690
      %v745 = vmul.f32 %v613, %v691
      %v746 = vmul.f32 %v615, %v692
      %v747 = vmul.f32 %v617, %v693
      %v748 = vmul.f32 %v619, %v694
      %v749 = vmul.f32 %v621, %v695
      %v750 = vmul.f32 %v623, %v696
      %v751 = vmul.f32 %v625, %v697
      %v752 = vmul.f32 %v627, %v698
      %v753 = vmul.f32 %v629, %v699
      %v754 = vmul.f32 %v631, %v700
      %v755 = vmul.f32 %v633, %v701
      %v756 = vmul.f32 %v635, %v702
      %v757 = vmul.f32 %v637, %v703
      %v758 = vmul.f32 %v639, %v704
      %v759 = vmul.f32 %v641, %v705
      %v760 = vmul.f32 %v643, %v706
      %v761 = vmul.f32 %v645, %v707
      %v762 = vmul.f32 %v647, %v708
      %v763 = vmul.f32 %v649, %v709
      %v764 = vmul.f32 %v651, %v710
      %v765 = vmul.f32 %v653, %v711
      %v766 = vmul.f32 %v655, %v712
      %v767 = vmul.f32 %v657, %v713
      %v768 = vmul.f32 %v659, %v714
      %v769 = vmul.f32 %v661, %v715
      %v770 = vmul.f32 %v446, %v716
      %v771 = vmul.f32 %v447, %v717
      %v772 = vmul.f32 %v448, %v718
      %v773 = vmul.f32 %v449, %v719
      %v774 = vmul.f32 %v450, %v720
      %v775 = vmul.f32 %v451, %v721
      %v776 = vmul.f32 %v452, %v722
      %v777 = vmul.f32 %v453, %v723
      %v778 = vmul.f32 %v454, %v724
      %v779 = vmul.f32 %v455, %v725
      %v780 = vmul.f32 %v456, %v726
      %v781 = vmul.f32 %v457, %v727
      %v782 = vmul.f32 %v458, %v728
      %v783 = vmul.f32 %v459, %v729
      %v784 = vmul.f32 %v460, %v730
      %v785 = vmul.f32 %v461, %v731
      %v786 = vmul.f32 %v462, %v732
      %v787 = vmul.f32 %v463, %v733
      %v788 = vmul.f32 %v464, %v734
      %v789 = vmul.f32 %v465, %v735
      %v790 = vmul.f32 %v466, %v736
      %v791 = vmul.f32 %v467, %v737
      %v792 = vmul.f32 %v468, %v738
      %v793 = vmul.f32 %v469, %v739
      %v794 = vmul.f32 %v470, %v740
      %v795 = vmul.f32 %v471, %v741
      %v796 = vmul.f32 %v472, %v742
      %v797 = vmul.f32 %v473, %v743
      %v798 = vmul.f32 %v474, %v744
      %v799 = vmul.f32 %v475, %v745
      %v800 = vmul.f32 %v476, %v746
      %v801 = vmul.f32 %v477, %v747
      %v802 = vmul.f32 %v478, %v748
      %v803 = vmul.f32 %v479, %v749
      %v804 = vmul.f32 %v480, %v750
      %v805 = vmul.f32 %v481, %v751
      %v806 = vmul.f32 %v482, %v752
      %v807 = vmul.f32 %v483, %v753
      %v808 = vmul.f32 %v484, %v754
      %v809 = vmul.f32 %v485, %v755
      %v810 = vmul.f32 %v486, %v756
      %v811 = vmul.f32 %v487, %v757
      %v812 = vmul.f32 %v488, %v758
      %v813 = vmul.f32 %v489, %v759
      %v814 = vmul.f32 %v490, %v760
      %v815 = vmul.f32 %v491, %v761
      %v816 = vmul.f32 %v492, %v762
      %v817 = vmul.f32 %v493, %v763
      %v818 = vmul.f32 %v494, %v764
      %v819 = vmul.f32 %v495, %v765
      %v820 = vmul.f32 %v496, %v766
      %v821 = vmul.f32 %v497, %v767
      %v822 = vmul.f32 %v498, %v768
      %v823 = vmul.f32 %v499, %v769
      %v824 = vadd.f32 %v716, 2.0
      %v825 = vadd.f32 %v717, 2.0
      %v826 = vadd.f32 %v718, 2.0
      %v827 = vadd.f32 %v719, 2.0
      %v828 = vadd.f32 %v720, 2.0
      %v829 = vadd.f32 %v721, 2.0
      %v830 = vadd.f32 %v722, 2.0
      %v831 = vadd.f32 %v723, 2.0
      %v832 = vadd.f32 %v724, 2.0
      %v833 = vadd.f32 %v725, 2.0
      %v834 = vadd.f32 %v726, 2.0
      %v835 = vadd.f32 %v727, 2.0
      %v836 = vadd.f32 %v728, 2.0
      %v837 = vadd.f32 %v729, 2.0
      %v838 = vadd.f32 %v730, 2.0
      %v839 = vadd.f32 %v731, 2.0
      %v840 = vadd.f32 %v732, 2.0
      %v841 = vadd.f32 %v733, 2.0
      %v842 = vadd.f32 %v734, 2.0
      %v843 = vadd.f32 %v735, 2.0
      %v844 = vadd.f32 %v736, 2.0
      %v845 = vadd.f32 %v737, 2.0
      %v846 = vadd.f32 %v738, 2.0
      %v847 = vadd.f32 %v739, 2.0
      %v848 = vadd.f32 %v740, 2.0
      %v849 = vadd.f32 %v741, 2.0
      %v850 = vadd.f32 %v742, 2.0
      %v851 = vadd.f32 %v743, 2.0
      %v852 = vadd.f32 %v744, 2.0
      %v853 = vadd.f32 %v745, 2.0
      %v854 = vadd.f32 %v746, 2.0
      %v855 = vadd.f32 %v747, 2.0
      %v856 = vadd.f32 %v748, 2.0
      %v857 = vadd.f32 %v749, 2.0
      %v858 = vadd.f32 %v750, 2.0
      %v859 = vadd.f32 %v751, 2.0
      %v860 = vadd.f32 %v752, 2.0
      %v861 = vadd.f32 %v753, 2.0
      %v862 = vadd.f32 %v754, 2.0
      %v863 = vadd.f32 %v755, 2.0
      %v864 = vadd.f32 %v756, 2.0
      %v865 = vadd.f32 %v757, 2.0
      %v866 = vadd.f32 %v758, 2.0
      %v867 = vadd.f32 %v759, 2.0
      %v868 = vadd.f32 %v760, 2.0
      %v869 = vadd.f32 %v761, 2.0
      %v870 = vadd.f32 %v762, 2.0
      %v871 = vadd.f32 %v763, 2.0
      %v872 = vadd.f32 %v764, 2.0
      %v873 = vadd.f32 %v765, 2.0
      %v874 = vadd.f32 %v766, 2.0
      %v875 = vadd.f32 %v767, 2.0
      %v876 = vadd.f32 %v768, 2.0
      %v877 = vadd.f32 %v769, 2.0
      %v878 = vrcp.pop %v824
      %v879 = vmul.f32 %v770, %v878
      %v880 = vrcp.pop %v825
      %v881 = vmul.f32 %v771, %v880
      %v882 = vrcp.pop %v826
      %v883 = vmul.f32 %v772, %v882
      %v884 = vrcp.pop %v827
      %v885 = vmul.f32 %v773, %v884
      %v886 = vrcp.pop %v828
      %v887 = vmul.f32 %v774, %v886
      %v888 = vrcp.pop %v829
      %v889 = vmul.f32 %v775, %v888
      %v890 = vrcp.pop %v830
      %v891 = vmul.f32 %v776, %v890
      %v892 = vrcp.pop %v831
      %v893 = vmul.f32 %v777, %v892
      %v894 = vrcp.pop %v832
      %v895 = vmul.f32 %v778, %v894
      %v896 = vrcp.pop %v833
      %v897 = vmul.f32 %v779, %v896
      %v898 = vrcp.pop %v834
      %v899 = vmul.f32 %v780, %v898
      %v900 = vrcp.pop %v835
      %v901 = vmul.f32 %v781, %v900
      %v902 = vrcp.pop %v836
      %v903 = vmul.f32 %v782, %v902
      %v904 = vrcp.pop %v837
      %v905 = vmul.f32 %v783, %v904
      %v906 = vrcp.pop %v838
      %v907 = vmul.f32 %v784, %v906
      %v908 = vrcp.pop %v839
      %v909 = vmul.f32 %v785, %v908
      %v910 = vrcp.pop %v840
      %v911 = vmul.f32 %v786, %v910
      %v912 = vrcp.pop %v841
      %v913 = vmul.f32 %v787, %v912
      %v914 = vrcp.pop %v842
      %v915 = vmul.f32 %v788, %v914
      %v916 = vrcp.pop %v843
      %v917 = vmul.f32 %v789, %v916
      %v918 = vrcp.pop %v844
      %v919 = vmul.f32 %v790, %v918
      %v920 = vrcp.pop %v845
      %v921 = vmul.f32 %v791, %v920
      %v922 = vrcp.pop %v846
      %v923 = vmul.f32 %v792, %v922
      %v924 = vrcp.pop %v847
      %v925 = vmul.f32 %v793, %v924
      %v926 = vrcp.pop %v848
      %v927 = vmul.f32 %v794, %v926
      %v928 = vrcp.pop %v849
      %v929 = vmul.f32 %v795, %v928
      %v930 = vrcp.pop %v850
      %v931 = vmul.f32 %v796, %v930
      %v932 = vrcp.pop %v851
      %v933 = vmul.f32 %v797, %v932
      %v934 = vrcp.pop %v852
      %v935 = vmul.f32 %v798, %v934
      %v936 = vrcp.pop %v853
      %v937 = vmul.f32 %v799, %v936
      %v938 = vrcp.pop %v854
      %v939 = vmul.f32 %v800, %v938
      %v940 = vrcp.pop %v855
      %v941 = vmul.f32 %v801, %v940
      %v942 = vrcp.pop %v856
      %v943 = vmul.f32 %v802, %v942
      %v944 = vrcp.pop %v857
      %v945 = vmul.f32 %v803, %v944
      %v946 = vrcp.pop %v858
      %v947 = vmul.f32 %v804, %v946
      %v948 = vrcp.pop %v859
      %v949 = vmul.f32 %v805, %v948
      %v950 = vrcp.pop %v860
      %v951 = vmul.f32 %v806, %v950
      %v952 = vrcp.pop %v861
      %v953 = vmul.f32 %v807, %v952
      %v954 = vrcp.pop %v862
      %v955 = vmul.f32 %v808, %v954
      %v956 = vrcp.pop %v863
      %v957 = vmul.f32 %v809, %v956
      %v958 = vrcp.pop %v864
      %v959 = vmul.f32 %v810, %v958
      %v960 = vrcp.pop %v865
      %v961 = vmul.f32 %v811, %v960
      %v962 = vrcp.pop %v866
      %v963 = vmul.f32 %v812, %v962
      %v964 = vrcp.pop %v867
      %v965 = vmul.f32 %v813, %v964
      %v966 = vrcp.pop %v868
      %v967 = vmul.f32 %v814, %v966
      %v968 = vrcp.pop %v869
      %v969 = vmul.f32 %v815, %v968
      %v970 = vrcp.pop %v870
      %v971 = vmul.f32 %v816, %v970
      %v972 = vrcp.pop %v871
      %v973 = vmul.f32 %v817, %v972
      %v974 = vrcp.pop %v872
      %v975 = vmul.f32 %v818, %v974
      %v976 = vrcp.pop %v873
      %v977 = vmul.f32 %v819, %v976
      %v978 = vrcp.pop %v874
      %v979 = vmul.f32 %v820, %v978
      %v980 = vrcp.pop %v875
      %v981 = vmul.f32 %v821, %v980
      %v982 = vrcp.pop %v876
      %v983 = vmul.f32 %v822, %v982
      %v984 = vrcp.pop %v877
      %v985 = vmul.f32 %v823, %v984
      %v986 = vlaneseq
      %v987 = vshrl.u32 %v986, 7
      %v988 = vadd.s32 %v987, 8
      %v989 = vadd.s32 %v987, 16
      %vm990 = vcmp.ge.s32.totalorder %v987, 1
      %vm991 = vcmp.ge.s32.totalorder %v988, 1
      %vm992 = vcmp.ge.s32.totalorder %v989, 1
      %vm993 = vmand 0, %vm990
      %vm994 = vmand 0, %vm991
      %vm995 = vmand 0, %vm992
      %vm996 = vmand 1, %vm990
      %vm997 = vmand 1, %vm991
      %vm998 = vmand 1, %vm992
      %vm999 = vcmp.le.s32.totalorder %v987, 16
      %vm1000 = vcmp.le.s32.totalorder %v988, 16
      %vm1001 = vcmp.le.s32.totalorder %v989, 16
      %vm1002 = vmand %vm993, %vm999
      %vm1003 = vmand %vm994, %vm1000
      %vm1004 = vmand %vm995, %vm1001
      %vm1005 = vmand %vm996, %vm999
      %vm1006 = vmand %vm997, %vm1000
      %vm1007 = vmand %vm998, %vm1001
      %v1008 = vsel %vm1002, %v879, 0.0
      %v1009 = vsel %vm1003, %v881, 0.0
      %v1010 = vsel %vm1004, %v883, 0.0
      %v1011 = vsel %vm1005, %v885, 0.0
      %v1012 = vsel %vm1006, %v887, 0.0
      %v1013 = vsel %vm1007, %v889, 0.0
      %v1014 = vsel %vm1005, %v891, 0.0
      %v1015 = vsel %vm1006, %v893, 0.0
      %v1016 = vsel %vm1007, %v895, 0.0
      %v1017 = vsel %vm1005, %v897, 0.0
      %v1018 = vsel %vm1006, %v899, 0.0
      %v1019 = vsel %vm1007, %v901, 0.0
      %v1020 = vsel %vm1005, %v903, 0.0
      %v1021 = vsel %vm1006, %v905, 0.0
      %v1022 = vsel %vm1007, %v907, 0.0
      %v1023 = vsel %vm1005, %v909, 0.0
      %v1024 = vsel %vm1006, %v911, 0.0
      %v1025 = vsel %vm1007, %v913, 0.0
      %v1026 = vsel %vm1005, %v915, 0.0
      %v1027 = vsel %vm1006, %v917, 0.0
      %v1028 = vsel %vm1007, %v919, 0.0
      %v1029 = vsel %vm1005, %v921, 0.0
      %v1030 = vsel %vm1006, %v923, 0.0
      %v1031 = vsel %vm1007, %v925, 0.0
      %v1032 = vsel %vm1005, %v927, 0.0
      %v1033 = vsel %vm1006, %v929, 0.0
      %v1034 = vsel %vm1007, %v931, 0.0
      %v1035 = vsel %vm1005, %v933, 0.0
      %v1036 = vsel %vm1006, %v935, 0.0
      %v1037 = vsel %vm1007, %v937, 0.0
      %v1038 = vsel %vm1005, %v939, 0.0
      %v1039 = vsel %vm1006, %v941, 0.0
      %v1040 = vsel %vm1007, %v943, 0.0
      %v1041 = vsel %vm1005, %v945, 0.0
      %v1042 = vsel %vm1006, %v947, 0.0
      %v1043 = vsel %vm1007, %v949, 0.0
      %v1044 = vsel %vm1005, %v951, 0.0
      %v1045 = vsel %vm1006, %v953, 0.0
      %v1046 = vsel %vm1007, %v955, 0.0
      %v1047 = vsel %vm1005, %v957, 0.0
      %v1048 = vsel %vm1006, %v959, 0.0
      %v1049 = vsel %vm1007, %v961, 0.0
      %v1050 = vsel %vm1005, %v963, 0.0
      %v1051 = vsel %vm1006, %v965, 0.0
      %v1052 = vsel %vm1007, %v967, 0.0
      %v1053 = vsel %vm1005, %v969, 0.0
      %v1054 = vsel %vm1006, %v971, 0.0
      %v1055 = vsel %vm1007, %v973, 0.0
      %v1056 = vsel %vm1005, %v975, 0.0
      %v1057 = vsel %vm1006, %v977, 0.0
      %v1058 = vsel %vm1007, %v979, 0.0
      %v1059 = vsel %vm1002, %v981, 0.0
      %v1060 = vsel %vm1003, %v983, 0.0
      %v1061 = vsel %vm1004, %v985, 0.0
      %v1062 = vld [vmem:[%s3] sm:$0xff]
      %v1063 = vld [vmem:[%s3 + $0x8] sm:$0xf]
      %v1064 = vld [vmem:[%s3 + $0xc] sm:$0xff]
      %v1065 = vld [vmem:[%s3 + $0x14] sm:$0xf]
      %v1066 = vld [vmem:[%s3 + $0x18] sm:$0xff]
      %v1067 = vld [vmem:[%s3 + $0x20] sm:$0xf]
      %v1068 = vld [vmem:[%s3 + $0x24] sm:$0xff]
      %v1069 = vld [vmem:[%s3 + $0x2c] sm:$0xf]
      %v1070 = vld [vmem:[%s3 + $0x30] sm:$0xff]
      %v1071 = vld [vmem:[%s3 + $0x38] sm:$0xf]
      %v1072 = vld [vmem:[%s3 + $0x3c] sm:$0xff]
      %v1073 = vld [vmem:[%s3 + $0x44] sm:$0xf]
      %v1074 = vld [vmem:[%s3 + $0x48] sm:$0xff]
      %v1075 = vld [vmem:[%s3 + $0x50] sm:$0xf]
      %v1076 = vld [vmem:[%s3 + $0x54] sm:$0xff]
      %v1077 = vld [vmem:[%s3 + $0x5c] sm:$0xf]
      %v1078 = vld [vmem:[%s3 + $0x60] sm:$0xff]
      %v1079 = vld [vmem:[%s3 + $0x68] sm:$0xf]
      %v1080 = vld [vmem:[%s3 + $0x6c] sm:$0xff]
      %v1081 = vld [vmem:[%s3 + $0x74] sm:$0xf]
      %v1082 = vld [vmem:[%s3 + $0x78] sm:$0xff]
      %v1083 = vld [vmem:[%s3 + $0x80] sm:$0xf]
      %v1084 = vld [vmem:[%s3 + $0x84] sm:$0xff]
      %v1085 = vld [vmem:[%s3 + $0x8c] sm:$0xf]
      %v1086 = vld [vmem:[%s3 + $0x90] sm:$0xff]
      %v1087 = vld [vmem:[%s3 + $0x98] sm:$0xf]
      %v1088 = vld [vmem:[%s3 + $0x9c] sm:$0xff]
      %v1089 = vld [vmem:[%s3 + $0xa4] sm:$0xf]
      %v1090 = vld [vmem:[%s3 + $0xa8] sm:$0xff]
      %v1091 = vld [vmem:[%s3 + $0xb0] sm:$0xf]
      %v1092 = vld [vmem:[%s3 + $0xb4] sm:$0xff]
      %v1093 = vld [vmem:[%s3 + $0xbc] sm:$0xf]
      %v1094 = vld [vmem:[%s3 + $0xc0] sm:$0xff]
      %v1095 = vld [vmem:[%s3 + $0xc8] sm:$0xf]
      %v1096 = vld [vmem:[%s3 + $0xcc] sm:$0xff]
      %v1097 = vld [vmem:[%s3 + $0xd4] sm:$0xf]
      %v1098 = vld [vmem:[%s3 + $0xd8] sm:$0xff]
      %v1099 = vld [vmem:[%s3 + $0xe0] sm:$0xf]
      %v1100 = vld [vmem:[%s3 + $0xe4] sm:$0xff]
      %v1101 = vld [vmem:[%s3 + $0xec] sm:$0xf]
      %v1102 = vld [vmem:[%s3 + $0xf0] sm:$0xff]
      %v1103 = vld [vmem:[%s3 + $0xf8] sm:$0xf]
      %v1104 = vld [vmem:[%s3 + $0xfc] sm:$0xff]
      %v1105 = vld [vmem:[%s3 + $0x104] sm:$0xf]
      %v1106 = vld [vmem:[%s3 + $0x108] sm:$0xff]
      %v1107 = vld [vmem:[%s3 + $0x110] sm:$0xf]
      %v1108 = vld [vmem:[%s3 + $0x114] sm:$0xff]
      %v1109 = vld [vmem:[%s3 + $0x11c] sm:$0xf]
      %v1110 = vld [vmem:[%s3 + $0x120] sm:$0xff]
      %v1111 = vld [vmem:[%s3 + $0x128] sm:$0xf]
      %v1112 = vld [vmem:[%s3 + $0x12c] sm:$0xff]
      %v1113 = vld [vmem:[%s3 + $0x134] sm:$0xf]
      %v1114 = vld [vmem:[%s3 + $0x138] sm:$0xff]
      %v1115 = vld [vmem:[%s3 + $0x140] sm:$0xf]
      %v1116 = vld [vmem:[%s3 + $0x144] sm:$0xff]
      %v1117 = vld [vmem:[%s3 + $0x14c] sm:$0xf]
      %v1118 = vld [vmem:[%s3 + $0x150] sm:$0xff]
      %v1119 = vld [vmem:[%s3 + $0x158] sm:$0xf]
      %v1120 = vld [vmem:[%s3 + $0x15c] sm:$0xff]
      %v1121 = vld [vmem:[%s3 + $0x164] sm:$0xf]
      %v1122 = vld [vmem:[%s3 + $0x168] sm:$0xff]
      %v1123 = vld [vmem:[%s3 + $0x170] sm:$0xf]
      %v1124 = vld [vmem:[%s3 + $0x174] sm:$0xff]
      %v1125 = vld [vmem:[%s3 + $0x17c] sm:$0xf]
      %v1126 = vld [vmem:[%s3 + $0x180] sm:$0xff]
      %v1127 = vld [vmem:[%s3 + $0x188] sm:$0xf]
      %v1128 = vld [vmem:[%s3 + $0x18c] sm:$0xff]
      %v1129 = vld [vmem:[%s3 + $0x194] sm:$0xf]
      %v1130 = vld [vmem:[%s3 + $0x198] sm:$0xff]
      %v1131 = vld [vmem:[%s3 + $0x1a0] sm:$0xf]
      %v1132 = vld [vmem:[%s3 + $0x1a4] sm:$0xff]
      %v1133 = vld [vmem:[%s3 + $0x1ac] sm:$0xf]
      %v1134 = vld [vmem:[%s3 + $0x1b0] sm:$0xff]
      %v1135 = vld [vmem:[%s3 + $0x1b8] sm:$0xf]
      %v1136 = vld [vmem:[%s3 + $0x1bc] sm:$0xff]
      %v1137 = vld [vmem:[%s3 + $0x1c4] sm:$0xf]
      %v1138 = vld [vmem:[%s3 + $0x1c8] sm:$0xff]
      %v1139 = vld [vmem:[%s3 + $0x1d0] sm:$0xf]
      %v1140 = vld [vmem:[%s3 + $0x1d4] sm:$0xff]
      %v1141 = vld [vmem:[%s3 + $0x1dc] sm:$0xf]
      %v1142 = vld [vmem:[%s3 + $0x1e0] sm:$0xff]
      %v1143 = vld [vmem:[%s3 + $0x1e8] sm:$0xf]
      %v1144 = vld [vmem:[%s3 + $0x1ec] sm:$0xff]
      %v1145 = vld [vmem:[%s3 + $0x1f4] sm:$0xf]
      %v1146 = vld [vmem:[%s3 + $0x1f8] sm:$0xff]
      %v1147 = vld [vmem:[%s3 + $0x200] sm:$0xf]
      %v1148 = vld [vmem:[%s3 + $0x204] sm:$0xff]
      %v1149 = vld [vmem:[%s3 + $0x20c] sm:$0xf]
      %v1150 = vld [vmem:[%s3 + $0x210] sm:$0xff]
      %v1151 = vld [vmem:[%s3 + $0x218] sm:$0xf]
      %v1152 = vld [vmem:[%s3 + $0x21c] sm:$0xff]
      %v1153 = vld [vmem:[%s3 + $0x224] sm:$0xf]
      %v1154 = vld [vmem:[%s3 + $0x228] sm:$0xff]
      %v1155 = vld [vmem:[%s3 + $0x230] sm:$0xf]
      %v1156 = vld [vmem:[%s3 + $0x234] sm:$0xff]
      %v1157 = vld [vmem:[%s3 + $0x23c] sm:$0xf]
      %v1158 = vpack.c.bf16 %v1009, %v1008
      %v1159 = vpack.c.bf16 %v1012, %v1011
      %v1160 = vpack.c.bf16 %v1015, %v1014
      %v1161 = vpack.c.bf16 %v1011, %v1010
      %v1162 = vpack.c.bf16 %v1014, %v1013
      %v1163 = vpack.c.bf16 %v1017, %v1016
      %v1164 = vpack.c.bf16 %v1013, %v1012
      %v1165 = vpack.c.bf16 %v1016, %v1015
      %v1166 = vpack.c.bf16 %v1019, %v1018
      %v1167 = vpack.c.bf16 %v1018, %v1017
      %v1168 = vpack.c.bf16 %v1021, %v1020
      %v1169 = vpack.c.bf16 %v1020, %v1019
      %v1170 = vpack.c.bf16 %v1023, %v1022
      %v1171 = vpack.c.bf16 %v1022, %v1021
      %v1172 = vpack.c.bf16 %v1025, %v1024
      %v1173 = vpack.c.bf16 %v1024, %v1023
      %v1174 = vpack.c.bf16 %v1027, %v1026
      %v1175 = vpack.c.bf16 %v1026, %v1025
      %v1176 = vpack.c.bf16 %v1029, %v1028
      %v1177 = vpack.c.bf16 %v1028, %v1027
      %v1178 = vpack.c.bf16 %v1031, %v1030
      %v1179 = vpack.c.bf16 %v1030, %v1029
      %v1180 = vpack.c.bf16 %v1033, %v1032
      %v1181 = vpack.c.bf16 %v1032, %v1031
      %v1182 = vpack.c.bf16 %v1035, %v1034
      %v1183 = vpack.c.bf16 %v1034, %v1033
      %v1184 = vpack.c.bf16 %v1037, %v1036
      %v1185 = vpack.c.bf16 %v1036, %v1035
      %v1186 = vpack.c.bf16 %v1039, %v1038
      %v1187 = vpack.c.bf16 %v1038, %v1037
      %v1188 = vpack.c.bf16 %v1041, %v1040
      %v1189 = vpack.c.bf16 %v1040, %v1039
      %v1190 = vpack.c.bf16 %v1043, %v1042
      %v1191 = vpack.c.bf16 %v1042, %v1041
      %v1192 = vpack.c.bf16 %v1045, %v1044
      %v1193 = vpack.c.bf16 %v1044, %v1043
      %v1194 = vpack.c.bf16 %v1047, %v1046
      %v1195 = vpack.c.bf16 %v1046, %v1045
      %v1196 = vpack.c.bf16 %v1049, %v1048
      %v1197 = vpack.c.bf16 %v1048, %v1047
      %v1198 = vpack.c.bf16 %v1051, %v1050
      %v1199 = vpack.c.bf16 %v1050, %v1049
      %v1200 = vpack.c.bf16 %v1053, %v1052
      %v1201 = vpack.c.bf16 %v1052, %v1051
      %v1202 = vpack.c.bf16 %v1055, %v1054
      %v1203 = vpack.c.bf16 %v1054, %v1053
      %v1204 = vpack.c.bf16 %v1057, %v1056
      %v1205 = vpack.c.bf16 %v1056, %v1055
      %v1206 = vpack.c.bf16 %v1059, %v1058
      %v1207 = vpack.c.bf16 %v1058, %v1057
      %v1208 = vpack.c.bf16 %v1061, %v1060
      %v1305 = vunpack.c.l.b16 %v1062
      %v1306 = vunpack.c.h.b16 %v1062
      %v1307 = vunpack.c.l.b16 %v1063
      %v1308 = vunpack.c.l.b16 %v1064
      %v1309 = vunpack.c.h.b16 %v1064
      %v1310 = vunpack.c.l.b16 %v1065
      %v1311 = vunpack.c.l.b16 %v1066
      %v1312 = vunpack.c.h.b16 %v1066
      %v1313 = vunpack.c.l.b16 %v1067
      %v1314 = vunpack.c.l.b16 %v1068
      %v1315 = vunpack.c.h.b16 %v1068
      %v1316 = vunpack.c.l.b16 %v1069
      %v1317 = vunpack.c.l.b16 %v1070
      %v1318 = vunpack.c.h.b16 %v1070
      %v1319 = vunpack.c.l.b16 %v1071
      %v1320 = vunpack.c.l.b16 %v1072
      %v1321 = vunpack.c.h.b16 %v1072
      %v1322 = vunpack.c.l.b16 %v1073
      %v1323 = vunpack.c.l.b16 %v1074
      %v1324 = vunpack.c.h.b16 %v1074
      %v1325 = vunpack.c.l.b16 %v1075
      %v1326 = vunpack.c.l.b16 %v1076
      %v1327 = vunpack.c.h.b16 %v1076
      %v1328 = vunpack.c.l.b16 %v1077
      %v1329 = vunpack.c.l.b16 %v1078
      %v1330 = vunpack.c.h.b16 %v1078
      %v1331 = vunpack.c.l.b16 %v1079
      %v1332 = vunpack.c.l.b16 %v1080
      %v1333 = vunpack.c.h.b16 %v1080
      %v1334 = vunpack.c.l.b16 %v1081
      %v1335 = vunpack.c.l.b16 %v1082
      %v1336 = vunpack.c.h.b16 %v1082
      %v1337 = vunpack.c.l.b16 %v1083
      %v1338 = vunpack.c.l.b16 %v1084
      %v1339 = vunpack.c.h.b16 %v1084
      %v1340 = vunpack.c.l.b16 %v1085
      %v1341 = vunpack.c.l.b16 %v1086
      %v1342 = vunpack.c.h.b16 %v1086
      %v1343 = vunpack.c.l.b16 %v1087
      %v1344 = vunpack.c.l.b16 %v1088
      %v1345 = vunpack.c.h.b16 %v1088
      %v1346 = vunpack.c.l.b16 %v1089
      %v1347 = vunpack.c.l.b16 %v1090
      %v1348 = vunpack.c.h.b16 %v1090
      %v1349 = vunpack.c.l.b16 %v1091
      %v1350 = vunpack.c.l.b16 %v1092
      %v1351 = vunpack.c.h.b16 %v1092
      %v1352 = vunpack.c.l.b16 %v1093
      %v1353 = vunpack.c.l.b16 %v1094
      %v1354 = vunpack.c.h.b16 %v1094
      %v1355 = vunpack.c.l.b16 %v1095
      %v1356 = vunpack.c.l.b16 %v1096
      %v1357 = vunpack.c.h.b16 %v1096
      %v1358 = vunpack.c.l.b16 %v1097
      %v1359 = vunpack.c.l.b16 %v1098
      %v1360 = vunpack.c.h.b16 %v1098
      %v1361 = vunpack.c.l.b16 %v1099
      %v1362 = vunpack.c.l.b16 %v1100
      %v1363 = vunpack.c.h.b16 %v1100
      %v1364 = vunpack.c.l.b16 %v1101
      %v1365 = vunpack.c.l.b16 %v1102
      %v1366 = vunpack.c.h.b16 %v1102
      %v1367 = vunpack.c.l.b16 %v1103
      %v1368 = vunpack.c.l.b16 %v1104
      %v1369 = vunpack.c.h.b16 %v1104
      %v1370 = vunpack.c.l.b16 %v1105
      %v1371 = vunpack.c.l.b16 %v1106
      %v1372 = vunpack.c.h.b16 %v1106
      %v1373 = vunpack.c.l.b16 %v1107
      %v1374 = vunpack.c.l.b16 %v1108
      %v1375 = vunpack.c.h.b16 %v1108
      %v1376 = vunpack.c.l.b16 %v1109
      %v1377 = vunpack.c.l.b16 %v1110
      %v1378 = vunpack.c.h.b16 %v1110
      %v1379 = vunpack.c.l.b16 %v1111
      %v1380 = vunpack.c.l.b16 %v1112
      %v1381 = vunpack.c.h.b16 %v1112
      %v1382 = vunpack.c.l.b16 %v1113
      %v1383 = vunpack.c.l.b16 %v1114
      %v1384 = vunpack.c.h.b16 %v1114
      %v1385 = vunpack.c.l.b16 %v1115
      %v1386 = vunpack.c.l.b16 %v1116
      %v1387 = vunpack.c.h.b16 %v1116
      %v1388 = vunpack.c.l.b16 %v1117
      %v1389 = vunpack.c.l.b16 %v1118
      %v1390 = vunpack.c.h.b16 %v1118
      %v1391 = vunpack.c.l.b16 %v1119
      %v1392 = vunpack.c.l.b16 %v1120
      %v1393 = vunpack.c.h.b16 %v1120
      %v1394 = vunpack.c.l.b16 %v1121
      %v1395 = vunpack.c.l.b16 %v1122
      %v1396 = vunpack.c.h.b16 %v1122
      %v1397 = vunpack.c.l.b16 %v1123
      %v1398 = vunpack.c.l.b16 %v1124
      %v1399 = vunpack.c.h.b16 %v1124
      %v1400 = vunpack.c.l.b16 %v1125
      %v1401 = vunpack.c.l.b16 %v1126
      %v1402 = vunpack.c.h.b16 %v1126
      %v1403 = vunpack.c.l.b16 %v1127
      %v1404 = vunpack.c.l.b16 %v1128
      %v1405 = vunpack.c.h.b16 %v1128
      %v1406 = vunpack.c.l.b16 %v1129
      %v1407 = vunpack.c.l.b16 %v1130
      %v1408 = vunpack.c.h.b16 %v1130
      %v1409 = vunpack.c.l.b16 %v1131
      %v1410 = vunpack.c.l.b16 %v1132
      %v1411 = vunpack.c.h.b16 %v1132
      %v1412 = vunpack.c.l.b16 %v1133
      %v1413 = vunpack.c.l.b16 %v1134
      %v1414 = vunpack.c.h.b16 %v1134
      %v1415 = vunpack.c.l.b16 %v1135
      %v1416 = vunpack.c.l.b16 %v1136
      %v1417 = vunpack.c.h.b16 %v1136
      %v1418 = vunpack.c.l.b16 %v1137
      %v1419 = vunpack.c.l.b16 %v1138
      %v1420 = vunpack.c.h.b16 %v1138
      %v1421 = vunpack.c.l.b16 %v1139
      %v1422 = vunpack.c.l.b16 %v1140
      %v1423 = vunpack.c.h.b16 %v1140
      %v1424 = vunpack.c.l.b16 %v1141
      %v1425 = vunpack.c.l.b16 %v1142
      %v1426 = vunpack.c.h.b16 %v1142
      %v1427 = vunpack.c.l.b16 %v1143
      %v1428 = vunpack.c.l.b16 %v1144
      %v1429 = vunpack.c.h.b16 %v1144
      %v1430 = vunpack.c.l.b16 %v1145
      %v1431 = vunpack.c.l.b16 %v1146
      %v1432 = vunpack.c.h.b16 %v1146
      %v1433 = vunpack.c.l.b16 %v1147
      %v1434 = vunpack.c.l.b16 %v1148
      %v1435 = vunpack.c.h.b16 %v1148
      %v1436 = vunpack.c.l.b16 %v1149
      %v1437 = vunpack.c.l.b16 %v1150
      %v1438 = vunpack.c.h.b16 %v1150
      %v1439 = vunpack.c.l.b16 %v1151
      %v1440 = vunpack.c.l.b16 %v1152
      %v1441 = vunpack.c.h.b16 %v1152
      %v1442 = vunpack.c.l.b16 %v1153
      %v1443 = vunpack.c.l.b16 %v1154
      %v1444 = vunpack.c.h.b16 %v1154
      %v1445 = vunpack.c.l.b16 %v1155
      %v1446 = vunpack.c.l.b16 %v1156
      %v1447 = vunpack.c.h.b16 %v1156
      %v1448 = vunpack.c.l.b16 %v1157
      %v1449 = vpack.c.b16 %v1308, %v1305
      %v1450 = vpack.c.b16 %v1309, %v1306
      %v1451 = vpack.c.b16 %v1310, %v1307
      %v1452 = vpack.c.b16 %v1314, %v1311
      %v1453 = vpack.c.b16 %v1315, %v1312
      %v1454 = vpack.c.b16 %v1316, %v1313
      %v1455 = vpack.c.b16 %v1320, %v1317
      %v1456 = vpack.c.b16 %v1321, %v1318
      %v1457 = vpack.c.b16 %v1322, %v1319
      %v1458 = vpack.c.b16 %v1326, %v1323
      %v1459 = vpack.c.b16 %v1327, %v1324
      %v1460 = vpack.c.b16 %v1328, %v1325
      %v1461 = vpack.c.b16 %v1332, %v1329
      %v1462 = vpack.c.b16 %v1333, %v1330
      %v1463 = vpack.c.b16 %v1334, %v1331
      %v1464 = vpack.c.b16 %v1338, %v1335
      %v1465 = vpack.c.b16 %v1339, %v1336
      %v1466 = vpack.c.b16 %v1340, %v1337
      %v1467 = vpack.c.b16 %v1344, %v1341
      %v1468 = vpack.c.b16 %v1345, %v1342
      %v1469 = vpack.c.b16 %v1346, %v1343
      %v1470 = vpack.c.b16 %v1350, %v1347
      %v1471 = vpack.c.b16 %v1351, %v1348
      %v1472 = vpack.c.b16 %v1352, %v1349
      %v1473 = vpack.c.b16 %v1356, %v1353
      %v1474 = vpack.c.b16 %v1357, %v1354
      %v1475 = vpack.c.b16 %v1358, %v1355
      %v1476 = vpack.c.b16 %v1362, %v1359
      %v1477 = vpack.c.b16 %v1363, %v1360
      %v1478 = vpack.c.b16 %v1364, %v1361
      %v1479 = vpack.c.b16 %v1368, %v1365
      %v1480 = vpack.c.b16 %v1369, %v1366
      %v1481 = vpack.c.b16 %v1370, %v1367
      %v1482 = vpack.c.b16 %v1374, %v1371
      %v1483 = vpack.c.b16 %v1375, %v1372
      %v1484 = vpack.c.b16 %v1376, %v1373
      %v1485 = vpack.c.b16 %v1380, %v1377
      %v1486 = vpack.c.b16 %v1381, %v1378
      %v1487 = vpack.c.b16 %v1382, %v1379
      %v1488 = vpack.c.b16 %v1386, %v1383
      %v1489 = vpack.c.b16 %v1387, %v1384
      %v1490 = vpack.c.b16 %v1388, %v1385
      %v1491 = vpack.c.b16 %v1392, %v1389
      %v1492 = vpack.c.b16 %v1393, %v1390
      %v1493 = vpack.c.b16 %v1394, %v1391
      %v1494 = vpack.c.b16 %v1398, %v1395
      %v1495 = vpack.c.b16 %v1399, %v1396
      %v1496 = vpack.c.b16 %v1400, %v1397
      %v1497 = vpack.c.b16 %v1404, %v1401
      %v1498 = vpack.c.b16 %v1405, %v1402
      %v1499 = vpack.c.b16 %v1406, %v1403
      %v1500 = vpack.c.b16 %v1410, %v1407
      %v1501 = vpack.c.b16 %v1411, %v1408
      %v1502 = vpack.c.b16 %v1412, %v1409
      %v1503 = vpack.c.b16 %v1416, %v1413
      %v1504 = vpack.c.b16 %v1417, %v1414
      %v1505 = vpack.c.b16 %v1418, %v1415
      %v1506 = vpack.c.b16 %v1422, %v1419
      %v1507 = vpack.c.b16 %v1423, %v1420
      %v1508 = vpack.c.b16 %v1424, %v1421
      %v1509 = vpack.c.b16 %v1428, %v1425
      %v1510 = vpack.c.b16 %v1429, %v1426
      %v1511 = vpack.c.b16 %v1430, %v1427
      %v1512 = vpack.c.b16 %v1434, %v1431
      %v1513 = vpack.c.b16 %v1435, %v1432
      %v1514 = vpack.c.b16 %v1436, %v1433
      %v1515 = vpack.c.b16 %v1440, %v1437
      %v1516 = vpack.c.b16 %v1441, %v1438
      %v1517 = vpack.c.b16 %v1442, %v1439
      %v1518 = vpack.c.b16 %v1446, %v1443
      %v1519 = vpack.c.b16 %v1447, %v1444
      %v1520 = vpack.c.b16 %v1448, %v1445
      %1593 = vmatprep.subr.bf16.mxu0 %v1450
      %1594 = vmatpush1.bf16.msra.mxu0 %v1449
      %1595 = vmatprep.subr.bf16.mxu0 %v1453
      %1596 = vmatpush1.bf16.msra.mxu0 %v1452
      %1597 = vmatprep.subr.bf16.mxu0 %v1456
      %1598 = vmatpush1.bf16.msra.mxu0 %v1455
      %1599 = vmatprep.subr.bf16.mxu0 %v1459
      %1600 = vmatpush1.bf16.msra.mxu0 %v1458
      %1601 = vmatprep.subr.bf16.mxu0 %v1462
      %1602 = vmatpush1.bf16.msra.mxu0 %v1461
      %1603 = vmatprep.subr.bf16.mxu0 %v1465
      %1604 = vmatpush1.bf16.msra.mxu0 %v1464
      %1605 = vmatprep.subr.bf16.mxu0 %v1468
      %1606 = vmatpush1.bf16.msra.mxu0 %v1467
      %1607 = vmatprep.subr.bf16.mxu0 %v1471
      %1608 = vmatpush1.bf16.msra.mxu0 %v1470
      %1609 = vmatprep.subr.bf16.mxu0 %v1474
      %1610 = vmatpush1.bf16.msra.mxu0 %v1473
      %1611 = vmatprep.subr.bf16.mxu0 %v1477
      %1612 = vmatpush1.bf16.msra.mxu0 %v1476
      %1613 = vmatprep.subr.bf16.mxu0 %v1480
      %1614 = vmatpush1.bf16.msra.mxu0 %v1479
      %1615 = vmatprep.subr.bf16.mxu0 %v1483
      %1616 = vmatpush1.bf16.msra.mxu0 %v1482
      %1617 = vmatprep.subr.bf16.mxu0 %v1486
      %1618 = vmatpush1.bf16.msra.mxu0 %v1485
      %1619 = vmatprep.subr.bf16.mxu0 %v1489
      %1620 = vmatpush1.bf16.msra.mxu0 %v1488
      %1621 = vmatprep.subr.bf16.mxu0 %v1492
      %1622 = vmatpush1.bf16.msra.mxu0 %v1491
      %1623 = vmatprep.subr.bf16.mxu0 %v1495
      %1624 = vmatpush1.bf16.msra.mxu0 %v1494
      %1625 = vmatprep.mubr.bf16.mxu0 %v1159
      %1626 = vmatmul.mubr.bf16.gmra.mrb[0].mxu0 %v1158
      %v1627 = vpop.f32.mrb[0].mxu0
      %v1628 = vadd.f32 0.0, %v1627
      %v1629 = vpop.f32.mrb[0].mxu0
      %v1630 = vadd.f32 0.0, %v1629
      %v1631 = vpop.f32.mrb[0].mxu0
      %v1632 = vadd.f32 0.0, %v1631
      %v1633 = vpop.f32.mrb[0].mxu0
      %v1634 = vadd.f32 0.0, %v1633
      %1635 = vmatprep.mubr.bf16.mxu0 %v1162
      %1636 = vmatmul.mubr.bf16.gmra.mrb[0].mxu0 %v1161
      %v1637 = vpop.f32.mrb[0].mxu0
      %v1638 = vpop.f32.mrb[0].mxu0
      %v1639 = vadd.f32 0.0, %v1638
      %v1640 = vpop.f32.mrb[0].mxu0
      %v1641 = vadd.f32 0.0, %v1640
      %v1642 = vpop.f32.mrb[0].mxu0
      %v1643 = vadd.f32 0.0, %v1642
      %1644 = vmatprep.mubr.bf16.mxu0 %v1165
      %1645 = vmatmul.mubr.bf16.gmra.mrb[0].mxu0 %v1164
      %v1646 = vpop.f32.mrb[0].mxu0
      %v1647 = vadd.f32 0.0, %v1646
      %v1648 = vpop.f32.mrb[0].mxu0
      %v1649 = vadd.f32 0.0, %v1648
      %v1650 = vpop.f32.mrb[0].mxu0
      %v1651 = vpop.f32.mrb[0].mxu0
      %v1652 = vadd.f32 0.0, %v1651
      %1653 = vmatprep.mubr.bf16.mxu0 %v1167
      %1654 = vmatmul.mubr.bf16.gmra.mrb[0].mxu0 %v1160
      %v1655 = vpop.f32.mrb[0].mxu0
      %v1656 = vadd.f32 0.0, %v1655
      %v1657 = vpop.f32.mrb[0].mxu0
      %v1658 = vadd.f32 0.0, %v1657
      %v1659 = vpop.f32.mrb[0].mxu0
      %v1660 = vadd.f32 0.0, %v1659
      %v1661 = vpop.f32.mrb[0].mxu0
      %v1662 = vadd.f32 0.0, %v1661
      %1663 = vmatprep.mubr.bf16.mxu0 %v1169
      %1664 = vmatmul.mubr.bf16.gmra.mrb[0].mxu0 %v1163
      %v1665 = vpop.f32.mrb[0].mxu0
      %v1666 = vpop.f32.mrb[0].mxu0
      %v1667 = vadd.f32 0.0, %v1666
      %v1668 = vpop.f32.mrb[0].mxu0
      %v1669 = vadd.f32 0.0, %v1668
      %v1670 = vpop.f32.mrb[0].mxu0
      %v1671 = vadd.f32 0.0, %v1670
      %1672 = vmatprep.mubr.bf16.mxu0 %v1171
      %1673 = vmatmul.mubr.bf16.gmra.mrb[0].mxu0 %v1166
      %v1674 = vpop.f32.mrb[0].mxu0
      %v1675 = vadd.f32 0.0, %v1674
      %v1676 = vpop.f32.mrb[0].mxu0
      %v1677 = vadd.f32 0.0, %v1676
      %v1678 = vpop.f32.mrb[0].mxu0
      %v1679 = vpop.f32.mrb[0].mxu0
      %v1680 = vadd.f32 0.0, %v1679
      %1681 = vmatprep.mubr.bf16.mxu0 %v1173
      %1682 = vmatmul.mubr.bf16.gmra.mrb[0].mxu0 %v1168
      %v1683 = vpop.f32.mrb[0].mxu0
      %v1684 = vadd.f32 0.0, %v1683
      %v1685 = vpop.f32.mrb[0].mxu0
      %v1686 = vadd.f32 0.0, %v1685
      %v1687 = vpop.f32.mrb[0].mxu0
      %v1688 = vadd.f32 0.0, %v1687
      %v1689 = vpop.f32.mrb[0].mxu0
      %v1690 = vadd.f32 0.0, %v1689
      %1691 = vmatprep.mubr.bf16.mxu0 %v1175
      %1692 = vmatmul.mubr.bf16.gmra.mrb[0].mxu0 %v1170
      %v1693 = vpop.f32.mrb[0].mxu0
      %v1694 = vpop.f32.mrb[0].mxu0
      %v1695 = vadd.f32 0.0, %v1694
      %v1696 = vpop.f32.mrb[0].mxu0
      %v1697 = vadd.f32 0.0, %v1696
      %v1698 = vpop.f32.mrb[0].mxu0
      %v1699 = vadd.f32 0.0, %v1698
      %1700 = vmatprep.mubr.bf16.mxu0 %v1177
      %1701 = vmatmul.mubr.bf16.gmra.mrb[0].mxu0 %v1172
      %v1702 = vpop.f32.mrb[0].mxu0
      %v1703 = vadd.f32 0.0, %v1702
      %v1704 = vpop.f32.mrb[0].mxu0
      %v1705 = vadd.f32 0.0, %v1704
      %v1706 = vpop.f32.mrb[0].mxu0
      %v1707 = vpop.f32.mrb[0].mxu0
      %v1708 = vadd.f32 0.0, %v1707
      %1709 = vmatprep.mubr.bf16.mxu0 %v1179
      %1710 = vmatmul.mubr.bf16.gmra.mrb[0].mxu0 %v1174
      %v1711 = vpop.f32.mrb[0].mxu0
      %v1712 = vadd.f32 0.0, %v1711
      %v1713 = vpop.f32.mrb[0].mxu0
      %v1714 = vadd.f32 0.0, %v1713
      %v1715 = vpop.f32.mrb[0].mxu0
      %v1716 = vadd.f32 0.0, %v1715
      %v1717 = vpop.f32.mrb[0].mxu0
      %v1718 = vadd.f32 0.0, %v1717
      %1719 = vmatprep.mubr.bf16.mxu0 %v1181
      %1720 = vmatmul.mubr.bf16.gmra.mrb[0].mxu0 %v1176
      %v1721 = vpop.f32.mrb[0].mxu0
      %v1722 = vpop.f32.mrb[0].mxu0
      %v1723 = vadd.f32 0.0, %v1722
      %v1724 = vpop.f32.mrb[0].mxu0
      %v1725 = vadd.f32 0.0, %v1724
      %v1726 = vpop.f32.mrb[0].mxu0
      %v1727 = vadd.f32 0.0, %v1726
      %1728 = vmatprep.mubr.bf16.mxu0 %v1183
      %1729 = vmatmul.mubr.bf16.gmra.mrb[0].mxu0 %v1178
      %v1730 = vpop.f32.mrb[0].mxu0
      %v1731 = vadd.f32 0.0, %v1730
      %v1732 = vpop.f32.mrb[0].mxu0
      %v1733 = vadd.f32 0.0, %v1732
      %v1734 = vpop.f32.mrb[0].mxu0
      %v1735 = vpop.f32.mrb[0].mxu0
      %v1736 = vadd.f32 0.0, %v1735
      %1737 = vmatprep.mubr.bf16.mxu0 %v1185
      %1738 = vmatmul.mubr.bf16.gmra.mrb[0].mxu0 %v1180
      %v1739 = vpop.f32.mrb[0].mxu0
      %v1740 = vadd.f32 0.0, %v1739
      %v1741 = vpop.f32.mrb[0].mxu0
      %v1742 = vadd.f32 0.0, %v1741
      %v1743 = vpop.f32.mrb[0].mxu0
      %v1744 = vadd.f32 0.0, %v1743
      %v1745 = vpop.f32.mrb[0].mxu0
      %v1746 = vadd.f32 0.0, %v1745
      %1747 = vmatprep.mubr.bf16.mxu0 %v1187
      %1748 = vmatmul.mubr.bf16.gmra.mrb[0].mxu0 %v1182
      %v1749 = vpop.f32.mrb[0].mxu0
      %v1750 = vpop.f32.mrb[0].mxu0
      %v1751 = vadd.f32 0.0, %v1750
      %v1752 = vpop.f32.mrb[0].mxu0
      %v1753 = vadd.f32 0.0, %v1752
      %v1754 = vpop.f32.mrb[0].mxu0
      %v1755 = vadd.f32 0.0, %v1754
      %1756 = vmatprep.mubr.bf16.mxu0 %v1189
      %1757 = vmatmul.mubr.bf16.gmra.mrb[0].mxu0 %v1184
      %v1758 = vpop.f32.mrb[0].mxu0
      %v1759 = vadd.f32 0.0, %v1758
      %v1760 = vpop.f32.mrb[0].mxu0
      %v1761 = vadd.f32 0.0, %v1760
      %v1762 = vpop.f32.mrb[0].mxu0
      %v1763 = vpop.f32.mrb[0].mxu0
      %v1764 = vadd.f32 0.0, %v1763
      %1765 = vmatprep.mubr.bf16.mxu0 %v1191
      %1766 = vmatmul.mubr.bf16.gmra.mrb[0].mxu0 %v1186
      %v1767 = vpop.f32.mrb[0].mxu0
      %v1768 = vadd.f32 0.0, %v1767
      %v1769 = vpop.f32.mrb[0].mxu0
      %v1770 = vadd.f32 0.0, %v1769
      %v1771 = vpop.f32.mrb[0].mxu0
      %v1772 = vadd.f32 0.0, %v1771
      %v1773 = vpop.f32.mrb[0].mxu0
      %v1774 = vadd.f32 0.0, %v1773
      %1775 = vmatprep.mubr.bf16.mxu0 %v1193
      %1776 = vmatmul.mubr.bf16.gmra.mrb[0].mxu0 %v1188
      %v1777 = vpop.f32.mrb[0].mxu0
      %v1778 = vpop.f32.mrb[0].mxu0
      %v1779 = vadd.f32 0.0, %v1778
      %v1780 = vpop.f32.mrb[0].mxu0
      %v1781 = vadd.f32 0.0, %v1780
      %v1782 = vpop.f32.mrb[0].mxu0
      %v1783 = vadd.f32 0.0, %v1782
      %1784 = vmatprep.mubr.bf16.mxu0 %v1195
      %1785 = vmatmul.mubr.bf16.gmra.mrb[0].mxu0 %v1190
      %v1786 = vpop.f32.mrb[0].mxu0
      %v1787 = vadd.f32 0.0, %v1786
      %v1788 = vpop.f32.mrb[0].mxu0
      %v1789 = vadd.f32 0.0, %v1788
      %v1790 = vpop.f32.mrb[0].mxu0
      %v1791 = vpop.f32.mrb[0].mxu0
      %v1792 = vadd.f32 0.0, %v1791
      %1793 = vmatprep.mubr.bf16.mxu0 %v1197
      %1794 = vmatmul.mubr.bf16.gmra.mrb[0].mxu0 %v1192
      %v1795 = vpop.f32.mrb[0].mxu0
      %v1796 = vadd.f32 0.0, %v1795
      %v1797 = vpop.f32.mrb[0].mxu0
      %v1798 = vadd.f32 0.0, %v1797
      %v1799 = vpop.f32.mrb[0].mxu0
      %v1800 = vadd.f32 0.0, %v1799
      %v1801 = vpop.f32.mrb[0].mxu0
      %v1802 = vadd.f32 0.0, %v1801
      %1803 = vmatprep.mubr.bf16.mxu0 %v1199
      %1804 = vmatmul.mubr.bf16.gmra.mrb[0].mxu0 %v1194
      %v1805 = vpop.f32.mrb[0].mxu0
      %v1806 = vpop.f32.mrb[0].mxu0
      %v1807 = vadd.f32 0.0, %v1806
      %v1808 = vpop.f32.mrb[0].mxu0
      %v1809 = vadd.f32 0.0, %v1808
      %v1810 = vpop.f32.mrb[0].mxu0
      %v1811 = vadd.f32 0.0, %v1810
      %1812 = vmatprep.mubr.bf16.mxu0 %v1201
      %1813 = vmatmul.mubr.bf16.gmra.mrb[0].mxu0 %v1196
      %v1814 = vpop.f32.mrb[0].mxu0
      %v1815 = vadd.f32 0.0, %v1814
      %v1816 = vpop.f32.mrb[0].mxu0
      %v1817 = vadd.f32 0.0, %v1816
      %v1818 = vpop.f32.mrb[0].mxu0
      %v1819 = vpop.f32.mrb[0].mxu0
      %v1820 = vadd.f32 0.0, %v1819
      %1821 = vmatprep.mubr.bf16.mxu0 %v1203
      %1822 = vmatmul.mubr.bf16.gmra.mrb[0].mxu0 %v1198
      %v1823 = vpop.f32.mrb[0].mxu0
      %v1824 = vadd.f32 0.0, %v1823
      %v1825 = vpop.f32.mrb[0].mxu0
      %v1826 = vadd.f32 0.0, %v1825
      %v1827 = vpop.f32.mrb[0].mxu0
      %v1828 = vadd.f32 0.0, %v1827
      %v1829 = vpop.f32.mrb[0].mxu0
      %v1830 = vadd.f32 0.0, %v1829
      %1831 = vmatprep.mubr.bf16.mxu0 %v1205
      %1832 = vmatmul.mubr.bf16.gmra.mrb[0].mxu0 %v1200
      %v1833 = vpop.f32.mrb[0].mxu0
      %v1834 = vpop.f32.mrb[0].mxu0
      %v1835 = vadd.f32 0.0, %v1834
      %v1836 = vpop.f32.mrb[0].mxu0
      %v1837 = vadd.f32 0.0, %v1836
      %v1838 = vpop.f32.mrb[0].mxu0
      %v1839 = vadd.f32 0.0, %v1838
      %1840 = vmatprep.mubr.bf16.mxu0 %v1207
      %1841 = vmatmul.mubr.bf16.gmra.mrb[0].mxu0 %v1202
      %v1842 = vpop.f32.mrb[0].mxu0
      %v1843 = vadd.f32 0.0, %v1842
      %v1844 = vpop.f32.mrb[0].mxu0
      %v1845 = vadd.f32 0.0, %v1844
      %v1846 = vpop.f32.mrb[0].mxu0
      %v1847 = vpop.f32.mrb[0].mxu0
      %v1848 = vadd.f32 0.0, %v1847
      %1849 = vdwg.mxu0
      %1850 = vmatprep.subr.bf16.mxu0 %v1498
      %1851 = vmatpush1.bf16.msra.mxu0 %v1497
      %1852 = vmatprep.subr.bf16.mxu0 %v1501
      %1853 = vmatpush1.bf16.msra.mxu0 %v1500
      %1854 = vmatprep.subr.bf16.mxu0 %v1504
      %1855 = vmatpush1.bf16.msra.mxu0 %v1503
      %1856 = vmatprep.subr.bf16.mxu0 %v1507
      %1857 = vmatpush1.bf16.msra.mxu0 %v1506
      %1858 = vmatprep.subr.bf16.mxu0 %v1510
      %1859 = vmatpush1.bf16.msra.mxu0 %v1509
      %1860 = vmatprep.subr.bf16.mxu0 %v1513
      %1861 = vmatpush1.bf16.msra.mxu0 %v1512
      %1862 = vmatprep.subr.bf16.mxu0 %v1516
      %1863 = vmatpush1.bf16.msra.mxu0 %v1515
      %1864 = vmatprep.subr.bf16.mxu0 %v1519
      %1865 = vmatpush1.bf16.msra.mxu0 %v1518
      %1866 = vmatprep.subr.bf16.mxu0 0
      %1867 = vmatpush1.bf16.msra.mxu0 0
      %1868 = vmatprep.subr.bf16.mxu0 0
      %1869 = vmatpush1.bf16.msra.mxu0 0
      %1870 = vmatprep.subr.bf16.mxu0 0
      %1871 = vmatpush1.bf16.msra.mxu0 0
      %1872 = vmatprep.subr.bf16.mxu0 0
      %1873 = vmatpush1.bf16.msra.mxu0 0
      %1874 = vmatprep.subr.bf16.mxu0 0
      %1875 = vmatpush1.bf16.msra.mxu0 0
      %1876 = vmatprep.subr.bf16.mxu0 0
      %1877 = vmatpush1.bf16.msra.mxu0 0
      %1878 = vmatprep.subr.bf16.mxu0 0
      %1879 = vmatpush1.bf16.msra.mxu0 0
      %1880 = vmatprep.subr.bf16.mxu0 0
      %1881 = vmatpush1.bf16.msra.mxu0 0
      %1882 = vmatprep.mubr.bf16.mxu0 0
      %1883 = vmatmul.mubr.bf16.gmra.mrb[0].mxu0 %v1160
      %v1884 = vpop.f32.mrb[0].mxu0
      %v1885 = vadd.f32 %v1628, %v1884
      %v1886 = vpop.f32.mrb[0].mxu0
      %v1887 = vadd.f32 %v1630, %v1886
      %v1888 = vpop.f32.mrb[0].mxu0
      %v1889 = vadd.f32 %v1632, %v1888
      %v1890 = vpop.f32.mrb[0].mxu0
      %v1891 = vadd.f32 %v1634, %v1890
      %1892 = vmatprep.mubr.bf16.mxu0 0
      %1893 = vmatmul.mubr.bf16.gmra.mrb[0].mxu0 %v1163
      %v1894 = vpop.f32.mrb[0].mxu0
      %v1895 = vpop.f32.mrb[0].mxu0
      %v1896 = vadd.f32 %v1639, %v1895
      %v1897 = vpop.f32.mrb[0].mxu0
      %v1898 = vadd.f32 %v1641, %v1897
      %v1899 = vpop.f32.mrb[0].mxu0
      %v1900 = vadd.f32 %v1643, %v1899
      %1901 = vmatprep.mubr.bf16.mxu0 0
      %1902 = vmatmul.mubr.bf16.gmra.mrb[0].mxu0 %v1166
      %v1903 = vpop.f32.mrb[0].mxu0
      %v1904 = vadd.f32 %v1647, %v1903
      %v1905 = vpop.f32.mrb[0].mxu0
      %v1906 = vadd.f32 %v1649, %v1905
      %v1907 = vpop.f32.mrb[0].mxu0
      %v1908 = vpop.f32.mrb[0].mxu0
      %v1909 = vadd.f32 %v1652, %v1908
      %1910 = vmatprep.mubr.bf16.mxu0 0
      %1911 = vmatmul.mubr.bf16.gmra.mrb[0].mxu0 %v1168
      %v1912 = vpop.f32.mrb[0].mxu0
      %v1913 = vadd.f32 %v1656, %v1912
      %v1914 = vpop.f32.mrb[0].mxu0
      %v1915 = vadd.f32 %v1658, %v1914
      %v1916 = vpop.f32.mrb[0].mxu0
      %v1917 = vadd.f32 %v1660, %v1916
      %v1918 = vpop.f32.mrb[0].mxu0
      %v1919 = vadd.f32 %v1662, %v1918
      %1920 = vmatprep.mubr.bf16.mxu0 0
      %1921 = vmatmul.mubr.bf16.gmra.mrb[0].mxu0 %v1170
      %v1922 = vpop.f32.mrb[0].mxu0
      %v1923 = vpop.f32.mrb[0].mxu0
      %v1924 = vadd.f32 %v1667, %v1923
      %v1925 = vpop.f32.mrb[0].mxu0
      %v1926 = vadd.f32 %v1669, %v1925
      %v1927 = vpop.f32.mrb[0].mxu0
      %v1928 = vadd.f32 %v1671, %v1927
      %1929 = vmatprep.mubr.bf16.mxu0 0
      %1930 = vmatmul.mubr.bf16.gmra.mrb[0].mxu0 %v1172
      %v1931 = vpop.f32.mrb[0].mxu0
      %v1932 = vadd.f32 %v1675, %v1931
      %v1933 = vpop.f32.mrb[0].mxu0
      %v1934 = vadd.f32 %v1677, %v1933
      %v1935 = vpop.f32.mrb[0].mxu0
      %v1936 = vpop.f32.mrb[0].mxu0
      %v1937 = vadd.f32 %v1680, %v1936
      %1938 = vmatprep.mubr.bf16.mxu0 0
      %1939 = vmatmul.mubr.bf16.gmra.mrb[0].mxu0 %v1174
      %v1940 = vpop.f32.mrb[0].mxu0
      %v1941 = vadd.f32 %v1684, %v1940
      %v1942 = vpop.f32.mrb[0].mxu0
      %v1943 = vadd.f32 %v1686, %v1942
      %v1944 = vpop.f32.mrb[0].mxu0
      %v1945 = vadd.f32 %v1688, %v1944
      %v1946 = vpop.f32.mrb[0].mxu0
      %v1947 = vadd.f32 %v1690, %v1946
      %1948 = vmatprep.mubr.bf16.mxu0 0
      %1949 = vmatmul.mubr.bf16.gmra.mrb[0].mxu0 %v1176
      %v1950 = vpop.f32.mrb[0].mxu0
      %v1951 = vpop.f32.mrb[0].mxu0
      %v1952 = vadd.f32 %v1695, %v1951
      %v1953 = vpop.f32.mrb[0].mxu0
      %v1954 = vadd.f32 %v1697, %v1953
      %v1955 = vpop.f32.mrb[0].mxu0
      %v1956 = vadd.f32 %v1699, %v1955
      %1957 = vmatprep.mubr.bf16.mxu0 0
      %1958 = vmatmul.mubr.bf16.gmra.mrb[0].mxu0 %v1178
      %v1959 = vpop.f32.mrb[0].mxu0
      %v1960 = vadd.f32 %v1703, %v1959
      %v1961 = vpop.f32.mrb[0].mxu0
      %v1962 = vadd.f32 %v1705, %v1961
      %v1963 = vpop.f32.mrb[0].mxu0
      %v1964 = vpop.f32.mrb[0].mxu0
      %v1965 = vadd.f32 %v1708, %v1964
      %1966 = vmatprep.mubr.bf16.mxu0 0
      %1967 = vmatmul.mubr.bf16.gmra.mrb[0].mxu0 %v1180
      %v1968 = vpop.f32.mrb[0].mxu0
      %v1969 = vadd.f32 %v1712, %v1968
      %v1970 = vpop.f32.mrb[0].mxu0
      %v1971 = vadd.f32 %v1714, %v1970
      %v1972 = vpop.f32.mrb[0].mxu0
      %v1973 = vadd.f32 %v1716, %v1972
      %v1974 = vpop.f32.mrb[0].mxu0
      %v1975 = vadd.f32 %v1718, %v1974
      %1976 = vmatprep.mubr.bf16.mxu0 0
      %1977 = vmatmul.mubr.bf16.gmra.mrb[0].mxu0 %v1182
      %v1978 = vpop.f32.mrb[0].mxu0
      %v1979 = vpop.f32.mrb[0].mxu0
      %v1980 = vadd.f32 %v1723, %v1979
      %v1981 = vpop.f32.mrb[0].mxu0
      %v1982 = vadd.f32 %v1725, %v1981
      %v1983 = vpop.f32.mrb[0].mxu0
      %v1984 = vadd.f32 %v1727, %v1983
      %1985 = vmatprep.mubr.bf16.mxu0 0
      %1986 = vmatmul.mubr.bf16.gmra.mrb[0].mxu0 %v1184
      %v1987 = vpop.f32.mrb[0].mxu0
      %v1988 = vadd.f32 %v1731, %v1987
      %v1989 = vpop.f32.mrb[0].mxu0
      %v1990 = vadd.f32 %v1733, %v1989
      %v1991 = vpop.f32.mrb[0].mxu0
      %v1992 = vpop.f32.mrb[0].mxu0
      %v1993 = vadd.f32 %v1736, %v1992
      %1994 = vmatprep.mubr.bf16.mxu0 0
      %1995 = vmatmul.mubr.bf16.gmra.mrb[0].mxu0 %v1186
      %v1996 = vpop.f32.mrb[0].mxu0
      %v1997 = vadd.f32 %v1740, %v1996
      %v1998 = vpop.f32.mrb[0].mxu0
      %v1999 = vadd.f32 %v1742, %v1998
      %v2000 = vpop.f32.mrb[0].mxu0
      %v2001 = vadd.f32 %v1744, %v2000
      %v2002 = vpop.f32.mrb[0].mxu0
      %v2003 = vadd.f32 %v1746, %v2002
      %2004 = vmatprep.mubr.bf16.mxu0 0
      %2005 = vmatmul.mubr.bf16.gmra.mrb[0].mxu0 %v1188
      %v2006 = vpop.f32.mrb[0].mxu0
      %v2007 = vpop.f32.mrb[0].mxu0
      %v2008 = vadd.f32 %v1751, %v2007
      %v2009 = vpop.f32.mrb[0].mxu0
      %v2010 = vadd.f32 %v1753, %v2009
      %v2011 = vpop.f32.mrb[0].mxu0
      %v2012 = vadd.f32 %v1755, %v2011
      %2013 = vmatprep.mubr.bf16.mxu0 0
      %2014 = vmatmul.mubr.bf16.gmra.mrb[0].mxu0 %v1190
      %v2015 = vpop.f32.mrb[0].mxu0
      %v2016 = vadd.f32 %v1759, %v2015
      %v2017 = vpop.f32.mrb[0].mxu0
      %v2018 = vadd.f32 %v1761, %v2017
      %v2019 = vpop.f32.mrb[0].mxu0
      %v2020 = vpop.f32.mrb[0].mxu0
      %v2021 = vadd.f32 %v1764, %v2020
      %2022 = vmatprep.mubr.bf16.mxu0 0
      %2023 = vmatmul.mubr.bf16.gmra.mrb[0].mxu0 %v1192
      %v2024 = vpop.f32.mrb[0].mxu0
      %v2025 = vadd.f32 %v1768, %v2024
      %v2026 = vpop.f32.mrb[0].mxu0
      %v2027 = vadd.f32 %v1770, %v2026
      %v2028 = vpop.f32.mrb[0].mxu0
      %v2029 = vadd.f32 %v1772, %v2028
      %v2030 = vpop.f32.mrb[0].mxu0
      %v2031 = vadd.f32 %v1774, %v2030
      %2032 = vmatprep.mubr.bf16.mxu0 0
      %2033 = vmatmul.mubr.bf16.gmra.mrb[0].mxu0 %v1194
      %v2034 = vpop.f32.mrb[0].mxu0
      %v2035 = vpop.f32.mrb[0].mxu0
      %v2036 = vadd.f32 %v1779, %v2035
      %v2037 = vpop.f32.mrb[0].mxu0
      %v2038 = vadd.f32 %v1781, %v2037
      %v2039 = vpop.f32.mrb[0].mxu0
      %v2040 = vadd.f32 %v1783, %v2039
      %2041 = vmatprep.mubr.bf16.mxu0 0
      %2042 = vmatmul.mubr.bf16.gmra.mrb[0].mxu0 %v1196
      %v2043 = vpop.f32.mrb[0].mxu0
      %v2044 = vadd.f32 %v1787, %v2043
      %v2045 = vpop.f32.mrb[0].mxu0
      %v2046 = vadd.f32 %v1789, %v2045
      %v2047 = vpop.f32.mrb[0].mxu0
      %v2048 = vpop.f32.mrb[0].mxu0
      %v2049 = vadd.f32 %v1792, %v2048
      %2050 = vmatprep.mubr.bf16.mxu0 0
      %2051 = vmatmul.mubr.bf16.gmra.mrb[0].mxu0 %v1198
      %v2052 = vpop.f32.mrb[0].mxu0
      %v2053 = vadd.f32 %v1796, %v2052
      %v2054 = vpop.f32.mrb[0].mxu0
      %v2055 = vadd.f32 %v1798, %v2054
      %v2056 = vpop.f32.mrb[0].mxu0
      %v2057 = vadd.f32 %v1800, %v2056
      %v2058 = vpop.f32.mrb[0].mxu0
      %v2059 = vadd.f32 %v1802, %v2058
      %2060 = vmatprep.mubr.bf16.mxu0 0
      %2061 = vmatmul.mubr.bf16.gmra.mrb[0].mxu0 %v1200
      %v2062 = vpop.f32.mrb[0].mxu0
      %v2063 = vpop.f32.mrb[0].mxu0
      %v2064 = vadd.f32 %v1807, %v2063
      %v2065 = vpop.f32.mrb[0].mxu0
      %v2066 = vadd.f32 %v1809, %v2065
      %v2067 = vpop.f32.mrb[0].mxu0
      %v2068 = vadd.f32 %v1811, %v2067
      %2069 = vmatprep.mubr.bf16.mxu0 0
      %2070 = vmatmul.mubr.bf16.gmra.mrb[0].mxu0 %v1202
      %v2071 = vpop.f32.mrb[0].mxu0
      %v2072 = vadd.f32 %v1815, %v2071
      %v2073 = vpop.f32.mrb[0].mxu0
      %v2074 = vadd.f32 %v1817, %v2073
      %v2075 = vpop.f32.mrb[0].mxu0
      %v2076 = vpop.f32.mrb[0].mxu0
      %v2077 = vadd.f32 %v1820, %v2076
      %2078 = vmatprep.mubr.bf16.mxu0 0
      %2079 = vmatmul.mubr.bf16.gmra.mrb[0].mxu0 %v1204
      %v2080 = vpop.f32.mrb[0].mxu0
      %v2081 = vadd.f32 %v1824, %v2080
      %v2082 = vpop.f32.mrb[0].mxu0
      %v2083 = vadd.f32 %v1826, %v2082
      %v2084 = vpop.f32.mrb[0].mxu0
      %v2085 = vadd.f32 %v1828, %v2084
      %v2086 = vpop.f32.mrb[0].mxu0
      %v2087 = vadd.f32 %v1830, %v2086
      %2088 = vmatprep.mubr.bf16.mxu0 0
      %2089 = vmatmul.mubr.bf16.gmra.mrb[0].mxu0 %v1206
      %v2090 = vpop.f32.mrb[0].mxu0
      %v2091 = vpop.f32.mrb[0].mxu0
      %v2092 = vadd.f32 %v1835, %v2091
      %v2093 = vpop.f32.mrb[0].mxu0
      %v2094 = vadd.f32 %v1837, %v2093
      %v2095 = vpop.f32.mrb[0].mxu0
      %v2096 = vadd.f32 %v1839, %v2095
      %2097 = vmatprep.mubr.bf16.mxu0 0
      %2098 = vmatmul.mubr.bf16.gmra.mrb[0].mxu0 %v1208
      %v2099 = vpop.f32.mrb[0].mxu0
      %v2100 = vadd.f32 %v1843, %v2099
      %v2101 = vpop.f32.mrb[0].mxu0
      %v2102 = vadd.f32 %v1845, %v2101
      %v2103 = vpop.f32.mrb[0].mxu0
      %v2104 = vpop.f32.mrb[0].mxu0
      %v2105 = vadd.f32 %v1848, %v2104
      %2106 = vdwg.mxu0
      %2107 = vmatprep.subr.bf16.mxu0 0
      %2108 = vmatpush1.bf16.msra.mxu0 %v1451
      %2109 = vmatprep.subr.bf16.mxu0 0
      %2110 = vmatpush1.bf16.msra.mxu0 %v1454
      %2111 = vmatprep.subr.bf16.mxu0 0
      %2112 = vmatpush1.bf16.msra.mxu0 %v1457
      %2113 = vmatprep.subr.bf16.mxu0 0
      %2114 = vmatpush1.bf16.msra.mxu0 %v1460
      %2115 = vmatprep.subr.bf16.mxu0 0
      %2116 = vmatpush1.bf16.msra.mxu0 %v1463
      %2117 = vmatprep.subr.bf16.mxu0 0
      %2118 = vmatpush1.bf16.msra.mxu0 %v1466
      %2119 = vmatprep.subr.bf16.mxu0 0
      %2120 = vmatpush1.bf16.msra.mxu0 %v1469
      %2121 = vmatprep.subr.bf16.mxu0 0
      %2122 = vmatpush1.bf16.msra.mxu0 %v1472
      %2123 = vmatprep.subr.bf16.mxu0 0
      %2124 = vmatpush1.bf16.msra.mxu0 %v1475
      %2125 = vmatprep.subr.bf16.mxu0 0
      %2126 = vmatpush1.bf16.msra.mxu0 %v1478
      %2127 = vmatprep.subr.bf16.mxu0 0
      %2128 = vmatpush1.bf16.msra.mxu0 %v1481
      %2129 = vmatprep.subr.bf16.mxu0 0
      %2130 = vmatpush1.bf16.msra.mxu0 %v1484
      %2131 = vmatprep.subr.bf16.mxu0 0
      %2132 = vmatpush1.bf16.msra.mxu0 %v1487
      %2133 = vmatprep.subr.bf16.mxu0 0
      %2134 = vmatpush1.bf16.msra.mxu0 %v1490
      %2135 = vmatprep.subr.bf16.mxu0 0
      %2136 = vmatpush1.bf16.msra.mxu0 %v1493
      %2137 = vmatprep.subr.bf16.mxu0 0
      %2138 = vmatpush1.bf16.msra.mxu0 %v1496
      %2139 = vmatprep.mubr.bf16.mxu0 %v1159
      %2140 = vmatmul.mubr.bf16.gmra.mrb[0].mxu0 %v1158
      %v2141 = vpop.f32.mrb[0].mxu0
      %v2142 = vadd.f32 0.0, %v2141
      %v2143 = vpop.f32.mrb[0].mxu0
      %v2144 = vpop.f32.mrb[0].mxu0
      %v2145 = vadd.f32 0.0, %v2144
      %v2146 = vpop.f32.mrb[0].mxu0
      %2147 = vmatprep.mubr.bf16.mxu0 %v1162
      %2148 = vmatmul.mubr.bf16.gmra.mrb[0].mxu0 %v1161
      %v2149 = vpop.f32.mrb[0].mxu0
      %v2150 = vadd.f32 0.0, %v2149
      %v2151 = vpop.f32.mrb[0].mxu0
      %v2152 = vpop.f32.mrb[0].mxu0
      %v2153 = vadd.f32 0.0, %v2152
      %v2154 = vpop.f32.mrb[0].mxu0
      %2155 = vmatprep.mubr.bf16.mxu0 %v1165
      %2156 = vmatmul.mubr.bf16.gmra.mrb[0].mxu0 %v1164
      %v2157 = vpop.f32.mrb[0].mxu0
      %v2158 = vadd.f32 0.0, %v2157
      %v2159 = vpop.f32.mrb[0].mxu0
      %v2160 = vpop.f32.mrb[0].mxu0
      %v2161 = vadd.f32 0.0, %v2160
      %v2162 = vpop.f32.mrb[0].mxu0
      %2163 = vmatprep.mubr.bf16.mxu0 %v1167
      %2164 = vmatmul.mubr.bf16.gmra.mrb[0].mxu0 %v1160
      %v2165 = vpop.f32.mrb[0].mxu0
      %v2166 = vadd.f32 0.0, %v2165
      %v2167 = vpop.f32.mrb[0].mxu0
      %v2168 = vpop.f32.mrb[0].mxu0
      %v2169 = vadd.f32 0.0, %v2168
      %v2170 = vpop.f32.mrb[0].mxu0
      %2171 = vmatprep.mubr.bf16.mxu0 %v1169
      %2172 = vmatmul.mubr.bf16.gmra.mrb[0].mxu0 %v1163
      %v2173 = vpop.f32.mrb[0].mxu0
      %v2174 = vadd.f32 0.0, %v2173
      %v2175 = vpop.f32.mrb[0].mxu0
      %v2176 = vpop.f32.mrb[0].mxu0
      %v2177 = vadd.f32 0.0, %v2176
      %v2178 = vpop.f32.mrb[0].mxu0
      %2179 = vmatprep.mubr.bf16.mxu0 %v1171
      %2180 = vmatmul.mubr.bf16.gmra.mrb[0].mxu0 %v1166
      %v2181 = vpop.f32.mrb[0].mxu0
      %v2182 = vadd.f32 0.0, %v2181
      %v2183 = vpop.f32.mrb[0].mxu0
      %v2184 = vpop.f32.mrb[0].mxu0
      %v2185 = vadd.f32 0.0, %v2184
      %v2186 = vpop.f32.mrb[0].mxu0
      %2187 = vmatprep.mubr.bf16.mxu0 %v1173
      %2188 = vmatmul.mubr.bf16.gmra.mrb[0].mxu0 %v1168
      %v2189 = vpop.f32.mrb[0].mxu0
      %v2190 = vadd.f32 0.0, %v2189
      %v2191 = vpop.f32.mrb[0].mxu0
      %v2192 = vpop.f32.mrb[0].mxu0
      %v2193 = vadd.f32 0.0, %v2192
      %v2194 = vpop.f32.mrb[0].mxu0
      %2195 = vmatprep.mubr.bf16.mxu0 %v1175
      %2196 = vmatmul.mubr.bf16.gmra.mrb[0].mxu0 %v1170
      %v2197 = vpop.f32.mrb[0].mxu0
      %v2198 = vadd.f32 0.0, %v2197
      %v2199 = vpop.f32.mrb[0].mxu0
      %v2200 = vpop.f32.mrb[0].mxu0
      %v2201 = vadd.f32 0.0, %v2200
      %v2202 = vpop.f32.mrb[0].mxu0
      %2203 = vmatprep.mubr.bf16.mxu0 %v1177
      %2204 = vmatmul.mubr.bf16.gmra.mrb[0].mxu0 %v1172
      %v2205 = vpop.f32.mrb[0].mxu0
      %v2206 = vadd.f32 0.0, %v2205
      %v2207 = vpop.f32.mrb[0].mxu0
      %v2208 = vpop.f32.mrb[0].mxu0
      %v2209 = vadd.f32 0.0, %v2208
      %v2210 = vpop.f32.mrb[0].mxu0
      %2211 = vmatprep.mubr.bf16.mxu0 %v1179
      %2212 = vmatmul.mubr.bf16.gmra.mrb[0].mxu0 %v1174
      %v2213 = vpop.f32.mrb[0].mxu0
      %v2214 = vadd.f32 0.0, %v2213
      %v2215 = vpop.f32.mrb[0].mxu0
      %v2216 = vpop.f32.mrb[0].mxu0
      %v2217 = vadd.f32 0.0, %v2216
      %v2218 = vpop.f32.mrb[0].mxu0
      %2219 = vmatprep.mubr.bf16.mxu0 %v1181
      %2220 = vmatmul.mubr.bf16.gmra.mrb[0].mxu0 %v1176
      %v2221 = vpop.f32.mrb[0].mxu0
      %v2222 = vadd.f32 0.0, %v2221
      %v2223 = vpop.f32.mrb[0].mxu0
      %v2224 = vpop.f32.mrb[0].mxu0
      %v2225 = vadd.f32 0.0, %v2224
      %v2226 = vpop.f32.mrb[0].mxu0
      %2227 = vmatprep.mubr.bf16.mxu0 %v1183
      %2228 = vmatmul.mubr.bf16.gmra.mrb[0].mxu0 %v1178
      %v2229 = vpop.f32.mrb[0].mxu0
      %v2230 = vadd.f32 0.0, %v2229
      %v2231 = vpop.f32.mrb[0].mxu0
      %v2232 = vpop.f32.mrb[0].mxu0
      %v2233 = vadd.f32 0.0, %v2232
      %v2234 = vpop.f32.mrb[0].mxu0
      %2235 = vmatprep.mubr.bf16.mxu0 %v1185
      %2236 = vmatmul.mubr.bf16.gmra.mrb[0].mxu0 %v1180
      %v2237 = vpop.f32.mrb[0].mxu0
      %v2238 = vadd.f32 0.0, %v2237
      %v2239 = vpop.f32.mrb[0].mxu0
      %v2240 = vpop.f32.mrb[0].mxu0
      %v2241 = vadd.f32 0.0, %v2240
      %v2242 = vpop.f32.mrb[0].mxu0
      %2243 = vmatprep.mubr.bf16.mxu0 %v1187
      %2244 = vmatmul.mubr.bf16.gmra.mrb[0].mxu0 %v1182
      %v2245 = vpop.f32.mrb[0].mxu0
      %v2246 = vadd.f32 0.0, %v2245
      %v2247 = vpop.f32.mrb[0].mxu0
      %v2248 = vpop.f32.mrb[0].mxu0
      %v2249 = vadd.f32 0.0, %v2248
      %v2250 = vpop.f32.mrb[0].mxu0
      %2251 = vmatprep.mubr.bf16.mxu0 %v1189
      %2252 = vmatmul.mubr.bf16.gmra.mrb[0].mxu0 %v1184
      %v2253 = vpop.f32.mrb[0].mxu0
      %v2254 = vadd.f32 0.0, %v2253
      %v2255 = vpop.f32.mrb[0].mxu0
      %v2256 = vpop.f32.mrb[0].mxu0
      %v2257 = vadd.f32 0.0, %v2256
      %v2258 = vpop.f32.mrb[0].mxu0
      %2259 = vmatprep.mubr.bf16.mxu0 %v1191
      %2260 = vmatmul.mubr.bf16.gmra.mrb[0].mxu0 %v1186
      %v2261 = vpop.f32.mrb[0].mxu0
      %v2262 = vadd.f32 0.0, %v2261
      %v2263 = vpop.f32.mrb[0].mxu0
      %v2264 = vpop.f32.mrb[0].mxu0
      %v2265 = vadd.f32 0.0, %v2264
      %v2266 = vpop.f32.mrb[0].mxu0
      %2267 = vmatprep.mubr.bf16.mxu0 %v1193
      %2268 = vmatmul.mubr.bf16.gmra.mrb[0].mxu0 %v1188
      %v2269 = vpop.f32.mrb[0].mxu0
      %v2270 = vadd.f32 0.0, %v2269
      %v2271 = vpop.f32.mrb[0].mxu0
      %v2272 = vpop.f32.mrb[0].mxu0
      %v2273 = vadd.f32 0.0, %v2272
      %v2274 = vpop.f32.mrb[0].mxu0
      %2275 = vmatprep.mubr.bf16.mxu0 %v1195
      %2276 = vmatmul.mubr.bf16.gmra.mrb[0].mxu0 %v1190
      %v2277 = vpop.f32.mrb[0].mxu0
      %v2278 = vadd.f32 0.0, %v2277
      %v2279 = vpop.f32.mrb[0].mxu0
      %v2280 = vpop.f32.mrb[0].mxu0
      %v2281 = vadd.f32 0.0, %v2280
      %v2282 = vpop.f32.mrb[0].mxu0
      %2283 = vmatprep.mubr.bf16.mxu0 %v1197
      %2284 = vmatmul.mubr.bf16.gmra.mrb[0].mxu0 %v1192
      %v2285 = vpop.f32.mrb[0].mxu0
      %v2286 = vadd.f32 0.0, %v2285
      %v2287 = vpop.f32.mrb[0].mxu0
      %v2288 = vpop.f32.mrb[0].mxu0
      %v2289 = vadd.f32 0.0, %v2288
      %v2290 = vpop.f32.mrb[0].mxu0
      %2291 = vmatprep.mubr.bf16.mxu0 %v1199
      %2292 = vmatmul.mubr.bf16.gmra.mrb[0].mxu0 %v1194
      %v2293 = vpop.f32.mrb[0].mxu0
      %v2294 = vadd.f32 0.0, %v2293
      %v2295 = vpop.f32.mrb[0].mxu0
      %v2296 = vpop.f32.mrb[0].mxu0
      %v2297 = vadd.f32 0.0, %v2296
      %v2298 = vpop.f32.mrb[0].mxu0
      %2299 = vmatprep.mubr.bf16.mxu0 %v1201
      %2300 = vmatmul.mubr.bf16.gmra.mrb[0].mxu0 %v1196
      %v2301 = vpop.f32.mrb[0].mxu0
      %v2302 = vadd.f32 0.0, %v2301
      %v2303 = vpop.f32.mrb[0].mxu0
      %v2304 = vpop.f32.mrb[0].mxu0
      %v2305 = vadd.f32 0.0, %v2304
      %v2306 = vpop.f32.mrb[0].mxu0
      %2307 = vmatprep.mubr.bf16.mxu0 %v1203
      %2308 = vmatmul.mubr.bf16.gmra.mrb[0].mxu0 %v1198
      %v2309 = vpop.f32.mrb[0].mxu0
      %v2310 = vadd.f32 0.0, %v2309
      %v2311 = vpop.f32.mrb[0].mxu0
      %v2312 = vpop.f32.mrb[0].mxu0
      %v2313 = vadd.f32 0.0, %v2312
      %v2314 = vpop.f32.mrb[0].mxu0
      %2315 = vmatprep.mubr.bf16.mxu0 %v1205
      %2316 = vmatmul.mubr.bf16.gmra.mrb[0].mxu0 %v1200
      %v2317 = vpop.f32.mrb[0].mxu0
      %v2318 = vadd.f32 0.0, %v2317
      %v2319 = vpop.f32.mrb[0].mxu0
      %v2320 = vpop.f32.mrb[0].mxu0
      %v2321 = vadd.f32 0.0, %v2320
      %v2322 = vpop.f32.mrb[0].mxu0
      %2323 = vmatprep.mubr.bf16.mxu0 %v1207
      %2324 = vmatmul.mubr.bf16.gmra.mrb[0].mxu0 %v1202
      %v2325 = vpop.f32.mrb[0].mxu0
      %v2326 = vadd.f32 0.0, %v2325
      %v2327 = vpop.f32.mrb[0].mxu0
      %v2328 = vpop.f32.mrb[0].mxu0
      %v2329 = vadd.f32 0.0, %v2328
      %v2330 = vpop.f32.mrb[0].mxu0
      %2331 = vdwg.mxu0
      %2332 = vmatprep.subr.bf16.mxu0 0
      %2333 = vmatpush1.bf16.msra.mxu0 %v1499
      %2334 = vmatprep.subr.bf16.mxu0 0
      %2335 = vmatpush1.bf16.msra.mxu0 %v1502
      %2336 = vmatprep.subr.bf16.mxu0 0
      %2337 = vmatpush1.bf16.msra.mxu0 %v1505
      %2338 = vmatprep.subr.bf16.mxu0 0
      %2339 = vmatpush1.bf16.msra.mxu0 %v1508
      %2340 = vmatprep.subr.bf16.mxu0 0
      %2341 = vmatpush1.bf16.msra.mxu0 %v1511
      %2342 = vmatprep.subr.bf16.mxu0 0
      %2343 = vmatpush1.bf16.msra.mxu0 %v1514
      %2344 = vmatprep.subr.bf16.mxu0 0
      %2345 = vmatpush1.bf16.msra.mxu0 %v1517
      %2346 = vmatprep.subr.bf16.mxu0 0
      %2347 = vmatpush1.bf16.msra.mxu0 %v1520
      %2348 = vmatprep.subr.bf16.mxu0 0
      %2349 = vmatpush1.bf16.msra.mxu0 0
      %2350 = vmatprep.subr.bf16.mxu0 0
      %2351 = vmatpush1.bf16.msra.mxu0 0
      %2352 = vmatprep.subr.bf16.mxu0 0
      %2353 = vmatpush1.bf16.msra.mxu0 0
      %2354 = vmatprep.subr.bf16.mxu0 0
      %2355 = vmatpush1.bf16.msra.mxu0 0
      %2356 = vmatprep.subr.bf16.mxu0 0
      %2357 = vmatpush1.bf16.msra.mxu0 0
      %2358 = vmatprep.subr.bf16.mxu0 0
      %2359 = vmatpush1.bf16.msra.mxu0 0
      %2360 = vmatprep.subr.bf16.mxu0 0
      %2361 = vmatpush1.bf16.msra.mxu0 0
      %2362 = vmatprep.subr.bf16.mxu0 0
      %2363 = vmatpush1.bf16.msra.mxu0 0
      %2364 = vmatprep.mubr.bf16.mxu0 0
      %2365 = vmatmul.mubr.bf16.gmra.mrb[0].mxu0 %v1160
      %v2366 = vpop.f32.mrb[0].mxu0
      %v2367 = vadd.f32 %v2142, %v2366
      %v2368 = vpop.f32.mrb[0].mxu0
      %v2369 = vpop.f32.mrb[0].mxu0
      %v2370 = vadd.f32 %v2145, %v2369
      %v2371 = vpop.f32.mrb[0].mxu0
      %2372 = vmatprep.mubr.bf16.mxu0 0
      %2373 = vmatmul.mubr.bf16.gmra.mrb[0].mxu0 %v1163
      %v2374 = vpop.f32.mrb[0].mxu0
      %v2375 = vadd.f32 %v2150, %v2374
      %v2376 = vpop.f32.mrb[0].mxu0
      %v2377 = vpop.f32.mrb[0].mxu0
      %v2378 = vadd.f32 %v2153, %v2377
      %v2379 = vpop.f32.mrb[0].mxu0
      %2380 = vmatprep.mubr.bf16.mxu0 0
      %2381 = vmatmul.mubr.bf16.gmra.mrb[0].mxu0 %v1166
      %v2382 = vpop.f32.mrb[0].mxu0
      %v2383 = vadd.f32 %v2158, %v2382
      %v2384 = vpop.f32.mrb[0].mxu0
      %v2385 = vpop.f32.mrb[0].mxu0
      %v2386 = vadd.f32 %v2161, %v2385
      %v2387 = vpop.f32.mrb[0].mxu0
      %2388 = vmatprep.mubr.bf16.mxu0 0
      %2389 = vmatmul.mubr.bf16.gmra.mrb[0].mxu0 %v1168
      %v2390 = vpop.f32.mrb[0].mxu0
      %v2391 = vadd.f32 %v2166, %v2390
      %v2392 = vpop.f32.mrb[0].mxu0
      %v2393 = vpop.f32.mrb[0].mxu0
      %v2394 = vadd.f32 %v2169, %v2393
      %v2395 = vpop.f32.mrb[0].mxu0
      %2396 = vmatprep.mubr.bf16.mxu0 0
      %2397 = vmatmul.mubr.bf16.gmra.mrb[0].mxu0 %v1170
      %v2398 = vpop.f32.mrb[0].mxu0
      %v2399 = vadd.f32 %v2174, %v2398
      %v2400 = vpop.f32.mrb[0].mxu0
      %v2401 = vpop.f32.mrb[0].mxu0
      %v2402 = vadd.f32 %v2177, %v2401
      %v2403 = vpop.f32.mrb[0].mxu0
      %2404 = vmatprep.mubr.bf16.mxu0 0
      %2405 = vmatmul.mubr.bf16.gmra.mrb[0].mxu0 %v1172
      %v2406 = vpop.f32.mrb[0].mxu0
      %v2407 = vadd.f32 %v2182, %v2406
      %v2408 = vpop.f32.mrb[0].mxu0
      %v2409 = vpop.f32.mrb[0].mxu0
      %v2410 = vadd.f32 %v2185, %v2409
      %v2411 = vpop.f32.mrb[0].mxu0
      %2412 = vmatprep.mubr.bf16.mxu0 0
      %2413 = vmatmul.mubr.bf16.gmra.mrb[0].mxu0 %v1174
      %v2414 = vpop.f32.mrb[0].mxu0
      %v2415 = vadd.f32 %v2190, %v2414
      %v2416 = vpop.f32.mrb[0].mxu0
      %v2417 = vpop.f32.mrb[0].mxu0
      %v2418 = vadd.f32 %v2193, %v2417
      %v2419 = vpop.f32.mrb[0].mxu0
      %2420 = vmatprep.mubr.bf16.mxu0 0
      %2421 = vmatmul.mubr.bf16.gmra.mrb[0].mxu0 %v1176
      %v2422 = vpop.f32.mrb[0].mxu0
      %v2423 = vadd.f32 %v2198, %v2422
      %v2424 = vpop.f32.mrb[0].mxu0
      %v2425 = vpop.f32.mrb[0].mxu0
      %v2426 = vadd.f32 %v2201, %v2425
      %v2427 = vpop.f32.mrb[0].mxu0
      %2428 = vmatprep.mubr.bf16.mxu0 0
      %2429 = vmatmul.mubr.bf16.gmra.mrb[0].mxu0 %v1178
      %v2430 = vpop.f32.mrb[0].mxu0
      %v2431 = vadd.f32 %v2206, %v2430
      %v2432 = vpop.f32.mrb[0].mxu0
      %v2433 = vpop.f32.mrb[0].mxu0
      %v2434 = vadd.f32 %v2209, %v2433
      %v2435 = vpop.f32.mrb[0].mxu0
      %2436 = vmatprep.mubr.bf16.mxu0 0
      %2437 = vmatmul.mubr.bf16.gmra.mrb[0].mxu0 %v1180
      %v2438 = vpop.f32.mrb[0].mxu0
      %v2439 = vadd.f32 %v2214, %v2438
      %v2440 = vpop.f32.mrb[0].mxu0
      %v2441 = vpop.f32.mrb[0].mxu0
      %v2442 = vadd.f32 %v2217, %v2441
      %v2443 = vpop.f32.mrb[0].mxu0
      %2444 = vmatprep.mubr.bf16.mxu0 0
      %2445 = vmatmul.mubr.bf16.gmra.mrb[0].mxu0 %v1182
      %v2446 = vpop.f32.mrb[0].mxu0
      %v2447 = vadd.f32 %v2222, %v2446
      %v2448 = vpop.f32.mrb[0].mxu0
      %v2449 = vpop.f32.mrb[0].mxu0
      %v2450 = vadd.f32 %v2225, %v2449
      %v2451 = vpop.f32.mrb[0].mxu0
      %2452 = vmatprep.mubr.bf16.mxu0 0
      %2453 = vmatmul.mubr.bf16.gmra.mrb[0].mxu0 %v1184
      %v2454 = vpop.f32.mrb[0].mxu0
      %v2455 = vadd.f32 %v2230, %v2454
      %v2456 = vpop.f32.mrb[0].mxu0
      %v2457 = vpop.f32.mrb[0].mxu0
      %v2458 = vadd.f32 %v2233, %v2457
      %v2459 = vpop.f32.mrb[0].mxu0
      %2460 = vmatprep.mubr.bf16.mxu0 0
      %2461 = vmatmul.mubr.bf16.gmra.mrb[0].mxu0 %v1186
      %v2462 = vpop.f32.mrb[0].mxu0
      %v2463 = vadd.f32 %v2238, %v2462
      %v2464 = vpop.f32.mrb[0].mxu0
      %v2465 = vpop.f32.mrb[0].mxu0
      %v2466 = vadd.f32 %v2241, %v2465
      %v2467 = vpop.f32.mrb[0].mxu0
      %2468 = vmatprep.mubr.bf16.mxu0 0
      %2469 = vmatmul.mubr.bf16.gmra.mrb[0].mxu0 %v1188
      %v2470 = vpop.f32.mrb[0].mxu0
      %v2471 = vadd.f32 %v2246, %v2470
      %v2472 = vpop.f32.mrb[0].mxu0
      %v2473 = vpop.f32.mrb[0].mxu0
      %v2474 = vadd.f32 %v2249, %v2473
      %v2475 = vpop.f32.mrb[0].mxu0
      %2476 = vmatprep.mubr.bf16.mxu0 0
      %2477 = vmatmul.mubr.bf16.gmra.mrb[0].mxu0 %v1190
      %v2478 = vpop.f32.mrb[0].mxu0
      %v2479 = vadd.f32 %v2254, %v2478
      %v2480 = vpop.f32.mrb[0].mxu0
      %v2481 = vpop.f32.mrb[0].mxu0
      %v2482 = vadd.f32 %v2257, %v2481
      %v2483 = vpop.f32.mrb[0].mxu0
      %2484 = vmatprep.mubr.bf16.mxu0 0
      %2485 = vmatmul.mubr.bf16.gmra.mrb[0].mxu0 %v1192
      %v2486 = vpop.f32.mrb[0].mxu0
      %v2487 = vadd.f32 %v2262, %v2486
      %v2488 = vpop.f32.mrb[0].mxu0
      %v2489 = vpop.f32.mrb[0].mxu0
      %v2490 = vadd.f32 %v2265, %v2489
      %v2491 = vpop.f32.mrb[0].mxu0
      %2492 = vmatprep.mubr.bf16.mxu0 0
      %2493 = vmatmul.mubr.bf16.gmra.mrb[0].mxu0 %v1194
      %v2494 = vpop.f32.mrb[0].mxu0
      %v2495 = vadd.f32 %v2270, %v2494
      %v2496 = vpop.f32.mrb[0].mxu0
      %v2497 = vpop.f32.mrb[0].mxu0
      %v2498 = vadd.f32 %v2273, %v2497
      %v2499 = vpop.f32.mrb[0].mxu0
      %2500 = vmatprep.mubr.bf16.mxu0 0
      %2501 = vmatmul.mubr.bf16.gmra.mrb[0].mxu0 %v1196
      %v2502 = vpop.f32.mrb[0].mxu0
      %v2503 = vadd.f32 %v2278, %v2502
      %v2504 = vpop.f32.mrb[0].mxu0
      %v2505 = vpop.f32.mrb[0].mxu0
      %v2506 = vadd.f32 %v2281, %v2505
      %v2507 = vpop.f32.mrb[0].mxu0
      %2508 = vmatprep.mubr.bf16.mxu0 0
      %2509 = vmatmul.mubr.bf16.gmra.mrb[0].mxu0 %v1198
      %v2510 = vpop.f32.mrb[0].mxu0
      %v2511 = vadd.f32 %v2286, %v2510
      %v2512 = vpop.f32.mrb[0].mxu0
      %v2513 = vpop.f32.mrb[0].mxu0
      %v2514 = vadd.f32 %v2289, %v2513
      %v2515 = vpop.f32.mrb[0].mxu0
      %2516 = vmatprep.mubr.bf16.mxu0 0
      %2517 = vmatmul.mubr.bf16.gmra.mrb[0].mxu0 %v1200
      %v2518 = vpop.f32.mrb[0].mxu0
      %v2519 = vadd.f32 %v2294, %v2518
      %v2520 = vpop.f32.mrb[0].mxu0
      %v2521 = vpop.f32.mrb[0].mxu0
      %v2522 = vadd.f32 %v2297, %v2521
      %v2523 = vpop.f32.mrb[0].mxu0
      %2524 = vmatprep.mubr.bf16.mxu0 0
      %2525 = vmatmul.mubr.bf16.gmra.mrb[0].mxu0 %v1202
      %v2526 = vpop.f32.mrb[0].mxu0
      %v2527 = vadd.f32 %v2302, %v2526
      %v2528 = vpop.f32.mrb[0].mxu0
      %v2529 = vpop.f32.mrb[0].mxu0
      %v2530 = vadd.f32 %v2305, %v2529
      %v2531 = vpop.f32.mrb[0].mxu0
      %2532 = vmatprep.mubr.bf16.mxu0 0
      %2533 = vmatmul.mubr.bf16.gmra.mrb[0].mxu0 %v1204
      %v2534 = vpop.f32.mrb[0].mxu0
      %v2535 = vadd.f32 %v2310, %v2534
      %v2536 = vpop.f32.mrb[0].mxu0
      %v2537 = vpop.f32.mrb[0].mxu0
      %v2538 = vadd.f32 %v2313, %v2537
      %v2539 = vpop.f32.mrb[0].mxu0
      %2540 = vmatprep.mubr.bf16.mxu0 0
      %2541 = vmatmul.mubr.bf16.gmra.mrb[0].mxu0 %v1206
      %v2542 = vpop.f32.mrb[0].mxu0
      %v2543 = vadd.f32 %v2318, %v2542
      %v2544 = vpop.f32.mrb[0].mxu0
      %v2545 = vpop.f32.mrb[0].mxu0
      %v2546 = vadd.f32 %v2321, %v2545
      %v2547 = vpop.f32.mrb[0].mxu0
      %2548 = vmatprep.mubr.bf16.mxu0 0
      %2549 = vmatmul.mubr.bf16.gmra.mrb[0].mxu0 %v1208
      %v2550 = vpop.f32.mrb[0].mxu0
      %v2551 = vadd.f32 %v2326, %v2550
      %v2552 = vpop.f32.mrb[0].mxu0
      %v2553 = vpop.f32.mrb[0].mxu0
      %v2554 = vadd.f32 %v2329, %v2553
      %v2555 = vpop.f32.mrb[0].mxu0
      %2556 = vdwg.mxu0
      %vm2605 = vcmask 1046528
      %v2606 = vrot.slane %v1887, 1
      %v2607 = vrot.slane %v1891, 1
      %v2608 = vsel %vm2605, %v2606, %v2607
      %v2609 = vrot.slane %v1896, 1
      %v2610 = vsel %vm2605, %v2607, %v2609
      %v2611 = vrot.slane %v1900, 1
      %v2612 = vrot.slane %v1906, 1
      %v2613 = vsel %vm2605, %v2611, %v2612
      %v2614 = vrot.slane %v1909, 1
      %v2615 = vsel %vm2605, %v2612, %v2614
      %v2616 = vrot.slane %v1915, 1
      %v2617 = vrot.slane %v1919, 1
      %v2618 = vsel %vm2605, %v2616, %v2617
      %v2619 = vrot.slane %v1924, 1
      %v2620 = vsel %vm2605, %v2617, %v2619
      %v2621 = vrot.slane %v1928, 1
      %v2622 = vrot.slane %v1934, 1
      %v2623 = vsel %vm2605, %v2621, %v2622
      %v2624 = vrot.slane %v1937, 1
      %v2625 = vsel %vm2605, %v2622, %v2624
      %v2626 = vrot.slane %v1943, 1
      %v2627 = vrot.slane %v1947, 1
      %v2628 = vsel %vm2605, %v2626, %v2627
      %v2629 = vrot.slane %v1952, 1
      %v2630 = vsel %vm2605, %v2627, %v2629
      %v2631 = vrot.slane %v1956, 1
      %v2632 = vrot.slane %v1962, 1
      %v2633 = vsel %vm2605, %v2631, %v2632
      %v2634 = vrot.slane %v1965, 1
      %v2635 = vsel %vm2605, %v2632, %v2634
      %v2636 = vrot.slane %v1971, 1
      %v2637 = vrot.slane %v1975, 1
      %v2638 = vsel %vm2605, %v2636, %v2637
      %v2639 = vrot.slane %v1980, 1
      %v2640 = vsel %vm2605, %v2637, %v2639
      %v2641 = vrot.slane %v1984, 1
      %v2642 = vrot.slane %v1990, 1
      %v2643 = vsel %vm2605, %v2641, %v2642
      %v2644 = vrot.slane %v1993, 1
      %v2645 = vsel %vm2605, %v2642, %v2644
      %v2646 = vrot.slane %v1999, 1
      %v2647 = vrot.slane %v2003, 1
      %v2648 = vsel %vm2605, %v2646, %v2647
      %v2649 = vrot.slane %v2008, 1
      %v2650 = vsel %vm2605, %v2647, %v2649
      %v2651 = vrot.slane %v2012, 1
      %v2652 = vrot.slane %v2018, 1
      %v2653 = vsel %vm2605, %v2651, %v2652
      %v2654 = vrot.slane %v2021, 1
      %v2655 = vsel %vm2605, %v2652, %v2654
      %v2656 = vrot.slane %v2027, 1
      %v2657 = vrot.slane %v2031, 1
      %v2658 = vsel %vm2605, %v2656, %v2657
      %v2659 = vrot.slane %v2036, 1
      %v2660 = vsel %vm2605, %v2657, %v2659
      %v2661 = vrot.slane %v2040, 1
      %v2662 = vrot.slane %v2046, 1
      %v2663 = vsel %vm2605, %v2661, %v2662
      %v2664 = vrot.slane %v2049, 1
      %v2665 = vsel %vm2605, %v2662, %v2664
      %v2666 = vrot.slane %v2055, 1
      %v2667 = vrot.slane %v2059, 1
      %v2668 = vsel %vm2605, %v2666, %v2667
      %v2669 = vrot.slane %v2064, 1
      %v2670 = vsel %vm2605, %v2667, %v2669
      %v2671 = vrot.slane %v2068, 1
      %v2672 = vrot.slane %v2074, 1
      %v2673 = vsel %vm2605, %v2671, %v2672
      %v2674 = vrot.slane %v2077, 1
      %v2675 = vsel %vm2605, %v2672, %v2674
      %v2676 = vrot.slane %v2083, 1
      %v2677 = vrot.slane %v2087, 1
      %v2678 = vsel %vm2605, %v2676, %v2677
      %v2679 = vrot.slane %v2092, 1
      %v2680 = vsel %vm2605, %v2677, %v2679
      %v2681 = vrot.slane %v2096, 1
      %v2682 = vrot.slane %v2102, 1
      %v2683 = vsel %vm2605, %v2681, %v2682
      %v2684 = vrot.slane %v2105, 1
      %v2685 = vsel %vm2605, %v2682, %v2684
      %v2718 = vadd.f32 %v1885, %v2608
      %v2719 = vadd.f32 %v1889, %v2610
      %v2720 = vadd.f32 %v1898, %v2613
      %v2721 = vadd.f32 %v1904, %v2615
      %v2722 = vadd.f32 %v1913, %v2618
      %v2723 = vadd.f32 %v1917, %v2620
      %v2724 = vadd.f32 %v1926, %v2623
      %v2725 = vadd.f32 %v1932, %v2625
      %v2726 = vadd.f32 %v1941, %v2628
      %v2727 = vadd.f32 %v1945, %v2630
      %v2728 = vadd.f32 %v1954, %v2633
      %v2729 = vadd.f32 %v1960, %v2635
      %v2730 = vadd.f32 %v1969, %v2638
      %v2731 = vadd.f32 %v1973, %v2640
      %v2732 = vadd.f32 %v1982, %v2643
      %v2733 = vadd.f32 %v1988, %v2645
      %v2734 = vadd.f32 %v1997, %v2648
      %v2735 = vadd.f32 %v2001, %v2650
      %v2736 = vadd.f32 %v2010, %v2653
      %v2737 = vadd.f32 %v2016, %v2655
      %v2738 = vadd.f32 %v2025, %v2658
      %v2739 = vadd.f32 %v2029, %v2660
      %v2740 = vadd.f32 %v2038, %v2663
      %v2741 = vadd.f32 %v2044, %v2665
      %v2742 = vadd.f32 %v2053, %v2668
      %v2743 = vadd.f32 %v2057, %v2670
      %v2744 = vadd.f32 %v2066, %v2673
      %v2745 = vadd.f32 %v2072, %v2675
      %v2746 = vadd.f32 %v2081, %v2678
      %v2747 = vadd.f32 %v2085, %v2680
      %v2748 = vadd.f32 %v2094, %v2683
      %v2749 = vadd.f32 %v2100, %v2685
      %vm2798 = vcmask 1045504
      %v2799 = vrot.slane %v2367, 2
      %v2800 = vrot.slane %v2370, 2
      %v2801 = vsel %vm2798, %v2799, %v2800
      %v2802 = vrot.slane %v2375, 2
      %v2803 = vsel %vm2798, %v2800, %v2802
      %v2804 = vrot.slane %v2378, 2
      %v2805 = vrot.slane %v2383, 2
      %v2806 = vsel %vm2798, %v2804, %v2805
      %v2807 = vrot.slane %v2386, 2
      %v2808 = vsel %vm2798, %v2805, %v2807
      %v2809 = vrot.slane %v2391, 2
      %v2810 = vrot.slane %v2394, 2
      %v2811 = vsel %vm2798, %v2809, %v2810
      %v2812 = vrot.slane %v2399, 2
      %v2813 = vsel %vm2798, %v2810, %v2812
      %v2814 = vrot.slane %v2402, 2
      %v2815 = vrot.slane %v2407, 2
      %v2816 = vsel %vm2798, %v2814, %v2815
      %v2817 = vrot.slane %v2410, 2
      %v2818 = vsel %vm2798, %v2815, %v2817
      %v2819 = vrot.slane %v2415, 2
      %v2820 = vrot.slane %v2418, 2
      %v2821 = vsel %vm2798, %v2819, %v2820
      %v2822 = vrot.slane %v2423, 2
      %v2823 = vsel %vm2798, %v2820, %v2822
      %v2824 = vrot.slane %v2426, 2
      %v2825 = vrot.slane %v2431, 2
      %v2826 = vsel %vm2798, %v2824, %v2825
      %v2827 = vrot.slane %v2434, 2
      %v2828 = vsel %vm2798, %v2825, %v2827
      %v2829 = vrot.slane %v2439, 2
      %v2830 = vrot.slane %v2442, 2
      %v2831 = vsel %vm2798, %v2829, %v2830
      %v2832 = vrot.slane %v2447, 2
      %v2833 = vsel %vm2798, %v2830, %v2832
      %v2834 = vrot.slane %v2450, 2
      %v2835 = vrot.slane %v2455, 2
      %v2836 = vsel %vm2798, %v2834, %v2835
      %v2837 = vrot.slane %v2458, 2
      %v2838 = vsel %vm2798, %v2835, %v2837
      %v2839 = vrot.slane %v2463, 2
      %v2840 = vrot.slane %v2466, 2
      %v2841 = vsel %vm2798, %v2839, %v2840
      %v2842 = vrot.slane %v2471, 2
      %v2843 = vsel %vm2798, %v2840, %v2842
      %v2844 = vrot.slane %v2474, 2
      %v2845 = vrot.slane %v2479, 2
      %v2846 = vsel %vm2798, %v2844, %v2845
      %v2847 = vrot.slane %v2482, 2
      %v2848 = vsel %vm2798, %v2845, %v2847
      %v2849 = vrot.slane %v2487, 2
      %v2850 = vrot.slane %v2490, 2
      %v2851 = vsel %vm2798, %v2849, %v2850
      %v2852 = vrot.slane %v2495, 2
      %v2853 = vsel %vm2798, %v2850, %v2852
      %v2854 = vrot.slane %v2498, 2
      %v2855 = vrot.slane %v2503, 2
      %v2856 = vsel %vm2798, %v2854, %v2855
      %v2857 = vrot.slane %v2506, 2
      %v2858 = vsel %vm2798, %v2855, %v2857
      %v2859 = vrot.slane %v2511, 2
      %v2860 = vrot.slane %v2514, 2
      %v2861 = vsel %vm2798, %v2859, %v2860
      %v2862 = vrot.slane %v2519, 2
      %v2863 = vsel %vm2798, %v2860, %v2862
      %v2864 = vrot.slane %v2522, 2
      %v2865 = vrot.slane %v2527, 2
      %v2866 = vsel %vm2798, %v2864, %v2865
      %v2867 = vrot.slane %v2530, 2
      %v2868 = vsel %vm2798, %v2865, %v2867
      %v2869 = vrot.slane %v2535, 2
      %v2870 = vrot.slane %v2538, 2
      %v2871 = vsel %vm2798, %v2869, %v2870
      %v2872 = vrot.slane %v2543, 2
      %v2873 = vsel %vm2798, %v2870, %v2872
      %v2874 = vrot.slane %v2546, 2
      %v2875 = vrot.slane %v2551, 2
      %v2876 = vsel %vm2798, %v2874, %v2875
      %v2877 = vrot.slane %v2554, 2
      %v2878 = vsel %vm2798, %v2875, %v2877
      %v2911 = vadd.f32 %v2718, %v2801
      %v2912 = vadd.f32 %v2719, %v2803
      %v2913 = vadd.f32 %v2720, %v2806
      %v2914 = vadd.f32 %v2721, %v2808
      %v2915 = vadd.f32 %v2722, %v2811
      %v2916 = vadd.f32 %v2723, %v2813
      %v2917 = vadd.f32 %v2724, %v2816
      %v2918 = vadd.f32 %v2725, %v2818
      %v2919 = vadd.f32 %v2726, %v2821
      %v2920 = vadd.f32 %v2727, %v2823
      %v2921 = vadd.f32 %v2728, %v2826
      %v2922 = vadd.f32 %v2729, %v2828
      %v2923 = vadd.f32 %v2730, %v2831
      %v2924 = vadd.f32 %v2731, %v2833
      %v2925 = vadd.f32 %v2732, %v2836
      %v2926 = vadd.f32 %v2733, %v2838
      %v2927 = vadd.f32 %v2734, %v2841
      %v2928 = vadd.f32 %v2735, %v2843
      %v2929 = vadd.f32 %v2736, %v2846
      %v2930 = vadd.f32 %v2737, %v2848
      %v2931 = vadd.f32 %v2738, %v2851
      %v2932 = vadd.f32 %v2739, %v2853
      %v2933 = vadd.f32 %v2740, %v2856
      %v2934 = vadd.f32 %v2741, %v2858
      %v2935 = vadd.f32 %v2742, %v2861
      %v2936 = vadd.f32 %v2743, %v2863
      %v2937 = vadd.f32 %v2744, %v2866
      %v2938 = vadd.f32 %v2745, %v2868
      %v2939 = vadd.f32 %v2746, %v2871
      %v2940 = vadd.f32 %v2747, %v2873
      %v2941 = vadd.f32 %v2748, %v2876
      %v2942 = vadd.f32 %v2749, %v2878
      %v2943 = vpack.c.bf16 %v2912, %v2911
      %v2944 = vpack.c.bf16 %v2914, %v2913
      %v2945 = vpack.c.bf16 %v2916, %v2915
      %v2946 = vpack.c.bf16 %v2918, %v2917
      %v2947 = vpack.c.bf16 %v2920, %v2919
      %v2948 = vpack.c.bf16 %v2922, %v2921
      %v2949 = vpack.c.bf16 %v2924, %v2923
      %v2950 = vpack.c.bf16 %v2926, %v2925
      %v2951 = vpack.c.bf16 %v2928, %v2927
      %v2952 = vpack.c.bf16 %v2930, %v2929
      %v2953 = vpack.c.bf16 %v2932, %v2931
      %v2954 = vpack.c.bf16 %v2934, %v2933
      %v2955 = vpack.c.bf16 %v2936, %v2935
      %v2956 = vpack.c.bf16 %v2938, %v2937
      %v2957 = vpack.c.bf16 %v2940, %v2939
      %v2958 = vpack.c.bf16 %v2942, %v2941
      %v2975 = vunpack.c.l.b16 %v2943
      %v2976 = vunpack.c.h.b16 %v2943
      %v2977 = vunpack.c.l.b16 %v2944
      %v2978 = vunpack.c.h.b16 %v2944
      %v2979 = vunpack.c.l.b16 %v2945
      %v2980 = vunpack.c.h.b16 %v2945
      %v2981 = vunpack.c.l.b16 %v2946
      %v2982 = vunpack.c.h.b16 %v2946
      %v2983 = vunpack.c.l.b16 %v2947
      %v2984 = vunpack.c.h.b16 %v2947
      %v2985 = vunpack.c.l.b16 %v2948
      %v2986 = vunpack.c.h.b16 %v2948
      %v2987 = vunpack.c.l.b16 %v2949
      %v2988 = vunpack.c.h.b16 %v2949
      %v2989 = vunpack.c.l.b16 %v2950
      %v2990 = vunpack.c.h.b16 %v2950
      %v2991 = vunpack.c.l.b16 %v2951
      %v2992 = vunpack.c.h.b16 %v2951
      %v2993 = vunpack.c.l.b16 %v2952
      %v2994 = vunpack.c.h.b16 %v2952
      %v2995 = vunpack.c.l.b16 %v2953
      %v2996 = vunpack.c.h.b16 %v2953
      %v2997 = vunpack.c.l.b16 %v2954
      %v2998 = vunpack.c.h.b16 %v2954
      %v2999 = vunpack.c.l.b16 %v2955
      %v3000 = vunpack.c.h.b16 %v2955
      %v3001 = vunpack.c.l.b16 %v2956
      %v3002 = vunpack.c.h.b16 %v2956
      %v3003 = vunpack.c.l.b16 %v2957
      %v3004 = vunpack.c.h.b16 %v2957
      %v3005 = vunpack.c.l.b16 %v2958
      %v3006 = vunpack.c.h.b16 %v2958
      %v3007 = vpack.c.b16 %v2975, %v2975
      %v3008 = vpack.c.b16 %v2976, %v2976
      %v3009 = vpack.c.b16 %v2977, %v2977
      %v3010 = vpack.c.b16 %v2978, %v2978
      %v3011 = vpack.c.b16 %v2979, %v2979
      %v3012 = vpack.c.b16 %v2980, %v2980
      %v3013 = vpack.c.b16 %v2981, %v2981
      %v3014 = vpack.c.b16 %v2982, %v2982
      %v3015 = vpack.c.b16 %v2983, %v2983
      %v3016 = vpack.c.b16 %v2984, %v2984
      %v3017 = vpack.c.b16 %v2985, %v2985
      %v3018 = vpack.c.b16 %v2986, %v2986
      %v3019 = vpack.c.b16 %v2987, %v2987
      %v3020 = vpack.c.b16 %v2988, %v2988
      %v3021 = vpack.c.b16 %v2989, %v2989
      %v3022 = vpack.c.b16 %v2990, %v2990
      %v3023 = vpack.c.b16 %v2991, %v2991
      %v3024 = vpack.c.b16 %v2992, %v2992
      %v3025 = vpack.c.b16 %v2993, %v2993
      %v3026 = vpack.c.b16 %v2994, %v2994
      %v3027 = vpack.c.b16 %v2995, %v2995
      %v3028 = vpack.c.b16 %v2996, %v2996
      %v3029 = vpack.c.b16 %v2997, %v2997
      %v3030 = vpack.c.b16 %v2998, %v2998
      %v3031 = vpack.c.b16 %v2999, %v2999
      %v3032 = vpack.c.b16 %v3000, %v3000
      %v3033 = vpack.c.b16 %v3001, %v3001
      %v3034 = vpack.c.b16 %v3002, %v3002
      %v3035 = vpack.c.b16 %v3003, %v3003
      %v3036 = vpack.c.b16 %v3004, %v3004
      %v3037 = vpack.c.b16 %v3005, %v3005
      %v3038 = vpack.c.b16 %v3006, %v3006
      %3071 = vst [vmem:[%s262] sm:$0xf] %v3007
      %3072 = vst [vmem:[%s262 + $0x4] sm:$0xf] %v3008
      %3073 = vst [vmem:[%s262 + $0x8] sm:$0xf] %v3009
      %3074 = vst [vmem:[%s262 + $0xc] sm:$0xf] %v3010
      %3075 = vst [vmem:[%s262 + $0x10] sm:$0xf] %v3011
      %3076 = vst [vmem:[%s262 + $0x14] sm:$0xf] %v3012
      %3077 = vst [vmem:[%s262 + $0x18] sm:$0xf] %v3013
      %3078 = vst [vmem:[%s262 + $0x1c] sm:$0xf] %v3014
      %3079 = vst [vmem:[%s262 + $0x20] sm:$0xf] %v3015
      %3080 = vst [vmem:[%s262 + $0x24] sm:$0xf] %v3016
      %3081 = vst [vmem:[%s262 + $0x28] sm:$0xf] %v3017
      %3082 = vst [vmem:[%s262 + $0x2c] sm:$0xf] %v3018
      %3083 = vst [vmem:[%s262 + $0x30] sm:$0xf] %v3019
      %3084 = vst [vmem:[%s262 + $0x34] sm:$0xf] %v3020
      %3085 = vst [vmem:[%s262 + $0x38] sm:$0xf] %v3021
      %3086 = vst [vmem:[%s262 + $0x3c] sm:$0xf] %v3022
      %3087 = vst [vmem:[%s262 + $0x40] sm:$0xf] %v3023
      %3088 = vst [vmem:[%s262 + $0x44] sm:$0xf] %v3024
      %3089 = vst [vmem:[%s262 + $0x48] sm:$0xf] %v3025
      %3090 = vst [vmem:[%s262 + $0x4c] sm:$0xf] %v3026
      %3091 = vst [vmem:[%s262 + $0x50] sm:$0xf] %v3027
      %3092 = vst [vmem:[%s262 + $0x54] sm:$0xf] %v3028
      %3093 = vst [vmem:[%s262 + $0x58] sm:$0xf] %v3029
      %3094 = vst [vmem:[%s262 + $0x5c] sm:$0xf] %v3030
      %3095 = vst [vmem:[%s262 + $0x60] sm:$0xf] %v3031
      %3096 = vst [vmem:[%s262 + $0x64] sm:$0xf] %v3032
      %3097 = vst [vmem:[%s262 + $0x68] sm:$0xf] %v3033
      %3098 = vst [vmem:[%s262 + $0x6c] sm:$0xf] %v3034
      %3099 = vst [vmem:[%s262 + $0x70] sm:$0xf] %v3035
      %3100 = vst [vmem:[%s262 + $0x74] sm:$0xf] %v3036
      %3101 = vst [vmem:[%s262 + $0x78] sm:$0xf] %v3037
      %3102 = vst [vmem:[%s262 + $0x7c] sm:$0xf] %v3038
      %v3103 = vadd.f32 %v2911, %v2912
      %v3104 = vadd.f32 %v3103, %v2913
      %v3105 = vadd.f32 %v3104, %v2914
      %v3106 = vadd.f32 %v3105, %v2915
      %v3107 = vadd.f32 %v3106, %v2916
      %v3108 = vadd.f32 %v3107, %v2917
      %v3109 = vadd.f32 %v3108, %v2918
      %v3110 = vadd.f32 %v3109, %v2919
      %v3111 = vadd.f32 %v3110, %v2920
      %v3112 = vadd.f32 %v3111, %v2921
      %v3113 = vadd.f32 %v3112, %v2922
      %v3114 = vadd.f32 %v3113, %v2923
      %v3115 = vadd.f32 %v3114, %v2924
      %v3116 = vadd.f32 %v3115, %v2925
      %v3117 = vadd.f32 %v3116, %v2926
      %v3118 = vadd.f32 %v3117, %v2927
      %v3119 = vadd.f32 %v3118, %v2928
      %v3120 = vadd.f32 %v3119, %v2929
      %v3121 = vadd.f32 %v3120, %v2930
      %v3122 = vadd.f32 %v3121, %v2931
      %v3123 = vadd.f32 %v3122, %v2932
      %v3124 = vadd.f32 %v3123, %v2933
      %v3125 = vadd.f32 %v3124, %v2934
      %v3126 = vadd.f32 %v3125, %v2935
      %v3127 = vadd.f32 %v3126, %v2936
      %v3128 = vadd.f32 %v3127, %v2937
      %v3129 = vadd.f32 %v3128, %v2938
      %v3130 = vadd.f32 %v3129, %v2939
      %v3131 = vadd.f32 %v3130, %v2940
      %v3132 = vadd.f32 %v3131, %v2941
      %v3133 = vadd.f32 %v3132, %v2942
      %v3134 = vrot.slane %v3133, 4
      %v3135 = vadd.f32 %v3133, %v3134
      %v3136 = vrot.slane %v3135, 2
      %v3137 = vadd.f32 %v3135, %v3136
      %v3138 = vrot.slane %v3137, 1
      %v3139 = vadd.f32 %v3137, %v3138
      %v3140 = vmul.f32 %v3139, 0.00390625
      %v3141 = vsub.f32 %v2911, %v3140
      %v3142 = vsub.f32 %v2912, %v3140
      %v3143 = vsub.f32 %v2913, %v3140
      %v3144 = vsub.f32 %v2914, %v3140
      %v3145 = vsub.f32 %v2915, %v3140
      %v3146 = vsub.f32 %v2916, %v3140
      %v3147 = vsub.f32 %v2917, %v3140
      %v3148 = vsub.f32 %v2918, %v3140
      %v3149 = vsub.f32 %v2919, %v3140
      %v3150 = vsub.f32 %v2920, %v3140
      %v3151 = vsub.f32 %v2921, %v3140
      %v3152 = vsub.f32 %v2922, %v3140
      %v3153 = vsub.f32 %v2923, %v3140
      %v3154 = vsub.f32 %v2924, %v3140
      %v3155 = vsub.f32 %v2925, %v3140
      %v3156 = vsub.f32 %v2926, %v3140
      %v3157 = vsub.f32 %v2927, %v3140
      %v3158 = vsub.f32 %v2928, %v3140
      %v3159 = vsub.f32 %v2929, %v3140
      %v3160 = vsub.f32 %v2930, %v3140
      %v3161 = vsub.f32 %v2931, %v3140
      %v3162 = vsub.f32 %v2932, %v3140
      %v3163 = vsub.f32 %v2933, %v3140
      %v3164 = vsub.f32 %v2934, %v3140
      %v3165 = vsub.f32 %v2935, %v3140
      %v3166 = vsub.f32 %v2936, %v3140
      %v3167 = vsub.f32 %v2937, %v3140
      %v3168 = vsub.f32 %v2938, %v3140
      %v3169 = vsub.f32 %v2939, %v3140
      %v3170 = vsub.f32 %v2940, %v3140
      %v3171 = vsub.f32 %v2941, %v3140
      %v3172 = vsub.f32 %v2942, %v3140
      %v3173 = vmul.f32 %v3141, %v3141
      %v3174 = vmul.f32 %v3142, %v3142
      %v3175 = vmul.f32 %v3143, %v3143
      %v3176 = vmul.f32 %v3144, %v3144
      %v3177 = vmul.f32 %v3145, %v3145
      %v3178 = vmul.f32 %v3146, %v3146
      %v3179 = vmul.f32 %v3147, %v3147
      %v3180 = vmul.f32 %v3148, %v3148
      %v3181 = vmul.f32 %v3149, %v3149
      %v3182 = vmul.f32 %v3150, %v3150
      %v3183 = vmul.f32 %v3151, %v3151
      %v3184 = vmul.f32 %v3152, %v3152
      %v3185 = vmul.f32 %v3153, %v3153
      %v3186 = vmul.f32 %v3154, %v3154
      %v3187 = vmul.f32 %v3155, %v3155
      %v3188 = vmul.f32 %v3156, %v3156
      %v3189 = vmul.f32 %v3157, %v3157
      %v3190 = vmul.f32 %v3158, %v3158
      %v3191 = vmul.f32 %v3159, %v3159
      %v3192 = vmul.f32 %v3160, %v3160
      %v3193 = vmul.f32 %v3161, %v3161
      %v3194 = vmul.f32 %v3162, %v3162
      %v3195 = vmul.f32 %v3163, %v3163
      %v3196 = vmul.f32 %v3164, %v3164
      %v3197 = vmul.f32 %v3165, %v3165
      %v3198 = vmul.f32 %v3166, %v3166
      %v3199 = vmul.f32 %v3167, %v3167
      %v3200 = vmul.f32 %v3168, %v3168
      %v3201 = vmul.f32 %v3169, %v3169
      %v3202 = vmul.f32 %v3170, %v3170
      %v3203 = vmul.f32 %v3171, %v3171
      %v3204 = vmul.f32 %v3172, %v3172
      %v3205 = vadd.f32 %v3173, %v3174
      %v3206 = vadd.f32 %v3205, %v3175
      %v3207 = vadd.f32 %v3206, %v3176
      %v3208 = vadd.f32 %v3207, %v3177
      %v3209 = vadd.f32 %v3208, %v3178
      %v3210 = vadd.f32 %v3209, %v3179
      %v3211 = vadd.f32 %v3210, %v3180
      %v3212 = vadd.f32 %v3211, %v3181
      %v3213 = vadd.f32 %v3212, %v3182
      %v3214 = vadd.f32 %v3213, %v3183
      %v3215 = vadd.f32 %v3214, %v3184
      %v3216 = vadd.f32 %v3215, %v3185
      %v3217 = vadd.f32 %v3216, %v3186
      %v3218 = vadd.f32 %v3217, %v3187
      %v3219 = vadd.f32 %v3218, %v3188
      %v3220 = vadd.f32 %v3219, %v3189
      %v3221 = vadd.f32 %v3220, %v3190
      %v3222 = vadd.f32 %v3221, %v3191
      %v3223 = vadd.f32 %v3222, %v3192
      %v3224 = vadd.f32 %v3223, %v3193
      %v3225 = vadd.f32 %v3224, %v3194
      %v3226 = vadd.f32 %v3225, %v3195
      %v3227 = vadd.f32 %v3226, %v3196
      %v3228 = vadd.f32 %v3227, %v3197
      %v3229 = vadd.f32 %v3228, %v3198
      %v3230 = vadd.f32 %v3229, %v3199
      %v3231 = vadd.f32 %v3230, %v3200
      %v3232 = vadd.f32 %v3231, %v3201
      %v3233 = vadd.f32 %v3232, %v3202
      %v3234 = vadd.f32 %v3233, %v3203
      %v3235 = vadd.f32 %v3234, %v3204
      %v3236 = vrot.slane %v3235, 4
      %v3237 = vadd.f32 %v3235, %v3236
      %v3238 = vrot.slane %v3237, 2
      %v3239 = vadd.f32 %v3237, %v3238
      %v3240 = vrot.slane %v3239, 1
      %v3241 = vadd.f32 %v3239, %v3240
      %3242 = vst [vmem:[%s265] sm:$0x1] %v3139
      %3243 = vst [vmem:[%s268] sm:$0x1] %v3241
      %p3244 = scmp.lt.s32.totalorder %s18, 1
      %s3245 = scalar_select %p3244, %s18, 1
      %s3246 = smul.addr %s3245, 32
      %s3247 = smul.addr %s3246, 4
      %s3248 = scalar_lea.vmem %s4, %s3247
      %p3249 = scmp.lt.s32.totalorder %s18, 1
      %s3250 = scalar_select %p3249, %s18, 1
      %s3251 = scalar_lea.vmem %s5, %s3250
      %p3252 = scmp.lt.s32.totalorder %s18, 1
      %s3253 = scalar_select %p3252, %s18, 1
      %s3254 = scalar_lea.vmem %s6, %s3253
      // Predicated region
      $region37: #{resblock_pallas.4} parent=35 // pred_check
        %p3255 = pneg %p125
      $region38: #{resblock_pallas.4} parent=35 // pred_check_branch
        %3257 = sbr.rel (%p3255) target = $region40
      $region39: #{resblock_pallas.4} parent=35 // pred_region
        _
      $region40: #{resblock_pallas.4} parent=35 // pred_fallthru
        _
      // Predicated region
      $region41: #{resblock_pallas.4} parent=35 // pred_check
        %p3258 = pneg %p151
      $region42: #{resblock_pallas.4} parent=35 // pred_check_branch
        %3260 = sbr.rel (%p3258) target = $region44
      $region43: #{resblock_pallas.4} parent=35 // pred_region
        _
      $region44: #{resblock_pallas.4} parent=35 // pred_fallthru
        _
      // Predicated region
      $region45: #{resblock_pallas.4} parent=35 // pred_check
        %p3261 = pneg %p177
      $region46: #{resblock_pallas.4} parent=35 // pred_check_branch
        %3263 = sbr.rel (%p3261) target = $region48
      $region47: #{resblock_pallas.4} parent=35 // pred_region
        _
      $region48: #{resblock_pallas.4} parent=35 // pred_fallthru
        _
    $region36: #{resblock_pallas.4} parent=5 // pred_fallthru
      _
    %p3264 = scmp.le.s32.totalorder 2, %s13
    // Predicated region
    $region49: #{resblock_pallas.4} parent=5 // pred_check
      %p3265 = pneg %p3264
    $region50: #{resblock_pallas.4} parent=5 // pred_check_branch
      %3267 = sbr.rel (%p3265) target = $region52
    $region51: #{resblock_pallas.4} parent=5 // pred_region
      %s3268 = ssub.s32 %s13, 2
      // Predicated region
      $region53: #{resblock_pallas.4} parent=51 // pred_check
        %p3269 = pneg %p131
      $region54: #{resblock_pallas.4} parent=51 // pred_check_branch
        %3271 = sbr.rel (%p3269) target = $region56
      $region55: #{resblock_pallas.4} parent=51 // pred_region
        %p3272 = scmp.lt.s32.totalorder %s19, 1
        %s3273 = scalar_select %p3272, %s19, 1
        %s3274 = smul.addr %s3273, 32
        %s3275 = smul.addr %s3274, 4
        %s3276 = scalar_lea.vmem %s4, %s3275
      $region56: #{resblock_pallas.4} parent=51 // pred_fallthru
        _
      // Predicated region
      $region57: #{resblock_pallas.4} parent=51 // pred_check
        %p3277 = pneg %p157
      $region58: #{resblock_pallas.4} parent=51 // pred_check_branch
        %3279 = sbr.rel (%p3277) target = $region60
      $region59: #{resblock_pallas.4} parent=51 // pred_region
        %p3280 = scmp.lt.s32.totalorder %s19, 1
        %s3281 = scalar_select %p3280, %s19, 1
        %s3282 = scalar_lea.vmem %s5, %s3281
      $region60: #{resblock_pallas.4} parent=51 // pred_fallthru
        _
      // Predicated region
      $region61: #{resblock_pallas.4} parent=51 // pred_check
        %p3283 = pneg %p183
      $region62: #{resblock_pallas.4} parent=51 // pred_check_branch
        %3285 = sbr.rel (%p3283) target = $region64
      $region63: #{resblock_pallas.4} parent=51 // pred_region
        %p3286 = scmp.lt.s32.totalorder %s19, 1
        %s3287 = scalar_select %p3286, %s19, 1
        %s3288 = scalar_lea.vmem %s6, %s3287
      $region64: #{resblock_pallas.4} parent=51 // pred_fallthru
        _
    $region52: #{resblock_pallas.4} parent=5 // pred_fallthru
      _
  $region6: #{resblock_pallas.4} parent=0 // loop_footer
    %s17 = sadd.s32 1, %s13
  $region7: #{resblock_pallas.4} parent=0 // loop_footer_branch
    %12 = sbr.rel target = $region3
  $region8: #{resblock_pallas.4} parent=0 // loop_exit
    _

// kernel: resblock_pallas.3
$region0: #{resblock_pallas.3}
  #allocation0 [shape = 'u32[]', space=smem, size = 0x4, offset = 0x4, fixed_abs, tag = 'smem constant byte address 0x4 - core index']
  #allocation1 [shape = 'u32[144,128]{1,0:T(1,128)}', space=vmem, size = 0x12000, scoped, tag = 'internal scratch']
  %s0 = inlined_call_operand.vmem [shape: bf16[2,20,32,128], index: 0, kind: input, shape index: {}]
  %s1 = inlined_call_operand.vmem [shape: bf16[384,384], index: 1, kind: input, shape index: {}]
  %s2 = inlined_call_operand.vmem [shape: bf16[2,18,24,128], index: 2, kind: output, shape index: {0}]
  %s3 = inlined_call_operand.vmem [shape: f32[2,1,128], index: 3, kind: output, shape index: {1}]
  %s4 = inlined_call_operand.vmem [shape: f32[2,1,128], index: 4, kind: output, shape index: {2}]
  %5 = xla_tuple %s2, %s3, %s4
  %s6 = sld [smem:[#allocation0]]
  $region57: #{resblock_pallas.3} parent=0
    _
  %s8 = ssub.s32 1, %s6
  %s9 = scalar_select 0, %s8, %s6
  loop: start=0, step=1, limit=4
  $region2: #{resblock_pallas.3} parent=0 // loop_pre_header
    _
  $region3: #{resblock_pallas.3} parent=0 // loop_header
    %s11 = sphi 0, %s15
    %p12 = scmp.ge.s32.totalorder %s11, 4
    %s21 = sphi 0, %s23
    %s24 = sphi 0, %s21
    %s25 = sphi 0, %s24
    %s41 = sphi 0, %s25
    %s45 = sphi 0, %s45
    %s47 = sphi 0, %s45
    %s48 = sphi 0, %s47
    %s62 = sphi 0, %s48
    %s68 = sphi 0, %s70
    %s71 = sphi 0, %s68
    %s72 = sphi 0, %s71
    %s88 = sphi 0, %s72
    %s94 = sphi 0, %s96
    %s97 = sphi 0, %s94
    %s98 = sphi 0, %s97
    %s114 = sphi 0, %s98
    %s120 = sphi 0, %s122
    %s123 = sphi 0, %s120
    %s124 = sphi 0, %s123
    %s140 = sphi 0, %s124
  $region4: #{resblock_pallas.3} parent=0 // loop_header_branch
    %14 = sbr.rel (%p12) target = $region8
  $region5: #{resblock_pallas.3} parent=0 // loop_body
    %s16 = ssub.s32 %s11, 1
    %s17 = ssub.s32 %s11, 2
    %s18 = sadd.s32 %s11, 1
    %s19 = ssub.s32 %s11, %s18
    %p20 = scmp.eq.s32.totalorder %s19, 0
    %s22 = sadd.s32 %s21, 1
    %s23 = scalar_select %p20, %s21, %s22
    %p26 = pneg %p20
    %p27 = scmp.eq.s32.totalorder %s11, 1
    %p28 = por %p26, %p27
    %p29 = scmp.ne.s32.totalorder %s21, %s24
    %p30 = scmp.eq.s32.totalorder %s11, 0
    %p31 = por %p29, %p30
    %p32 = scmp.ne.s32.totalorder %s21, %s24
    %p33 = scmp.eq.s32.totalorder %s16, 1
    %p34 = por %p32, %p33
    %p35 = scmp.ne.s32.totalorder %s24, %s25
    %p36 = scmp.eq.s32.totalorder %s16, 0
    %p37 = por %p35, %p36
    %p38 = scmp.ne.s32.totalorder %s24, %s25
    %p39 = scmp.eq.s32.totalorder %s17, 1
    %p40 = por %p38, %p39
    %p42 = scmp.ne.s32.totalorder %s25, %s41
    %p43 = scmp.eq.s32.totalorder %s17, 0
    %p44 = por %p42, %p43
    %s46 = sadd.s32 %s45, 1
    %p49 = scmp.eq.s32.totalorder %s11, 1
    %p50 = scmp.ne.s32.totalorder %s45, %s47
    %p51 = scmp.eq.s32.totalorder %s11, 0
    %p52 = por %p50, %p51
    %p53 = scmp.ne.s32.totalorder %s45, %s47
    %p54 = scmp.eq.s32.totalorder %s16, 1
    %p55 = por %p53, %p54
    %p56 = scmp.ne.s32.totalorder %s47, %s48
    %p57 = scmp.eq.s32.totalorder %s16, 0
    %p58 = por %p56, %p57
    %p59 = scmp.ne.s32.totalorder %s47, %s48
    %p60 = scmp.eq.s32.totalorder %s17, 1
    %p61 = por %p59, %p60
    %p63 = scmp.ne.s32.totalorder %s48, %s62
    %p64 = scmp.eq.s32.totalorder %s17, 0
    %p65 = por %p63, %p64
    %s66 = ssub.s32 %s11, %s18
    %p67 = scmp.eq.s32.totalorder %s66, 0
    %s69 = sadd.s32 %s68, 1
    %s70 = scalar_select %p67, %s68, %s69
    %p73 = pneg %p67
    %p74 = scmp.eq.s32.totalorder %s11, 1
    %p75 = por %p73, %p74
    %p76 = scmp.ne.s32.totalorder %s68, %s71
    %p77 = scmp.eq.s32.totalorder %s11, 0
    %p78 = por %p76, %p77
    %p79 = scmp.ne.s32.totalorder %s68, %s71
    %p80 = scmp.eq.s32.totalorder %s16, 1
    %p81 = por %p79, %p80
    %p82 = scmp.ne.s32.totalorder %s71, %s72
    %p83 = scmp.eq.s32.totalorder %s16, 0
    %p84 = por %p82, %p83
    %p85 = scmp.ne.s32.totalorder %s71, %s72
    %p86 = scmp.eq.s32.totalorder %s17, 1
    %p87 = por %p85, %p86
    %p89 = scmp.ne.s32.totalorder %s72, %s88
    %p90 = scmp.eq.s32.totalorder %s17, 0
    %p91 = por %p89, %p90
    %s92 = ssub.s32 %s11, %s18
    %p93 = scmp.eq.s32.totalorder %s92, 0
    %s95 = sadd.s32 %s94, 1
    %s96 = scalar_select %p93, %s94, %s95
    %p99 = pneg %p93
    %p100 = scmp.eq.s32.totalorder %s11, 1
    %p101 = por %p99, %p100
    %p102 = scmp.ne.s32.totalorder %s94, %s97
    %p103 = scmp.eq.s32.totalorder %s11, 0
    %p104 = por %p102, %p103
    %p105 = scmp.ne.s32.totalorder %s94, %s97
    %p106 = scmp.eq.s32.totalorder %s16, 1
    %p107 = por %p105, %p106
    %p108 = scmp.ne.s32.totalorder %s97, %s98
    %p109 = scmp.eq.s32.totalorder %s16, 0
    %p110 = por %p108, %p109
    %p111 = scmp.ne.s32.totalorder %s97, %s98
    %p112 = scmp.eq.s32.totalorder %s17, 1
    %p113 = por %p111, %p112
    %p115 = scmp.ne.s32.totalorder %s98, %s114
    %p116 = scmp.eq.s32.totalorder %s17, 0
    %p117 = por %p115, %p116
    %s118 = ssub.s32 %s11, %s18
    %p119 = scmp.eq.s32.totalorder %s118, 0
    %s121 = sadd.s32 %s120, 1
    %s122 = scalar_select %p119, %s120, %s121
    %p125 = pneg %p119
    %p126 = scmp.eq.s32.totalorder %s11, 1
    %p127 = por %p125, %p126
    %p128 = scmp.ne.s32.totalorder %s120, %s123
    %p129 = scmp.eq.s32.totalorder %s11, 0
    %p130 = por %p128, %p129
    %p131 = scmp.ne.s32.totalorder %s120, %s123
    %p132 = scmp.eq.s32.totalorder %s16, 1
    %p133 = por %p131, %p132
    %p134 = scmp.ne.s32.totalorder %s123, %s124
    %p135 = scmp.eq.s32.totalorder %s16, 0
    %p136 = por %p134, %p135
    %p137 = scmp.ne.s32.totalorder %s123, %s124
    %p138 = scmp.eq.s32.totalorder %s17, 1
    %p139 = por %p137, %p138
    %p141 = scmp.ne.s32.totalorder %s124, %s140
    %p142 = scmp.eq.s32.totalorder %s17, 0
    %p143 = por %p141, %p142
    %p144 = scmp.le.s32.totalorder 1, %s11
    %p145 = scmp.lt.s32.totalorder %s11, 3
    %p146 = pnand %p144, %p145
    %p147 = pneg %p146
    // Predicated region
    $region9: #{resblock_pallas.3} parent=5 // pred_check
      _
    $region10: #{resblock_pallas.3} parent=5 // pred_check_branch
      %149 = sbr.rel (%p146) target = $region12
    $region11: #{resblock_pallas.3} parent=5 // pred_region
      %s150 = ssub.s32 %s11, 1
      // Predicated region
      $region13: #{resblock_pallas.3} parent=11 // pred_check
        %p151 = pneg %p58
      $region14: #{resblock_pallas.3} parent=11 // pred_check_branch
        %153 = sbr.rel (%p151) target = $region16
      $region15: #{resblock_pallas.3} parent=11 // pred_region
        _
      $region16: #{resblock_pallas.3} parent=11 // pred_fallthru
        _
    $region12: #{resblock_pallas.3} parent=5 // pred_fallthru
      _
    %p154 = scmp.lt.s32.totalorder %s11, 2
    // Predicated region
    $region17: #{resblock_pallas.3} parent=5 // pred_check
      %p155 = pneg %p154
    $region18: #{resblock_pallas.3} parent=5 // pred_check_branch
      %157 = sbr.rel (%p155) target = $region20
    $region19: #{resblock_pallas.3} parent=5 // pred_region
      // Predicated region
      $region21: #{resblock_pallas.3} parent=19 // pred_check
        %p158 = pneg %p31
      $region22: #{resblock_pallas.3} parent=19 // pred_check_branch
        %160 = sbr.rel (%p158) target = $region24
      $region23: #{resblock_pallas.3} parent=19 // pred_region
        %p161 = scmp.lt.s32.totalorder %s11, 1
        %s162 = scalar_select %p161, %s11, 1
        %s163 = smul.addr %s162, 80
        %s164 = smul.addr %s163, 4
        %s165 = scalar_lea.vmem %s0, %s164
      $region24: #{resblock_pallas.3} parent=19 // pred_fallthru
        _
    $region20: #{resblock_pallas.3} parent=5 // pred_fallthru
      _
    %p166 = scmp.le.s32.totalorder 1, %s11
    %p167 = scmp.lt.s32.totalorder %s11, 3
    %p168 = pnand %p166, %p167
    %p169 = pneg %p168
    // Predicated region
    $region25: #{resblock_pallas.3} parent=5 // pred_check
      _
    $region26: #{resblock_pallas.3} parent=5 // pred_check_branch
      %171 = sbr.rel (%p168) target = $region28
    $region27: #{resblock_pallas.3} parent=5 // pred_region
      %s172 = ssub.s32 %s11, 1
      %p173 = scmp.lt.s32.totalorder %s16, 1
      %s174 = scalar_select %p173, %s16, 1
      %s175 = smul.addr %s174, 80
      %s176 = smul.addr %s175, 4
      %s177 = scalar_lea.vmem %s0, %s176
      %p178 = pneg %p37
      %p179 = pneg %p34
      %p180 = pneg %p58
      %p181 = pneg %p55
      %p182 = pneg %p84
      %p183 = pneg %p81
      %p184 = scmp.lt.s32.totalorder %s16, 1
      %s185 = scalar_select %p184, %s16, 1
      %s186 = smul.addr %s185, 54
      %s187 = smul.addr %s186, 4
      %s188 = scalar_lea.vmem %s2, %s187
      %p189 = pneg %p110
      %p190 = pneg %p107
      %p191 = scmp.lt.s32.totalorder %s16, 1
      %s192 = scalar_select %p191, %s16, 1
      %s193 = scalar_lea.vmem %s3, %s192
      %p194 = pneg %p136
      %p195 = pneg %p133
      %p196 = scmp.lt.s32.totalorder %s16, 1
      %s197 = scalar_select %p196, %s16, 1
      %s198 = scalar_lea.vmem %s4, %s197
      %p199 = scmp.lt.s32.totalorder %s16, 1
      %s200 = scalar_select %p199, %s16, 1
      %s201 = smul.addr %s200, 80
      %s202 = smul.addr %s201, 4
      %s203 = scalar_lea.vmem %s0, %s202
      %p204 = scmp.lt.s32.totalorder %s16, 1
      %s205 = scalar_select %p204, %s16, 1
      %s206 = smul.addr %s205, 54
      %s207 = smul.addr %s206, 4
      %s208 = scalar_lea.vmem %s2, %s207
      %p209 = scmp.lt.s32.totalorder %s16, 1
      %s210 = scalar_select %p209, %s16, 1
      %s211 = scalar_lea.vmem %s3, %s210
      %p212 = scmp.lt.s32.totalorder %s16, 1
      %s213 = scalar_select %p212, %s16, 1
      %s214 = scalar_lea.vmem %s4, %s213
      %v216 = vld [vmem:[%s203] sm:$0xf]
      %v217 = vld [vmem:[%s203 + $0x4] sm:$0xf]
      %v218 = vld [vmem:[%s203 + $0x8] sm:$0xf]
      %v219 = vld [vmem:[%s203 + $0xc] sm:$0xf]
      %v220 = vld [vmem:[%s203 + $0x10] sm:$0xf]
      %v221 = vld [vmem:[%s203 + $0x14] sm:$0xf]
      %v222 = vld [vmem:[%s203 + $0x18] sm:$0xf]
      %v223 = vld [vmem:[%s203 + $0x1c] sm:$0xf]
      %v224 = vld [vmem:[%s203 + $0x20] sm:$0xf]
      %v225 = vld [vmem:[%s203 + $0x24] sm:$0xf]
      %v226 = vld [vmem:[%s203 + $0x28] sm:$0xf]
      %v227 = vld [vmem:[%s203 + $0x2c] sm:$0xf]
      %v228 = vld [vmem:[%s203 + $0x30] sm:$0xf]
      %v229 = vld [vmem:[%s203 + $0x34] sm:$0xf]
      %v230 = vld [vmem:[%s203 + $0x38] sm:$0xf]
      %v231 = vld [vmem:[%s203 + $0x3c] sm:$0xf]
      %v232 = vld [vmem:[%s203 + $0x40] sm:$0xf]
      %v233 = vld [vmem:[%s203 + $0x44] sm:$0xf]
      %v234 = vld [vmem:[%s203 + $0x48] sm:$0xf]
      %v235 = vld [vmem:[%s203 + $0x4c] sm:$0xf]
      %v236 = vld [vmem:[%s203 + $0x50] sm:$0xf]
      %v237 = vld [vmem:[%s203 + $0x54] sm:$0xf]
      %v238 = vld [vmem:[%s203 + $0x58] sm:$0xf]
      %v239 = vld [vmem:[%s203 + $0x5c] sm:$0xf]
      %v240 = vld [vmem:[%s203 + $0x60] sm:$0xf]
      %v241 = vld [vmem:[%s203 + $0x64] sm:$0xf]
      %v242 = vld [vmem:[%s203 + $0x68] sm:$0xf]
      %v243 = vld [vmem:[%s203 + $0x6c] sm:$0xf]
      %v244 = vld [vmem:[%s203 + $0x70] sm:$0xf]
      %v245 = vld [vmem:[%s203 + $0x74] sm:$0xf]
      %v246 = vld [vmem:[%s203 + $0x78] sm:$0xf]
      %v247 = vld [vmem:[%s203 + $0x7c] sm:$0xf]
      %v248 = vld [vmem:[%s203 + $0x80] sm:$0xf]
      %v249 = vld [vmem:[%s203 + $0x84] sm:$0xf]
      %v250 = vld [vmem:[%s203 + $0x88] sm:$0xf]
      %v251 = vld [vmem:[%s203 + $0x8c] sm:$0xf]
      %v252 = vld [vmem:[%s203 + $0x90] sm:$0xf]
      %v253 = vld [vmem:[%s203 + $0x94] sm:$0xf]
      %v254 = vld [vmem:[%s203 + $0x98] sm:$0xf]
      %v255 = vld [vmem:[%s203 + $0x9c] sm:$0xf]
      %v256 = vld [vmem:[%s203 + $0xa0] sm:$0xf]
      %v257 = vld [vmem:[%s203 + $0xa4] sm:$0xf]
      %v258 = vld [vmem:[%s203 + $0xa8] sm:$0xf]
      %v259 = vld [vmem:[%s203 + $0xac] sm:$0xf]
      %v260 = vld [vmem:[%s203 + $0xb0] sm:$0xf]
      %v261 = vld [vmem:[%s203 + $0xb4] sm:$0xf]
      %v262 = vld [vmem:[%s203 + $0xb8] sm:$0xf]
      %v263 = vld [vmem:[%s203 + $0xbc] sm:$0xf]
      %v264 = vld [vmem:[%s203 + $0xc0] sm:$0xf]
      %v265 = vld [vmem:[%s203 + $0xc4] sm:$0xf]
      %v266 = vld [vmem:[%s203 + $0xc8] sm:$0xf]
      %v267 = vld [vmem:[%s203 + $0xcc] sm:$0xf]
      %v268 = vld [vmem:[%s203 + $0xd0] sm:$0xf]
      %v269 = vld [vmem:[%s203 + $0xd4] sm:$0xf]
      %v270 = vld [vmem:[%s203 + $0xd8] sm:$0xf]
      %v271 = vld [vmem:[%s203 + $0xdc] sm:$0xf]
      %v272 = vld [vmem:[%s203 + $0xe0] sm:$0xf]
      %v273 = vld [vmem:[%s203 + $0xe4] sm:$0xf]
      %v274 = vld [vmem:[%s203 + $0xe8] sm:$0xf]
      %v275 = vld [vmem:[%s203 + $0xec] sm:$0xf]
      %v276 = vld [vmem:[%s203 + $0xf0] sm:$0xf]
      %v277 = vld [vmem:[%s203 + $0xf4] sm:$0xf]
      %v278 = vld [vmem:[%s203 + $0xf8] sm:$0xf]
      %v279 = vld [vmem:[%s203 + $0xfc] sm:$0xf]
      %v280 = vld [vmem:[%s203 + $0x100] sm:$0xf]
      %v281 = vld [vmem:[%s203 + $0x104] sm:$0xf]
      %v282 = vld [vmem:[%s203 + $0x108] sm:$0xf]
      %v283 = vld [vmem:[%s203 + $0x10c] sm:$0xf]
      %v284 = vld [vmem:[%s203 + $0x110] sm:$0xf]
      %v285 = vld [vmem:[%s203 + $0x114] sm:$0xf]
      %v286 = vld [vmem:[%s203 + $0x118] sm:$0xf]
      %v287 = vld [vmem:[%s203 + $0x11c] sm:$0xf]
      %v288 = vld [vmem:[%s203 + $0x120] sm:$0xf]
      %v289 = vld [vmem:[%s203 + $0x124] sm:$0xf]
      %v290 = vld [vmem:[%s203 + $0x128] sm:$0xf]
      %v291 = vld [vmem:[%s203 + $0x12c] sm:$0xf]
      %v292 = vld [vmem:[%s203 + $0x130] sm:$0xf]
      %v293 = vld [vmem:[%s203 + $0x134] sm:$0xf]
      %v294 = vld [vmem:[%s203 + $0x138] sm:$0xf]
      %v295 = vld [vmem:[%s203 + $0x13c] sm:$0xf]
      %v296 = vld [vmem:[%s1] sm:$0xff]
      %v297 = vld [vmem:[%s1 + $0x8] sm:$0xf]
      %v298 = vld [vmem:[%s1 + $0xc] sm:$0xff]
      %v299 = vld [vmem:[%s1 + $0x14] sm:$0xf]
      %v300 = vld [vmem:[%s1 + $0x18] sm:$0xff]
      %v301 = vld [vmem:[%s1 + $0x20] sm:$0xf]
      %v302 = vld [vmem:[%s1 + $0x24] sm:$0xff]
      %v303 = vld [vmem:[%s1 + $0x2c] sm:$0xf]
      %v304 = vld [vmem:[%s1 + $0x30] sm:$0xff]
      %v305 = vld [vmem:[%s1 + $0x38] sm:$0xf]
      %v306 = vld [vmem:[%s1 + $0x3c] sm:$0xff]
      %v307 = vld [vmem:[%s1 + $0x44] sm:$0xf]
      %v308 = vld [vmem:[%s1 + $0x48] sm:$0xff]
      %v309 = vld [vmem:[%s1 + $0x50] sm:$0xf]
      %v310 = vld [vmem:[%s1 + $0x54] sm:$0xff]
      %v311 = vld [vmem:[%s1 + $0x5c] sm:$0xf]
      %v312 = vld [vmem:[%s1 + $0x60] sm:$0xff]
      %v313 = vld [vmem:[%s1 + $0x68] sm:$0xf]
      %v314 = vld [vmem:[%s1 + $0x6c] sm:$0xff]
      %v315 = vld [vmem:[%s1 + $0x74] sm:$0xf]
      %v316 = vld [vmem:[%s1 + $0x78] sm:$0xff]
      %v317 = vld [vmem:[%s1 + $0x80] sm:$0xf]
      %v318 = vld [vmem:[%s1 + $0x84] sm:$0xff]
      %v319 = vld [vmem:[%s1 + $0x8c] sm:$0xf]
      %v320 = vld [vmem:[%s1 + $0x90] sm:$0xff]
      %v321 = vld [vmem:[%s1 + $0x98] sm:$0xf]
      %v322 = vld [vmem:[%s1 + $0x9c] sm:$0xff]
      %v323 = vld [vmem:[%s1 + $0xa4] sm:$0xf]
      %v324 = vld [vmem:[%s1 + $0xa8] sm:$0xff]
      %v325 = vld [vmem:[%s1 + $0xb0] sm:$0xf]
      %v326 = vld [vmem:[%s1 + $0xb4] sm:$0xff]
      %v327 = vld [vmem:[%s1 + $0xbc] sm:$0xf]
      %v328 = vld [vmem:[%s1 + $0xc0] sm:$0xff]
      %v329 = vld [vmem:[%s1 + $0xc8] sm:$0xf]
      %v330 = vld [vmem:[%s1 + $0xcc] sm:$0xff]
      %v331 = vld [vmem:[%s1 + $0xd4] sm:$0xf]
      %v332 = vld [vmem:[%s1 + $0xd8] sm:$0xff]
      %v333 = vld [vmem:[%s1 + $0xe0] sm:$0xf]
      %v334 = vld [vmem:[%s1 + $0xe4] sm:$0xff]
      %v335 = vld [vmem:[%s1 + $0xec] sm:$0xf]
      %v336 = vld [vmem:[%s1 + $0xf0] sm:$0xff]
      %v337 = vld [vmem:[%s1 + $0xf8] sm:$0xf]
      %v338 = vld [vmem:[%s1 + $0xfc] sm:$0xff]
      %v339 = vld [vmem:[%s1 + $0x104] sm:$0xf]
      %v340 = vld [vmem:[%s1 + $0x108] sm:$0xff]
      %v341 = vld [vmem:[%s1 + $0x110] sm:$0xf]
      %v342 = vld [vmem:[%s1 + $0x114] sm:$0xff]
      %v343 = vld [vmem:[%s1 + $0x11c] sm:$0xf]
      %v344 = vld [vmem:[%s1 + $0x120] sm:$0xff]
      %v345 = vld [vmem:[%s1 + $0x128] sm:$0xf]
      %v346 = vld [vmem:[%s1 + $0x12c] sm:$0xff]
      %v347 = vld [vmem:[%s1 + $0x134] sm:$0xf]
      %v348 = vld [vmem:[%s1 + $0x138] sm:$0xff]
      %v349 = vld [vmem:[%s1 + $0x140] sm:$0xf]
      %v350 = vld [vmem:[%s1 + $0x144] sm:$0xff]
      %v351 = vld [vmem:[%s1 + $0x14c] sm:$0xf]
      %v352 = vld [vmem:[%s1 + $0x150] sm:$0xff]
      %v353 = vld [vmem:[%s1 + $0x158] sm:$0xf]
      %v354 = vld [vmem:[%s1 + $0x15c] sm:$0xff]
      %v355 = vld [vmem:[%s1 + $0x164] sm:$0xf]
      %v356 = vld [vmem:[%s1 + $0x168] sm:$0xff]
      %v357 = vld [vmem:[%s1 + $0x170] sm:$0xf]
      %v358 = vld [vmem:[%s1 + $0x174] sm:$0xff]
      %v359 = vld [vmem:[%s1 + $0x17c] sm:$0xf]
      %v360 = vld [vmem:[%s1 + $0x180] sm:$0xff]
      %v361 = vld [vmem:[%s1 + $0x188] sm:$0xf]
      %v362 = vld [vmem:[%s1 + $0x18c] sm:$0xff]
      %v363 = vld [vmem:[%s1 + $0x194] sm:$0xf]
      %v364 = vld [vmem:[%s1 + $0x198] sm:$0xff]
      %v365 = vld [vmem:[%s1 + $0x1a0] sm:$0xf]
      %v366 = vld [vmem:[%s1 + $0x1a4] sm:$0xff]
      %v367 = vld [vmem:[%s1 + $0x1ac] sm:$0xf]
      %v368 = vld [vmem:[%s1 + $0x1b0] sm:$0xff]
      %v369 = vld [vmem:[%s1 + $0x1b8] sm:$0xf]
      %v370 = vld [vmem:[%s1 + $0x1bc] sm:$0xff]
      %v371 = vld [vmem:[%s1 + $0x1c4] sm:$0xf]
      %v372 = vld [vmem:[%s1 + $0x1c8] sm:$0xff]
      %v373 = vld [vmem:[%s1 + $0x1d0] sm:$0xf]
      %v374 = vld [vmem:[%s1 + $0x1d4] sm:$0xff]
      %v375 = vld [vmem:[%s1 + $0x1dc] sm:$0xf]
      %v376 = vld [vmem:[%s1 + $0x1e0] sm:$0xff]
      %v377 = vld [vmem:[%s1 + $0x1e8] sm:$0xf]
      %v378 = vld [vmem:[%s1 + $0x1ec] sm:$0xff]
      %v379 = vld [vmem:[%s1 + $0x1f4] sm:$0xf]
      %v380 = vld [vmem:[%s1 + $0x1f8] sm:$0xff]
      %v381 = vld [vmem:[%s1 + $0x200] sm:$0xf]
      %v382 = vld [vmem:[%s1 + $0x204] sm:$0xff]
      %v383 = vld [vmem:[%s1 + $0x20c] sm:$0xf]
      %v384 = vld [vmem:[%s1 + $0x210] sm:$0xff]
      %v385 = vld [vmem:[%s1 + $0x218] sm:$0xf]
      %v386 = vld [vmem:[%s1 + $0x21c] sm:$0xff]
      %v387 = vld [vmem:[%s1 + $0x224] sm:$0xf]
      %v388 = vld [vmem:[%s1 + $0x228] sm:$0xff]
      %v389 = vld [vmem:[%s1 + $0x230] sm:$0xf]
      %v390 = vld [vmem:[%s1 + $0x234] sm:$0xff]
      %v391 = vld [vmem:[%s1 + $0x23c] sm:$0xf]
      %v464 = vunpack.c.l.b16 %v216
      %v465 = vunpack.c.l.b16 %v217
      %v466 = vunpack.c.l.b16 %v218
      %v467 = vunpack.c.l.b16 %v219
      %v468 = vunpack.c.l.b16 %v220
      %v469 = vunpack.c.l.b16 %v221
      %v470 = vunpack.c.l.b16 %v222
      %v471 = vunpack.c.l.b16 %v223
      %v472 = vunpack.c.l.b16 %v224
      %v473 = vunpack.c.l.b16 %v225
      %v474 = vunpack.c.l.b16 %v226
      %v475 = vunpack.c.l.b16 %v227
      %v476 = vunpack.c.l.b16 %v228
      %v477 = vunpack.c.l.b16 %v229
      %v478 = vunpack.c.l.b16 %v230
      %v479 = vunpack.c.l.b16 %v231
      %v480 = vunpack.c.l.b16 %v232
      %v481 = vunpack.c.l.b16 %v233
      %v482 = vunpack.c.l.b16 %v234
      %v483 = vunpack.c.l.b16 %v235
      %v484 = vunpack.c.l.b16 %v236
      %v485 = vunpack.c.l.b16 %v237
      %v486 = vunpack.c.l.b16 %v238
      %v487 = vunpack.c.l.b16 %v239
      %v488 = vunpack.c.l.b16 %v240
      %v489 = vunpack.c.l.b16 %v241
      %v490 = vunpack.c.l.b16 %v242
      %v491 = vunpack.c.l.b16 %v243
      %v492 = vunpack.c.l.b16 %v244
      %v493 = vunpack.c.l.b16 %v245
      %v494 = vunpack.c.l.b16 %v246
      %v495 = vunpack.c.l.b16 %v247
      %v496 = vunpack.c.l.b16 %v248
      %v497 = vunpack.c.l.b16 %v249
      %v498 = vunpack.c.l.b16 %v250
      %v499 = vunpack.c.l.b16 %v251
      %v500 = vunpack.c.l.b16 %v252
      %v501 = vunpack.c.l.b16 %v253
      %v502 = vunpack.c.l.b16 %v254
      %v503 = vunpack.c.l.b16 %v255
      %v504 = vunpack.c.l.b16 %v256
      %v505 = vunpack.c.l.b16 %v257
      %v506 = vunpack.c.l.b16 %v258
      %v507 = vunpack.c.l.b16 %v259
      %v508 = vunpack.c.l.b16 %v260
      %v509 = vunpack.c.l.b16 %v261
      %v510 = vunpack.c.l.b16 %v262
      %v511 = vunpack.c.l.b16 %v263
      %v512 = vunpack.c.l.b16 %v264
      %v513 = vunpack.c.l.b16 %v265
      %v514 = vunpack.c.l.b16 %v266
      %v515 = vunpack.c.l.b16 %v267
      %v516 = vunpack.c.l.b16 %v268
      %v517 = vunpack.c.l.b16 %v269
      %v518 = vunpack.c.l.b16 %v270
      %v519 = vunpack.c.l.b16 %v271
      %v520 = vunpack.c.l.b16 %v272
      %v521 = vunpack.c.l.b16 %v273
      %v522 = vunpack.c.l.b16 %v274
      %v523 = vunpack.c.l.b16 %v275
      %v524 = vunpack.c.l.b16 %v276
      %v525 = vunpack.c.l.b16 %v277
      %v526 = vunpack.c.l.b16 %v278
      %v527 = vunpack.c.l.b16 %v279
      %v528 = vunpack.c.l.b16 %v280
      %v529 = vunpack.c.l.b16 %v281
      %v530 = vunpack.c.l.b16 %v282
      %v531 = vunpack.c.l.b16 %v283
      %v532 = vunpack.c.l.b16 %v284
      %v533 = vunpack.c.l.b16 %v285
      %v534 = vunpack.c.l.b16 %v286
      %v535 = vunpack.c.l.b16 %v287
      %v536 = vpack.c.b16 %v465, %v464
      %v537 = vpack.c.b16 %v467, %v466
      %v538 = vpack.c.b16 %v469, %v468
      %v539 = vpack.c.b16 %v471, %v470
      %v540 = vpack.c.b16 %v473, %v472
      %v541 = vpack.c.b16 %v475, %v474
      %v542 = vpack.c.b16 %v477, %v476
      %v543 = vpack.c.b16 %v479, %v478
      %v544 = vpack.c.b16 %v481, %v480
      %v545 = vpack.c.b16 %v483, %v482
      %v546 = vpack.c.b16 %v485, %v484
      %v547 = vpack.c.b16 %v487, %v486
      %v548 = vpack.c.b16 %v489, %v488
      %v549 = vpack.c.b16 %v491, %v490
      %v550 = vpack.c.b16 %v493, %v492
      %v551 = vpack.c.b16 %v495, %v494
      %v552 = vpack.c.b16 %v497, %v496
      %v553 = vpack.c.b16 %v499, %v498
      %v554 = vpack.c.b16 %v501, %v500
      %v555 = vpack.c.b16 %v503, %v502
      %v556 = vpack.c.b16 %v505, %v504
      %v557 = vpack.c.b16 %v507, %v506
      %v558 = vpack.c.b16 %v509, %v508
      %v559 = vpack.c.b16 %v511, %v510
      %v560 = vpack.c.b16 %v513, %v512
      %v561 = vpack.c.b16 %v515, %v514
      %v562 = vpack.c.b16 %v517, %v516
      %v563 = vpack.c.b16 %v519, %v518
      %v564 = vpack.c.b16 %v521, %v520
      %v565 = vpack.c.b16 %v523, %v522
      %v566 = vpack.c.b16 %v525, %v524
      %v567 = vpack.c.b16 %v527, %v526
      %v568 = vpack.c.b16 %v529, %v528
      %v569 = vpack.c.b16 %v531, %v530
      %v570 = vpack.c.b16 %v533, %v532
      %v571 = vpack.c.b16 %v535, %v534
      %v612 = vunpack.c.l.b16 %v288
      %v613 = vunpack.c.l.b16 %v289
      %v614 = vunpack.c.l.b16 %v290
      %v615 = vunpack.c.l.b16 %v291
      %v616 = vpack.c.b16 %v613, %v612
      %v617 = vpack.c.b16 %v615, %v614
      %v624 = vunpack.c.l.b16 %v292
      %v625 = vunpack.c.l.b16 %v293
      %v626 = vunpack.c.l.b16 %v294
      %v627 = vunpack.c.l.b16 %v295
      %v628 = vpack.c.b16 %v625, %v624
      %v629 = vpack.c.b16 %v627, %v626
      %v728 = vunpack.c.l.b16 %v296
      %v729 = vunpack.c.h.b16 %v296
      %v730 = vunpack.c.l.b16 %v297
      %v731 = vunpack.c.l.b16 %v298
      %v732 = vunpack.c.h.b16 %v298
      %v733 = vunpack.c.l.b16 %v299
      %v734 = vunpack.c.l.b16 %v300
      %v735 = vunpack.c.h.b16 %v300
      %v736 = vunpack.c.l.b16 %v301
      %v737 = vunpack.c.l.b16 %v302
      %v738 = vunpack.c.h.b16 %v302
      %v739 = vunpack.c.l.b16 %v303
      %v740 = vunpack.c.l.b16 %v304
      %v741 = vunpack.c.h.b16 %v304
      %v742 = vunpack.c.l.b16 %v305
      %v743 = vunpack.c.l.b16 %v306
      %v744 = vunpack.c.h.b16 %v306
      %v745 = vunpack.c.l.b16 %v307
      %v746 = vunpack.c.l.b16 %v308
      %v747 = vunpack.c.h.b16 %v308
      %v748 = vunpack.c.l.b16 %v309
      %v749 = vunpack.c.l.b16 %v310
      %v750 = vunpack.c.h.b16 %v310
      %v751 = vunpack.c.l.b16 %v311
      %v752 = vunpack.c.l.b16 %v312
      %v753 = vunpack.c.h.b16 %v312
      %v754 = vunpack.c.l.b16 %v313
      %v755 = vunpack.c.l.b16 %v314
      %v756 = vunpack.c.h.b16 %v314
      %v757 = vunpack.c.l.b16 %v315
      %v758 = vunpack.c.l.b16 %v316
      %v759 = vunpack.c.h.b16 %v316
      %v760 = vunpack.c.l.b16 %v317
      %v761 = vunpack.c.l.b16 %v318
      %v762 = vunpack.c.h.b16 %v318
      %v763 = vunpack.c.l.b16 %v319
      %v764 = vunpack.c.l.b16 %v320
      %v765 = vunpack.c.h.b16 %v320
      %v766 = vunpack.c.l.b16 %v321
      %v767 = vunpack.c.l.b16 %v322
      %v768 = vunpack.c.h.b16 %v322
      %v769 = vunpack.c.l.b16 %v323
      %v770 = vunpack.c.l.b16 %v324
      %v771 = vunpack.c.h.b16 %v324
      %v772 = vunpack.c.l.b16 %v325
      %v773 = vunpack.c.l.b16 %v326
      %v774 = vunpack.c.h.b16 %v326
      %v775 = vunpack.c.l.b16 %v327
      %v776 = vunpack.c.l.b16 %v328
      %v777 = vunpack.c.h.b16 %v328
      %v778 = vunpack.c.l.b16 %v329
      %v779 = vunpack.c.l.b16 %v330
      %v780 = vunpack.c.h.b16 %v330
      %v781 = vunpack.c.l.b16 %v331
      %v782 = vunpack.c.l.b16 %v332
      %v783 = vunpack.c.h.b16 %v332
      %v784 = vunpack.c.l.b16 %v333
      %v785 = vunpack.c.l.b16 %v334
      %v786 = vunpack.c.h.b16 %v334
      %v787 = vunpack.c.l.b16 %v335
      %v788 = vunpack.c.l.b16 %v336
      %v789 = vunpack.c.h.b16 %v336
      %v790 = vunpack.c.l.b16 %v337
      %v791 = vunpack.c.l.b16 %v338
      %v792 = vunpack.c.h.b16 %v338
      %v793 = vunpack.c.l.b16 %v339
      %v794 = vunpack.c.l.b16 %v340
      %v795 = vunpack.c.h.b16 %v340
      %v796 = vunpack.c.l.b16 %v341
      %v797 = vunpack.c.l.b16 %v342
      %v798 = vunpack.c.h.b16 %v342
      %v799 = vunpack.c.l.b16 %v343
      %v800 = vunpack.c.l.b16 %v344
      %v801 = vunpack.c.h.b16 %v344
      %v802 = vunpack.c.l.b16 %v345
      %v803 = vunpack.c.l.b16 %v346
      %v804 = vunpack.c.h.b16 %v346
      %v805 = vunpack.c.l.b16 %v347
      %v806 = vunpack.c.l.b16 %v348
      %v807 = vunpack.c.h.b16 %v348
      %v808 = vunpack.c.l.b16 %v349
      %v809 = vunpack.c.l.b16 %v350
      %v810 = vunpack.c.h.b16 %v350
      %v811 = vunpack.c.l.b16 %v351
      %v812 = vunpack.c.l.b16 %v352
      %v813 = vunpack.c.h.b16 %v352
      %v814 = vunpack.c.l.b16 %v353
      %v815 = vunpack.c.l.b16 %v354
      %v816 = vunpack.c.h.b16 %v354
      %v817 = vunpack.c.l.b16 %v355
      %v818 = vunpack.c.l.b16 %v356
      %v819 = vunpack.c.h.b16 %v356
      %v820 = vunpack.c.l.b16 %v357
      %v821 = vunpack.c.l.b16 %v358
      %v822 = vunpack.c.h.b16 %v358
      %v823 = vunpack.c.l.b16 %v359
      %v824 = vunpack.c.l.b16 %v360
      %v825 = vunpack.c.h.b16 %v360
      %v826 = vunpack.c.l.b16 %v361
      %v827 = vunpack.c.l.b16 %v362
      %v828 = vunpack.c.h.b16 %v362
      %v829 = vunpack.c.l.b16 %v363
      %v830 = vunpack.c.l.b16 %v364
      %v831 = vunpack.c.h.b16 %v364
      %v832 = vunpack.c.l.b16 %v365
      %v833 = vunpack.c.l.b16 %v366
      %v834 = vunpack.c.h.b16 %v366
      %v835 = vunpack.c.l.b16 %v367
      %v836 = vunpack.c.l.b16 %v368
      %v837 = vunpack.c.h.b16 %v368
      %v838 = vunpack.c.l.b16 %v369
      %v839 = vunpack.c.l.b16 %v370
      %v840 = vunpack.c.h.b16 %v370
      %v841 = vunpack.c.l.b16 %v371
      %v842 = vunpack.c.l.b16 %v372
      %v843 = vunpack.c.h.b16 %v372
      %v844 = vunpack.c.l.b16 %v373
      %v845 = vunpack.c.l.b16 %v374
      %v846 = vunpack.c.h.b16 %v374
      %v847 = vunpack.c.l.b16 %v375
      %v848 = vunpack.c.l.b16 %v376
      %v849 = vunpack.c.h.b16 %v376
      %v850 = vunpack.c.l.b16 %v377
      %v851 = vunpack.c.l.b16 %v378
      %v852 = vunpack.c.h.b16 %v378
      %v853 = vunpack.c.l.b16 %v379
      %v854 = vunpack.c.l.b16 %v380
      %v855 = vunpack.c.h.b16 %v380
      %v856 = vunpack.c.l.b16 %v381
      %v857 = vunpack.c.l.b16 %v382
      %v858 = vunpack.c.h.b16 %v382
      %v859 = vunpack.c.l.b16 %v383
      %v860 = vunpack.c.l.b16 %v384
      %v861 = vunpack.c.h.b16 %v384
      %v862 = vunpack.c.l.b16 %v385
      %v863 = vunpack.c.l.b16 %v386
      %v864 = vunpack.c.h.b16 %v386
      %v865 = vunpack.c.l.b16 %v387
      %v866 = vunpack.c.l.b16 %v388
      %v867 = vunpack.c.h.b16 %v388
      %v868 = vunpack.c.l.b16 %v389
      %v869 = vunpack.c.l.b16 %v390
      %v870 = vunpack.c.h.b16 %v390
      %v871 = vunpack.c.l.b16 %v391
      %v872 = vpack.c.b16 %v731, %v728
      %v873 = vpack.c.b16 %v732, %v729
      %v874 = vpack.c.b16 %v733, %v730
      %v875 = vpack.c.b16 %v737, %v734
      %v876 = vpack.c.b16 %v738, %v735
      %v877 = vpack.c.b16 %v739, %v736
      %v878 = vpack.c.b16 %v743, %v740
      %v879 = vpack.c.b16 %v744, %v741
      %v880 = vpack.c.b16 %v745, %v742
      %v881 = vpack.c.b16 %v749, %v746
      %v882 = vpack.c.b16 %v750, %v747
      %v883 = vpack.c.b16 %v751, %v748
      %v884 = vpack.c.b16 %v755, %v752
      %v885 = vpack.c.b16 %v756, %v753
      %v886 = vpack.c.b16 %v757, %v754
      %v887 = vpack.c.b16 %v761, %v758
      %v888 = vpack.c.b16 %v762, %v759
      %v889 = vpack.c.b16 %v763, %v760
      %v890 = vpack.c.b16 %v767, %v764
      %v891 = vpack.c.b16 %v768, %v765
      %v892 = vpack.c.b16 %v769, %v766
      %v893 = vpack.c.b16 %v773, %v770
      %v894 = vpack.c.b16 %v774, %v771
      %v895 = vpack.c.b16 %v775, %v772
      %v896 = vpack.c.b16 %v779, %v776
      %v897 = vpack.c.b16 %v780, %v777
      %v898 = vpack.c.b16 %v781, %v778
      %v899 = vpack.c.b16 %v785, %v782
      %v900 = vpack.c.b16 %v786, %v783
      %v901 = vpack.c.b16 %v787, %v784
      %v902 = vpack.c.b16 %v791, %v788
      %v903 = vpack.c.b16 %v792, %v789
      %v904 = vpack.c.b16 %v793, %v790
      %v905 = vpack.c.b16 %v797, %v794
      %v906 = vpack.c.b16 %v798, %v795
      %v907 = vpack.c.b16 %v799, %v796
      %v908 = vpack.c.b16 %v803, %v800
      %v909 = vpack.c.b16 %v804, %v801
      %v910 = vpack.c.b16 %v805, %v802
      %v911 = vpack.c.b16 %v809, %v806
      %v912 = vpack.c.b16 %v810, %v807
      %v913 = vpack.c.b16 %v811, %v808
      %v914 = vpack.c.b16 %v815, %v812
      %v915 = vpack.c.b16 %v816, %v813
      %v916 = vpack.c.b16 %v817, %v814
      %v917 = vpack.c.b16 %v821, %v818
      %v918 = vpack.c.b16 %v822, %v819
      %v919 = vpack.c.b16 %v823, %v820
      %v920 = vpack.c.b16 %v827, %v824
      %v921 = vpack.c.b16 %v828, %v825
      %v922 = vpack.c.b16 %v829, %v826
      %v923 = vpack.c.b16 %v833, %v830
      %v924 = vpack.c.b16 %v834, %v831
      %v925 = vpack.c.b16 %v835, %v832
      %v926 = vpack.c.b16 %v839, %v836
      %v927 = vpack.c.b16 %v840, %v837
      %v928 = vpack.c.b16 %v841, %v838
      %v929 = vpack.c.b16 %v845, %v842
      %v930 = vpack.c.b16 %v846, %v843
      %v931 = vpack.c.b16 %v847, %v844
      %v932 = vpack.c.b16 %v851, %v848
      %v933 = vpack.c.b16 %v852, %v849
      %v934 = vpack.c.b16 %v853, %v850
      %v935 = vpack.c.b16 %v857, %v854
      %v936 = vpack.c.b16 %v858, %v855
      %v937 = vpack.c.b16 %v859, %v856
      %v938 = vpack.c.b16 %v863, %v860
      %v939 = vpack.c.b16 %v864, %v861
      %v940 = vpack.c.b16 %v865, %v862
      %v941 = vpack.c.b16 %v869, %v866
      %v942 = vpack.c.b16 %v870, %v867
      %v943 = vpack.c.b16 %v871, %v868
      %1016 = vmatprep.subr.bf16.mxu0 %v873
      %1017 = vmatpush1.bf16.msra.mxu0 %v872
      %1018 = vmatprep.subr.bf16.mxu0 %v876
      %1019 = vmatpush1.bf16.msra.mxu0 %v875
      %1020 = vmatprep.subr.bf16.mxu0 %v879
      %1021 = vmatpush1.bf16.msra.mxu0 %v878
      %1022 = vmatprep.subr.bf16.mxu0 %v882
      %1023 = vmatpush1.bf16.msra.mxu0 %v881
      %1024 = vmatprep.subr.bf16.mxu0 %v885
      %1025 = vmatpush1.bf16.msra.mxu0 %v884
      %1026 = vmatprep.subr.bf16.mxu0 %v888
      %1027 = vmatpush1.bf16.msra.mxu0 %v887
      %1028 = vmatprep.subr.bf16.mxu0 %v891
      %1029 = vmatpush1.bf16.msra.mxu0 %v890
      %1030 = vmatprep.subr.bf16.mxu0 %v894
      %1031 = vmatpush1.bf16.msra.mxu0 %v893
      %1032 = vmatprep.subr.bf16.mxu0 %v897
      %1033 = vmatpush1.bf16.msra.mxu0 %v896
      %1034 = vmatprep.subr.bf16.mxu0 %v900
      %1035 = vmatpush1.bf16.msra.mxu0 %v899
      %1036 = vmatprep.subr.bf16.mxu0 %v903
      %1037 = vmatpush1.bf16.msra.mxu0 %v902
      %1038 = vmatprep.subr.bf16.mxu0 %v906
      %1039 = vmatpush1.bf16.msra.mxu0 %v905
      %1040 = vmatprep.subr.bf16.mxu0 %v909
      %1041 = vmatpush1.bf16.msra.mxu0 %v908
      %1042 = vmatprep.subr.bf16.mxu0 %v912
      %1043 = vmatpush1.bf16.msra.mxu0 %v911
      %1044 = vmatprep.subr.bf16.mxu0 %v915
      %1045 = vmatpush1.bf16.msra.mxu0 %v914
      %1046 = vmatprep.subr.bf16.mxu0 %v918
      %1047 = vmatpush1.bf16.msra.mxu0 %v917
      %1048 = vmatprep.mubr.bf16.mxu0 %v538
      %1049 = vmatmul.mubr.bf16.gmra.mrb[0].mxu0 %v536
      %v1050 = vpop.f32.mrb[0].mxu0
      %v1051 = vadd.f32 0.0, %v1050
      %v1052 = vpop.f32.mrb[0].mxu0
      %v1053 = vadd.f32 0.0, %v1052
      %v1054 = vpop.f32.mrb[0].mxu0
      %v1055 = vadd.f32 0.0, %v1054
      %v1056 = vpop.f32.mrb[0].mxu0
      %v1057 = vadd.f32 0.0, %v1056
      %1058 = vmatprep.mubr.bf16.mxu0 %v539
      %1059 = vmatmul.mubr.bf16.gmra.mrb[0].mxu0 %v537
      %v1060 = vpop.f32.mrb[0].mxu0
      %v1061 = vadd.f32 0.0, %v1060
      %v1062 = vpop.f32.mrb[0].mxu0
      %v1063 = vadd.f32 0.0, %v1062
      %v1064 = vpop.f32.mrb[0].mxu0
      %v1065 = vpop.f32.mrb[0].mxu0
      %v1066 = vadd.f32 0.0, %v1065
      %1067 = vmatprep.mubr.bf16.mxu0 %v540
      %1068 = vmatmul.mubr.bf16.gmra.mrb[0].mxu0 %v538
      %v1069 = vpop.f32.mrb[0].mxu0
      %v1070 = vadd.f32 0.0, %v1069
      %v1071 = vpop.f32.mrb[0].mxu0
      %v1072 = vadd.f32 0.0, %v1071
      %v1073 = vpop.f32.mrb[0].mxu0
      %v1074 = vadd.f32 0.0, %v1073
      %v1075 = vpop.f32.mrb[0].mxu0
      %v1076 = vadd.f32 0.0, %v1075
      %1077 = vmatprep.mubr.bf16.mxu0 %v541
      %1078 = vmatmul.mubr.bf16.gmra.mrb[0].mxu0 %v539
      %v1079 = vpop.f32.mrb[0].mxu0
      %v1080 = vadd.f32 0.0, %v1079
      %v1081 = vpop.f32.mrb[0].mxu0
      %v1082 = vadd.f32 0.0, %v1081
      %v1083 = vpop.f32.mrb[0].mxu0
      %v1084 = vpop.f32.mrb[0].mxu0
      %v1085 = vadd.f32 0.0, %v1084
      %1086 = vmatprep.mubr.bf16.mxu0 %v542
      %1087 = vmatmul.mubr.bf16.gmra.mrb[0].mxu0 %v540
      %v1088 = vpop.f32.mrb[0].mxu0
      %v1089 = vadd.f32 0.0, %v1088
      %v1090 = vpop.f32.mrb[0].mxu0
      %v1091 = vadd.f32 0.0, %v1090
      %v1092 = vpop.f32.mrb[0].mxu0
      %v1093 = vadd.f32 0.0, %v1092
      %v1094 = vpop.f32.mrb[0].mxu0
      %v1095 = vadd.f32 0.0, %v1094
      %1096 = vmatprep.mubr.bf16.mxu0 %v543
      %1097 = vmatmul.mubr.bf16.gmra.mrb[0].mxu0 %v541
      %v1098 = vpop.f32.mrb[0].mxu0
      %v1099 = vadd.f32 0.0, %v1098
      %v1100 = vpop.f32.mrb[0].mxu0
      %v1101 = vadd.f32 0.0, %v1100
      %v1102 = vpop.f32.mrb[0].mxu0
      %v1103 = vpop.f32.mrb[0].mxu0
      %v1104 = vadd.f32 0.0, %v1103
      %1105 = vmatprep.mubr.bf16.mxu0 %v544
      %1106 = vmatmul.mubr.bf16.gmra.mrb[0].mxu0 %v542
      %v1107 = vpop.f32.mrb[0].mxu0
      %v1108 = vadd.f32 0.0, %v1107
      %v1109 = vpop.f32.mrb[0].mxu0
      %v1110 = vadd.f32 0.0, %v1109
      %v1111 = vpop.f32.mrb[0].mxu0
      %v1112 = vadd.f32 0.0, %v1111
      %v1113 = vpop.f32.mrb[0].mxu0
      %v1114 = vadd.f32 0.0, %v1113
      %1115 = vmatprep.mubr.bf16.mxu0 %v545
      %1116 = vmatmul.mubr.bf16.gmra.mrb[0].mxu0 %v543
      %v1117 = vpop.f32.mrb[0].mxu0
      %v1118 = vadd.f32 0.0, %v1117
      %v1119 = vpop.f32.mrb[0].mxu0
      %v1120 = vadd.f32 0.0, %v1119
      %v1121 = vpop.f32.mrb[0].mxu0
      %v1122 = vpop.f32.mrb[0].mxu0
      %v1123 = vadd.f32 0.0, %v1122
      %1124 = vmatprep.mubr.bf16.mxu0 %v546
      %1125 = vmatmul.mubr.bf16.gmra.mrb[0].mxu0 %v544
      %v1126 = vpop.f32.mrb[0].mxu0
      %v1127 = vadd.f32 0.0, %v1126
      %v1128 = vpop.f32.mrb[0].mxu0
      %v1129 = vadd.f32 0.0, %v1128
      %v1130 = vpop.f32.mrb[0].mxu0
      %v1131 = vadd.f32 0.0, %v1130
      %v1132 = vpop.f32.mrb[0].mxu0
      %v1133 = vadd.f32 0.0, %v1132
      %1134 = vmatprep.mubr.bf16.mxu0 %v547
      %1135 = vmatmul.mubr.bf16.gmra.mrb[0].mxu0 %v545
      %v1136 = vpop.f32.mrb[0].mxu0
      %v1137 = vadd.f32 0.0, %v1136
      %v1138 = vpop.f32.mrb[0].mxu0
      %v1139 = vadd.f32 0.0, %v1138
      %v1140 = vpop.f32.mrb[0].mxu0
      %v1141 = vpop.f32.mrb[0].mxu0
      %v1142 = vadd.f32 0.0, %v1141
      %1143 = vmatprep.mubr.bf16.mxu0 %v548
      %1144 = vmatmul.mubr.bf16.gmra.mrb[0].mxu0 %v546
      %v1145 = vpop.f32.mrb[0].mxu0
      %v1146 = vadd.f32 0.0, %v1145
      %v1147 = vpop.f32.mrb[0].mxu0
      %v1148 = vadd.f32 0.0, %v1147
      %v1149 = vpop.f32.mrb[0].mxu0
      %v1150 = vadd.f32 0.0, %v1149
      %v1151 = vpop.f32.mrb[0].mxu0
      %v1152 = vadd.f32 0.0, %v1151
      %1153 = vmatprep.mubr.bf16.mxu0 %v549
      %1154 = vmatmul.mubr.bf16.gmra.mrb[0].mxu0 %v547
      %v1155 = vpop.f32.mrb[0].mxu0
      %v1156 = vadd.f32 0.0, %v1155
      %v1157 = vpop.f32.mrb[0].mxu0
      %v1158 = vadd.f32 0.0, %v1157
      %v1159 = vpop.f32.mrb[0].mxu0
      %v1160 = vpop.f32.mrb[0].mxu0
      %v1161 = vadd.f32 0.0, %v1160
      %1162 = vmatprep.mubr.bf16.mxu0 %v550
      %1163 = vmatmul.mubr.bf16.gmra.mrb[0].mxu0 %v548
      %v1164 = vpop.f32.mrb[0].mxu0
      %v1165 = vadd.f32 0.0, %v1164
      %v1166 = vpop.f32.mrb[0].mxu0
      %v1167 = vadd.f32 0.0, %v1166
      %v1168 = vpop.f32.mrb[0].mxu0
      %v1169 = vadd.f32 0.0, %v1168
      %v1170 = vpop.f32.mrb[0].mxu0
      %v1171 = vadd.f32 0.0, %v1170
      %1172 = vmatprep.mubr.bf16.mxu0 %v551
      %1173 = vmatmul.mubr.bf16.gmra.mrb[0].mxu0 %v549
      %v1174 = vpop.f32.mrb[0].mxu0
      %v1175 = vadd.f32 0.0, %v1174
      %v1176 = vpop.f32.mrb[0].mxu0
      %v1177 = vadd.f32 0.0, %v1176
      %v1178 = vpop.f32.mrb[0].mxu0
      %v1179 = vpop.f32.mrb[0].mxu0
      %v1180 = vadd.f32 0.0, %v1179
      %1181 = vmatprep.mubr.bf16.mxu0 %v552
      %1182 = vmatmul.mubr.bf16.gmra.mrb[0].mxu0 %v550
      %v1183 = vpop.f32.mrb[0].mxu0
      %v1184 = vadd.f32 0.0, %v1183
      %v1185 = vpop.f32.mrb[0].mxu0
      %v1186 = vadd.f32 0.0, %v1185
      %v1187 = vpop.f32.mrb[0].mxu0
      %v1188 = vadd.f32 0.0, %v1187
      %v1189 = vpop.f32.mrb[0].mxu0
      %v1190 = vadd.f32 0.0, %v1189
      %1191 = vmatprep.mubr.bf16.mxu0 %v553
      %1192 = vmatmul.mubr.bf16.gmra.mrb[0].mxu0 %v551
      %v1193 = vpop.f32.mrb[0].mxu0
      %v1194 = vadd.f32 0.0, %v1193
      %v1195 = vpop.f32.mrb[0].mxu0
      %v1196 = vadd.f32 0.0, %v1195
      %v1197 = vpop.f32.mrb[0].mxu0
      %v1198 = vpop.f32.mrb[0].mxu0
      %v1199 = vadd.f32 0.0, %v1198
      %1200 = vmatprep.mubr.bf16.mxu0 %v554
      %1201 = vmatmul.mubr.bf16.gmra.mrb[0].mxu0 %v552
      %v1202 = vpop.f32.mrb[0].mxu0
      %v1203 = vadd.f32 0.0, %v1202
      %v1204 = vpop.f32.mrb[0].mxu0
      %v1205 = vadd.f32 0.0, %v1204
      %v1206 = vpop.f32.mrb[0].mxu0
      %v1207 = vadd.f32 0.0, %v1206
      %v1208 = vpop.f32.mrb[0].mxu0
      %v1209 = vadd.f32 0.0, %v1208
      %1210 = vmatprep.mubr.bf16.mxu0 %v555
      %1211 = vmatmul.mubr.bf16.gmra.mrb[0].mxu0 %v553
      %v1212 = vpop.f32.mrb[0].mxu0
      %v1213 = vadd.f32 0.0, %v1212
      %v1214 = vpop.f32.mrb[0].mxu0
      %v1215 = vadd.f32 0.0, %v1214
      %v1216 = vpop.f32.mrb[0].mxu0
      %v1217 = vpop.f32.mrb[0].mxu0
      %v1218 = vadd.f32 0.0, %v1217
      %1219 = vmatprep.mubr.bf16.mxu0 %v556
      %1220 = vmatmul.mubr.bf16.gmra.mrb[0].mxu0 %v554
      %v1221 = vpop.f32.mrb[0].mxu0
      %v1222 = vadd.f32 0.0, %v1221
      %v1223 = vpop.f32.mrb[0].mxu0
      %v1224 = vadd.f32 0.0, %v1223
      %v1225 = vpop.f32.mrb[0].mxu0
      %v1226 = vadd.f32 0.0, %v1225
      %v1227 = vpop.f32.mrb[0].mxu0
      %v1228 = vadd.f32 0.0, %v1227
      %1229 = vmatprep.mubr.bf16.mxu0 %v557
      %1230 = vmatmul.mubr.bf16.gmra.mrb[0].mxu0 %v555
      %v1231 = vpop.f32.mrb[0].mxu0
      %v1232 = vadd.f32 0.0, %v1231
      %v1233 = vpop.f32.mrb[0].mxu0
      %v1234 = vadd.f32 0.0, %v1233
      %v1235 = vpop.f32.mrb[0].mxu0
      %v1236 = vpop.f32.mrb[0].mxu0
      %v1237 = vadd.f32 0.0, %v1236
      %1238 = vmatprep.mubr.bf16.mxu0 %v558
      %1239 = vmatmul.mubr.bf16.gmra.mrb[0].mxu0 %v556
      %v1240 = vpop.f32.mrb[0].mxu0
      %v1241 = vadd.f32 0.0, %v1240
      %v1242 = vpop.f32.mrb[0].mxu0
      %v1243 = vadd.f32 0.0, %v1242
      %v1244 = vpop.f32.mrb[0].mxu0
      %v1245 = vadd.f32 0.0, %v1244
      %v1246 = vpop.f32.mrb[0].mxu0
      %v1247 = vadd.f32 0.0, %v1246
      %1248 = vmatprep.mubr.bf16.mxu0 %v559
      %1249 = vmatmul.mubr.bf16.gmra.mrb[0].mxu0 %v557
      %v1250 = vpop.f32.mrb[0].mxu0
      %v1251 = vadd.f32 0.0, %v1250
      %v1252 = vpop.f32.mrb[0].mxu0
      %v1253 = vadd.f32 0.0, %v1252
      %v1254 = vpop.f32.mrb[0].mxu0
      %v1255 = vpop.f32.mrb[0].mxu0
      %v1256 = vadd.f32 0.0, %v1255
      %1257 = vmatprep.mubr.bf16.mxu0 %v560
      %1258 = vmatmul.mubr.bf16.gmra.mrb[0].mxu0 %v558
      %v1259 = vpop.f32.mrb[0].mxu0
      %v1260 = vadd.f32 0.0, %v1259
      %v1261 = vpop.f32.mrb[0].mxu0
      %v1262 = vadd.f32 0.0, %v1261
      %v1263 = vpop.f32.mrb[0].mxu0
      %v1264 = vadd.f32 0.0, %v1263
      %v1265 = vpop.f32.mrb[0].mxu0
      %v1266 = vadd.f32 0.0, %v1265
      %1267 = vmatprep.mubr.bf16.mxu0 %v561
      %1268 = vmatmul.mubr.bf16.gmra.mrb[0].mxu0 %v559
      %v1269 = vpop.f32.mrb[0].mxu0
      %v1270 = vadd.f32 0.0, %v1269
      %v1271 = vpop.f32.mrb[0].mxu0
      %v1272 = vadd.f32 0.0, %v1271
      %v1273 = vpop.f32.mrb[0].mxu0
      %v1274 = vpop.f32.mrb[0].mxu0
      %v1275 = vadd.f32 0.0, %v1274
      %1276 = vmatprep.mubr.bf16.mxu0 %v562
      %1277 = vmatmul.mubr.bf16.gmra.mrb[0].mxu0 %v560
      %v1278 = vpop.f32.mrb[0].mxu0
      %v1279 = vadd.f32 0.0, %v1278
      %v1280 = vpop.f32.mrb[0].mxu0
      %v1281 = vadd.f32 0.0, %v1280
      %v1282 = vpop.f32.mrb[0].mxu0
      %v1283 = vadd.f32 0.0, %v1282
      %v1284 = vpop.f32.mrb[0].mxu0
      %v1285 = vadd.f32 0.0, %v1284
      %1286 = vmatprep.mubr.bf16.mxu0 %v563
      %1287 = vmatmul.mubr.bf16.gmra.mrb[0].mxu0 %v561
      %v1288 = vpop.f32.mrb[0].mxu0
      %v1289 = vadd.f32 0.0, %v1288
      %v1290 = vpop.f32.mrb[0].mxu0
      %v1291 = vadd.f32 0.0, %v1290
      %v1292 = vpop.f32.mrb[0].mxu0
      %v1293 = vpop.f32.mrb[0].mxu0
      %v1294 = vadd.f32 0.0, %v1293
      %1295 = vmatprep.mubr.bf16.mxu0 %v564
      %1296 = vmatmul.mubr.bf16.gmra.mrb[0].mxu0 %v562
      %v1297 = vpop.f32.mrb[0].mxu0
      %v1298 = vadd.f32 0.0, %v1297
      %v1299 = vpop.f32.mrb[0].mxu0
      %v1300 = vadd.f32 0.0, %v1299
      %v1301 = vpop.f32.mrb[0].mxu0
      %v1302 = vadd.f32 0.0, %v1301
      %v1303 = vpop.f32.mrb[0].mxu0
      %v1304 = vadd.f32 0.0, %v1303
      %1305 = vmatprep.mubr.bf16.mxu0 %v565
      %1306 = vmatmul.mubr.bf16.gmra.mrb[0].mxu0 %v563
      %v1307 = vpop.f32.mrb[0].mxu0
      %v1308 = vadd.f32 0.0, %v1307
      %v1309 = vpop.f32.mrb[0].mxu0
      %v1310 = vadd.f32 0.0, %v1309
      %v1311 = vpop.f32.mrb[0].mxu0
      %v1312 = vpop.f32.mrb[0].mxu0
      %v1313 = vadd.f32 0.0, %v1312
      %1314 = vmatprep.mubr.bf16.mxu0 %v566
      %1315 = vmatmul.mubr.bf16.gmra.mrb[0].mxu0 %v564
      %v1316 = vpop.f32.mrb[0].mxu0
      %v1317 = vadd.f32 0.0, %v1316
      %v1318 = vpop.f32.mrb[0].mxu0
      %v1319 = vadd.f32 0.0, %v1318
      %v1320 = vpop.f32.mrb[0].mxu0
      %v1321 = vadd.f32 0.0, %v1320
      %v1322 = vpop.f32.mrb[0].mxu0
      %v1323 = vadd.f32 0.0, %v1322
      %1324 = vmatprep.mubr.bf16.mxu0 %v567
      %1325 = vmatmul.mubr.bf16.gmra.mrb[0].mxu0 %v565
      %v1326 = vpop.f32.mrb[0].mxu0
      %v1327 = vadd.f32 0.0, %v1326
      %v1328 = vpop.f32.mrb[0].mxu0
      %v1329 = vadd.f32 0.0, %v1328
      %v1330 = vpop.f32.mrb[0].mxu0
      %v1331 = vpop.f32.mrb[0].mxu0
      %v1332 = vadd.f32 0.0, %v1331
      %1333 = vmatprep.mubr.bf16.mxu0 %v568
      %1334 = vmatmul.mubr.bf16.gmra.mrb[0].mxu0 %v566
      %v1335 = vpop.f32.mrb[0].mxu0
      %v1336 = vadd.f32 0.0, %v1335
      %v1337 = vpop.f32.mrb[0].mxu0
      %v1338 = vadd.f32 0.0, %v1337
      %v1339 = vpop.f32.mrb[0].mxu0
      %v1340 = vadd.f32 0.0, %v1339
      %v1341 = vpop.f32.mrb[0].mxu0
      %v1342 = vadd.f32 0.0, %v1341
      %1343 = vmatprep.mubr.bf16.mxu0 %v569
      %1344 = vmatmul.mubr.bf16.gmra.mrb[0].mxu0 %v567
      %v1345 = vpop.f32.mrb[0].mxu0
      %v1346 = vadd.f32 0.0, %v1345
      %v1347 = vpop.f32.mrb[0].mxu0
      %v1348 = vadd.f32 0.0, %v1347
      %v1349 = vpop.f32.mrb[0].mxu0
      %v1350 = vpop.f32.mrb[0].mxu0
      %v1351 = vadd.f32 0.0, %v1350
      %1352 = vmatprep.mubr.bf16.mxu0 %v570
      %1353 = vmatmul.mubr.bf16.gmra.mrb[0].mxu0 %v568
      %v1354 = vpop.f32.mrb[0].mxu0
      %v1355 = vadd.f32 0.0, %v1354
      %v1356 = vpop.f32.mrb[0].mxu0
      %v1357 = vadd.f32 0.0, %v1356
      %v1358 = vpop.f32.mrb[0].mxu0
      %v1359 = vadd.f32 0.0, %v1358
      %v1360 = vpop.f32.mrb[0].mxu0
      %v1361 = vadd.f32 0.0, %v1360
      %1362 = vmatprep.mubr.bf16.mxu0 %v571
      %1363 = vmatmul.mubr.bf16.gmra.mrb[0].mxu0 %v569
      %v1364 = vpop.f32.mrb[0].mxu0
      %v1365 = vadd.f32 0.0, %v1364
      %v1366 = vpop.f32.mrb[0].mxu0
      %v1367 = vadd.f32 0.0, %v1366
      %v1368 = vpop.f32.mrb[0].mxu0
      %v1369 = vpop.f32.mrb[0].mxu0
      %v1370 = vadd.f32 0.0, %v1369
      %1371 = vmatprep.mubr.bf16.mxu0 %v616
      %1372 = vmatmul.mubr.bf16.gmra.mrb[0].mxu0 %v570
      %v1373 = vpop.f32.mrb[0].mxu0
      %v1374 = vadd.f32 0.0, %v1373
      %v1375 = vpop.f32.mrb[0].mxu0
      %v1376 = vadd.f32 0.0, %v1375
      %v1377 = vpop.f32.mrb[0].mxu0
      %v1378 = vadd.f32 0.0, %v1377
      %v1379 = vpop.f32.mrb[0].mxu0
      %v1380 = vadd.f32 0.0, %v1379
      %1381 = vmatprep.mubr.bf16.mxu0 %v617
      %1382 = vmatmul.mubr.bf16.gmra.mrb[0].mxu0 %v571
      %v1383 = vpop.f32.mrb[0].mxu0
      %v1384 = vadd.f32 0.0, %v1383
      %v1385 = vpop.f32.mrb[0].mxu0
      %v1386 = vadd.f32 0.0, %v1385
      %v1387 = vpop.f32.mrb[0].mxu0
      %v1388 = vpop.f32.mrb[0].mxu0
      %v1389 = vadd.f32 0.0, %v1388
      %1390 = vdwg.mxu0
      %1391 = vmatprep.subr.bf16.mxu0 %v921
      %1392 = vmatpush1.bf16.msra.mxu0 %v920
      %1393 = vmatprep.subr.bf16.mxu0 %v924
      %1394 = vmatpush1.bf16.msra.mxu0 %v923
      %1395 = vmatprep.subr.bf16.mxu0 %v927
      %1396 = vmatpush1.bf16.msra.mxu0 %v926
      %1397 = vmatprep.subr.bf16.mxu0 %v930
      %1398 = vmatpush1.bf16.msra.mxu0 %v929
      %1399 = vmatprep.subr.bf16.mxu0 %v933
      %1400 = vmatpush1.bf16.msra.mxu0 %v932
      %1401 = vmatprep.subr.bf16.mxu0 %v936
      %1402 = vmatpush1.bf16.msra.mxu0 %v935
      %1403 = vmatprep.subr.bf16.mxu0 %v939
      %1404 = vmatpush1.bf16.msra.mxu0 %v938
      %1405 = vmatprep.subr.bf16.mxu0 %v942
      %1406 = vmatpush1.bf16.msra.mxu0 %v941
      %1407 = vmatprep.subr.bf16.mxu0 0
      %1408 = vmatpush1.bf16.msra.mxu0 0
      %1409 = vmatprep.subr.bf16.mxu0 0
      %1410 = vmatpush1.bf16.msra.mxu0 0
      %1411 = vmatprep.subr.bf16.mxu0 0
      %1412 = vmatpush1.bf16.msra.mxu0 0
      %1413 = vmatprep.subr.bf16.mxu0 0
      %1414 = vmatpush1.bf16.msra.mxu0 0
      %1415 = vmatprep.subr.bf16.mxu0 0
      %1416 = vmatpush1.bf16.msra.mxu0 0
      %1417 = vmatprep.subr.bf16.mxu0 0
      %1418 = vmatpush1.bf16.msra.mxu0 0
      %1419 = vmatprep.subr.bf16.mxu0 0
      %1420 = vmatpush1.bf16.msra.mxu0 0
      %1421 = vmatprep.subr.bf16.mxu0 0
      %1422 = vmatpush1.bf16.msra.mxu0 0
      %1423 = vmatprep.mubr.bf16.mxu0 0
      %1424 = vmatmul.mubr.bf16.gmra.mrb[0].mxu0 %v540
      %v1425 = vpop.f32.mrb[0].mxu0
      %v1426 = vadd.f32 %v1051, %v1425
      %v1427 = vpop.f32.mrb[0].mxu0
      %v1428 = vadd.f32 %v1053, %v1427
      %v1429 = vpop.f32.mrb[0].mxu0
      %v1430 = vadd.f32 %v1055, %v1429
      %v1431 = vpop.f32.mrb[0].mxu0
      %v1432 = vadd.f32 %v1057, %v1431
      %1433 = vmatprep.mubr.bf16.mxu0 0
      %1434 = vmatmul.mubr.bf16.gmra.mrb[0].mxu0 %v541
      %v1435 = vpop.f32.mrb[0].mxu0
      %v1436 = vadd.f32 %v1061, %v1435
      %v1437 = vpop.f32.mrb[0].mxu0
      %v1438 = vadd.f32 %v1063, %v1437
      %v1439 = vpop.f32.mrb[0].mxu0
      %v1440 = vpop.f32.mrb[0].mxu0
      %v1441 = vadd.f32 %v1066, %v1440
      %1442 = vmatprep.mubr.bf16.mxu0 0
      %1443 = vmatmul.mubr.bf16.gmra.mrb[0].mxu0 %v542
      %v1444 = vpop.f32.mrb[0].mxu0
      %v1445 = vadd.f32 %v1070, %v1444
      %v1446 = vpop.f32.mrb[0].mxu0
      %v1447 = vadd.f32 %v1072, %v1446
      %v1448 = vpop.f32.mrb[0].mxu0
      %v1449 = vadd.f32 %v1074, %v1448
      %v1450 = vpop.f32.mrb[0].mxu0
      %v1451 = vadd.f32 %v1076, %v1450
      %1452 = vmatprep.mubr.bf16.mxu0 0
      %1453 = vmatmul.mubr.bf16.gmra.mrb[0].mxu0 %v543
      %v1454 = vpop.f32.mrb[0].mxu0
      %v1455 = vadd.f32 %v1080, %v1454
      %v1456 = vpop.f32.mrb[0].mxu0
      %v1457 = vadd.f32 %v1082, %v1456
      %v1458 = vpop.f32.mrb[0].mxu0
      %v1459 = vpop.f32.mrb[0].mxu0
      %v1460 = vadd.f32 %v1085, %v1459
      %1461 = vmatprep.mubr.bf16.mxu0 0
      %1462 = vmatmul.mubr.bf16.gmra.mrb[0].mxu0 %v544
      %v1463 = vpop.f32.mrb[0].mxu0
      %v1464 = vadd.f32 %v1089, %v1463
      %v1465 = vpop.f32.mrb[0].mxu0
      %v1466 = vadd.f32 %v1091, %v1465
      %v1467 = vpop.f32.mrb[0].mxu0
      %v1468 = vadd.f32 %v1093, %v1467
      %v1469 = vpop.f32.mrb[0].mxu0
      %v1470 = vadd.f32 %v1095, %v1469
      %1471 = vmatprep.mubr.bf16.mxu0 0
      %1472 = vmatmul.mubr.bf16.gmra.mrb[0].mxu0 %v545
      %v1473 = vpop.f32.mrb[0].mxu0
      %v1474 = vadd.f32 %v1099, %v1473
      %v1475 = vpop.f32.mrb[0].mxu0
      %v1476 = vadd.f32 %v1101, %v1475
      %v1477 = vpop.f32.mrb[0].mxu0
      %v1478 = vpop.f32.mrb[0].mxu0
      %v1479 = vadd.f32 %v1104, %v1478
      %1480 = vmatprep.mubr.bf16.mxu0 0
      %1481 = vmatmul.mubr.bf16.gmra.mrb[0].mxu0 %v546
      %v1482 = vpop.f32.mrb[0].mxu0
      %v1483 = vadd.f32 %v1108, %v1482
      %v1484 = vpop.f32.mrb[0].mxu0
      %v1485 = vadd.f32 %v1110, %v1484
      %v1486 = vpop.f32.mrb[0].mxu0
      %v1487 = vadd.f32 %v1112, %v1486
      %v1488 = vpop.f32.mrb[0].mxu0
      %v1489 = vadd.f32 %v1114, %v1488
      %1490 = vmatprep.mubr.bf16.mxu0 0
      %1491 = vmatmul.mubr.bf16.gmra.mrb[0].mxu0 %v547
      %v1492 = vpop.f32.mrb[0].mxu0
      %v1493 = vadd.f32 %v1118, %v1492
      %v1494 = vpop.f32.mrb[0].mxu0
      %v1495 = vadd.f32 %v1120, %v1494
      %v1496 = vpop.f32.mrb[0].mxu0
      %v1497 = vpop.f32.mrb[0].mxu0
      %v1498 = vadd.f32 %v1123, %v1497
      %1499 = vmatprep.mubr.bf16.mxu0 0
      %1500 = vmatmul.mubr.bf16.gmra.mrb[0].mxu0 %v548
      %v1501 = vpop.f32.mrb[0].mxu0
      %v1502 = vadd.f32 %v1127, %v1501
      %v1503 = vpop.f32.mrb[0].mxu0
      %v1504 = vadd.f32 %v1129, %v1503
      %v1505 = vpop.f32.mrb[0].mxu0
      %v1506 = vadd.f32 %v1131, %v1505
      %v1507 = vpop.f32.mrb[0].mxu0
      %v1508 = vadd.f32 %v1133, %v1507
      %1509 = vmatprep.mubr.bf16.mxu0 0
      %1510 = vmatmul.mubr.bf16.gmra.mrb[0].mxu0 %v549
      %v1511 = vpop.f32.mrb[0].mxu0
      %v1512 = vadd.f32 %v1137, %v1511
      %v1513 = vpop.f32.mrb[0].mxu0
      %v1514 = vadd.f32 %v1139, %v1513
      %v1515 = vpop.f32.mrb[0].mxu0
      %v1516 = vpop.f32.mrb[0].mxu0
      %v1517 = vadd.f32 %v1142, %v1516
      %1518 = vmatprep.mubr.bf16.mxu0 0
      %1519 = vmatmul.mubr.bf16.gmra.mrb[0].mxu0 %v550
      %v1520 = vpop.f32.mrb[0].mxu0
      %v1521 = vadd.f32 %v1146, %v1520
      %v1522 = vpop.f32.mrb[0].mxu0
      %v1523 = vadd.f32 %v1148, %v1522
      %v1524 = vpop.f32.mrb[0].mxu0
      %v1525 = vadd.f32 %v1150, %v1524
      %v1526 = vpop.f32.mrb[0].mxu0
      %v1527 = vadd.f32 %v1152, %v1526
      %1528 = vmatprep.mubr.bf16.mxu0 0
      %1529 = vmatmul.mubr.bf16.gmra.mrb[0].mxu0 %v551
      %v1530 = vpop.f32.mrb[0].mxu0
      %v1531 = vadd.f32 %v1156, %v1530
      %v1532 = vpop.f32.mrb[0].mxu0
      %v1533 = vadd.f32 %v1158, %v1532
      %v1534 = vpop.f32.mrb[0].mxu0
      %v1535 = vpop.f32.mrb[0].mxu0
      %v1536 = vadd.f32 %v1161, %v1535
      %1537 = vmatprep.mubr.bf16.mxu0 0
      %1538 = vmatmul.mubr.bf16.gmra.mrb[0].mxu0 %v552
      %v1539 = vpop.f32.mrb[0].mxu0
      %v1540 = vadd.f32 %v1165, %v1539
      %v1541 = vpop.f32.mrb[0].mxu0
      %v1542 = vadd.f32 %v1167, %v1541
      %v1543 = vpop.f32.mrb[0].mxu0
      %v1544 = vadd.f32 %v1169, %v1543
      %v1545 = vpop.f32.mrb[0].mxu0
      %v1546 = vadd.f32 %v1171, %v1545
      %1547 = vmatprep.mubr.bf16.mxu0 0
      %1548 = vmatmul.mubr.bf16.gmra.mrb[0].mxu0 %v553
      %v1549 = vpop.f32.mrb[0].mxu0
      %v1550 = vadd.f32 %v1175, %v1549
      %v1551 = vpop.f32.mrb[0].mxu0
      %v1552 = vadd.f32 %v1177, %v1551
      %v1553 = vpop.f32.mrb[0].mxu0
      %v1554 = vpop.f32.mrb[0].mxu0
      %v1555 = vadd.f32 %v1180, %v1554
      %1556 = vmatprep.mubr.bf16.mxu0 0
      %1557 = vmatmul.mubr.bf16.gmra.mrb[0].mxu0 %v554
      %v1558 = vpop.f32.mrb[0].mxu0
      %v1559 = vadd.f32 %v1184, %v1558
      %v1560 = vpop.f32.mrb[0].mxu0
      %v1561 = vadd.f32 %v1186, %v1560
      %v1562 = vpop.f32.mrb[0].mxu0
      %v1563 = vadd.f32 %v1188, %v1562
      %v1564 = vpop.f32.mrb[0].mxu0
      %v1565 = vadd.f32 %v1190, %v1564
      %1566 = vmatprep.mubr.bf16.mxu0 0
      %1567 = vmatmul.mubr.bf16.gmra.mrb[0].mxu0 %v555
      %v1568 = vpop.f32.mrb[0].mxu0
      %v1569 = vadd.f32 %v1194, %v1568
      %v1570 = vpop.f32.mrb[0].mxu0
      %v1571 = vadd.f32 %v1196, %v1570
      %v1572 = vpop.f32.mrb[0].mxu0
      %v1573 = vpop.f32.mrb[0].mxu0
      %v1574 = vadd.f32 %v1199, %v1573
      %1575 = vmatprep.mubr.bf16.mxu0 0
      %1576 = vmatmul.mubr.bf16.gmra.mrb[0].mxu0 %v556
      %v1577 = vpop.f32.mrb[0].mxu0
      %v1578 = vadd.f32 %v1203, %v1577
      %v1579 = vpop.f32.mrb[0].mxu0
      %v1580 = vadd.f32 %v1205, %v1579
      %v1581 = vpop.f32.mrb[0].mxu0
      %v1582 = vadd.f32 %v1207, %v1581
      %v1583 = vpop.f32.mrb[0].mxu0
      %v1584 = vadd.f32 %v1209, %v1583
      %1585 = vmatprep.mubr.bf16.mxu0 0
      %1586 = vmatmul.mubr.bf16.gmra.mrb[0].mxu0 %v557
      %v1587 = vpop.f32.mrb[0].mxu0
      %v1588 = vadd.f32 %v1213, %v1587
      %v1589 = vpop.f32.mrb[0].mxu0
      %v1590 = vadd.f32 %v1215, %v1589
      %v1591 = vpop.f32.mrb[0].mxu0
      %v1592 = vpop.f32.mrb[0].mxu0
      %v1593 = vadd.f32 %v1218, %v1592
      %1594 = vmatprep.mubr.bf16.mxu0 0
      %1595 = vmatmul.mubr.bf16.gmra.mrb[0].mxu0 %v558
      %v1596 = vpop.f32.mrb[0].mxu0
      %v1597 = vadd.f32 %v1222, %v1596
      %v1598 = vpop.f32.mrb[0].mxu0
      %v1599 = vadd.f32 %v1224, %v1598
      %v1600 = vpop.f32.mrb[0].mxu0
      %v1601 = vadd.f32 %v1226, %v1600
      %v1602 = vpop.f32.mrb[0].mxu0
      %v1603 = vadd.f32 %v1228, %v1602
      %1604 = vmatprep.mubr.bf16.mxu0 0
      %1605 = vmatmul.mubr.bf16.gmra.mrb[0].mxu0 %v559
      %v1606 = vpop.f32.mrb[0].mxu0
      %v1607 = vadd.f32 %v1232, %v1606
      %v1608 = vpop.f32.mrb[0].mxu0
      %v1609 = vadd.f32 %v1234, %v1608
      %v1610 = vpop.f32.mrb[0].mxu0
      %v1611 = vpop.f32.mrb[0].mxu0
      %v1612 = vadd.f32 %v1237, %v1611
      %1613 = vmatprep.mubr.bf16.mxu0 0
      %1614 = vmatmul.mubr.bf16.gmra.mrb[0].mxu0 %v560
      %v1615 = vpop.f32.mrb[0].mxu0
      %v1616 = vadd.f32 %v1241, %v1615
      %v1617 = vpop.f32.mrb[0].mxu0
      %v1618 = vadd.f32 %v1243, %v1617
      %v1619 = vpop.f32.mrb[0].mxu0
      %v1620 = vadd.f32 %v1245, %v1619
      %v1621 = vpop.f32.mrb[0].mxu0
      %v1622 = vadd.f32 %v1247, %v1621
      %1623 = vmatprep.mubr.bf16.mxu0 0
      %1624 = vmatmul.mubr.bf16.gmra.mrb[0].mxu0 %v561
      %v1625 = vpop.f32.mrb[0].mxu0
      %v1626 = vadd.f32 %v1251, %v1625
      %v1627 = vpop.f32.mrb[0].mxu0
      %v1628 = vadd.f32 %v1253, %v1627
      %v1629 = vpop.f32.mrb[0].mxu0
      %v1630 = vpop.f32.mrb[0].mxu0
      %v1631 = vadd.f32 %v1256, %v1630
      %1632 = vmatprep.mubr.bf16.mxu0 0
      %1633 = vmatmul.mubr.bf16.gmra.mrb[0].mxu0 %v562
      %v1634 = vpop.f32.mrb[0].mxu0
      %v1635 = vadd.f32 %v1260, %v1634
      %v1636 = vpop.f32.mrb[0].mxu0
      %v1637 = vadd.f32 %v1262, %v1636
      %v1638 = vpop.f32.mrb[0].mxu0
      %v1639 = vadd.f32 %v1264, %v1638
      %v1640 = vpop.f32.mrb[0].mxu0
      %v1641 = vadd.f32 %v1266, %v1640
      %1642 = vmatprep.mubr.bf16.mxu0 0
      %1643 = vmatmul.mubr.bf16.gmra.mrb[0].mxu0 %v563
      %v1644 = vpop.f32.mrb[0].mxu0
      %v1645 = vadd.f32 %v1270, %v1644
      %v1646 = vpop.f32.mrb[0].mxu0
      %v1647 = vadd.f32 %v1272, %v1646
      %v1648 = vpop.f32.mrb[0].mxu0
      %v1649 = vpop.f32.mrb[0].mxu0
      %v1650 = vadd.f32 %v1275, %v1649
      %1651 = vmatprep.mubr.bf16.mxu0 0
      %1652 = vmatmul.mubr.bf16.gmra.mrb[0].mxu0 %v564
      %v1653 = vpop.f32.mrb[0].mxu0
      %v1654 = vadd.f32 %v1279, %v1653
      %v1655 = vpop.f32.mrb[0].mxu0
      %v1656 = vadd.f32 %v1281, %v1655
      %v1657 = vpop.f32.mrb[0].mxu0
      %v1658 = vadd.f32 %v1283, %v1657
      %v1659 = vpop.f32.mrb[0].mxu0
      %v1660 = vadd.f32 %v1285, %v1659
      %1661 = vmatprep.mubr.bf16.mxu0 0
      %1662 = vmatmul.mubr.bf16.gmra.mrb[0].mxu0 %v565
      %v1663 = vpop.f32.mrb[0].mxu0
      %v1664 = vadd.f32 %v1289, %v1663
      %v1665 = vpop.f32.mrb[0].mxu0
      %v1666 = vadd.f32 %v1291, %v1665
      %v1667 = vpop.f32.mrb[0].mxu0
      %v1668 = vpop.f32.mrb[0].mxu0
      %v1669 = vadd.f32 %v1294, %v1668
      %1670 = vmatprep.mubr.bf16.mxu0 0
      %1671 = vmatmul.mubr.bf16.gmra.mrb[0].mxu0 %v566
      %v1672 = vpop.f32.mrb[0].mxu0
      %v1673 = vadd.f32 %v1298, %v1672
      %v1674 = vpop.f32.mrb[0].mxu0
      %v1675 = vadd.f32 %v1300, %v1674
      %v1676 = vpop.f32.mrb[0].mxu0
      %v1677 = vadd.f32 %v1302, %v1676
      %v1678 = vpop.f32.mrb[0].mxu0
      %v1679 = vadd.f32 %v1304, %v1678
      %1680 = vmatprep.mubr.bf16.mxu0 0
      %1681 = vmatmul.mubr.bf16.gmra.mrb[0].mxu0 %v567
      %v1682 = vpop.f32.mrb[0].mxu0
      %v1683 = vadd.f32 %v1308, %v1682
      %v1684 = vpop.f32.mrb[0].mxu0
      %v1685 = vadd.f32 %v1310, %v1684
      %v1686 = vpop.f32.mrb[0].mxu0
      %v1687 = vpop.f32.mrb[0].mxu0
      %v1688 = vadd.f32 %v1313, %v1687
      %1689 = vmatprep.mubr.bf16.mxu0 0
      %1690 = vmatmul.mubr.bf16.gmra.mrb[0].mxu0 %v568
      %v1691 = vpop.f32.mrb[0].mxu0
      %v1692 = vadd.f32 %v1317, %v1691
      %v1693 = vpop.f32.mrb[0].mxu0
      %v1694 = vadd.f32 %v1319, %v1693
      %v1695 = vpop.f32.mrb[0].mxu0
      %v1696 = vadd.f32 %v1321, %v1695
      %v1697 = vpop.f32.mrb[0].mxu0
      %v1698 = vadd.f32 %v1323, %v1697
      %1699 = vmatprep.mubr.bf16.mxu0 0
      %1700 = vmatmul.mubr.bf16.gmra.mrb[0].mxu0 %v569
      %v1701 = vpop.f32.mrb[0].mxu0
      %v1702 = vadd.f32 %v1327, %v1701
      %v1703 = vpop.f32.mrb[0].mxu0
      %v1704 = vadd.f32 %v1329, %v1703
      %v1705 = vpop.f32.mrb[0].mxu0
      %v1706 = vpop.f32.mrb[0].mxu0
      %v1707 = vadd.f32 %v1332, %v1706
      %1708 = vmatprep.mubr.bf16.mxu0 0
      %1709 = vmatmul.mubr.bf16.gmra.mrb[0].mxu0 %v570
      %v1710 = vpop.f32.mrb[0].mxu0
      %v1711 = vadd.f32 %v1336, %v1710
      %v1712 = vpop.f32.mrb[0].mxu0
      %v1713 = vadd.f32 %v1338, %v1712
      %v1714 = vpop.f32.mrb[0].mxu0
      %v1715 = vadd.f32 %v1340, %v1714
      %v1716 = vpop.f32.mrb[0].mxu0
      %v1717 = vadd.f32 %v1342, %v1716
      %1718 = vmatprep.mubr.bf16.mxu0 0
      %1719 = vmatmul.mubr.bf16.gmra.mrb[0].mxu0 %v571
      %v1720 = vpop.f32.mrb[0].mxu0
      %v1721 = vadd.f32 %v1346, %v1720
      %v1722 = vpop.f32.mrb[0].mxu0
      %v1723 = vadd.f32 %v1348, %v1722
      %v1724 = vpop.f32.mrb[0].mxu0
      %v1725 = vpop.f32.mrb[0].mxu0
      %v1726 = vadd.f32 %v1351, %v1725
      %1727 = vmatprep.mubr.bf16.mxu0 0
      %1728 = vmatmul.mubr.bf16.gmra.mrb[0].mxu0 %v616
      %v1729 = vpop.f32.mrb[0].mxu0
      %v1730 = vadd.f32 %v1355, %v1729
      %v1731 = vpop.f32.mrb[0].mxu0
      %v1732 = vadd.f32 %v1357, %v1731
      %v1733 = vpop.f32.mrb[0].mxu0
      %v1734 = vadd.f32 %v1359, %v1733
      %v1735 = vpop.f32.mrb[0].mxu0
      %v1736 = vadd.f32 %v1361, %v1735
      %1737 = vmatprep.mubr.bf16.mxu0 0
      %1738 = vmatmul.mubr.bf16.gmra.mrb[0].mxu0 %v617
      %v1739 = vpop.f32.mrb[0].mxu0
      %v1740 = vadd.f32 %v1365, %v1739
      %v1741 = vpop.f32.mrb[0].mxu0
      %v1742 = vadd.f32 %v1367, %v1741
      %v1743 = vpop.f32.mrb[0].mxu0
      %v1744 = vpop.f32.mrb[0].mxu0
      %v1745 = vadd.f32 %v1370, %v1744
      %1746 = vmatprep.mubr.bf16.mxu0 0
      %1747 = vmatmul.mubr.bf16.gmra.mrb[0].mxu0 %v628
      %v1748 = vpop.f32.mrb[0].mxu0
      %v1749 = vadd.f32 %v1374, %v1748
      %v1750 = vpop.f32.mrb[0].mxu0
      %v1751 = vadd.f32 %v1376, %v1750
      %v1752 = vpop.f32.mrb[0].mxu0
      %v1753 = vadd.f32 %v1378, %v1752
      %v1754 = vpop.f32.mrb[0].mxu0
      %v1755 = vadd.f32 %v1380, %v1754
      %1756 = vmatprep.mubr.bf16.mxu0 0
      %1757 = vmatmul.mubr.bf16.gmra.mrb[0].mxu0 %v629
      %v1758 = vpop.f32.mrb[0].mxu0
      %v1759 = vadd.f32 %v1384, %v1758
      %v1760 = vpop.f32.mrb[0].mxu0
      %v1761 = vadd.f32 %v1386, %v1760
      %v1762 = vpop.f32.mrb[0].mxu0
      %v1763 = vpop.f32.mrb[0].mxu0
      %v1764 = vadd.f32 %v1389, %v1763
      %1765 = vdwg.mxu0
      %1766 = vmatprep.subr.bf16.mxu0 0
      %1767 = vmatpush1.bf16.msra.mxu0 %v874
      %1768 = vmatprep.subr.bf16.mxu0 0
      %1769 = vmatpush1.bf16.msra.mxu0 %v877
      %1770 = vmatprep.subr.bf16.mxu0 0
      %1771 = vmatpush1.bf16.msra.mxu0 %v880
      %1772 = vmatprep.subr.bf16.mxu0 0
      %1773 = vmatpush1.bf16.msra.mxu0 %v883
      %1774 = vmatprep.subr.bf16.mxu0 0
      %1775 = vmatpush1.bf16.msra.mxu0 %v886
      %1776 = vmatprep.subr.bf16.mxu0 0
      %1777 = vmatpush1.bf16.msra.mxu0 %v889
      %1778 = vmatprep.subr.bf16.mxu0 0
      %1779 = vmatpush1.bf16.msra.mxu0 %v892
      %1780 = vmatprep.subr.bf16.mxu0 0
      %1781 = vmatpush1.bf16.msra.mxu0 %v895
      %1782 = vmatprep.subr.bf16.mxu0 0
      %1783 = vmatpush1.bf16.msra.mxu0 %v898
      %1784 = vmatprep.subr.bf16.mxu0 0
      %1785 = vmatpush1.bf16.msra.mxu0 %v901
      %1786 = vmatprep.subr.bf16.mxu0 0
      %1787 = vmatpush1.bf16.msra.mxu0 %v904
      %1788 = vmatprep.subr.bf16.mxu0 0
      %1789 = vmatpush1.bf16.msra.mxu0 %v907
      %1790 = vmatprep.subr.bf16.mxu0 0
      %1791 = vmatpush1.bf16.msra.mxu0 %v910
      %1792 = vmatprep.subr.bf16.mxu0 0
      %1793 = vmatpush1.bf16.msra.mxu0 %v913
      %1794 = vmatprep.subr.bf16.mxu0 0
      %1795 = vmatpush1.bf16.msra.mxu0 %v916
      %1796 = vmatprep.subr.bf16.mxu0 0
      %1797 = vmatpush1.bf16.msra.mxu0 %v919
      %1798 = vmatprep.mubr.bf16.mxu0 %v538
      %1799 = vmatmul.mubr.bf16.gmra.mrb[0].mxu0 %v536
      %v1800 = vpop.f32.mrb[0].mxu0
      %v1801 = vadd.f32 0.0, %v1800
      %v1802 = vpop.f32.mrb[0].mxu0
      %v1803 = vpop.f32.mrb[0].mxu0
      %v1804 = vadd.f32 0.0, %v1803
      %v1805 = vpop.f32.mrb[0].mxu0
      %1806 = vmatprep.mubr.bf16.mxu0 %v539
      %1807 = vmatmul.mubr.bf16.gmra.mrb[0].mxu0 %v537
      %v1808 = vpop.f32.mrb[0].mxu0
      %v1809 = vadd.f32 0.0, %v1808
      %v1810 = vpop.f32.mrb[0].mxu0
      %v1811 = vpop.f32.mrb[0].mxu0
      %v1812 = vadd.f32 0.0, %v1811
      %v1813 = vpop.f32.mrb[0].mxu0
      %1814 = vmatprep.mubr.bf16.mxu0 %v540
      %1815 = vmatmul.mubr.bf16.gmra.mrb[0].mxu0 %v538
      %v1816 = vpop.f32.mrb[0].mxu0
      %v1817 = vadd.f32 0.0, %v1816
      %v1818 = vpop.f32.mrb[0].mxu0
      %v1819 = vpop.f32.mrb[0].mxu0
      %v1820 = vadd.f32 0.0, %v1819
      %v1821 = vpop.f32.mrb[0].mxu0
      %1822 = vmatprep.mubr.bf16.mxu0 %v541
      %1823 = vmatmul.mubr.bf16.gmra.mrb[0].mxu0 %v539
      %v1824 = vpop.f32.mrb[0].mxu0
      %v1825 = vadd.f32 0.0, %v1824
      %v1826 = vpop.f32.mrb[0].mxu0
      %v1827 = vpop.f32.mrb[0].mxu0
      %v1828 = vadd.f32 0.0, %v1827
      %v1829 = vpop.f32.mrb[0].mxu0
      %1830 = vmatprep.mubr.bf16.mxu0 %v542
      %1831 = vmatmul.mubr.bf16.gmra.mrb[0].mxu0 %v540
      %v1832 = vpop.f32.mrb[0].mxu0
      %v1833 = vadd.f32 0.0, %v1832
      %v1834 = vpop.f32.mrb[0].mxu0
      %v1835 = vpop.f32.mrb[0].mxu0
      %v1836 = vadd.f32 0.0, %v1835
      %v1837 = vpop.f32.mrb[0].mxu0
      %1838 = vmatprep.mubr.bf16.mxu0 %v543
      %1839 = vmatmul.mubr.bf16.gmra.mrb[0].mxu0 %v541
      %v1840 = vpop.f32.mrb[0].mxu0
      %v1841 = vadd.f32 0.0, %v1840
      %v1842 = vpop.f32.mrb[0].mxu0
      %v1843 = vpop.f32.mrb[0].mxu0
      %v1844 = vadd.f32 0.0, %v1843
      %v1845 = vpop.f32.mrb[0].mxu0
      %1846 = vmatprep.mubr.bf16.mxu0 %v544
      %1847 = vmatmul.mubr.bf16.gmra.mrb[0].mxu0 %v542
      %v1848 = vpop.f32.mrb[0].mxu0
      %v1849 = vadd.f32 0.0, %v1848
      %v1850 = vpop.f32.mrb[0].mxu0
      %v1851 = vpop.f32.mrb[0].mxu0
      %v1852 = vadd.f32 0.0, %v1851
      %v1853 = vpop.f32.mrb[0].mxu0
      %1854 = vmatprep.mubr.bf16.mxu0 %v545
      %1855 = vmatmul.mubr.bf16.gmra.mrb[0].mxu0 %v543
      %v1856 = vpop.f32.mrb[0].mxu0
      %v1857 = vadd.f32 0.0, %v1856
      %v1858 = vpop.f32.mrb[0].mxu0
      %v1859 = vpop.f32.mrb[0].mxu0
      %v1860 = vadd.f32 0.0, %v1859
      %v1861 = vpop.f32.mrb[0].mxu0
      %1862 = vmatprep.mubr.bf16.mxu0 %v546
      %1863 = vmatmul.mubr.bf16.gmra.mrb[0].mxu0 %v544
      %v1864 = vpop.f32.mrb[0].mxu0
      %v1865 = vadd.f32 0.0, %v1864
      %v1866 = vpop.f32.mrb[0].mxu0
      %v1867 = vpop.f32.mrb[0].mxu0
      %v1868 = vadd.f32 0.0, %v1867
      %v1869 = vpop.f32.mrb[0].mxu0
      %1870 = vmatprep.mubr.bf16.mxu0 %v547
      %1871 = vmatmul.mubr.bf16.gmra.mrb[0].mxu0 %v545
      %v1872 = vpop.f32.mrb[0].mxu0
      %v1873 = vadd.f32 0.0, %v1872
      %v1874 = vpop.f32.mrb[0].mxu0
      %v1875 = vpop.f32.mrb[0].mxu0
      %v1876 = vadd.f32 0.0, %v1875
      %v1877 = vpop.f32.mrb[0].mxu0
      %1878 = vmatprep.mubr.bf16.mxu0 %v548
      %1879 = vmatmul.mubr.bf16.gmra.mrb[0].mxu0 %v546
      %v1880 = vpop.f32.mrb[0].mxu0
      %v1881 = vadd.f32 0.0, %v1880
      %v1882 = vpop.f32.mrb[0].mxu0
      %v1883 = vpop.f32.mrb[0].mxu0
      %v1884 = vadd.f32 0.0, %v1883
      %v1885 = vpop.f32.mrb[0].mxu0
      %1886 = vmatprep.mubr.bf16.mxu0 %v549
      %1887 = vmatmul.mubr.bf16.gmra.mrb[0].mxu0 %v547
      %v1888 = vpop.f32.mrb[0].mxu0
      %v1889 = vadd.f32 0.0, %v1888
      %v1890 = vpop.f32.mrb[0].mxu0
      %v1891 = vpop.f32.mrb[0].mxu0
      %v1892 = vadd.f32 0.0, %v1891
      %v1893 = vpop.f32.mrb[0].mxu0
      %1894 = vmatprep.mubr.bf16.mxu0 %v550
      %1895 = vmatmul.mubr.bf16.gmra.mrb[0].mxu0 %v548
      %v1896 = vpop.f32.mrb[0].mxu0
      %v1897 = vadd.f32 0.0, %v1896
      %v1898 = vpop.f32.mrb[0].mxu0
      %v1899 = vpop.f32.mrb[0].mxu0
      %v1900 = vadd.f32 0.0, %v1899
      %v1901 = vpop.f32.mrb[0].mxu0
      %1902 = vmatprep.mubr.bf16.mxu0 %v551
      %1903 = vmatmul.mubr.bf16.gmra.mrb[0].mxu0 %v549
      %v1904 = vpop.f32.mrb[0].mxu0
      %v1905 = vadd.f32 0.0, %v1904
      %v1906 = vpop.f32.mrb[0].mxu0
      %v1907 = vpop.f32.mrb[0].mxu0
      %v1908 = vadd.f32 0.0, %v1907
      %v1909 = vpop.f32.mrb[0].mxu0
      %1910 = vmatprep.mubr.bf16.mxu0 %v552
      %1911 = vmatmul.mubr.bf16.gmra.mrb[0].mxu0 %v550
      %v1912 = vpop.f32.mrb[0].mxu0
      %v1913 = vadd.f32 0.0, %v1912
      %v1914 = vpop.f32.mrb[0].mxu0
      %v1915 = vpop.f32.mrb[0].mxu0
      %v1916 = vadd.f32 0.0, %v1915
      %v1917 = vpop.f32.mrb[0].mxu0
      %1918 = vmatprep.mubr.bf16.mxu0 %v553
      %1919 = vmatmul.mubr.bf16.gmra.mrb[0].mxu0 %v551
      %v1920 = vpop.f32.mrb[0].mxu0
      %v1921 = vadd.f32 0.0, %v1920
      %v1922 = vpop.f32.mrb[0].mxu0
      %v1923 = vpop.f32.mrb[0].mxu0
      %v1924 = vadd.f32 0.0, %v1923
      %v1925 = vpop.f32.mrb[0].mxu0
      %1926 = vmatprep.mubr.bf16.mxu0 %v554
      %1927 = vmatmul.mubr.bf16.gmra.mrb[0].mxu0 %v552
      %v1928 = vpop.f32.mrb[0].mxu0
      %v1929 = vadd.f32 0.0, %v1928
      %v1930 = vpop.f32.mrb[0].mxu0
      %v1931 = vpop.f32.mrb[0].mxu0
      %v1932 = vadd.f32 0.0, %v1931
      %v1933 = vpop.f32.mrb[0].mxu0
      %1934 = vmatprep.mubr.bf16.mxu0 %v555
      %1935 = vmatmul.mubr.bf16.gmra.mrb[0].mxu0 %v553
      %v1936 = vpop.f32.mrb[0].mxu0
      %v1937 = vadd.f32 0.0, %v1936
      %v1938 = vpop.f32.mrb[0].mxu0
      %v1939 = vpop.f32.mrb[0].mxu0
      %v1940 = vadd.f32 0.0, %v1939
      %v1941 = vpop.f32.mrb[0].mxu0
      %1942 = vmatprep.mubr.bf16.mxu0 %v556
      %1943 = vmatmul.mubr.bf16.gmra.mrb[0].mxu0 %v554
      %v1944 = vpop.f32.mrb[0].mxu0
      %v1945 = vadd.f32 0.0, %v1944
      %v1946 = vpop.f32.mrb[0].mxu0
      %v1947 = vpop.f32.mrb[0].mxu0
      %v1948 = vadd.f32 0.0, %v1947
      %v1949 = vpop.f32.mrb[0].mxu0
      %1950 = vmatprep.mubr.bf16.mxu0 %v557
      %1951 = vmatmul.mubr.bf16.gmra.mrb[0].mxu0 %v555
      %v1952 = vpop.f32.mrb[0].mxu0
      %v1953 = vadd.f32 0.0, %v1952
      %v1954 = vpop.f32.mrb[0].mxu0
      %v1955 = vpop.f32.mrb[0].mxu0
      %v1956 = vadd.f32 0.0, %v1955
      %v1957 = vpop.f32.mrb[0].mxu0
      %1958 = vmatprep.mubr.bf16.mxu0 %v558
      %1959 = vmatmul.mubr.bf16.gmra.mrb[0].mxu0 %v556
      %v1960 = vpop.f32.mrb[0].mxu0
      %v1961 = vadd.f32 0.0, %v1960
      %v1962 = vpop.f32.mrb[0].mxu0
      %v1963 = vpop.f32.mrb[0].mxu0
      %v1964 = vadd.f32 0.0, %v1963
      %v1965 = vpop.f32.mrb[0].mxu0
      %1966 = vmatprep.mubr.bf16.mxu0 %v559
      %1967 = vmatmul.mubr.bf16.gmra.mrb[0].mxu0 %v557
      %v1968 = vpop.f32.mrb[0].mxu0
      %v1969 = vadd.f32 0.0, %v1968
      %v1970 = vpop.f32.mrb[0].mxu0
      %v1971 = vpop.f32.mrb[0].mxu0
      %v1972 = vadd.f32 0.0, %v1971
      %v1973 = vpop.f32.mrb[0].mxu0
      %1974 = vmatprep.mubr.bf16.mxu0 %v560
      %1975 = vmatmul.mubr.bf16.gmra.mrb[0].mxu0 %v558
      %v1976 = vpop.f32.mrb[0].mxu0
      %v1977 = vadd.f32 0.0, %v1976
      %v1978 = vpop.f32.mrb[0].mxu0
      %v1979 = vpop.f32.mrb[0].mxu0
      %v1980 = vadd.f32 0.0, %v1979
      %v1981 = vpop.f32.mrb[0].mxu0
      %1982 = vmatprep.mubr.bf16.mxu0 %v561
      %1983 = vmatmul.mubr.bf16.gmra.mrb[0].mxu0 %v559
      %v1984 = vpop.f32.mrb[0].mxu0
      %v1985 = vadd.f32 0.0, %v1984
      %v1986 = vpop.f32.mrb[0].mxu0
      %v1987 = vpop.f32.mrb[0].mxu0
      %v1988 = vadd.f32 0.0, %v1987
      %v1989 = vpop.f32.mrb[0].mxu0
      %1990 = vmatprep.mubr.bf16.mxu0 %v562
      %1991 = vmatmul.mubr.bf16.gmra.mrb[0].mxu0 %v560
      %v1992 = vpop.f32.mrb[0].mxu0
      %v1993 = vadd.f32 0.0, %v1992
      %v1994 = vpop.f32.mrb[0].mxu0
      %v1995 = vpop.f32.mrb[0].mxu0
      %v1996 = vadd.f32 0.0, %v1995
      %v1997 = vpop.f32.mrb[0].mxu0
      %1998 = vmatprep.mubr.bf16.mxu0 %v563
      %1999 = vmatmul.mubr.bf16.gmra.mrb[0].mxu0 %v561
      %v2000 = vpop.f32.mrb[0].mxu0
      %v2001 = vadd.f32 0.0, %v2000
      %v2002 = vpop.f32.mrb[0].mxu0
      %v2003 = vpop.f32.mrb[0].mxu0
      %v2004 = vadd.f32 0.0, %v2003
      %v2005 = vpop.f32.mrb[0].mxu0
      %2006 = vmatprep.mubr.bf16.mxu0 %v564
      %2007 = vmatmul.mubr.bf16.gmra.mrb[0].mxu0 %v562
      %v2008 = vpop.f32.mrb[0].mxu0
      %v2009 = vadd.f32 0.0, %v2008
      %v2010 = vpop.f32.mrb[0].mxu0
      %v2011 = vpop.f32.mrb[0].mxu0
      %v2012 = vadd.f32 0.0, %v2011
      %v2013 = vpop.f32.mrb[0].mxu0
      %2014 = vmatprep.mubr.bf16.mxu0 %v565
      %2015 = vmatmul.mubr.bf16.gmra.mrb[0].mxu0 %v563
      %v2016 = vpop.f32.mrb[0].mxu0
      %v2017 = vadd.f32 0.0, %v2016
      %v2018 = vpop.f32.mrb[0].mxu0
      %v2019 = vpop.f32.mrb[0].mxu0
      %v2020 = vadd.f32 0.0, %v2019
      %v2021 = vpop.f32.mrb[0].mxu0
      %2022 = vmatprep.mubr.bf16.mxu0 %v566
      %2023 = vmatmul.mubr.bf16.gmra.mrb[0].mxu0 %v564
      %v2024 = vpop.f32.mrb[0].mxu0
      %v2025 = vadd.f32 0.0, %v2024
      %v2026 = vpop.f32.mrb[0].mxu0
      %v2027 = vpop.f32.mrb[0].mxu0
      %v2028 = vadd.f32 0.0, %v2027
      %v2029 = vpop.f32.mrb[0].mxu0
      %2030 = vmatprep.mubr.bf16.mxu0 %v567
      %2031 = vmatmul.mubr.bf16.gmra.mrb[0].mxu0 %v565
      %v2032 = vpop.f32.mrb[0].mxu0
      %v2033 = vadd.f32 0.0, %v2032
      %v2034 = vpop.f32.mrb[0].mxu0
      %v2035 = vpop.f32.mrb[0].mxu0
      %v2036 = vadd.f32 0.0, %v2035
      %v2037 = vpop.f32.mrb[0].mxu0
      %2038 = vmatprep.mubr.bf16.mxu0 %v568
      %2039 = vmatmul.mubr.bf16.gmra.mrb[0].mxu0 %v566
      %v2040 = vpop.f32.mrb[0].mxu0
      %v2041 = vadd.f32 0.0, %v2040
      %v2042 = vpop.f32.mrb[0].mxu0
      %v2043 = vpop.f32.mrb[0].mxu0
      %v2044 = vadd.f32 0.0, %v2043
      %v2045 = vpop.f32.mrb[0].mxu0
      %2046 = vmatprep.mubr.bf16.mxu0 %v569
      %2047 = vmatmul.mubr.bf16.gmra.mrb[0].mxu0 %v567
      %v2048 = vpop.f32.mrb[0].mxu0
      %v2049 = vadd.f32 0.0, %v2048
      %v2050 = vpop.f32.mrb[0].mxu0
      %v2051 = vpop.f32.mrb[0].mxu0
      %v2052 = vadd.f32 0.0, %v2051
      %v2053 = vpop.f32.mrb[0].mxu0
      %2054 = vmatprep.mubr.bf16.mxu0 %v570
      %2055 = vmatmul.mubr.bf16.gmra.mrb[0].mxu0 %v568
      %v2056 = vpop.f32.mrb[0].mxu0
      %v2057 = vadd.f32 0.0, %v2056
      %v2058 = vpop.f32.mrb[0].mxu0
      %v2059 = vpop.f32.mrb[0].mxu0
      %v2060 = vadd.f32 0.0, %v2059
      %v2061 = vpop.f32.mrb[0].mxu0
      %2062 = vmatprep.mubr.bf16.mxu0 %v571
      %2063 = vmatmul.mubr.bf16.gmra.mrb[0].mxu0 %v569
      %v2064 = vpop.f32.mrb[0].mxu0
      %v2065 = vadd.f32 0.0, %v2064
      %v2066 = vpop.f32.mrb[0].mxu0
      %v2067 = vpop.f32.mrb[0].mxu0
      %v2068 = vadd.f32 0.0, %v2067
      %v2069 = vpop.f32.mrb[0].mxu0
      %2070 = vmatprep.mubr.bf16.mxu0 %v616
      %2071 = vmatmul.mubr.bf16.gmra.mrb[0].mxu0 %v570
      %v2072 = vpop.f32.mrb[0].mxu0
      %v2073 = vadd.f32 0.0, %v2072
      %v2074 = vpop.f32.mrb[0].mxu0
      %v2075 = vpop.f32.mrb[0].mxu0
      %v2076 = vadd.f32 0.0, %v2075
      %v2077 = vpop.f32.mrb[0].mxu0
      %2078 = vmatprep.mubr.bf16.mxu0 %v617
      %2079 = vmatmul.mubr.bf16.gmra.mrb[0].mxu0 %v571
      %v2080 = vpop.f32.mrb[0].mxu0
      %v2081 = vadd.f32 0.0, %v2080
      %v2082 = vpop.f32.mrb[0].mxu0
      %v2083 = vpop.f32.mrb[0].mxu0
      %v2084 = vadd.f32 0.0, %v2083
      %v2085 = vpop.f32.mrb[0].mxu0
      %2086 = vdwg.mxu0
      %2087 = vmatprep.subr.bf16.mxu0 0
      %2088 = vmatpush1.bf16.msra.mxu0 %v922
      %2089 = vmatprep.subr.bf16.mxu0 0
      %2090 = vmatpush1.bf16.msra.mxu0 %v925
      %2091 = vmatprep.subr.bf16.mxu0 0
      %2092 = vmatpush1.bf16.msra.mxu0 %v928
      %2093 = vmatprep.subr.bf16.mxu0 0
      %2094 = vmatpush1.bf16.msra.mxu0 %v931
      %2095 = vmatprep.subr.bf16.mxu0 0
      %2096 = vmatpush1.bf16.msra.mxu0 %v934
      %2097 = vmatprep.subr.bf16.mxu0 0
      %2098 = vmatpush1.bf16.msra.mxu0 %v937
      %2099 = vmatprep.subr.bf16.mxu0 0
      %2100 = vmatpush1.bf16.msra.mxu0 %v940
      %2101 = vmatprep.subr.bf16.mxu0 0
      %2102 = vmatpush1.bf16.msra.mxu0 %v943
      %2103 = vmatprep.subr.bf16.mxu0 0
      %2104 = vmatpush1.bf16.msra.mxu0 0
      %2105 = vmatprep.subr.bf16.mxu0 0
      %2106 = vmatpush1.bf16.msra.mxu0 0
      %2107 = vmatprep.subr.bf16.mxu0 0
      %2108 = vmatpush1.bf16.msra.mxu0 0
      %2109 = vmatprep.subr.bf16.mxu0 0
      %2110 = vmatpush1.bf16.msra.mxu0 0
      %2111 = vmatprep.subr.bf16.mxu0 0
      %2112 = vmatpush1.bf16.msra.mxu0 0
      %2113 = vmatprep.subr.bf16.mxu0 0
      %2114 = vmatpush1.bf16.msra.mxu0 0
      %2115 = vmatprep.subr.bf16.mxu0 0
      %2116 = vmatpush1.bf16.msra.mxu0 0
      %2117 = vmatprep.subr.bf16.mxu0 0
      %2118 = vmatpush1.bf16.msra.mxu0 0
      %2119 = vmatprep.mubr.bf16.mxu0 0
      %2120 = vmatmul.mubr.bf16.gmra.mrb[0].mxu0 %v540
      %v2121 = vpop.f32.mrb[0].mxu0
      %v2122 = vadd.f32 %v1801, %v2121
      %v2123 = vpop.f32.mrb[0].mxu0
      %v2124 = vpop.f32.mrb[0].mxu0
      %v2125 = vadd.f32 %v1804, %v2124
      %v2126 = vpop.f32.mrb[0].mxu0
      %2127 = vmatprep.mubr.bf16.mxu0 0
      %2128 = vmatmul.mubr.bf16.gmra.mrb[0].mxu0 %v541
      %v2129 = vpop.f32.mrb[0].mxu0
      %v2130 = vadd.f32 %v1809, %v2129
      %v2131 = vpop.f32.mrb[0].mxu0
      %v2132 = vpop.f32.mrb[0].mxu0
      %v2133 = vadd.f32 %v1812, %v2132
      %v2134 = vpop.f32.mrb[0].mxu0
      %2135 = vmatprep.mubr.bf16.mxu0 0
      %2136 = vmatmul.mubr.bf16.gmra.mrb[0].mxu0 %v542
      %v2137 = vpop.f32.mrb[0].mxu0
      %v2138 = vadd.f32 %v1817, %v2137
      %v2139 = vpop.f32.mrb[0].mxu0
      %v2140 = vpop.f32.mrb[0].mxu0
      %v2141 = vadd.f32 %v1820, %v2140
      %v2142 = vpop.f32.mrb[0].mxu0
      %2143 = vmatprep.mubr.bf16.mxu0 0
      %2144 = vmatmul.mubr.bf16.gmra.mrb[0].mxu0 %v543
      %v2145 = vpop.f32.mrb[0].mxu0
      %v2146 = vadd.f32 %v1825, %v2145
      %v2147 = vpop.f32.mrb[0].mxu0
      %v2148 = vpop.f32.mrb[0].mxu0
      %v2149 = vadd.f32 %v1828, %v2148
      %v2150 = vpop.f32.mrb[0].mxu0
      %2151 = vmatprep.mubr.bf16.mxu0 0
      %2152 = vmatmul.mubr.bf16.gmra.mrb[0].mxu0 %v544
      %v2153 = vpop.f32.mrb[0].mxu0
      %v2154 = vadd.f32 %v1833, %v2153
      %v2155 = vpop.f32.mrb[0].mxu0
      %v2156 = vpop.f32.mrb[0].mxu0
      %v2157 = vadd.f32 %v1836, %v2156
      %v2158 = vpop.f32.mrb[0].mxu0
      %2159 = vmatprep.mubr.bf16.mxu0 0
      %2160 = vmatmul.mubr.bf16.gmra.mrb[0].mxu0 %v545
      %v2161 = vpop.f32.mrb[0].mxu0
      %v2162 = vadd.f32 %v1841, %v2161
      %v2163 = vpop.f32.mrb[0].mxu0
      %v2164 = vpop.f32.mrb[0].mxu0
      %v2165 = vadd.f32 %v1844, %v2164
      %v2166 = vpop.f32.mrb[0].mxu0
      %2167 = vmatprep.mubr.bf16.mxu0 0
      %2168 = vmatmul.mubr.bf16.gmra.mrb[0].mxu0 %v546
      %v2169 = vpop.f32.mrb[0].mxu0
      %v2170 = vadd.f32 %v1849, %v2169
      %v2171 = vpop.f32.mrb[0].mxu0
      %v2172 = vpop.f32.mrb[0].mxu0
      %v2173 = vadd.f32 %v1852, %v2172
      %v2174 = vpop.f32.mrb[0].mxu0
      %2175 = vmatprep.mubr.bf16.mxu0 0
      %2176 = vmatmul.mubr.bf16.gmra.mrb[0].mxu0 %v547
      %v2177 = vpop.f32.mrb[0].mxu0
      %v2178 = vadd.f32 %v1857, %v2177
      %v2179 = vpop.f32.mrb[0].mxu0
      %v2180 = vpop.f32.mrb[0].mxu0
      %v2181 = vadd.f32 %v1860, %v2180
      %v2182 = vpop.f32.mrb[0].mxu0
      %2183 = vmatprep.mubr.bf16.mxu0 0
      %2184 = vmatmul.mubr.bf16.gmra.mrb[0].mxu0 %v548
      %v2185 = vpop.f32.mrb[0].mxu0
      %v2186 = vadd.f32 %v1865, %v2185
      %v2187 = vpop.f32.mrb[0].mxu0
      %v2188 = vpop.f32.mrb[0].mxu0
      %v2189 = vadd.f32 %v1868, %v2188
      %v2190 = vpop.f32.mrb[0].mxu0
      %2191 = vmatprep.mubr.bf16.mxu0 0
      %2192 = vmatmul.mubr.bf16.gmra.mrb[0].mxu0 %v549
      %v2193 = vpop.f32.mrb[0].mxu0
      %v2194 = vadd.f32 %v1873, %v2193
      %v2195 = vpop.f32.mrb[0].mxu0
      %v2196 = vpop.f32.mrb[0].mxu0
      %v2197 = vadd.f32 %v1876, %v2196
      %v2198 = vpop.f32.mrb[0].mxu0
      %2199 = vmatprep.mubr.bf16.mxu0 0
      %2200 = vmatmul.mubr.bf16.gmra.mrb[0].mxu0 %v550
      %v2201 = vpop.f32.mrb[0].mxu0
      %v2202 = vadd.f32 %v1881, %v2201
      %v2203 = vpop.f32.mrb[0].mxu0
      %v2204 = vpop.f32.mrb[0].mxu0
      %v2205 = vadd.f32 %v1884, %v2204
      %v2206 = vpop.f32.mrb[0].mxu0
      %2207 = vmatprep.mubr.bf16.mxu0 0
      %2208 = vmatmul.mubr.bf16.gmra.mrb[0].mxu0 %v551
      %v2209 = vpop.f32.mrb[0].mxu0
      %v2210 = vadd.f32 %v1889, %v2209
      %v2211 = vpop.f32.mrb[0].mxu0
      %v2212 = vpop.f32.mrb[0].mxu0
      %v2213 = vadd.f32 %v1892, %v2212
      %v2214 = vpop.f32.mrb[0].mxu0
      %2215 = vmatprep.mubr.bf16.mxu0 0
      %2216 = vmatmul.mubr.bf16.gmra.mrb[0].mxu0 %v552
      %v2217 = vpop.f32.mrb[0].mxu0
      %v2218 = vadd.f32 %v1897, %v2217
      %v2219 = vpop.f32.mrb[0].mxu0
      %v2220 = vpop.f32.mrb[0].mxu0
      %v2221 = vadd.f32 %v1900, %v2220
      %v2222 = vpop.f32.mrb[0].mxu0
      %2223 = vmatprep.mubr.bf16.mxu0 0
      %2224 = vmatmul.mubr.bf16.gmra.mrb[0].mxu0 %v553
      %v2225 = vpop.f32.mrb[0].mxu0
      %v2226 = vadd.f32 %v1905, %v2225
      %v2227 = vpop.f32.mrb[0].mxu0
      %v2228 = vpop.f32.mrb[0].mxu0
      %v2229 = vadd.f32 %v1908, %v2228
      %v2230 = vpop.f32.mrb[0].mxu0
      %2231 = vmatprep.mubr.bf16.mxu0 0
      %2232 = vmatmul.mubr.bf16.gmra.mrb[0].mxu0 %v554
      %v2233 = vpop.f32.mrb[0].mxu0
      %v2234 = vadd.f32 %v1913, %v2233
      %v2235 = vpop.f32.mrb[0].mxu0
      %v2236 = vpop.f32.mrb[0].mxu0
      %v2237 = vadd.f32 %v1916, %v2236
      %v2238 = vpop.f32.mrb[0].mxu0
      %2239 = vmatprep.mubr.bf16.mxu0 0
      %2240 = vmatmul.mubr.bf16.gmra.mrb[0].mxu0 %v555
      %v2241 = vpop.f32.mrb[0].mxu0
      %v2242 = vadd.f32 %v1921, %v2241
      %v2243 = vpop.f32.mrb[0].mxu0
      %v2244 = vpop.f32.mrb[0].mxu0
      %v2245 = vadd.f32 %v1924, %v2244
      %v2246 = vpop.f32.mrb[0].mxu0
      %2247 = vmatprep.mubr.bf16.mxu0 0
      %2248 = vmatmul.mubr.bf16.gmra.mrb[0].mxu0 %v556
      %v2249 = vpop.f32.mrb[0].mxu0
      %v2250 = vadd.f32 %v1929, %v2249
      %v2251 = vpop.f32.mrb[0].mxu0
      %v2252 = vpop.f32.mrb[0].mxu0
      %v2253 = vadd.f32 %v1932, %v2252
      %v2254 = vpop.f32.mrb[0].mxu0
      %2255 = vmatprep.mubr.bf16.mxu0 0
      %2256 = vmatmul.mubr.bf16.gmra.mrb[0].mxu0 %v557
      %v2257 = vpop.f32.mrb[0].mxu0
      %v2258 = vadd.f32 %v1937, %v2257
      %v2259 = vpop.f32.mrb[0].mxu0
      %v2260 = vpop.f32.mrb[0].mxu0
      %v2261 = vadd.f32 %v1940, %v2260
      %v2262 = vpop.f32.mrb[0].mxu0
      %2263 = vmatprep.mubr.bf16.mxu0 0
      %2264 = vmatmul.mubr.bf16.gmra.mrb[0].mxu0 %v558
      %v2265 = vpop.f32.mrb[0].mxu0
      %v2266 = vadd.f32 %v1945, %v2265
      %v2267 = vpop.f32.mrb[0].mxu0
      %v2268 = vpop.f32.mrb[0].mxu0
      %v2269 = vadd.f32 %v1948, %v2268
      %v2270 = vpop.f32.mrb[0].mxu0
      %2271 = vmatprep.mubr.bf16.mxu0 0
      %2272 = vmatmul.mubr.bf16.gmra.mrb[0].mxu0 %v559
      %v2273 = vpop.f32.mrb[0].mxu0
      %v2274 = vadd.f32 %v1953, %v2273
      %v2275 = vpop.f32.mrb[0].mxu0
      %v2276 = vpop.f32.mrb[0].mxu0
      %v2277 = vadd.f32 %v1956, %v2276
      %v2278 = vpop.f32.mrb[0].mxu0
      %2279 = vmatprep.mubr.bf16.mxu0 0
      %2280 = vmatmul.mubr.bf16.gmra.mrb[0].mxu0 %v560
      %v2281 = vpop.f32.mrb[0].mxu0
      %v2282 = vadd.f32 %v1961, %v2281
      %v2283 = vpop.f32.mrb[0].mxu0
      %v2284 = vpop.f32.mrb[0].mxu0
      %v2285 = vadd.f32 %v1964, %v2284
      %v2286 = vpop.f32.mrb[0].mxu0
      %2287 = vmatprep.mubr.bf16.mxu0 0
      %2288 = vmatmul.mubr.bf16.gmra.mrb[0].mxu0 %v561
      %v2289 = vpop.f32.mrb[0].mxu0
      %v2290 = vadd.f32 %v1969, %v2289
      %v2291 = vpop.f32.mrb[0].mxu0
      %v2292 = vpop.f32.mrb[0].mxu0
      %v2293 = vadd.f32 %v1972, %v2292
      %v2294 = vpop.f32.mrb[0].mxu0
      %2295 = vmatprep.mubr.bf16.mxu0 0
      %2296 = vmatmul.mubr.bf16.gmra.mrb[0].mxu0 %v562
      %v2297 = vpop.f32.mrb[0].mxu0
      %v2298 = vadd.f32 %v1977, %v2297
      %v2299 = vpop.f32.mrb[0].mxu0
      %v2300 = vpop.f32.mrb[0].mxu0
      %v2301 = vadd.f32 %v1980, %v2300
      %v2302 = vpop.f32.mrb[0].mxu0
      %2303 = vmatprep.mubr.bf16.mxu0 0
      %2304 = vmatmul.mubr.bf16.gmra.mrb[0].mxu0 %v563
      %v2305 = vpop.f32.mrb[0].mxu0
      %v2306 = vadd.f32 %v1985, %v2305
      %v2307 = vpop.f32.mrb[0].mxu0
      %v2308 = vpop.f32.mrb[0].mxu0
      %v2309 = vadd.f32 %v1988, %v2308
      %v2310 = vpop.f32.mrb[0].mxu0
      %2311 = vmatprep.mubr.bf16.mxu0 0
      %2312 = vmatmul.mubr.bf16.gmra.mrb[0].mxu0 %v564
      %v2313 = vpop.f32.mrb[0].mxu0
      %v2314 = vadd.f32 %v1993, %v2313
      %v2315 = vpop.f32.mrb[0].mxu0
      %v2316 = vpop.f32.mrb[0].mxu0
      %v2317 = vadd.f32 %v1996, %v2316
      %v2318 = vpop.f32.mrb[0].mxu0
      %2319 = vmatprep.mubr.bf16.mxu0 0
      %2320 = vmatmul.mubr.bf16.gmra.mrb[0].mxu0 %v565
      %v2321 = vpop.f32.mrb[0].mxu0
      %v2322 = vadd.f32 %v2001, %v2321
      %v2323 = vpop.f32.mrb[0].mxu0
      %v2324 = vpop.f32.mrb[0].mxu0
      %v2325 = vadd.f32 %v2004, %v2324
      %v2326 = vpop.f32.mrb[0].mxu0
      %2327 = vmatprep.mubr.bf16.mxu0 0
      %2328 = vmatmul.mubr.bf16.gmra.mrb[0].mxu0 %v566
      %v2329 = vpop.f32.mrb[0].mxu0
      %v2330 = vadd.f32 %v2009, %v2329
      %v2331 = vpop.f32.mrb[0].mxu0
      %v2332 = vpop.f32.mrb[0].mxu0
      %v2333 = vadd.f32 %v2012, %v2332
      %v2334 = vpop.f32.mrb[0].mxu0
      %2335 = vmatprep.mubr.bf16.mxu0 0
      %2336 = vmatmul.mubr.bf16.gmra.mrb[0].mxu0 %v567
      %v2337 = vpop.f32.mrb[0].mxu0
      %v2338 = vadd.f32 %v2017, %v2337
      %v2339 = vpop.f32.mrb[0].mxu0
      %v2340 = vpop.f32.mrb[0].mxu0
      %v2341 = vadd.f32 %v2020, %v2340
      %v2342 = vpop.f32.mrb[0].mxu0
      %2343 = vmatprep.mubr.bf16.mxu0 0
      %2344 = vmatmul.mubr.bf16.gmra.mrb[0].mxu0 %v568
      %v2345 = vpop.f32.mrb[0].mxu0
      %v2346 = vadd.f32 %v2025, %v2345
      %v2347 = vpop.f32.mrb[0].mxu0
      %v2348 = vpop.f32.mrb[0].mxu0
      %v2349 = vadd.f32 %v2028, %v2348
      %v2350 = vpop.f32.mrb[0].mxu0
      %2351 = vmatprep.mubr.bf16.mxu0 0
      %2352 = vmatmul.mubr.bf16.gmra.mrb[0].mxu0 %v569
      %v2353 = vpop.f32.mrb[0].mxu0
      %v2354 = vadd.f32 %v2033, %v2353
      %v2355 = vpop.f32.mrb[0].mxu0
      %v2356 = vpop.f32.mrb[0].mxu0
      %v2357 = vadd.f32 %v2036, %v2356
      %v2358 = vpop.f32.mrb[0].mxu0
      %2359 = vmatprep.mubr.bf16.mxu0 0
      %2360 = vmatmul.mubr.bf16.gmra.mrb[0].mxu0 %v570
      %v2361 = vpop.f32.mrb[0].mxu0
      %v2362 = vadd.f32 %v2041, %v2361
      %v2363 = vpop.f32.mrb[0].mxu0
      %v2364 = vpop.f32.mrb[0].mxu0
      %v2365 = vadd.f32 %v2044, %v2364
      %v2366 = vpop.f32.mrb[0].mxu0
      %2367 = vmatprep.mubr.bf16.mxu0 0
      %2368 = vmatmul.mubr.bf16.gmra.mrb[0].mxu0 %v571
      %v2369 = vpop.f32.mrb[0].mxu0
      %v2370 = vadd.f32 %v2049, %v2369
      %v2371 = vpop.f32.mrb[0].mxu0
      %v2372 = vpop.f32.mrb[0].mxu0
      %v2373 = vadd.f32 %v2052, %v2372
      %v2374 = vpop.f32.mrb[0].mxu0
      %2375 = vmatprep.mubr.bf16.mxu0 0
      %2376 = vmatmul.mubr.bf16.gmra.mrb[0].mxu0 %v616
      %v2377 = vpop.f32.mrb[0].mxu0
      %v2378 = vadd.f32 %v2057, %v2377
      %v2379 = vpop.f32.mrb[0].mxu0
      %v2380 = vpop.f32.mrb[0].mxu0
      %v2381 = vadd.f32 %v2060, %v2380
      %v2382 = vpop.f32.mrb[0].mxu0
      %2383 = vmatprep.mubr.bf16.mxu0 0
      %2384 = vmatmul.mubr.bf16.gmra.mrb[0].mxu0 %v617
      %v2385 = vpop.f32.mrb[0].mxu0
      %v2386 = vadd.f32 %v2065, %v2385
      %v2387 = vpop.f32.mrb[0].mxu0
      %v2388 = vpop.f32.mrb[0].mxu0
      %v2389 = vadd.f32 %v2068, %v2388
      %v2390 = vpop.f32.mrb[0].mxu0
      %2391 = vmatprep.mubr.bf16.mxu0 0
      %2392 = vmatmul.mubr.bf16.gmra.mrb[0].mxu0 %v628
      %v2393 = vpop.f32.mrb[0].mxu0
      %v2394 = vadd.f32 %v2073, %v2393
      %v2395 = vpop.f32.mrb[0].mxu0
      %v2396 = vpop.f32.mrb[0].mxu0
      %v2397 = vadd.f32 %v2076, %v2396
      %v2398 = vpop.f32.mrb[0].mxu0
      %2399 = vmatprep.mubr.bf16.mxu0 0
      %2400 = vmatmul.mubr.bf16.gmra.mrb[0].mxu0 %v629
      %v2401 = vpop.f32.mrb[0].mxu0
      %v2402 = vadd.f32 %v2081, %v2401
      %v2403 = vpop.f32.mrb[0].mxu0
      %v2404 = vpop.f32.mrb[0].mxu0
      %v2405 = vadd.f32 %v2084, %v2404
      %v2406 = vpop.f32.mrb[0].mxu0
      %2407 = vdwg.mxu0
      %vm2480 = vcmask 1046528
      %v2481 = vrot.slane %v1428, 1
      %v2482 = vrot.slane %v1432, 1
      %v2483 = vsel %vm2480, %v2481, %v2482
      %v2484 = vrot.slane %v1438, 1
      %v2485 = vsel %vm2480, %v2482, %v2484
      %v2486 = vrot.slane %v1441, 1
      %v2487 = vsel %vm2480, %v2484, %v2486
      %v2488 = vrot.slane %v1447, 1
      %v2489 = vrot.slane %v1451, 1
      %v2490 = vsel %vm2480, %v2488, %v2489
      %v2491 = vrot.slane %v1457, 1
      %v2492 = vsel %vm2480, %v2489, %v2491
      %v2493 = vrot.slane %v1460, 1
      %v2494 = vsel %vm2480, %v2491, %v2493
      %v2495 = vrot.slane %v1466, 1
      %v2496 = vrot.slane %v1470, 1
      %v2497 = vsel %vm2480, %v2495, %v2496
      %v2498 = vrot.slane %v1476, 1
      %v2499 = vsel %vm2480, %v2496, %v2498
      %v2500 = vrot.slane %v1479, 1
      %v2501 = vsel %vm2480, %v2498, %v2500
      %v2502 = vrot.slane %v1485, 1
      %v2503 = vrot.slane %v1489, 1
      %v2504 = vsel %vm2480, %v2502, %v2503
      %v2505 = vrot.slane %v1495, 1
      %v2506 = vsel %vm2480, %v2503, %v2505
      %v2507 = vrot.slane %v1498, 1
      %v2508 = vsel %vm2480, %v2505, %v2507
      %v2509 = vrot.slane %v1504, 1
      %v2510 = vrot.slane %v1508, 1
      %v2511 = vsel %vm2480, %v2509, %v2510
      %v2512 = vrot.slane %v1514, 1
      %v2513 = vsel %vm2480, %v2510, %v2512
      %v2514 = vrot.slane %v1517, 1
      %v2515 = vsel %vm2480, %v2512, %v2514
      %v2516 = vrot.slane %v1523, 1
      %v2517 = vrot.slane %v1527, 1
      %v2518 = vsel %vm2480, %v2516, %v2517
      %v2519 = vrot.slane %v1533, 1
      %v2520 = vsel %vm2480, %v2517, %v2519
      %v2521 = vrot.slane %v1536, 1
      %v2522 = vsel %vm2480, %v2519, %v2521
      %v2523 = vrot.slane %v1542, 1
      %v2524 = vrot.slane %v1546, 1
      %v2525 = vsel %vm2480, %v2523, %v2524
      %v2526 = vrot.slane %v1552, 1
      %v2527 = vsel %vm2480, %v2524, %v2526
      %v2528 = vrot.slane %v1555, 1
      %v2529 = vsel %vm2480, %v2526, %v2528
      %v2530 = vrot.slane %v1561, 1
      %v2531 = vrot.slane %v1565, 1
      %v2532 = vsel %vm2480, %v2530, %v2531
      %v2533 = vrot.slane %v1571, 1
      %v2534 = vsel %vm2480, %v2531, %v2533
      %v2535 = vrot.slane %v1574, 1
      %v2536 = vsel %vm2480, %v2533, %v2535
      %v2537 = vrot.slane %v1580, 1
      %v2538 = vrot.slane %v1584, 1
      %v2539 = vsel %vm2480, %v2537, %v2538
      %v2540 = vrot.slane %v1590, 1
      %v2541 = vsel %vm2480, %v2538, %v2540
      %v2542 = vrot.slane %v1593, 1
      %v2543 = vsel %vm2480, %v2540, %v2542
      %v2544 = vrot.slane %v1599, 1
      %v2545 = vrot.slane %v1603, 1
      %v2546 = vsel %vm2480, %v2544, %v2545
      %v2547 = vrot.slane %v1609, 1
      %v2548 = vsel %vm2480, %v2545, %v2547
      %v2549 = vrot.slane %v1612, 1
      %v2550 = vsel %vm2480, %v2547, %v2549
      %v2551 = vrot.slane %v1618, 1
      %v2552 = vrot.slane %v1622, 1
      %v2553 = vsel %vm2480, %v2551, %v2552
      %v2554 = vrot.slane %v1628, 1
      %v2555 = vsel %vm2480, %v2552, %v2554
      %v2556 = vrot.slane %v1631, 1
      %v2557 = vsel %vm2480, %v2554, %v2556
      %v2558 = vrot.slane %v1637, 1
      %v2559 = vrot.slane %v1641, 1
      %v2560 = vsel %vm2480, %v2558, %v2559
      %v2561 = vrot.slane %v1647, 1
      %v2562 = vsel %vm2480, %v2559, %v2561
      %v2563 = vrot.slane %v1650, 1
      %v2564 = vsel %vm2480, %v2561, %v2563
      %v2565 = vrot.slane %v1656, 1
      %v2566 = vrot.slane %v1660, 1
      %v2567 = vsel %vm2480, %v2565, %v2566
      %v2568 = vrot.slane %v1666, 1
      %v2569 = vsel %vm2480, %v2566, %v2568
      %v2570 = vrot.slane %v1669, 1
      %v2571 = vsel %vm2480, %v2568, %v2570
      %v2572 = vrot.slane %v1675, 1
      %v2573 = vrot.slane %v1679, 1
      %v2574 = vsel %vm2480, %v2572, %v2573
      %v2575 = vrot.slane %v1685, 1
      %v2576 = vsel %vm2480, %v2573, %v2575
      %v2577 = vrot.slane %v1688, 1
      %v2578 = vsel %vm2480, %v2575, %v2577
      %v2579 = vrot.slane %v1694, 1
      %v2580 = vrot.slane %v1698, 1
      %v2581 = vsel %vm2480, %v2579, %v2580
      %v2582 = vrot.slane %v1704, 1
      %v2583 = vsel %vm2480, %v2580, %v2582
      %v2584 = vrot.slane %v1707, 1
      %v2585 = vsel %vm2480, %v2582, %v2584
      %v2586 = vrot.slane %v1713, 1
      %v2587 = vrot.slane %v1717, 1
      %v2588 = vsel %vm2480, %v2586, %v2587
      %v2589 = vrot.slane %v1723, 1
      %v2590 = vsel %vm2480, %v2587, %v2589
      %v2591 = vrot.slane %v1726, 1
      %v2592 = vsel %vm2480, %v2589, %v2591
      %v2593 = vrot.slane %v1732, 1
      %v2594 = vrot.slane %v1736, 1
      %v2595 = vsel %vm2480, %v2593, %v2594
      %v2596 = vrot.slane %v1742, 1
      %v2597 = vsel %vm2480, %v2594, %v2596
      %v2598 = vrot.slane %v1745, 1
      %v2599 = vsel %vm2480, %v2596, %v2598
      %v2600 = vrot.slane %v1751, 1
      %v2601 = vrot.slane %v1755, 1
      %v2602 = vsel %vm2480, %v2600, %v2601
      %v2603 = vrot.slane %v1761, 1
      %v2604 = vsel %vm2480, %v2601, %v2603
      %v2605 = vrot.slane %v1764, 1
      %v2606 = vsel %vm2480, %v2603, %v2605
      %v2661 = vadd.f32 %v1426, %v2483
      %v2662 = vadd.f32 %v1430, %v2485
      %v2663 = vadd.f32 %v1436, %v2487
      %v2664 = vadd.f32 %v1445, %v2490
      %v2665 = vadd.f32 %v1449, %v2492
      %v2666 = vadd.f32 %v1455, %v2494
      %v2667 = vadd.f32 %v1464, %v2497
      %v2668 = vadd.f32 %v1468, %v2499
      %v2669 = vadd.f32 %v1474, %v2501
      %v2670 = vadd.f32 %v1483, %v2504
      %v2671 = vadd.f32 %v1487, %v2506
      %v2672 = vadd.f32 %v1493, %v2508
      %v2673 = vadd.f32 %v1502, %v2511
      %v2674 = vadd.f32 %v1506, %v2513
      %v2675 = vadd.f32 %v1512, %v2515
      %v2676 = vadd.f32 %v1521, %v2518
      %v2677 = vadd.f32 %v1525, %v2520
      %v2678 = vadd.f32 %v1531, %v2522
      %v2679 = vadd.f32 %v1540, %v2525
      %v2680 = vadd.f32 %v1544, %v2527
      %v2681 = vadd.f32 %v1550, %v2529
      %v2682 = vadd.f32 %v1559, %v2532
      %v2683 = vadd.f32 %v1563, %v2534
      %v2684 = vadd.f32 %v1569, %v2536
      %v2685 = vadd.f32 %v1578, %v2539
      %v2686 = vadd.f32 %v1582, %v2541
      %v2687 = vadd.f32 %v1588, %v2543
      %v2688 = vadd.f32 %v1597, %v2546
      %v2689 = vadd.f32 %v1601, %v2548
      %v2690 = vadd.f32 %v1607, %v2550
      %v2691 = vadd.f32 %v1616, %v2553
      %v2692 = vadd.f32 %v1620, %v2555
      %v2693 = vadd.f32 %v1626, %v2557
      %v2694 = vadd.f32 %v1635, %v2560
      %v2695 = vadd.f32 %v1639, %v2562
      %v2696 = vadd.f32 %v1645, %v2564
      %v2697 = vadd.f32 %v1654, %v2567
      %v2698 = vadd.f32 %v1658, %v2569
      %v2699 = vadd.f32 %v1664, %v2571
      %v2700 = vadd.f32 %v1673, %v2574
      %v2701 = vadd.f32 %v1677, %v2576
      %v2702 = vadd.f32 %v1683, %v2578
      %v2703 = vadd.f32 %v1692, %v2581
      %v2704 = vadd.f32 %v1696, %v2583
      %v2705 = vadd.f32 %v1702, %v2585
      %v2706 = vadd.f32 %v1711, %v2588
      %v2707 = vadd.f32 %v1715, %v2590
      %v2708 = vadd.f32 %v1721, %v2592
      %v2709 = vadd.f32 %v1730, %v2595
      %v2710 = vadd.f32 %v1734, %v2597
      %v2711 = vadd.f32 %v1740, %v2599
      %v2712 = vadd.f32 %v1749, %v2602
      %v2713 = vadd.f32 %v1753, %v2604
      %v2714 = vadd.f32 %v1759, %v2606
      %vm2787 = vcmask 1045504
      %v2788 = vrot.slane %v2122, 2
      %v2789 = vrot.slane %v2125, 2
      %v2790 = vsel %vm2787, %v2788, %v2789
      %v2791 = vrot.slane %v2130, 2
      %v2792 = vsel %vm2787, %v2789, %v2791
      %v2793 = vrot.slane %v2133, 2
      %v2794 = vsel %vm2787, %v2791, %v2793
      %v2795 = vrot.slane %v2138, 2
      %v2796 = vrot.slane %v2141, 2
      %v2797 = vsel %vm2787, %v2795, %v2796
      %v2798 = vrot.slane %v2146, 2
      %v2799 = vsel %vm2787, %v2796, %v2798
      %v2800 = vrot.slane %v2149, 2
      %v2801 = vsel %vm2787, %v2798, %v2800
      %v2802 = vrot.slane %v2154, 2
      %v2803 = vrot.slane %v2157, 2
      %v2804 = vsel %vm2787, %v2802, %v2803
      %v2805 = vrot.slane %v2162, 2
      %v2806 = vsel %vm2787, %v2803, %v2805
      %v2807 = vrot.slane %v2165, 2
      %v2808 = vsel %vm2787, %v2805, %v2807
      %v2809 = vrot.slane %v2170, 2
      %v2810 = vrot.slane %v2173, 2
      %v2811 = vsel %vm2787, %v2809, %v2810
      %v2812 = vrot.slane %v2178, 2
      %v2813 = vsel %vm2787, %v2810, %v2812
      %v2814 = vrot.slane %v2181, 2
      %v2815 = vsel %vm2787, %v2812, %v2814
      %v2816 = vrot.slane %v2186, 2
      %v2817 = vrot.slane %v2189, 2
      %v2818 = vsel %vm2787, %v2816, %v2817
      %v2819 = vrot.slane %v2194, 2
      %v2820 = vsel %vm2787, %v2817, %v2819
      %v2821 = vrot.slane %v2197, 2
      %v2822 = vsel %vm2787, %v2819, %v2821
      %v2823 = vrot.slane %v2202, 2
      %v2824 = vrot.slane %v2205, 2
      %v2825 = vsel %vm2787, %v2823, %v2824
      %v2826 = vrot.slane %v2210, 2
      %v2827 = vsel %vm2787, %v2824, %v2826
      %v2828 = vrot.slane %v2213, 2
      %v2829 = vsel %vm2787, %v2826, %v2828
      %v2830 = vrot.slane %v2218, 2
      %v2831 = vrot.slane %v2221, 2
      %v2832 = vsel %vm2787, %v2830, %v2831
      %v2833 = vrot.slane %v2226, 2
      %v2834 = vsel %vm2787, %v2831, %v2833
      %v2835 = vrot.slane %v2229, 2
      %v2836 = vsel %vm2787, %v2833, %v2835
      %v2837 = vrot.slane %v2234, 2
      %v2838 = vrot.slane %v2237, 2
      %v2839 = vsel %vm2787, %v2837, %v2838
      %v2840 = vrot.slane %v2242, 2
      %v2841 = vsel %vm2787, %v2838, %v2840
      %v2842 = vrot.slane %v2245, 2
      %v2843 = vsel %vm2787, %v2840, %v2842
      %v2844 = vrot.slane %v2250, 2
      %v2845 = vrot.slane %v2253, 2
      %v2846 = vsel %vm2787, %v2844, %v2845
      %v2847 = vrot.slane %v2258, 2
      %v2848 = vsel %vm2787, %v2845, %v2847
      %v2849 = vrot.slane %v2261, 2
      %v2850 = vsel %vm2787, %v2847, %v2849
      %v2851 = vrot.slane %v2266, 2
      %v2852 = vrot.slane %v2269, 2
      %v2853 = vsel %vm2787, %v2851, %v2852
      %v2854 = vrot.slane %v2274, 2
      %v2855 = vsel %vm2787, %v2852, %v2854
      %v2856 = vrot.slane %v2277, 2
      %v2857 = vsel %vm2787, %v2854, %v2856
      %v2858 = vrot.slane %v2282, 2
      %v2859 = vrot.slane %v2285, 2
      %v2860 = vsel %vm2787, %v2858, %v2859
      %v2861 = vrot.slane %v2290, 2
      %v2862 = vsel %vm2787, %v2859, %v2861
      %v2863 = vrot.slane %v2293, 2
      %v2864 = vsel %vm2787, %v2861, %v2863
      %v2865 = vrot.slane %v2298, 2
      %v2866 = vrot.slane %v2301, 2
      %v2867 = vsel %vm2787, %v2865, %v2866
      %v2868 = vrot.slane %v2306, 2
      %v2869 = vsel %vm2787, %v2866, %v2868
      %v2870 = vrot.slane %v2309, 2
      %v2871 = vsel %vm2787, %v2868, %v2870
      %v2872 = vrot.slane %v2314, 2
      %v2873 = vrot.slane %v2317, 2
      %v2874 = vsel %vm2787, %v2872, %v2873
      %v2875 = vrot.slane %v2322, 2
      %v2876 = vsel %vm2787, %v2873, %v2875
      %v2877 = vrot.slane %v2325, 2
      %v2878 = vsel %vm2787, %v2875, %v2877
      %v2879 = vrot.slane %v2330, 2
      %v2880 = vrot.slane %v2333, 2
      %v2881 = vsel %vm2787, %v2879, %v2880
      %v2882 = vrot.slane %v2338, 2
      %v2883 = vsel %vm2787, %v2880, %v2882
      %v2884 = vrot.slane %v2341, 2
      %v2885 = vsel %vm2787, %v2882, %v2884
      %v2886 = vrot.slane %v2346, 2
      %v2887 = vrot.slane %v2349, 2
      %v2888 = vsel %vm2787, %v2886, %v2887
      %v2889 = vrot.slane %v2354, 2
      %v2890 = vsel %vm2787, %v2887, %v2889
      %v2891 = vrot.slane %v2357, 2
      %v2892 = vsel %vm2787, %v2889, %v2891
      %v2893 = vrot.slane %v2362, 2
      %v2894 = vrot.slane %v2365, 2
      %v2895 = vsel %vm2787, %v2893, %v2894
      %v2896 = vrot.slane %v2370, 2
      %v2897 = vsel %vm2787, %v2894, %v2896
      %v2898 = vrot.slane %v2373, 2
      %v2899 = vsel %vm2787, %v2896, %v2898
      %v2900 = vrot.slane %v2378, 2
      %v2901 = vrot.slane %v2381, 2
      %v2902 = vsel %vm2787, %v2900, %v2901
      %v2903 = vrot.slane %v2386, 2
      %v2904 = vsel %vm2787, %v2901, %v2903
      %v2905 = vrot.slane %v2389, 2
      %v2906 = vsel %vm2787, %v2903, %v2905
      %v2907 = vrot.slane %v2394, 2
      %v2908 = vrot.slane %v2397, 2
      %v2909 = vsel %vm2787, %v2907, %v2908
      %v2910 = vrot.slane %v2402, 2
      %v2911 = vsel %vm2787, %v2908, %v2910
      %v2912 = vrot.slane %v2405, 2
      %v2913 = vsel %vm2787, %v2910, %v2912
      %v2968 = vadd.f32 %v2661, %v2790
      %v2969 = vadd.f32 %v2662, %v2792
      %v2970 = vadd.f32 %v2663, %v2794
      %v2971 = vadd.f32 %v2664, %v2797
      %v2972 = vadd.f32 %v2665, %v2799
      %v2973 = vadd.f32 %v2666, %v2801
      %v2974 = vadd.f32 %v2667, %v2804
      %v2975 = vadd.f32 %v2668, %v2806
      %v2976 = vadd.f32 %v2669, %v2808
      %v2977 = vadd.f32 %v2670, %v2811
      %v2978 = vadd.f32 %v2671, %v2813
      %v2979 = vadd.f32 %v2672, %v2815
      %v2980 = vadd.f32 %v2673, %v2818
      %v2981 = vadd.f32 %v2674, %v2820
      %v2982 = vadd.f32 %v2675, %v2822
      %v2983 = vadd.f32 %v2676, %v2825
      %v2984 = vadd.f32 %v2677, %v2827
      %v2985 = vadd.f32 %v2678, %v2829
      %v2986 = vadd.f32 %v2679, %v2832
      %v2987 = vadd.f32 %v2680, %v2834
      %v2988 = vadd.f32 %v2681, %v2836
      %v2989 = vadd.f32 %v2682, %v2839
      %v2990 = vadd.f32 %v2683, %v2841
      %v2991 = vadd.f32 %v2684, %v2843
      %v2992 = vadd.f32 %v2685, %v2846
      %v2993 = vadd.f32 %v2686, %v2848
      %v2994 = vadd.f32 %v2687, %v2850
      %v2995 = vadd.f32 %v2688, %v2853
      %v2996 = vadd.f32 %v2689, %v2855
      %v2997 = vadd.f32 %v2690, %v2857
      %v2998 = vadd.f32 %v2691, %v2860
      %v2999 = vadd.f32 %v2692, %v2862
      %v3000 = vadd.f32 %v2693, %v2864
      %v3001 = vadd.f32 %v2694, %v2867
      %v3002 = vadd.f32 %v2695, %v2869
      %v3003 = vadd.f32 %v2696, %v2871
      %v3004 = vadd.f32 %v2697, %v2874
      %v3005 = vadd.f32 %v2698, %v2876
      %v3006 = vadd.f32 %v2699, %v2878
      %v3007 = vadd.f32 %v2700, %v2881
      %v3008 = vadd.f32 %v2701, %v2883
      %v3009 = vadd.f32 %v2702, %v2885
      %v3010 = vadd.f32 %v2703, %v2888
      %v3011 = vadd.f32 %v2704, %v2890
      %v3012 = vadd.f32 %v2705, %v2892
      %v3013 = vadd.f32 %v2706, %v2895
      %v3014 = vadd.f32 %v2707, %v2897
      %v3015 = vadd.f32 %v2708, %v2899
      %v3016 = vadd.f32 %v2709, %v2902
      %v3017 = vadd.f32 %v2710, %v2904
      %v3018 = vadd.f32 %v2711, %v2906
      %v3019 = vadd.f32 %v2712, %v2909
      %v3020 = vadd.f32 %v2713, %v2911
      %v3021 = vadd.f32 %v2714, %v2913
      %v3022 = vpack.c.bf16 %v2969, %v2968
      %v3023 = vpack.c.bf16 %v2970, %v2970
      %v3024 = vpack.c.bf16 %v2972, %v2971
      %v3025 = vpack.c.bf16 %v2973, %v2973
      %v3026 = vpack.c.bf16 %v2975, %v2974
      %v3027 = vpack.c.bf16 %v2976, %v2976
      %v3028 = vpack.c.bf16 %v2978, %v2977
      %v3029 = vpack.c.bf16 %v2979, %v2979
      %v3030 = vpack.c.bf16 %v2981, %v2980
      %v3031 = vpack.c.bf16 %v2982, %v2982
      %v3032 = vpack.c.bf16 %v2984, %v2983
      %v3033 = vpack.c.bf16 %v2985, %v2985
      %v3034 = vpack.c.bf16 %v2987, %v2986
      %v3035 = vpack.c.bf16 %v2988, %v2988
      %v3036 = vpack.c.bf16 %v2990, %v2989
      %v3037 = vpack.c.bf16 %v2991, %v2991
      %v3038 = vpack.c.bf16 %v2993, %v2992
      %v3039 = vpack.c.bf16 %v2994, %v2994
      %v3040 = vpack.c.bf16 %v2996, %v2995
      %v3041 = vpack.c.bf16 %v2997, %v2997
      %v3042 = vpack.c.bf16 %v2999, %v2998
      %v3043 = vpack.c.bf16 %v3000, %v3000
      %v3044 = vpack.c.bf16 %v3002, %v3001
      %v3045 = vpack.c.bf16 %v3003, %v3003
      %v3046 = vpack.c.bf16 %v3005, %v3004
      %v3047 = vpack.c.bf16 %v3006, %v3006
      %v3048 = vpack.c.bf16 %v3008, %v3007
      %v3049 = vpack.c.bf16 %v3009, %v3009
      %v3050 = vpack.c.bf16 %v3011, %v3010
      %v3051 = vpack.c.bf16 %v3012, %v3012
      %v3052 = vpack.c.bf16 %v3014, %v3013
      %v3053 = vpack.c.bf16 %v3015, %v3015
      %v3054 = vpack.c.bf16 %v3017, %v3016
      %v3055 = vpack.c.bf16 %v3018, %v3018
      %v3056 = vpack.c.bf16 %v3020, %v3019
      %v3057 = vpack.c.bf16 %v3021, %v3021
      %v3094 = vunpack.c.l.b16 %v3022
      %v3095 = vunpack.c.h.b16 %v3022
      %v3096 = vunpack.c.l.b16 %v3023
      %v3097 = vunpack.c.l.b16 %v3024
      %v3098 = vunpack.c.h.b16 %v3024
      %v3099 = vunpack.c.l.b16 %v3025
      %v3100 = vunpack.c.l.b16 %v3026
      %v3101 = vunpack.c.h.b16 %v3026
      %v3102 = vunpack.c.l.b16 %v3027
      %v3103 = vunpack.c.l.b16 %v3028
      %v3104 = vunpack.c.h.b16 %v3028
      %v3105 = vunpack.c.l.b16 %v3029
      %v3106 = vunpack.c.l.b16 %v3030
      %v3107 = vunpack.c.h.b16 %v3030
      %v3108 = vunpack.c.l.b16 %v3031
      %v3109 = vunpack.c.l.b16 %v3032
      %v3110 = vunpack.c.h.b16 %v3032
      %v3111 = vunpack.c.l.b16 %v3033
      %v3112 = vunpack.c.l.b16 %v3034
      %v3113 = vunpack.c.h.b16 %v3034
      %v3114 = vunpack.c.l.b16 %v3035
      %v3115 = vunpack.c.l.b16 %v3036
      %v3116 = vunpack.c.h.b16 %v3036
      %v3117 = vunpack.c.l.b16 %v3037
      %v3118 = vunpack.c.l.b16 %v3038
      %v3119 = vunpack.c.h.b16 %v3038
      %v3120 = vunpack.c.l.b16 %v3039
      %v3121 = vunpack.c.l.b16 %v3040
      %v3122 = vunpack.c.h.b16 %v3040
      %v3123 = vunpack.c.l.b16 %v3041
      %v3124 = vunpack.c.l.b16 %v3042
      %v3125 = vunpack.c.h.b16 %v3042
      %v3126 = vunpack.c.l.b16 %v3043
      %v3127 = vunpack.c.l.b16 %v3044
      %v3128 = vunpack.c.h.b16 %v3044
      %v3129 = vunpack.c.l.b16 %v3045
      %v3130 = vunpack.c.l.b16 %v3046
      %v3131 = vunpack.c.h.b16 %v3046
      %v3132 = vunpack.c.l.b16 %v3047
      %v3133 = vunpack.c.l.b16 %v3048
      %v3134 = vunpack.c.h.b16 %v3048
      %v3135 = vunpack.c.l.b16 %v3049
      %v3136 = vunpack.c.l.b16 %v3050
      %v3137 = vunpack.c.h.b16 %v3050
      %v3138 = vunpack.c.l.b16 %v3051
      %v3139 = vunpack.c.l.b16 %v3052
      %v3140 = vunpack.c.h.b16 %v3052
      %v3141 = vunpack.c.l.b16 %v3053
      %v3142 = vunpack.c.l.b16 %v3054
      %v3143 = vunpack.c.h.b16 %v3054
      %v3144 = vunpack.c.l.b16 %v3055
      %v3145 = vunpack.c.l.b16 %v3056
      %v3146 = vunpack.c.h.b16 %v3056
      %v3147 = vunpack.c.l.b16 %v3057
      %v3148 = vpack.c.b16 %v3094, %v3094
      %v3149 = vpack.c.b16 %v3095, %v3095
      %v3150 = vpack.c.b16 %v3096, %v3096
      %v3151 = vpack.c.b16 %v3097, %v3097
      %v3152 = vpack.c.b16 %v3098, %v3098
      %v3153 = vpack.c.b16 %v3099, %v3099
      %v3154 = vpack.c.b16 %v3100, %v3100
      %v3155 = vpack.c.b16 %v3101, %v3101
      %v3156 = vpack.c.b16 %v3102, %v3102
      %v3157 = vpack.c.b16 %v3103, %v3103
      %v3158 = vpack.c.b16 %v3104, %v3104
      %v3159 = vpack.c.b16 %v3105, %v3105
      %v3160 = vpack.c.b16 %v3106, %v3106
      %v3161 = vpack.c.b16 %v3107, %v3107
      %v3162 = vpack.c.b16 %v3108, %v3108
      %v3163 = vpack.c.b16 %v3109, %v3109
      %v3164 = vpack.c.b16 %v3110, %v3110
      %v3165 = vpack.c.b16 %v3111, %v3111
      %v3166 = vpack.c.b16 %v3112, %v3112
      %v3167 = vpack.c.b16 %v3113, %v3113
      %v3168 = vpack.c.b16 %v3114, %v3114
      %v3169 = vpack.c.b16 %v3115, %v3115
      %v3170 = vpack.c.b16 %v3116, %v3116
      %v3171 = vpack.c.b16 %v3117, %v3117
      %v3172 = vpack.c.b16 %v3118, %v3118
      %v3173 = vpack.c.b16 %v3119, %v3119
      %v3174 = vpack.c.b16 %v3120, %v3120
      %v3175 = vpack.c.b16 %v3121, %v3121
      %v3176 = vpack.c.b16 %v3122, %v3122
      %v3177 = vpack.c.b16 %v3123, %v3123
      %v3178 = vpack.c.b16 %v3124, %v3124
      %v3179 = vpack.c.b16 %v3125, %v3125
      %v3180 = vpack.c.b16 %v3126, %v3126
      %v3181 = vpack.c.b16 %v3127, %v3127
      %v3182 = vpack.c.b16 %v3128, %v3128
      %v3183 = vpack.c.b16 %v3129, %v3129
      %v3184 = vpack.c.b16 %v3130, %v3130
      %v3185 = vpack.c.b16 %v3131, %v3131
      %v3186 = vpack.c.b16 %v3132, %v3132
      %v3187 = vpack.c.b16 %v3133, %v3133
      %v3188 = vpack.c.b16 %v3134, %v3134
      %v3189 = vpack.c.b16 %v3135, %v3135
      %v3190 = vpack.c.b16 %v3136, %v3136
      %v3191 = vpack.c.b16 %v3137, %v3137
      %v3192 = vpack.c.b16 %v3138, %v3138
      %v3193 = vpack.c.b16 %v3139, %v3139
      %v3194 = vpack.c.b16 %v3140, %v3140
      %v3195 = vpack.c.b16 %v3141, %v3141
      %v3196 = vpack.c.b16 %v3142, %v3142
      %v3197 = vpack.c.b16 %v3143, %v3143
      %v3198 = vpack.c.b16 %v3144, %v3144
      %v3199 = vpack.c.b16 %v3145, %v3145
      %v3200 = vpack.c.b16 %v3146, %v3146
      %v3201 = vpack.c.b16 %v3147, %v3147
      %3256 = vst [vmem:[%s208] sm:$0xf] %v3148
      %3257 = vst [vmem:[%s208 + $0x4] sm:$0xf] %v3149
      %3258 = vst [vmem:[%s208 + $0x8] sm:$0xf] %v3150
      %3259 = vst [vmem:[%s208 + $0xc] sm:$0xf] %v3151
      %3260 = vst [vmem:[%s208 + $0x10] sm:$0xf] %v3152
      %3261 = vst [vmem:[%s208 + $0x14] sm:$0xf] %v3153
      %3262 = vst [vmem:[%s208 + $0x18] sm:$0xf] %v3154
      %3263 = vst [vmem:[%s208 + $0x1c] sm:$0xf] %v3155
      %3264 = vst [vmem:[%s208 + $0x20] sm:$0xf] %v3156
      %3265 = vst [vmem:[%s208 + $0x24] sm:$0xf] %v3157
      %3266 = vst [vmem:[%s208 + $0x28] sm:$0xf] %v3158
      %3267 = vst [vmem:[%s208 + $0x2c] sm:$0xf] %v3159
      %3268 = vst [vmem:[%s208 + $0x30] sm:$0xf] %v3160
      %3269 = vst [vmem:[%s208 + $0x34] sm:$0xf] %v3161
      %3270 = vst [vmem:[%s208 + $0x38] sm:$0xf] %v3162
      %3271 = vst [vmem:[%s208 + $0x3c] sm:$0xf] %v3163
      %3272 = vst [vmem:[%s208 + $0x40] sm:$0xf] %v3164
      %3273 = vst [vmem:[%s208 + $0x44] sm:$0xf] %v3165
      %3274 = vst [vmem:[%s208 + $0x48] sm:$0xf] %v3166
      %3275 = vst [vmem:[%s208 + $0x4c] sm:$0xf] %v3167
      %3276 = vst [vmem:[%s208 + $0x50] sm:$0xf] %v3168
      %3277 = vst [vmem:[%s208 + $0x54] sm:$0xf] %v3169
      %3278 = vst [vmem:[%s208 + $0x58] sm:$0xf] %v3170
      %3279 = vst [vmem:[%s208 + $0x5c] sm:$0xf] %v3171
      %3280 = vst [vmem:[%s208 + $0x60] sm:$0xf] %v3172
      %3281 = vst [vmem:[%s208 + $0x64] sm:$0xf] %v3173
      %3282 = vst [vmem:[%s208 + $0x68] sm:$0xf] %v3174
      %3283 = vst [vmem:[%s208 + $0x6c] sm:$0xf] %v3175
      %3284 = vst [vmem:[%s208 + $0x70] sm:$0xf] %v3176
      %3285 = vst [vmem:[%s208 + $0x74] sm:$0xf] %v3177
      %3286 = vst [vmem:[%s208 + $0x78] sm:$0xf] %v3178
      %3287 = vst [vmem:[%s208 + $0x7c] sm:$0xf] %v3179
      %3288 = vst [vmem:[%s208 + $0x80] sm:$0xf] %v3180
      %3289 = vst [vmem:[%s208 + $0x84] sm:$0xf] %v3181
      %3290 = vst [vmem:[%s208 + $0x88] sm:$0xf] %v3182
      %3291 = vst [vmem:[%s208 + $0x8c] sm:$0xf] %v3183
      %3292 = vst [vmem:[%s208 + $0x90] sm:$0xf] %v3184
      %3293 = vst [vmem:[%s208 + $0x94] sm:$0xf] %v3185
      %3294 = vst [vmem:[%s208 + $0x98] sm:$0xf] %v3186
      %3295 = vst [vmem:[%s208 + $0x9c] sm:$0xf] %v3187
      %3296 = vst [vmem:[%s208 + $0xa0] sm:$0xf] %v3188
      %3297 = vst [vmem:[%s208 + $0xa4] sm:$0xf] %v3189
      %3298 = vst [vmem:[%s208 + $0xa8] sm:$0xf] %v3190
      %3299 = vst [vmem:[%s208 + $0xac] sm:$0xf] %v3191
      %3300 = vst [vmem:[%s208 + $0xb0] sm:$0xf] %v3192
      %3301 = vst [vmem:[%s208 + $0xb4] sm:$0xf] %v3193
      %3302 = vst [vmem:[%s208 + $0xb8] sm:$0xf] %v3194
      %3303 = vst [vmem:[%s208 + $0xbc] sm:$0xf] %v3195
      %3304 = vst [vmem:[%s208 + $0xc0] sm:$0xf] %v3196
      %3305 = vst [vmem:[%s208 + $0xc4] sm:$0xf] %v3197
      %3306 = vst [vmem:[%s208 + $0xc8] sm:$0xf] %v3198
      %3307 = vst [vmem:[%s208 + $0xcc] sm:$0xf] %v3199
      %3308 = vst [vmem:[%s208 + $0xd0] sm:$0xf] %v3200
      %3309 = vst [vmem:[%s208 + $0xd4] sm:$0xf] %v3201
      %v3358 = vrot.slane %v2971, 1
      %v3359 = vrot.slane %v2972, 1
      %v3360 = vsel %vm2480, %v3358, %v3359
      %v3361 = vrot.slane %v2973, 1
      %v3362 = vsel %vm2480, %v3359, %v3361
      %v3363 = vrot.slane %v2974, 1
      %v3364 = vrot.slane %v2975, 1
      %v3365 = vsel %vm2480, %v3363, %v3364
      %v3366 = vrot.slane %v2976, 1
      %v3367 = vsel %vm2480, %v3364, %v3366
      %v3368 = vrot.slane %v2977, 1
      %v3369 = vrot.slane %v2978, 1
      %v3370 = vsel %vm2480, %v3368, %v3369
      %v3371 = vrot.slane %v2979, 1
      %v3372 = vsel %vm2480, %v3369, %v3371
      %v3373 = vrot.slane %v2980, 1
      %v3374 = vrot.slane %v2981, 1
      %v3375 = vsel %vm2480, %v3373, %v3374
      %v3376 = vrot.slane %v2982, 1
      %v3377 = vsel %vm2480, %v3374, %v3376
      %v3378 = vrot.slane %v2983, 1
      %v3379 = vrot.slane %v2984, 1
      %v3380 = vsel %vm2480, %v3378, %v3379
      %v3381 = vrot.slane %v2985, 1
      %v3382 = vsel %vm2480, %v3379, %v3381
      %v3383 = vrot.slane %v2986, 1
      %v3384 = vrot.slane %v2987, 1
      %v3385 = vsel %vm2480, %v3383, %v3384
      %v3386 = vrot.slane %v2988, 1
      %v3387 = vsel %vm2480, %v3384, %v3386
      %v3388 = vrot.slane %v2989, 1
      %v3389 = vrot.slane %v2990, 1
      %v3390 = vsel %vm2480, %v3388, %v3389
      %v3391 = vrot.slane %v2991, 1
      %v3392 = vsel %vm2480, %v3389, %v3391
      %v3393 = vrot.slane %v2992, 1
      %v3394 = vrot.slane %v2993, 1
      %v3395 = vsel %vm2480, %v3393, %v3394
      %v3396 = vrot.slane %v2994, 1
      %v3397 = vsel %vm2480, %v3394, %v3396
      %v3398 = vrot.slane %v2995, 1
      %v3399 = vrot.slane %v2996, 1
      %v3400 = vsel %vm2480, %v3398, %v3399
      %v3401 = vrot.slane %v2997, 1
      %v3402 = vsel %vm2480, %v3399, %v3401
      %v3403 = vrot.slane %v2998, 1
      %v3404 = vrot.slane %v2999, 1
      %v3405 = vsel %vm2480, %v3403, %v3404
      %v3406 = vrot.slane %v3000, 1
      %v3407 = vsel %vm2480, %v3404, %v3406
      %v3408 = vrot.slane %v3001, 1
      %v3409 = vrot.slane %v3002, 1
      %v3410 = vsel %vm2480, %v3408, %v3409
      %v3411 = vrot.slane %v3003, 1
      %v3412 = vsel %vm2480, %v3409, %v3411
      %v3413 = vrot.slane %v3004, 1
      %v3414 = vrot.slane %v3005, 1
      %v3415 = vsel %vm2480, %v3413, %v3414
      %v3416 = vrot.slane %v3006, 1
      %v3417 = vsel %vm2480, %v3414, %v3416
      %v3418 = vrot.slane %v3007, 1
      %v3419 = vrot.slane %v3008, 1
      %v3420 = vsel %vm2480, %v3418, %v3419
      %v3421 = vrot.slane %v3009, 1
      %v3422 = vsel %vm2480, %v3419, %v3421
      %v3423 = vrot.slane %v3010, 1
      %v3424 = vrot.slane %v3011, 1
      %v3425 = vsel %vm2480, %v3423, %v3424
      %v3426 = vrot.slane %v3012, 1
      %v3427 = vsel %vm2480, %v3424, %v3426
      %v3428 = vrot.slane %v3013, 1
      %v3429 = vrot.slane %v3014, 1
      %v3430 = vsel %vm2480, %v3428, %v3429
      %v3431 = vrot.slane %v3015, 1
      %v3432 = vsel %vm2480, %v3429, %v3431
      %v3433 = vrot.slane %v3016, 1
      %v3434 = vrot.slane %v3017, 1
      %v3435 = vsel %vm2480, %v3433, %v3434
      %v3436 = vrot.slane %v3018, 1
      %v3437 = vsel %vm2480, %v3434, %v3436
      %v3470 = vadd.f32 %v3360, %v3362
      %v3471 = vadd.f32 %v3470, %v3365
      %v3472 = vadd.f32 %v3471, %v3367
      %v3473 = vadd.f32 %v3472, %v3370
      %v3474 = vadd.f32 %v3473, %v3372
      %v3475 = vadd.f32 %v3474, %v3375
      %v3476 = vadd.f32 %v3475, %v3377
      %v3477 = vadd.f32 %v3476, %v3380
      %v3478 = vadd.f32 %v3477, %v3382
      %v3479 = vadd.f32 %v3478, %v3385
      %v3480 = vadd.f32 %v3479, %v3387
      %v3481 = vadd.f32 %v3480, %v3390
      %v3482 = vadd.f32 %v3481, %v3392
      %v3483 = vadd.f32 %v3482, %v3395
      %v3484 = vadd.f32 %v3483, %v3397
      %v3485 = vadd.f32 %v3484, %v3400
      %v3486 = vadd.f32 %v3485, %v3402
      %v3487 = vadd.f32 %v3486, %v3405
      %v3488 = vadd.f32 %v3487, %v3407
      %v3489 = vadd.f32 %v3488, %v3410
      %v3490 = vadd.f32 %v3489, %v3412
      %v3491 = vadd.f32 %v3490, %v3415
      %v3492 = vadd.f32 %v3491, %v3417
      %v3493 = vadd.f32 %v3492, %v3420
      %v3494 = vadd.f32 %v3493, %v3422
      %v3495 = vadd.f32 %v3494, %v3425
      %v3496 = vadd.f32 %v3495, %v3427
      %v3497 = vadd.f32 %v3496, %v3430
      %v3498 = vadd.f32 %v3497, %v3432
      %v3499 = vadd.f32 %v3498, %v3435
      %v3500 = vadd.f32 %v3499, %v3437
      %v3501 = vrot.slane %v3500, 4
      %v3502 = vadd.f32 %v3500, %v3501
      %v3503 = vrot.slane %v3502, 2
      %v3504 = vadd.f32 %v3502, %v3503
      %v3505 = vrot.slane %v3504, 1
      %v3506 = vadd.f32 %v3504, %v3505
      %v3507 = vmul.f32 %v3506, 0.00390625
      %v3508 = vsub.f32 %v2971, %v3507
      %v3509 = vsub.f32 %v2972, %v3507
      %v3510 = vsub.f32 %v2973, %v3507
      %v3511 = vsub.f32 %v2974, %v3507
      %v3512 = vsub.f32 %v2975, %v3507
      %v3513 = vsub.f32 %v2976, %v3507
      %v3514 = vsub.f32 %v2977, %v3507
      %v3515 = vsub.f32 %v2978, %v3507
      %v3516 = vsub.f32 %v2979, %v3507
      %v3517 = vsub.f32 %v2980, %v3507
      %v3518 = vsub.f32 %v2981, %v3507
      %v3519 = vsub.f32 %v2982, %v3507
      %v3520 = vsub.f32 %v2983, %v3507
      %v3521 = vsub.f32 %v2984, %v3507
      %v3522 = vsub.f32 %v2985, %v3507
      %v3523 = vsub.f32 %v2986, %v3507
      %v3524 = vsub.f32 %v2987, %v3507
      %v3525 = vsub.f32 %v2988, %v3507
      %v3526 = vsub.f32 %v2989, %v3507
      %v3527 = vsub.f32 %v2990, %v3507
      %v3528 = vsub.f32 %v2991, %v3507
      %v3529 = vsub.f32 %v2992, %v3507
      %v3530 = vsub.f32 %v2993, %v3507
      %v3531 = vsub.f32 %v2994, %v3507
      %v3532 = vsub.f32 %v2995, %v3507
      %v3533 = vsub.f32 %v2996, %v3507
      %v3534 = vsub.f32 %v2997, %v3507
      %v3535 = vsub.f32 %v2998, %v3507
      %v3536 = vsub.f32 %v2999, %v3507
      %v3537 = vsub.f32 %v3000, %v3507
      %v3538 = vsub.f32 %v3001, %v3507
      %v3539 = vsub.f32 %v3002, %v3507
      %v3540 = vsub.f32 %v3003, %v3507
      %v3541 = vsub.f32 %v3004, %v3507
      %v3542 = vsub.f32 %v3005, %v3507
      %v3543 = vsub.f32 %v3006, %v3507
      %v3544 = vsub.f32 %v3007, %v3507
      %v3545 = vsub.f32 %v3008, %v3507
      %v3546 = vsub.f32 %v3009, %v3507
      %v3547 = vsub.f32 %v3010, %v3507
      %v3548 = vsub.f32 %v3011, %v3507
      %v3549 = vsub.f32 %v3012, %v3507
      %v3550 = vsub.f32 %v3013, %v3507
      %v3551 = vsub.f32 %v3014, %v3507
      %v3552 = vsub.f32 %v3015, %v3507
      %v3553 = vsub.f32 %v3016, %v3507
      %v3554 = vsub.f32 %v3017, %v3507
      %v3555 = vsub.f32 %v3018, %v3507
      %v3556 = vmul.f32 %v3508, %v3508
      %v3557 = vmul.f32 %v3509, %v3509
      %v3558 = vmul.f32 %v3510, %v3510
      %v3559 = vmul.f32 %v3511, %v3511
      %v3560 = vmul.f32 %v3512, %v3512
      %v3561 = vmul.f32 %v3513, %v3513
      %v3562 = vmul.f32 %v3514, %v3514
      %v3563 = vmul.f32 %v3515, %v3515
      %v3564 = vmul.f32 %v3516, %v3516
      %v3565 = vmul.f32 %v3517, %v3517
      %v3566 = vmul.f32 %v3518, %v3518
      %v3567 = vmul.f32 %v3519, %v3519
      %v3568 = vmul.f32 %v3520, %v3520
      %v3569 = vmul.f32 %v3521, %v3521
      %v3570 = vmul.f32 %v3522, %v3522
      %v3571 = vmul.f32 %v3523, %v3523
      %v3572 = vmul.f32 %v3524, %v3524
      %v3573 = vmul.f32 %v3525, %v3525
      %v3574 = vmul.f32 %v3526, %v3526
      %v3575 = vmul.f32 %v3527, %v3527
      %v3576 = vmul.f32 %v3528, %v3528
      %v3577 = vmul.f32 %v3529, %v3529
      %v3578 = vmul.f32 %v3530, %v3530
      %v3579 = vmul.f32 %v3531, %v3531
      %v3580 = vmul.f32 %v3532, %v3532
      %v3581 = vmul.f32 %v3533, %v3533
      %v3582 = vmul.f32 %v3534, %v3534
      %v3583 = vmul.f32 %v3535, %v3535
      %v3584 = vmul.f32 %v3536, %v3536
      %v3585 = vmul.f32 %v3537, %v3537
      %v3586 = vmul.f32 %v3538, %v3538
      %v3587 = vmul.f32 %v3539, %v3539
      %v3588 = vmul.f32 %v3540, %v3540
      %v3589 = vmul.f32 %v3541, %v3541
      %v3590 = vmul.f32 %v3542, %v3542
      %v3591 = vmul.f32 %v3543, %v3543
      %v3592 = vmul.f32 %v3544, %v3544
      %v3593 = vmul.f32 %v3545, %v3545
      %v3594 = vmul.f32 %v3546, %v3546
      %v3595 = vmul.f32 %v3547, %v3547
      %v3596 = vmul.f32 %v3548, %v3548
      %v3597 = vmul.f32 %v3549, %v3549
      %v3598 = vmul.f32 %v3550, %v3550
      %v3599 = vmul.f32 %v3551, %v3551
      %v3600 = vmul.f32 %v3552, %v3552
      %v3601 = vmul.f32 %v3553, %v3553
      %v3602 = vmul.f32 %v3554, %v3554
      %v3603 = vmul.f32 %v3555, %v3555
      %v3652 = vrot.slane %v3556, 1
      %v3653 = vrot.slane %v3557, 1
      %v3654 = vsel %vm2480, %v3652, %v3653
      %v3655 = vrot.slane %v3558, 1
      %v3656 = vsel %vm2480, %v3653, %v3655
      %v3657 = vrot.slane %v3559, 1
      %v3658 = vrot.slane %v3560, 1
      %v3659 = vsel %vm2480, %v3657, %v3658
      %v3660 = vrot.slane %v3561, 1
      %v3661 = vsel %vm2480, %v3658, %v3660
      %v3662 = vrot.slane %v3562, 1
      %v3663 = vrot.slane %v3563, 1
      %v3664 = vsel %vm2480, %v3662, %v3663
      %v3665 = vrot.slane %v3564, 1
      %v3666 = vsel %vm2480, %v3663, %v3665
      %v3667 = vrot.slane %v3565, 1
      %v3668 = vrot.slane %v3566, 1
      %v3669 = vsel %vm2480, %v3667, %v3668
      %v3670 = vrot.slane %v3567, 1
      %v3671 = vsel %vm2480, %v3668, %v3670
      %v3672 = vrot.slane %v3568, 1
      %v3673 = vrot.slane %v3569, 1
      %v3674 = vsel %vm2480, %v3672, %v3673
      %v3675 = vrot.slane %v3570, 1
      %v3676 = vsel %vm2480, %v3673, %v3675
      %v3677 = vrot.slane %v3571, 1
      %v3678 = vrot.slane %v3572, 1
      %v3679 = vsel %vm2480, %v3677, %v3678
      %v3680 = vrot.slane %v3573, 1
      %v3681 = vsel %vm2480, %v3678, %v3680
      %v3682 = vrot.slane %v3574, 1
      %v3683 = vrot.slane %v3575, 1
      %v3684 = vsel %vm2480, %v3682, %v3683
      %v3685 = vrot.slane %v3576, 1
      %v3686 = vsel %vm2480, %v3683, %v3685
      %v3687 = vrot.slane %v3577, 1
      %v3688 = vrot.slane %v3578, 1
      %v3689 = vsel %vm2480, %v3687, %v3688
      %v3690 = vrot.slane %v3579, 1
      %v3691 = vsel %vm2480, %v3688, %v3690
      %v3692 = vrot.slane %v3580, 1
      %v3693 = vrot.slane %v3581, 1
      %v3694 = vsel %vm2480, %v3692, %v3693
      %v3695 = vrot.slane %v3582, 1
      %v3696 = vsel %vm2480, %v3693, %v3695
      %v3697 = vrot.slane %v3583, 1
      %v3698 = vrot.slane %v3584, 1
      %v3699 = vsel %vm2480, %v3697, %v3698
      %v3700 = vrot.slane %v3585, 1
      %v3701 = vsel %vm2480, %v3698, %v3700
      %v3702 = vrot.slane %v3586, 1
      %v3703 = vrot.slane %v3587, 1
      %v3704 = vsel %vm2480, %v3702, %v3703
      %v3705 = vrot.slane %v3588, 1
      %v3706 = vsel %vm2480, %v3703, %v3705
      %v3707 = vrot.slane %v3589, 1
      %v3708 = vrot.slane %v3590, 1
      %v3709 = vsel %vm2480, %v3707, %v3708
      %v3710 = vrot.slane %v3591, 1
      %v3711 = vsel %vm2480, %v3708, %v3710
      %v3712 = vrot.slane %v3592, 1
      %v3713 = vrot.slane %v3593, 1
      %v3714 = vsel %vm2480, %v3712, %v3713
      %v3715 = vrot.slane %v3594, 1
      %v3716 = vsel %vm2480, %v3713, %v3715
      %v3717 = vrot.slane %v3595, 1
      %v3718 = vrot.slane %v3596, 1
      %v3719 = vsel %vm2480, %v3717, %v3718
      %v3720 = vrot.slane %v3597, 1
      %v3721 = vsel %vm2480, %v3718, %v3720
      %v3722 = vrot.slane %v3598, 1
      %v3723 = vrot.slane %v3599, 1
      %v3724 = vsel %vm2480, %v3722, %v3723
      %v3725 = vrot.slane %v3600, 1
      %v3726 = vsel %vm2480, %v3723, %v3725
      %v3727 = vrot.slane %v3601, 1
      %v3728 = vrot.slane %v3602, 1
      %v3729 = vsel %vm2480, %v3727, %v3728
      %v3730 = vrot.slane %v3603, 1
      %v3731 = vsel %vm2480, %v3728, %v3730
      %v3764 = vadd.f32 %v3654, %v3656
      %v3765 = vadd.f32 %v3764, %v3659
      %v3766 = vadd.f32 %v3765, %v3661
      %v3767 = vadd.f32 %v3766, %v3664
      %v3768 = vadd.f32 %v3767, %v3666
      %v3769 = vadd.f32 %v3768, %v3669
      %v3770 = vadd.f32 %v3769, %v3671
      %v3771 = vadd.f32 %v3770, %v3674
      %v3772 = vadd.f32 %v3771, %v3676
      %v3773 = vadd.f32 %v3772, %v3679
      %v3774 = vadd.f32 %v3773, %v3681
      %v3775 = vadd.f32 %v3774, %v3684
      %v3776 = vadd.f32 %v3775, %v3686
      %v3777 = vadd.f32 %v3776, %v3689
      %v3778 = vadd.f32 %v3777, %v3691
      %v3779 = vadd.f32 %v3778, %v3694
      %v3780 = vadd.f32 %v3779, %v3696
      %v3781 = vadd.f32 %v3780, %v3699
      %v3782 = vadd.f32 %v3781, %v3701
      %v3783 = vadd.f32 %v3782, %v3704
      %v3784 = vadd.f32 %v3783, %v3706
      %v3785 = vadd.f32 %v3784, %v3709
      %v3786 = vadd.f32 %v3785, %v3711
      %v3787 = vadd.f32 %v3786, %v3714
      %v3788 = vadd.f32 %v3787, %v3716
      %v3789 = vadd.f32 %v3788, %v3719
      %v3790 = vadd.f32 %v3789, %v3721
      %v3791 = vadd.f32 %v3790, %v3724
      %v3792 = vadd.f32 %v3791, %v3726
      %v3793 = vadd.f32 %v3792, %v3729
      %v3794 = vadd.f32 %v3793, %v3731
      %v3795 = vrot.slane %v3794, 4
      %v3796 = vadd.f32 %v3794, %v3795
      %v3797 = vrot.slane %v3796, 2
      %v3798 = vadd.f32 %v3796, %v3797
      %v3799 = vrot.slane %v3798, 1
      %v3800 = vadd.f32 %v3798, %v3799
      %3801 = vst [vmem:[%s211] sm:$0x1] %v3506
      %3802 = vst [vmem:[%s214] sm:$0x1] %v3800
      %p3803 = scmp.lt.s32.totalorder %s16, 1
      %s3804 = scalar_select %p3803, %s16, 1
      %s3805 = smul.addr %s3804, 54
      %s3806 = smul.addr %s3805, 4
      %s3807 = scalar_lea.vmem %s2, %s3806
      %p3808 = scmp.lt.s32.totalorder %s16, 1
      %s3809 = scalar_select %p3808, %s16, 1
      %s3810 = scalar_lea.vmem %s3, %s3809
      %p3811 = scmp.lt.s32.totalorder %s16, 1
      %s3812 = scalar_select %p3811, %s16, 1
      %s3813 = scalar_lea.vmem %s4, %s3812
      // Predicated region
      $region29: #{resblock_pallas.3} parent=27 // pred_check
        %p3814 = pneg %p81
      $region30: #{resblock_pallas.3} parent=27 // pred_check_branch
        %3816 = sbr.rel (%p3814) target = $region32
      $region31: #{resblock_pallas.3} parent=27 // pred_region
        _
      $region32: #{resblock_pallas.3} parent=27 // pred_fallthru
        _
      // Predicated region
      $region33: #{resblock_pallas.3} parent=27 // pred_check
        %p3817 = pneg %p107
      $region34: #{resblock_pallas.3} parent=27 // pred_check_branch
        %3819 = sbr.rel (%p3817) target = $region36
      $region35: #{resblock_pallas.3} parent=27 // pred_region
        _
      $region36: #{resblock_pallas.3} parent=27 // pred_fallthru
        _
      // Predicated region
      $region37: #{resblock_pallas.3} parent=27 // pred_check
        %p3820 = pneg %p133
      $region38: #{resblock_pallas.3} parent=27 // pred_check_branch
        %3822 = sbr.rel (%p3820) target = $region40
      $region39: #{resblock_pallas.3} parent=27 // pred_region
        _
      $region40: #{resblock_pallas.3} parent=27 // pred_fallthru
        _
    $region28: #{resblock_pallas.3} parent=5 // pred_fallthru
      _
    %p3823 = scmp.le.s32.totalorder 2, %s11
    // Predicated region
    $region41: #{resblock_pallas.3} parent=5 // pred_check
      %p3824 = pneg %p3823
    $region42: #{resblock_pallas.3} parent=5 // pred_check_branch
      %3826 = sbr.rel (%p3824) target = $region44
    $region43: #{resblock_pallas.3} parent=5 // pred_region
      %s3827 = ssub.s32 %s11, 2
      // Predicated region
      $region45: #{resblock_pallas.3} parent=43 // pred_check
        %p3828 = pneg %p87
      $region46: #{resblock_pallas.3} parent=43 // pred_check_branch
        %3830 = sbr.rel (%p3828) target = $region48
      $region47: #{resblock_pallas.3} parent=43 // pred_region
        %p3831 = scmp.lt.s32.totalorder %s17, 1
        %s3832 = scalar_select %p3831, %s17, 1
        %s3833 = smul.addr %s3832, 54
        %s3834 = smul.addr %s3833, 4
        %s3835 = scalar_lea.vmem %s2, %s3834
      $region48: #{resblock_pallas.3} parent=43 // pred_fallthru
        _
      // Predicated region
      $region49: #{resblock_pallas.3} parent=43 // pred_check
        %p3836 = pneg %p113
      $region50: #{resblock_pallas.3} parent=43 // pred_check_branch
        %3838 = sbr.rel (%p3836) target = $region52
      $region51: #{resblock_pallas.3} parent=43 // pred_region
        %p3839 = scmp.lt.s32.totalorder %s17, 1
        %s3840 = scalar_select %p3839, %s17, 1
        %s3841 = scalar_lea.vmem %s3, %s3840
      $region52: #{resblock_pallas.3} parent=43 // pred_fallthru
        _
      // Predicated region
      $region53: #{resblock_pallas.3} parent=43 // pred_check
        %p3842 = pneg %p139
      $region54: #{resblock_pallas.3} parent=43 // pred_check_branch
        %3844 = sbr.rel (%p3842) target = $region56
      $region55: #{resblock_pallas.3} parent=43 // pred_region
        %p3845 = scmp.lt.s32.totalorder %s17, 1
        %s3846 = scalar_select %p3845, %s17, 1
        %s3847 = scalar_lea.vmem %s4, %s3846
      $region56: #{resblock_pallas.3} parent=43 // pred_fallthru
        _
    $region44: #{resblock_pallas.3} parent=5 // pred_fallthru
      _
  $region6: #{resblock_pallas.3} parent=0 // loop_footer
    %s15 = sadd.s32 1, %s11
  $region7: #{resblock_pallas.3} parent=0 // loop_footer_branch
    %10 = sbr.rel target = $region3
  $region8: #{resblock_pallas.3} parent=0 // loop_exit
    _

</llo_original>
